<compile_context>
chip_gen: v7x
topology: tpu7x:2x2x1
jax: 0.10.0
libtpu: 0.0.40
codegen_flags: <defaults>
</compile_context>

<pallas_src>
import functools

import jax
import jax.numpy as jnp
from jax import lax
from jax.experimental import pallas as pl
from jax.experimental.pallas import tpu as pltpu

LN_EPS_BLOCK = 1e-6   # nn.LayerNorm(dim, eps=1e-6) inside Block
LN_EPS_PE = 1e-5      # PatchExpand norm uses the default eps
BN_EPS = 1e-5         # nn.BatchNorm2d default eps
LANES = 128
_MM_DTYPE = jnp.bfloat16   # MXU operand dtype (accumulation stays f32)


def _round_up(x, m):
    return (x + m - 1) // m * m


def _mm(x):
    # mirror the kernel's MXU input precision (used by kernels and reference)
    return x.astype(_MM_DTYPE)


def _compiler_params(*arrays, parallel_dims=None):
    # explicit scoped-VMEM budget (v5e default is only 16 MiB) with headroom
    total = sum(int(a.size) * a.dtype.itemsize for a in arrays)
    limit = int(min(max(2 * total + (8 << 20), 32 << 20), 48 << 20))
    kwargs = dict(vmem_limit_bytes=limit)
    if parallel_dims is not None:
        kwargs["dimension_semantics"] = parallel_dims
    return pltpu.CompilerParams(**kwargs)


# ---------------------------------------------------------------------------
# helpers usable inside kernels
# ---------------------------------------------------------------------------
def _gelu(x):
    # tanh-approximate GELU: the tanh goes to the EUP slot (review item).
    # Deviation from nn.GELU() exact-erf is <~3e-4 at these activation scales.
    c = 0.7978845608028654  # sqrt(2/pi)
    return 0.5 * x * (1.0 + jnp.tanh(c * (x + 0.044715 * x * x * x)))


def _layer_norm(x, gamma, beta, eps):
    # single pass (f32): var = E[x^2] - mean^2; inputs here are unit-scale so
    # cancellation is not a concern at f32 (two-pass recommended if that changes)
    mean = jnp.mean(x, axis=-1, keepdims=True)
    var = jnp.mean(x * x, axis=-1, keepdims=True) - mean * mean
    return (x - mean) * lax.rsqrt(var + eps) * gamma + beta


# ---------------------------------------------------------------------------
# PatchExpand: expand Linear + grouped LayerNorm (spatial shuffle in wrapper)
# ---------------------------------------------------------------------------
def _patch_expand_kernel(x_ref, w_ref, g_ref, gt_ref, gamma_ref, beta_ref,
                         o_ref, *, group_size):
    # x_ref: (1, hw, C) bf16 tokens of one image; w_ref: (C, 2C) bf16
    # g_ref: (2C, 4) group one-hot; gt_ref: (4, 2C); gamma/beta: (1, 2C)
    x = x_ref[0]
    y = jnp.dot(x.astype(_MM_DTYPE), w_ref[...],
                preferred_element_type=jnp.float32)                 # (hw, 2C)
    # per-row, per-group LayerNorm stats via group-indicator matmuls (f32)
    g = g_ref[...]
    inv_n = 1.0 / group_size
    mean = jnp.dot(y, g, preferred_element_type=jnp.float32) * inv_n     # (hw, 4)
    ex2 = jnp.dot(y * y, g, preferred_element_type=jnp.float32) * inv_n
    inv_std = lax.rsqrt(ex2 - mean * mean + LN_EPS_PE)
    mean_b = jnp.dot(mean, gt_ref[...], preferred_element_type=jnp.float32)
    inv_b = jnp.dot(inv_std, gt_ref[...], preferred_element_type=jnp.float32)
    o_ref[0] = (y - mean_b) * inv_b * gamma_ref[...] + beta_ref[...]


def patch_expand(x_nchw, pep):
    B, C, h, w = x_nchw.shape
    gs = C // 2
    hw = h * w
    tokens = jnp.transpose(x_nchw.reshape(B, C, hw), (0, 2, 1)).astype(_MM_DTYPE)
    args = (tokens, pep['w_t'], pep['g_onehot'], pep['g_onehot_t'],
            pep['gamma_t'], pep['beta_t'])

    def wspec(a):
        return pl.BlockSpec(a.shape, lambda b, _nd=a.ndim: (0,) * _nd)

    in_specs = [pl.BlockSpec((1, hw, C), lambda b: (b, 0, 0))]
    in_specs += [wspec(a) for a in args[1:]]

    y = pl.pallas_call(
        functools.partial(_patch_expand_kernel, group_size=float(gs)),
        out_shape=jax.ShapeDtypeStruct((B, hw, 2 * C), jnp.float32),
        grid=(B,),
        in_specs=in_specs,
        out_specs=pl.BlockSpec((1, hw, 2 * C), lambda b: (b, 0, 0)),
        compiler_params=_compiler_params(*args, parallel_dims=("parallel",)),
    )(*args)

    # rearrange 'b h w (p1 p2 c) -> b (h p1) (w p2) c'  (pure layout glue)
    y = y.reshape(B, h, w, 2, 2, gs).transpose(0, 1, 3, 2, 4, 5)
    return y.reshape(B, 2 * h, 2 * w, gs)                            # NHWC


# ---------------------------------------------------------------------------
# Transformer Block (up=None): fused LN + attention + residual + LN + MLP
# ---------------------------------------------------------------------------
def _block_kernel(x_ref, ln1_g, ln1_b, wqkv_ref, bqkv_ref, wproj_ref, bproj_ref,
                  ln2_g, ln2_b, wfc1_ref, bfc1_ref, wfc2_ref, bfc2_ref,
                  o_ref, qkv_ref, *, n_heads):
    _, N, C = x_ref.shape
    hd = C // n_heads
    scale = hd ** -0.5
    x = x_ref[0]                                                     # (N, C)

    # ---- attention branch ----
    xn = _layer_norm(x, ln1_g[...], ln1_b[...], LN_EPS_BLOCK)
    qkv_ref[...] = (jnp.dot(xn.astype(_MM_DTYPE), wqkv_ref[...],
                            preferred_element_type=jnp.float32)
                    + bqkv_ref[...])                                 # (N, 3C)
    # batch the heads: (nh, N, hd) operands -> batched MXU matmuls, no concat
    q = jnp.stack([qkv_ref[:, h * hd:(h + 1) * hd] * scale
                   for h in range(n_heads)], axis=0)
    k = jnp.stack([qkv_ref[:, C + h * hd:C + (h + 1) * hd]
                   for h in range(n_heads)], axis=0)
    v = jnp.stack([qkv_ref[:, 2 * C + h * hd:2 * C + (h + 1) * hd]
                   for h in range(n_heads)], axis=0)
    s = jnp.einsum('hnd,hmd->hnm', q.astype(_MM_DTYPE), k.astype(_MM_DTYPE),
                   preferred_element_type=jnp.float32)               # (nh, N, N)
    s = s - jnp.max(s, axis=-1, keepdims=True)
    e = jnp.exp(s)
    p = e * pl.reciprocal(jnp.sum(e, axis=-1, keepdims=True), approx=True)
    wa = jnp.einsum('hnm,hmd->hnd', p.astype(_MM_DTYPE), v.astype(_MM_DTYPE),
                    preferred_element_type=jnp.float32)              # (nh, N, hd)
    # output projection folded into per-head accumulating matmuls (no concat)
    att = jnp.dot(wa[0].astype(_MM_DTYPE), wproj_ref[0],
                  preferred_element_type=jnp.float32)
    for h in range(1, n_heads):
        att = att + jnp.dot(wa[h].astype(_MM_DTYPE), wproj_ref[h],
                            preferred_element_type=jnp.float32)
    x = x + att + bproj_ref[...]

    # ---- MLP branch ----
    xn2 = _layer_norm(x, ln2_g[...], ln2_b[...], LN_EPS_BLOCK)
    h1 = jnp.dot(xn2.astype(_MM_DTYPE), wfc1_ref[...],
                 preferred_element_type=jnp.float32) + bfc1_ref[...]
    h1 = _gelu(h1)
    x = x + jnp.dot(h1.astype(_MM_DTYPE), wfc2_ref[...],
                    preferred_element_type=jnp.float32) + bfc2_ref[...]

    o_ref[0] = x


def transformer_block(x_tokens, bp, n_heads):
    B, N, C = x_tokens.shape
    args = (x_tokens,
            bp['ln1_g'], bp['ln1_b'], bp['qkv_w'], bp['qkv_b'],
            bp['proj_w'], bp['proj_b'], bp['ln2_g'], bp['ln2_b'],
            bp['fc1_w'], bp['fc1_b'], bp['fc2_w'], bp['fc2_b'])

    def wspec(a):
        return pl.BlockSpec(a.shape, lambda b, _nd=a.ndim: (0,) * _nd)

    in_specs = [pl.BlockSpec((1, N, C), lambda b: (b, 0, 0))]
    in_specs += [wspec(a) for a in args[1:]]

    return pl.pallas_call(
        functools.partial(_block_kernel, n_heads=n_heads),
        out_shape=jax.ShapeDtypeStruct((B, N, C), jnp.float32),
        grid=(B,),
        in_specs=in_specs,
        out_specs=pl.BlockSpec((1, N, C), lambda b: (b, 0, 0)),
        scratch_shapes=[pltpu.VMEM((N, 3 * C), jnp.float32)],
        compiler_params=pltpu.CompilerParams(dimension_semantics=("parallel",)),
    )(*args)


# ---------------------------------------------------------------------------
# DoubleConv: (3x3 conv -> train-mode BatchNorm -> ReLU) x 2, no conv bias
# ---------------------------------------------------------------------------
def _double_conv_kernel(x_ref, w1_ref, g1_ref, b1_ref, w2_ref, g2_ref, b2_ref,
                        o_ref):
    # x_ref:  (B, H+2, W+2, Cpi) bf16, spatially pre-padded, channel-padded NHWC
    # w1_ref: (9*Cpi, Cpm) bf16 / w2_ref: (9*Cpm, Cpo) bf16  (HWIO taps along K)
    # g*/b*:  (1, Cp) f32 BN affine (padded channels: gamma=1, beta=0)
    # o_ref:  (B*H*W, Cpo) f32 lane-dense 2-D output
    B, Hp, Wp, _ = x_ref.shape
    H, W = Hp - 2, Wp - 2
    M = B * H * W

    def conv3x3(src, w):
        # grouped-tap im2col: 3 accumulating MXU matmuls with K = 3*Cin
        # (no (M, 9*Cin) mega-buffer; K stays MXU-friendly on all generations)
        cin = src.shape[-1]
        acc = None
        for dy in range(3):
            taps = jnp.concatenate(
                [src[:, dy:dy + H, dx:dx + W, :].reshape(M, cin)
                 for dx in range(3)], axis=-1)                       # (M, 3*Cin)
            part = jnp.dot(taps.astype(_MM_DTYPE),
                           w[dy * 3 * cin:(dy + 1) * 3 * cin, :],
                           preferred_element_type=jnp.float32)
            acc = part if acc is None else acc + part
        return acc

    def bn_relu(acc, gamma, beta):
        # train-mode BatchNorm: batch statistics over all B*H*W positions (f32)
        inv_m = 1.0 / M
        mean = jnp.sum(acc, axis=0, keepdims=True) * inv_m
        ex2 = jnp.sum(acc * acc, axis=0, keepdims=True) * inv_m
        scale = gamma * lax.rsqrt(ex2 - mean * mean + BN_EPS)
        shift = beta - mean * scale
        return jnp.maximum(acc * scale + shift, 0.0)

    # ---- conv1 + BN1 + ReLU ----
    h1 = bn_relu(conv3x3(x_ref, w1_ref[...]), g1_ref[...], b1_ref[...])
    cm = h1.shape[-1]
    h1 = h1.astype(_MM_DTYPE).reshape(B, H, W, cm)

    # ---- 1-px zero halo built with full-width concats (no masked halo stores)
    zc = jnp.zeros((B, H, 1, cm), _MM_DTYPE)
    zr = jnp.zeros((B, 1, Wp, cm), _MM_DTYPE)
    h1p = jnp.concatenate([zr, jnp.concatenate([zc, h1, zc], axis=2), zr],
                          axis=1)                                    # (B,Hp,Wp,cm)

    # ---- conv2 + BN2 + ReLU ----
    o_ref[...] = bn_relu(conv3x3(h1p, w2_ref[...]), g2_ref[...], b2_ref[...])


def double_conv_nhwc(x_nhwc, dcp, c_out):
    B, H, W, Cin = x_nhwc.shape
    w1p, w2p = dcp['w1p'], dcp['w2p']
    Cpi = w1p.shape[0] // 9
    Cpo = w2p.shape[1]

    # spatial pad 1, channel pad to a lane-dense multiple of 128, cast to bf16
    x = jnp.pad(x_nhwc, ((0, 0), (1, 1), (1, 1), (0, Cpi - Cin)))
    x = x.astype(_MM_DTYPE)

    args = (x, w1p, dcp['g1p'], dcp['b1p'], w2p, dcp['g2p'], dcp['b2p'])
    vmem = pl.BlockSpec(memory_space=pltpu.MemorySpace.VMEM)
    out = pl.pallas_call(
        _double_conv_kernel,
        out_shape=jax.ShapeDtypeStruct((B * H * W, Cpo), jnp.float32),
        in_specs=[vmem] * 7,
        out_specs=vmem,
        compiler_params=_compiler_params(*args),
    )(*args)

    out = out[:, :c_out].reshape(B, H, W, c_out)
    return jnp.transpose(out, (0, 3, 1, 2))                          # NCHW


# ---------------------------------------------------------------------------
# one-time parameter prep (transpose / pad / pack / cast to bf16) -- done once
# outside the jitted forward so it is not re-executed per call
# ---------------------------------------------------------------------------
def prepare_params(params, n_heads):
    C = params['pe']['w'].shape[1]
    gs = C // 2
    hd = C // n_heads

    def prep_block(p):
        hidden = p['fc1_w'].shape[0]
        return dict(
            ln1_g=p['ln1_g'].reshape(1, C), ln1_b=p['ln1_b'].reshape(1, C),
            qkv_w=_mm(jnp.transpose(p['qkv_w'])),                    # (C, 3C)
            qkv_b=p['qkv_b'].reshape(1, 3 * C),
            proj_w=_mm(jnp.transpose(p['proj_w']).reshape(n_heads, hd, C)),
            proj_b=p['proj_b'].reshape(1, C),
            ln2_g=p['ln2_g'].reshape(1, C), ln2_b=p['ln2_b'].reshape(1, C),
            fc1_w=_mm(jnp.transpose(p['fc1_w'])),                    # (C, hid)
            fc1_b=p['fc1_b'].reshape(1, hidden),
            fc2_w=_mm(jnp.transpose(p['fc2_w'])),                    # (hid, C)
            fc2_b=p['fc2_b'].reshape(1, C),
        )

    grp = jnp.arange(2 * C) // gs
    g_onehot = (grp[:, None] == jnp.arange(4)[None, :]).astype(jnp.float32)
    pe = dict(
        w_t=_mm(jnp.transpose(params['pe']['w'])),                   # (C, 2C)
        g_onehot=g_onehot, g_onehot_t=jnp.transpose(g_onehot),
        gamma_t=jnp.tile(params['pe']['g'], 4).reshape(1, 2 * C),
        beta_t=jnp.tile(params['pe']['b'], 4).reshape(1, 2 * C),
    )

    dc = params['dc']
    Cin, Cmid, Cout = dc['w1'].shape[1], dc['w1'].shape[0], dc['w2'].shape[0]
    Cpi, Cpm, Cpo = (_round_up(c, LANES) for c in (Cin, Cmid, Cout))

    def prep_w(w_oihw, cin_p, cout_p):
        cout, cin = w_oihw.shape[0], w_oihw.shape[1]
        w = jnp.transpose(w_oihw, (2, 3, 1, 0))                      # HWIO
        w = jnp.pad(w, ((0, 0), (0, 0), (0, cin_p - cin), (0, cout_p - cout)))
        return _mm(w.reshape(9 * cin_p, cout_p))

    def prep_affine(g, b, c_p):
        c = g.shape[0]
        gp = jnp.pad(g, (0, c_p - c), constant_values=1.0).reshape(1, c_p)
        bp = jnp.pad(b, (0, c_p - c)).reshape(1, c_p)
        return gp, bp

    g1p, b1p = prep_affine(dc['g1'], dc['b1'], Cpm)
    g2p, b2p = prep_affine(dc['g2'], dc['b2'], Cpo)
    dcp = dict(w1p=prep_w(dc['w1'], Cpi, Cpm), w2p=prep_w(dc['w2'], Cpm, Cpo),
               g1p=g1p, b1p=b1p, g2p=g2p, b2p=b2p)

    return dict(pe=pe, blk1=prep_block(params['blk1']),
                blk2=prep_block(params['blk2']), dc=dcp)


# ---------------------------------------------------------------------------
# Up.forward
# ---------------------------------------------------------------------------
def up_forward(prep, x2, x1, n_heads):
    B, C, h, w = x2.shape
    gs = C // 2
    H, W = 2 * h, 2 * w
    N = H * W

    x2_nhwc = patch_expand(x2, prep['pe'])                           # (B,H,W,gs)
    x2_tok = x2_nhwc.reshape(B, N, gs)

    # torch.cat((x1, x2), dim=1) in NCHW == channel concat in token space
    x1_tok = jnp.transpose(x1.reshape(B, gs, N), (0, 2, 1))
    tok = jnp.concatenate([x1_tok, x2_tok], axis=-1)                 # (B, N, C)

    tok = transformer_block(tok, prep['blk1'], n_heads)
    tok = transformer_block(tok, prep['blk2'], n_heads)

    # the NCHW tensor exists only because the module returns it; DoubleConv is
    # fed NHWC directly from the token layout (free reshape, no relayout trip)
    attention = jnp.transpose(tok, (0, 2, 1)).reshape(B, C, H, W)
    conv = double_conv_nhwc(tok.reshape(B, H, W, C), prep['dc'], gs)
    return attention, conv


# ---------------------------------------------------------------------------
# pure-JAX reference: identical math to the PyTorch forward; matmul inputs are
# cast to the same bf16 MXU precision the kernels use so the parity stays tight
# ---------------------------------------------------------------------------
def _layer_norm_ref(x, g, b, eps):
    mu = jnp.mean(x, axis=-1, keepdims=True)
    var = jnp.mean((x - mu) ** 2, axis=-1, keepdims=True)
    return (x - mu) / jnp.sqrt(var + eps) * g + b


def _patch_expand_ref(x, w_e, g, b):
    B, C, h, w = x.shape
    t = jnp.transpose(x.reshape(B, C, h * w), (0, 2, 1))
    t = jnp.einsum('bnc,dc->bnd', _mm(t), _mm(w_e),
                   preferred_element_type=jnp.float32)               # (B,hw,2C)
    C2 = 2 * C
    t = t.reshape(B, h, w, 2, 2, C2 // 4).transpose(0, 1, 3, 2, 4, 5)
    t = t.reshape(B, 4 * h * w, C2 // 4)
    t = _layer_norm_ref(t, g, b, LN_EPS_PE)
    return jnp.transpose(t, (0, 2, 1)).reshape(B, C2 // 4, 2 * h, 2 * w)


def _block_ref(x_nchw, p, n_heads):
    B, C, H, W = x_nchw.shape
    N = H * W
    hd = C // n_heads
    scale = hd ** -0.5
    x = jnp.transpose(x_nchw.reshape(B, C, N), (0, 2, 1))

    xn = _layer_norm_ref(x, p['ln1_g'], p['ln1_b'], LN_EPS_BLOCK)
    qkv = jnp.einsum('bnc,dc->bnd', _mm(xn), _mm(p['qkv_w']),
                     preferred_element_type=jnp.float32) + p['qkv_b']
    qkv = qkv.reshape(B, N, 3, n_heads, hd).transpose(2, 0, 3, 1, 4)
    q, k, v = qkv[0] * scale, qkv[1], qkv[2]
    dp = jnp.einsum('bhnd,bhmd->bhnm', _mm(q), _mm(k),
                    preferred_element_type=jnp.float32)
    attn = jax.nn.softmax(dp, axis=-1)
    wa = jnp.einsum('bhnm,bhmd->bhnd', _mm(attn), _mm(v),
                    preferred_element_type=jnp.float32)
    wa = wa.transpose(0, 2, 1, 3).reshape(B, N, C)
    x = x + jnp.einsum('bnc,dc->bnd', _mm(wa), _mm(p['proj_w']),
                       preferred_element_type=jnp.float32) + p['proj_b']

    xn2 = _layer_norm_ref(x, p['ln2_g'], p['ln2_b'], LN_EPS_BLOCK)
    h1 = jnp.einsum('bnc,dc->bnd', _mm(xn2), _mm(p['fc1_w']),
                    preferred_element_type=jnp.float32) + p['fc1_b']
    h1 = jax.nn.gelu(h1, approximate=False)
    x = x + jnp.einsum('bnd,cd->bnc', _mm(h1), _mm(p['fc2_w']),
                       preferred_element_type=jnp.float32) + p['fc2_b']
    return jnp.transpose(x, (0, 2, 1)).reshape(B, C, H, W)


def _double_conv_ref(x, w1, g1, b1, w2, g2, b2):
    def conv_bn_relu(x, w, g, b):
        y = lax.conv_general_dilated(_mm(x), _mm(w), (1, 1), ((1, 1), (1, 1)),
                                     dimension_numbers=('NCHW', 'OIHW', 'NCHW'),
                                     preferred_element_type=jnp.float32)
        mean = jnp.mean(y, axis=(0, 2, 3), keepdims=True)
        var = jnp.mean((y - mean) ** 2, axis=(0, 2, 3), keepdims=True)
        y = (y - mean) / jnp.sqrt(var + BN_EPS)
        y = y * g.reshape(1, -1, 1, 1) + b.reshape(1, -1, 1, 1)
        return jnp.maximum(y, 0.0)

    return conv_bn_relu(conv_bn_relu(x, w1, g1, b1), w2, g2, b2)


def up_reference(params, x2, x1, n_heads):
    x2u = _patch_expand_ref(x2, params['pe']['w'], params['pe']['g'],
                            params['pe']['b'])
    c = jnp.concatenate([x1, x2u], axis=1)
    a = _block_ref(c, params['blk1'], n_heads)
    a = _block_ref(a, params['blk2'], n_heads)
    dc = params['dc']
    conv = _double_conv_ref(a, dc['w1'], dc['g1'], dc['b1'],
                            dc['w2'], dc['g2'], dc['b2'])
    return a, conv


if __name__ == "__main__":
    embed_dim = 128
    n_heads = 4
    mlp_ratio = 4.0
    B, h, w = 2, 4, 4
    C = embed_dim
    gs = C // 2
    hidden = int(embed_dim * mlp_ratio)

    key = jax.random.PRNGKey(0)
    keys = iter(jax.random.split(key, 40))

    def nrm(shape, s=0.02):
        return s * jax.random.normal(next(keys), shape, jnp.float32)

    def block_params():
        return dict(
            ln1_g=1.0 + nrm((C,), 0.1), ln1_b=nrm((C,), 0.1),
            qkv_w=nrm((3 * C, C)), qkv_b=nrm((3 * C,), 0.1),
            proj_w=nrm((C, C)), proj_b=nrm((C,), 0.1),
            ln2_g=1.0 + nrm((C,), 0.1), ln2_b=nrm((C,), 0.1),
            fc1_w=nrm((hidden, C)), fc1_b=nrm((hidden,), 0.1),
            fc2_w=nrm((C, hidden)), fc2_b=nrm((C,), 0.1),
        )

    params = dict(
        pe=dict(w=nrm((2 * C, C)), g=1.0 + nrm((gs,), 0.1), b=nrm((gs,), 0.1)),
        blk1=block_params(),
        blk2=block_params(),
        dc=dict(
            w1=nrm((gs, C, 3, 3), 0.05), g1=1.0 + nrm((gs,), 0.1),
            b1=nrm((gs,), 0.1),
            w2=nrm((gs, gs, 3, 3), 0.05), g2=1.0 + nrm((gs,), 0.1),
            b2=nrm((gs,), 0.1),
        ),
    )

    x2 = jax.random.normal(next(keys), (B, C, h, w), jnp.float32)
    x1 = jax.random.normal(next(keys), (B, gs, 2 * h, 2 * w), jnp.float32)

    # one-time weight prep (transpose / pad / bf16 cast) outside the jitted fwd
    prep = jax.tree_util.tree_map(lambda a: a, prepare_params(params, n_heads))

    fwd = jax.jit(up_forward, static_argnums=(3,))
    ref = jax.jit(up_reference, static_argnums=(3,))

    attn_out, conv_out = jax.block_until_ready(fwd(prep, x2, x1, n_heads))
    attn_ref, conv_ref = jax.block_until_ready(ref(params, x2, x1, n_heads))

    assert attn_out.shape == (B, C, 2 * h, 2 * w)
    assert conv_out.shape == (B, gs, 2 * h, 2 * w)
    # expected deviation (~1e-3) comes from the approx-reciprocal softmax,
    # tanh-GELU and matmul accumulation order; assert with margin.
    err_a = float(jnp.max(jnp.abs(attn_out - attn_ref)))
    err_c = float(jnp.max(jnp.abs(conv_out - conv_ref)))
    assert err_a < 1e-2 and err_c < 1e-2, (err_a, err_c)
    print("KERNEL_OK")
</pallas_src>

<mosaic_0001>
module attributes {stable_mosaic.version = 11 : i64} {
  func.func @_patch_expand_kernel(%arg0: i32, %arg1: memref<1x16x128xbf16, #tpu.memory_space<vmem>>, %arg2: memref<128x256xbf16, #tpu.memory_space<vmem>>, %arg3: memref<256x4xf32, #tpu.memory_space<vmem>>, %arg4: memref<4x256xf32, #tpu.memory_space<vmem>>, %arg5: memref<1x256xf32, #tpu.memory_space<vmem>>, %arg6: memref<1x256xf32, #tpu.memory_space<vmem>>, %arg7: memref<1x16x256xf32, #tpu.memory_space<vmem>>) attributes {dimension_semantics = [#tpu.dimension_semantics<parallel>], iteration_bounds = array<i64: 2>, scalar_prefetch = 0 : i64, scratch_operands = 0 : i64, tpu.core_type = #tpu.core_type<tc>, window_params = [{transform_indices = @transform_0, window_bounds = array<i64: 1, 16, 128>}, {pipeline_mode = #tpu.pipeline_mode<synchronous>, transform_indices = @transform_1, window_bounds = array<i64: 128, 256>}, {pipeline_mode = #tpu.pipeline_mode<synchronous>, transform_indices = @transform_2, window_bounds = array<i64: 256, 4>}, {pipeline_mode = #tpu.pipeline_mode<synchronous>, transform_indices = @transform_3, window_bounds = array<i64: 4, 256>}, {pipeline_mode = #tpu.pipeline_mode<synchronous>, transform_indices = @transform_4, window_bounds = array<i64: 1, 256>}, {pipeline_mode = #tpu.pipeline_mode<synchronous>, transform_indices = @transform_5, window_bounds = array<i64: 1, 256>}, {transform_indices = @transform_6, window_bounds = array<i64: 1, 16, 256>}]} {
    %c0 = arith.constant 0 : index
    %c0_0 = arith.constant 0 : index
    %c0_1 = arith.constant 0 : index
    %0 = vector.load %arg1[%c0, %c0_0, %c0_1] : memref<1x16x128xbf16, #tpu.memory_space<vmem>>, vector<1x16x128xbf16>
    %1 = vector.shape_cast %0 : vector<1x16x128xbf16> to vector<16x128xbf16>
    %c0_2 = arith.constant 0 : index
    %c0_3 = arith.constant 0 : index
    %2 = vector.load %arg2[%c0_2, %c0_3] : memref<128x256xbf16, #tpu.memory_space<vmem>>, vector<128x256xbf16>
    %cst = arith.constant dense<0.000000e+00> : vector<16x256xf32>
    %3 = tpu.matmul %1, %2, %cst {dimension_numbers = #tpu.dot_dimension_numbers<[1], [0], [0], [1], [0, 0, 1, 1], [], []>} : vector<16x128xbf16>, vector<128x256xbf16>, vector<16x256xf32> -> vector<16x256xf32>
    %c0_4 = arith.constant 0 : index
    %c0_5 = arith.constant 0 : index
    %4 = vector.load %arg3[%c0_4, %c0_5] : memref<256x4xf32, #tpu.memory_space<vmem>>, vector<256x4xf32>
    %cst_6 = arith.constant dense<0.000000e+00> : vector<16x4xf32>
    %5 = tpu.matmul %3, %4, %cst_6 {dimension_numbers = #tpu.dot_dimension_numbers<[1], [0], [0], [1], [0, 0, 1, 1], [], []>} : vector<16x256xf32>, vector<256x4xf32>, vector<16x4xf32> -> vector<16x4xf32>
    %cst_7 = arith.constant 1.562500e-02 : f32
    %6 = vector.broadcast %cst_7 : f32 to vector<16x4xf32>
    %7 = arith.mulf %5, %6 : vector<16x4xf32>
    %8 = arith.mulf %3, %3 : vector<16x256xf32>
    %cst_8 = arith.constant dense<0.000000e+00> : vector<16x4xf32>
    %9 = tpu.matmul %8, %4, %cst_8 {dimension_numbers = #tpu.dot_dimension_numbers<[1], [0], [0], [1], [0, 0, 1, 1], [], []>} : vector<16x256xf32>, vector<256x4xf32>, vector<16x4xf32> -> vector<16x4xf32>
    %cst_9 = arith.constant 1.562500e-02 : f32
    %10 = vector.broadcast %cst_9 : f32 to vector<16x4xf32>
    %11 = arith.mulf %9, %10 : vector<16x4xf32>
    %12 = arith.mulf %7, %7 : vector<16x4xf32>
    %13 = arith.subf %11, %12 : vector<16x4xf32>
    %cst_10 = arith.constant 9.99999974E-6 : f32
    %14 = vector.broadcast %cst_10 : f32 to vector<16x4xf32>
    %15 = arith.addf %13, %14 : vector<16x4xf32>
    %16 = math.rsqrt %15 : vector<16x4xf32>
    %c0_11 = arith.constant 0 : index
    %c0_12 = arith.constant 0 : index
    %17 = vector.load %arg4[%c0_11, %c0_12] : memref<4x256xf32, #tpu.memory_space<vmem>>, vector<4x256xf32>
    %cst_13 = arith.constant dense<0.000000e+00> : vector<16x256xf32>
    %18 = tpu.matmul %7, %17, %cst_13 {dimension_numbers = #tpu.dot_dimension_numbers<[1], [0], [0], [1], [0, 0, 1, 1], [], []>} : vector<16x4xf32>, vector<4x256xf32>, vector<16x256xf32> -> vector<16x256xf32>
    %c0_14 = arith.constant 0 : index
    %c0_15 = arith.constant 0 : index
    %19 = vector.load %arg4[%c0_14, %c0_15] : memref<4x256xf32, #tpu.memory_space<vmem>>, vector<4x256xf32>
    %cst_16 = arith.constant dense<0.000000e+00> : vector<16x256xf32>
    %20 = tpu.matmul %16, %19, %cst_16 {dimension_numbers = #tpu.dot_dimension_numbers<[1], [0], [0], [1], [0, 0, 1, 1], [], []>} : vector<16x4xf32>, vector<4x256xf32>, vector<16x256xf32> -> vector<16x256xf32>
    %21 = arith.subf %3, %18 : vector<16x256xf32>
    %22 = arith.mulf %21, %20 : vector<16x256xf32>
    %c0_17 = arith.constant 0 : index
    %c0_18 = arith.constant 0 : index
    %23 = vector.load %arg5[%c0_17, %c0_18] : memref<1x256xf32, #tpu.memory_space<vmem>>, vector<1x256xf32>
    %24 = vector.broadcast %23 : vector<1x256xf32> to vector<16x256xf32>
    %25 = arith.mulf %22, %24 : vector<16x256xf32>
    %c0_19 = arith.constant 0 : index
    %c0_20 = arith.constant 0 : index
    %26 = vector.load %arg6[%c0_19, %c0_20] : memref<1x256xf32, #tpu.memory_space<vmem>>, vector<1x256xf32>
    %27 = vector.broadcast %26 : vector<1x256xf32> to vector<16x256xf32>
    %28 = arith.addf %25, %27 : vector<16x256xf32>
    %c0_21 = arith.constant 0 : index
    %c0_22 = arith.constant 0 : index
    %c0_23 = arith.constant 0 : index
    %29 = vector.load %arg7[%c0_21, %c0_22, %c0_23] : memref<1x16x256xf32, #tpu.memory_space<vmem>>, vector<1x16x256xf32>
    %30 = vector.shape_cast %29 : vector<1x16x256xf32> to vector<16x256xf32>
    %31 = vector.shape_cast %28 : vector<16x256xf32> to vector<1x16x256xf32>
    tpu.vector_store %arg7[%c0_21, %c0_22, %c0_23], %31 {strides = array<i32>} : memref<1x16x256xf32, #tpu.memory_space<vmem>>, vector<1x16x256xf32>,
    return
  }
  func.func @transform_0(%arg0: i32) -> (i32, i32, i32) {
    %c0_i32 = arith.constant 0 : i32
    %c0_i32_0 = arith.constant 0 : i32
    %c0_i32_1 = arith.constant 0 : i32
    return %arg0, %c0_i32, %c0_i32_0 : i32, i32, i32
  }
  func.func @transform_1(%arg0: i32) -> (i32, i32) {
    %c0_i32 = arith.constant 0 : i32
    %c0_i32_0 = arith.constant 0 : i32
    %c0_i32_1 = arith.constant 0 : i32
    return %c0_i32, %c0_i32_0 : i32, i32
  }
  func.func @transform_2(%arg0: i32) -> (i32, i32) {
    %c0_i32 = arith.constant 0 : i32
    %c0_i32_0 = arith.constant 0 : i32
    %c0_i32_1 = arith.constant 0 : i32
    return %c0_i32, %c0_i32_0 : i32, i32
  }
  func.func @transform_3(%arg0: i32) -> (i32, i32) {
    %c0_i32 = arith.constant 0 : i32
    %c0_i32_0 = arith.constant 0 : i32
    %c0_i32_1 = arith.constant 0 : i32
    return %c0_i32, %c0_i32_0 : i32, i32
  }
  func.func @transform_4(%arg0: i32) -> (i32, i32) {
    %c0_i32 = arith.constant 0 : i32
    %c0_i32_0 = arith.constant 0 : i32
    %c0_i32_1 = arith.constant 0 : i32
    return %c0_i32, %c0_i32_0 : i32, i32
  }
  func.func @transform_5(%arg0: i32) -> (i32, i32) {
    %c0_i32 = arith.constant 0 : i32
    %c0_i32_0 = arith.constant 0 : i32
    %c0_i32_1 = arith.constant 0 : i32
    return %c0_i32, %c0_i32_0 : i32, i32
  }
  func.func @transform_6(%arg0: i32) -> (i32, i32, i32) {
    %c0_i32 = arith.constant 0 : i32
    %c0_i32_0 = arith.constant 0 : i32
    %c0_i32_1 = arith.constant 0 : i32
    return %arg0, %c0_i32, %c0_i32_0 : i32, i32, i32
  }
}

module attributes {stable_mosaic.version = 11 : i64} {
  func.func @_block_kernel(%arg0: i32, %arg1: memref<1x64x128xf32, #tpu.memory_space<vmem>>, %arg2: memref<1x128xf32, #tpu.memory_space<vmem>>, %arg3: memref<1x128xf32, #tpu.memory_space<vmem>>, %arg4: memref<128x384xbf16, #tpu.memory_space<vmem>>, %arg5: memref<1x384xf32, #tpu.memory_space<vmem>>, %arg6: memref<4x32x128xbf16, #tpu.memory_space<vmem>>, %arg7: memref<1x128xf32, #tpu.memory_space<vmem>>, %arg8: memref<1x128xf32, #tpu.memory_space<vmem>>, %arg9: memref<1x128xf32, #tpu.memory_space<vmem>>, %arg10: memref<128x512xbf16, #tpu.memory_space<vmem>>, %arg11: memref<1x512xf32, #tpu.memory_space<vmem>>, %arg12: memref<512x128xbf16, #tpu.memory_space<vmem>>, %arg13: memref<1x128xf32, #tpu.memory_space<vmem>>, %arg14: memref<1x64x128xf32, #tpu.memory_space<vmem>>, %arg15: memref<64x384xf32, #tpu.memory_space<vmem>>) attributes {dimension_semantics = [#tpu.dimension_semantics<parallel>], iteration_bounds = array<i64: 2>, scalar_prefetch = 0 : i64, scratch_operands = 1 : i64, tpu.core_type = #tpu.core_type<tc>, window_params = [{transform_indices = @transform_0, window_bounds = array<i64: 1, 64, 128>}, {pipeline_mode = #tpu.pipeline_mode<synchronous>, transform_indices = @transform_1, window_bounds = array<i64: 1, 128>}, {pipeline_mode = #tpu.pipeline_mode<synchronous>, transform_indices = @transform_2, window_bounds = array<i64: 1, 128>}, {pipeline_mode = #tpu.pipeline_mode<synchronous>, transform_indices = @transform_3, window_bounds = array<i64: 128, 384>}, {pipeline_mode = #tpu.pipeline_mode<synchronous>, transform_indices = @transform_4, window_bounds = array<i64: 1, 384>}, {pipeline_mode = #tpu.pipeline_mode<synchronous>, transform_indices = @transform_5, window_bounds = array<i64: 4, 32, 128>}, {pipeline_mode = #tpu.pipeline_mode<synchronous>, transform_indices = @transform_6, window_bounds = array<i64: 1, 128>}, {pipeline_mode = #tpu.pipeline_mode<synchronous>, transform_indices = @transform_7, window_bounds = array<i64: 1, 128>}, {pipeline_mode = #tpu.pipeline_mode<synchronous>, transform_indices = @transform_8, window_bounds = array<i64: 1, 128>}, {pipeline_mode = #tpu.pipeline_mode<synchronous>, transform_indices = @transform_9, window_bounds = array<i64: 128, 512>}, {pipeline_mode = #tpu.pipeline_mode<synchronous>, transform_indices = @transform_10, window_bounds = array<i64: 1, 512>}, {pipeline_mode = #tpu.pipeline_mode<synchronous>, transform_indices = @transform_11, window_bounds = array<i64: 512, 128>}, {pipeline_mode = #tpu.pipeline_mode<synchronous>, transform_indices = @transform_12, window_bounds = array<i64: 1, 128>}, {transform_indices = @transform_13, window_bounds = array<i64: 1, 64, 128>}]} {
    %c0 = arith.constant 0 : index
    %c0_0 = arith.constant 0 : index
    %c0_1 = arith.constant 0 : index
    %0 = vector.load %arg1[%c0, %c0_0, %c0_1] : memref<1x64x128xf32, #tpu.memory_space<vmem>>, vector<1x64x128xf32>
    %1 = vector.shape_cast %0 : vector<1x64x128xf32> to vector<64x128xf32>
    %c0_2 = arith.constant 0 : index
    %c0_3 = arith.constant 0 : index
    %2 = vector.load %arg2[%c0_2, %c0_3] : memref<1x128xf32, #tpu.memory_space<vmem>>, vector<1x128xf32>
    %c0_4 = arith.constant 0 : index
    %c0_5 = arith.constant 0 : index
    %3 = vector.load %arg3[%c0_4, %c0_5] : memref<1x128xf32, #tpu.memory_space<vmem>>, vector<1x128xf32>
    %cst = arith.constant dense<0.000000e+00> : vector<64xf32>
    %4 = vector.multi_reduction <add>, %1, %cst [1] : vector<64x128xf32> to vector<64xf32>
    %5 = vector.shape_cast %4 : vector<64xf32> to vector<64x1xf32>
    %cst_6 = arith.constant 1.280000e+02 : f32
    %6 = vector.broadcast %cst_6 : f32 to vector<64x1xf32>
    %7 = arith.divf %5, %6 : vector<64x1xf32>
    %8 = arith.mulf %1, %1 : vector<64x128xf32>
    %cst_7 = arith.constant dense<0.000000e+00> : vector<64xf32>
    %9 = vector.multi_reduction <add>, %8, %cst_7 [1] : vector<64x128xf32> to vector<64xf32>
    %10 = vector.shape_cast %9 : vector<64xf32> to vector<64x1xf32>
    %cst_8 = arith.constant 1.280000e+02 : f32
    %11 = vector.broadcast %cst_8 : f32 to vector<64x1xf32>
    %12 = arith.divf %10, %11 : vector<64x1xf32>
    %13 = arith.mulf %7, %7 : vector<64x1xf32>
    %14 = arith.subf %12, %13 : vector<64x1xf32>
    %15 = vector.broadcast %7 : vector<64x1xf32> to vector<64x128xf32>
    %16 = arith.subf %1, %15 : vector<64x128xf32>
    %cst_9 = arith.constant 9.99999997E-7 : f32
    %17 = vector.broadcast %cst_9 : f32 to vector<64x1xf32>
    %18 = arith.addf %14, %17 : vector<64x1xf32>
    %19 = math.rsqrt %18 : vector<64x1xf32>
    %20 = vector.broadcast %19 : vector<64x1xf32> to vector<64x128xf32>
    %21 = arith.mulf %16, %20 : vector<64x128xf32>
    %22 = vector.broadcast %2 : vector<1x128xf32> to vector<64x128xf32>
    %23 = arith.mulf %21, %22 : vector<64x128xf32>
    %24 = vector.broadcast %3 : vector<1x128xf32> to vector<64x128xf32>
    %25 = arith.addf %23, %24 : vector<64x128xf32>
    %26 = arith.truncf %25 : vector<64x128xf32> to vector<64x128xbf16>
    %c0_10 = arith.constant 0 : index
    %c0_11 = arith.constant 0 : index
    %27 = vector.load %arg4[%c0_10, %c0_11] : memref<128x384xbf16, #tpu.memory_space<vmem>>, vector<128x384xbf16>
    %cst_12 = arith.constant dense<0.000000e+00> : vector<64x384xf32>
    %28 = tpu.matmul %26, %27, %cst_12 {dimension_numbers = #tpu.dot_dimension_numbers<[1], [0], [0], [1], [0, 0, 1, 1], [], []>} : vector<64x128xbf16>, vector<128x384xbf16>, vector<64x384xf32> -> vector<64x384xf32>
    %c0_13 = arith.constant 0 : index
    %c0_14 = arith.constant 0 : index
    %29 = vector.load %arg5[%c0_13, %c0_14] : memref<1x384xf32, #tpu.memory_space<vmem>>, vector<1x384xf32>
    %30 = vector.broadcast %29 : vector<1x384xf32> to vector<64x384xf32>
    %31 = arith.addf %28, %30 : vector<64x384xf32>
    %c0_15 = arith.constant 0 : index
    %c0_16 = arith.constant 0 : index
    %32 = vector.load %arg15[%c0_15, %c0_16] : memref<64x384xf32, #tpu.memory_space<vmem>>, vector<64x384xf32>
    tpu.vector_store %arg15[%c0_15, %c0_16], %31 {strides = array<i32>} : memref<64x384xf32, #tpu.memory_space<vmem>>, vector<64x384xf32>,
    %c0_17 = arith.constant 0 : index
    %c0_18 = arith.constant 0 : index
    %33 = vector.load %arg15[%c0_17, %c0_18] : memref<64x384xf32, #tpu.memory_space<vmem>>, vector<64x32xf32>
    %cst_19 = arith.constant 0.176776692 : f32
    %34 = vector.broadcast %cst_19 : f32 to vector<64x32xf32>
    %35 = arith.mulf %33, %34 : vector<64x32xf32>
    %c0_20 = arith.constant 0 : index
    %c32 = arith.constant 32 : index
    %36 = vector.load %arg15[%c0_20, %c32] : memref<64x384xf32, #tpu.memory_space<vmem>>, vector<64x32xf32>
    %cst_21 = arith.constant 0.176776692 : f32
    %37 = vector.broadcast %cst_21 : f32 to vector<64x32xf32>
    %38 = arith.mulf %36, %37 : vector<64x32xf32>
    %c0_22 = arith.constant 0 : index
    %c64 = arith.constant 64 : index
    %39 = vector.load %arg15[%c0_22, %c64] : memref<64x384xf32, #tpu.memory_space<vmem>>, vector<64x32xf32>
    %cst_23 = arith.constant 0.176776692 : f32
    %40 = vector.broadcast %cst_23 : f32 to vector<64x32xf32>
    %41 = arith.mulf %39, %40 : vector<64x32xf32>
    %c0_24 = arith.constant 0 : index
    %c96 = arith.constant 96 : index
    %42 = vector.load %arg15[%c0_24, %c96] : memref<64x384xf32, #tpu.memory_space<vmem>>, vector<64x32xf32>
    %cst_25 = arith.constant 0.176776692 : f32
    %43 = vector.broadcast %cst_25 : f32 to vector<64x32xf32>
    %44 = arith.mulf %42, %43 : vector<64x32xf32>
    %45 = vector.shape_cast %35 : vector<64x32xf32> to vector<1x64x32xf32>
    %46 = vector.shape_cast %38 : vector<64x32xf32> to vector<1x64x32xf32>
    %47 = vector.shape_cast %41 : vector<64x32xf32> to vector<1x64x32xf32>
    %48 = vector.shape_cast %44 : vector<64x32xf32> to vector<1x64x32xf32>
    %49 = tpu.concatenate %45, %46, %47, %48 in 0 : vector<1x64x32xf32>, vector<1x64x32xf32>, vector<1x64x32xf32>, vector<1x64x32xf32> -> vector<4x64x32xf32>
    %c0_26 = arith.constant 0 : index
    %c128 = arith.constant 128 : index
    %50 = vector.load %arg15[%c0_26, %c128] : memref<64x384xf32, #tpu.memory_space<vmem>>, vector<64x32xf32>
    %c0_27 = arith.constant 0 : index
    %c160 = arith.constant 160 : index
    %51 = vector.load %arg15[%c0_27, %c160] : memref<64x384xf32, #tpu.memory_space<vmem>>, vector<64x32xf32>
    %c0_28 = arith.constant 0 : index
    %c192 = arith.constant 192 : index
    %52 = vector.load %arg15[%c0_28, %c192] : memref<64x384xf32, #tpu.memory_space<vmem>>, vector<64x32xf32>
    %c0_29 = arith.constant 0 : index
    %c224 = arith.constant 224 : index
    %53 = vector.load %arg15[%c0_29, %c224] : memref<64x384xf32, #tpu.memory_space<vmem>>, vector<64x32xf32>
    %54 = vector.shape_cast %50 : vector<64x32xf32> to vector<1x64x32xf32>
    %55 = vector.shape_cast %51 : vector<64x32xf32> to vector<1x64x32xf32>
    %56 = vector.shape_cast %52 : vector<64x32xf32> to vector<1x64x32xf32>
    %57 = vector.shape_cast %53 : vector<64x32xf32> to vector<1x64x32xf32>
    %58 = tpu.concatenate %54, %55, %56, %57 in 0 : vector<1x64x32xf32>, vector<1x64x32xf32>, vector<1x64x32xf32>, vector<1x64x32xf32> -> vector<4x64x32xf32>
    %c0_30 = arith.constant 0 : index
    %c256 = arith.constant 256 : index
    %59 = vector.load %arg15[%c0_30, %c256] : memref<64x384xf32, #tpu.memory_space<vmem>>, vector<64x32xf32>
    %c0_31 = arith.constant 0 : index
    %c288 = arith.constant 288 : index
    %60 = vector.load %arg15[%c0_31, %c288] : memref<64x384xf32, #tpu.memory_space<vmem>>, vector<64x32xf32>
    %c0_32 = arith.constant 0 : index
    %c320 = arith.constant 320 : index
    %61 = vector.load %arg15[%c0_32, %c320] : memref<64x384xf32, #tpu.memory_space<vmem>>, vector<64x32xf32>
    %c0_33 = arith.constant 0 : index
    %c352 = arith.constant 352 : index
    %62 = vector.load %arg15[%c0_33, %c352] : memref<64x384xf32, #tpu.memory_space<vmem>>, vector<64x32xf32>
    %63 = vector.shape_cast %59 : vector<64x32xf32> to vector<1x64x32xf32>
    %64 = vector.shape_cast %60 : vector<64x32xf32> to vector<1x64x32xf32>
    %65 = vector.shape_cast %61 : vector<64x32xf32> to vector<1x64x32xf32>
    %66 = vector.shape_cast %62 : vector<64x32xf32> to vector<1x64x32xf32>
    %67 = tpu.concatenate %63, %64, %65, %66 in 0 : vector<1x64x32xf32>, vector<1x64x32xf32>, vector<1x64x32xf32>, vector<1x64x32xf32> -> vector<4x64x32xf32>
    %68 = arith.truncf %49 : vector<4x64x32xf32> to vector<4x64x32xbf16>
    %69 = arith.truncf %58 : vector<4x64x32xf32> to vector<4x64x32xbf16>
    "tpu.trace_start"() <{level = 10 : i32, message = "hnd,hmd->hnm"}> : () -> ()
    %cst_34 = arith.constant dense<0.000000e+00> : vector<4x64x64xf32>
    %70 = tpu.matmul %68, %69, %cst_34 {dimension_numbers = #tpu.dot_dimension_numbers<[2], [2], [1], [1], [0, 0, 0, 1, 1, 1], [0], [0]>} : vector<4x64x32xbf16>, vector<4x64x32xbf16>, vector<4x64x64xf32> -> vector<4x64x64xf32>
    "tpu.trace_stop"() : () -> ()
    %cst_35 = arith.constant dense<0xFF800000> : vector<4x64xf32>
    %71 = vector.multi_reduction <maximumf>, %70, %cst_35 [2] : vector<4x64x64xf32> to vector<4x64xf32>
    %72 = vector.shape_cast %71 : vector<4x64xf32> to vector<4x64x1xf32>
    %73 = vector.broadcast %72 : vector<4x64x1xf32> to vector<4x64x64xf32>
    %74 = arith.subf %70, %73 : vector<4x64x64xf32>
    %75 = math.exp %74 : vector<4x64x64xf32>
    %cst_36 = arith.constant dense<0.000000e+00> : vector<4x64xf32>
    %76 = vector.multi_reduction <add>, %75, %cst_36 [2] : vector<4x64x64xf32> to vector<4x64xf32>
    %77 = vector.shape_cast %76 : vector<4x64xf32> to vector<4x64x1xf32>
    %78 = tpu.reciprocal %77 {approx = true} : vector<4x64x1xf32> -> vector<4x64x1xf32>
    %79 = vector.broadcast %78 : vector<4x64x1xf32> to vector<4x64x64xf32>
    %80 = arith.mulf %75, %79 : vector<4x64x64xf32>
    %81 = arith.truncf %80 : vector<4x64x64xf32> to vector<4x64x64xbf16>
    %82 = arith.truncf %67 : vector<4x64x32xf32> to vector<4x64x32xbf16>
    "tpu.trace_start"() <{level = 10 : i32, message = "hnm,hmd->hnd"}> : () -> ()
    %cst_37 = arith.constant dense<0.000000e+00> : vector<4x64x32xf32>
    %83 = tpu.matmul %81, %82, %cst_37 {dimension_numbers = #tpu.dot_dimension_numbers<[2], [1], [1], [2], [0, 0, 0, 1, 1, 2], [0], [0]>} : vector<4x64x64xbf16>, vector<4x64x32xbf16>, vector<4x64x32xf32> -> vector<4x64x32xf32>
    "tpu.trace_stop"() : () -> ()
    %84 = vector.extract_strided_slice %83 {offsets = [0, 0, 0], sizes = [1, 64, 32], strides = [1, 1, 1]} : vector<4x64x32xf32> to vector<1x64x32xf32>
    %85 = vector.shape_cast %84 : vector<1x64x32xf32> to vector<64x32xf32>
    %86 = arith.truncf %85 : vector<64x32xf32> to vector<64x32xbf16>
    %c0_38 = arith.constant 0 : index
    %c0_39 = arith.constant 0 : index
    %c0_40 = arith.constant 0 : index
    %87 = vector.load %arg6[%c0_38, %c0_39, %c0_40] : memref<4x32x128xbf16, #tpu.memory_space<vmem>>, vector<1x32x128xbf16>
    %88 = vector.shape_cast %87 : vector<1x32x128xbf16> to vector<32x128xbf16>
    %cst_41 = arith.constant dense<0.000000e+00> : vector<64x128xf32>
    %89 = tpu.matmul %86, %88, %cst_41 {dimension_numbers = #tpu.dot_dimension_numbers<[1], [0], [0], [1], [0, 0, 1, 1], [], []>} : vector<64x32xbf16>, vector<32x128xbf16>, vector<64x128xf32> -> vector<64x128xf32>
    %90 = vector.extract_strided_slice %83 {offsets = [1, 0, 0], sizes = [1, 64, 32], strides = [1, 1, 1]} : vector<4x64x32xf32> to vector<1x64x32xf32>
    %91 = vector.shape_cast %90 : vector<1x64x32xf32> to vector<64x32xf32>
    %92 = arith.truncf %91 : vector<64x32xf32> to vector<64x32xbf16>
    %c1 = arith.constant 1 : index
    %c0_42 = arith.constant 0 : index
    %c0_43 = arith.constant 0 : index
    %93 = vector.load %arg6[%c1, %c0_42, %c0_43] : memref<4x32x128xbf16, #tpu.memory_space<vmem>>, vector<1x32x128xbf16>
    %94 = vector.shape_cast %93 : vector<1x32x128xbf16> to vector<32x128xbf16>
    %cst_44 = arith.constant dense<0.000000e+00> : vector<64x128xf32>
    %95 = tpu.matmul %92, %94, %cst_44 {dimension_numbers = #tpu.dot_dimension_numbers<[1], [0], [0], [1], [0, 0, 1, 1], [], []>} : vector<64x32xbf16>, vector<32x128xbf16>, vector<64x128xf32> -> vector<64x128xf32>
    %96 = arith.addf %89, %95 : vector<64x128xf32>
    %97 = vector.extract_strided_slice %83 {offsets = [2, 0, 0], sizes = [1, 64, 32], strides = [1, 1, 1]} : vector<4x64x32xf32> to vector<1x64x32xf32>
    %98 = vector.shape_cast %97 : vector<1x64x32xf32> to vector<64x32xf32>
    %99 = arith.truncf %98 : vector<64x32xf32> to vector<64x32xbf16>
    %c2 = arith.constant 2 : index
    %c0_45 = arith.constant 0 : index
    %c0_46 = arith.constant 0 : index
    %100 = vector.load %arg6[%c2, %c0_45, %c0_46] : memref<4x32x128xbf16, #tpu.memory_space<vmem>>, vector<1x32x128xbf16>
    %101 = vector.shape_cast %100 : vector<1x32x128xbf16> to vector<32x128xbf16>
    %cst_47 = arith.constant dense<0.000000e+00> : vector<64x128xf32>
    %102 = tpu.matmul %99, %101, %cst_47 {dimension_numbers = #tpu.dot_dimension_numbers<[1], [0], [0], [1], [0, 0, 1, 1], [], []>} : vector<64x32xbf16>, vector<32x128xbf16>, vector<64x128xf32> -> vector<64x128xf32>
    %103 = arith.addf %96, %102 : vector<64x128xf32>
    %104 = vector.extract_strided_slice %83 {offsets = [3, 0, 0], sizes = [1, 64, 32], strides = [1, 1, 1]} : vector<4x64x32xf32> to vector<1x64x32xf32>
    %105 = vector.shape_cast %104 : vector<1x64x32xf32> to vector<64x32xf32>
    %106 = arith.truncf %105 : vector<64x32xf32> to vector<64x32xbf16>
    %c3 = arith.constant 3 : index
    %c0_48 = arith.constant 0 : index
    %c0_49 = arith.constant 0 : index
    %107 = vector.load %arg6[%c3, %c0_48, %c0_49] : memref<4x32x128xbf16, #tpu.memory_space<vmem>>, vector<1x32x128xbf16>
    %108 = vector.shape_cast %107 : vector<1x32x128xbf16> to vector<32x128xbf16>
    %cst_50 = arith.constant dense<0.000000e+00> : vector<64x128xf32>
    %109 = tpu.matmul %106, %108, %cst_50 {dimension_numbers = #tpu.dot_dimension_numbers<[1], [0], [0], [1], [0, 0, 1, 1], [], []>} : vector<64x32xbf16>, vector<32x128xbf16>, vector<64x128xf32> -> vector<64x128xf32>
    %110 = arith.addf %103, %109 : vector<64x128xf32>
    %111 = arith.addf %1, %110 : vector<64x128xf32>
    %c0_51 = arith.constant 0 : index
    %c0_52 = arith.constant 0 : index
    %112 = vector.load %arg7[%c0_51, %c0_52] : memref<1x128xf32, #tpu.memory_space<vmem>>, vector<1x128xf32>
    %113 = vector.broadcast %112 : vector<1x128xf32> to vector<64x128xf32>
    %114 = arith.addf %111, %113 : vector<64x128xf32>
    %c0_53 = arith.constant 0 : index
    %c0_54 = arith.constant 0 : index
    %115 = vector.load %arg8[%c0_53, %c0_54] : memref<1x128xf32, #tpu.memory_space<vmem>>, vector<1x128xf32>
    %c0_55 = arith.constant 0 : index
    %c0_56 = arith.constant 0 : index
    %116 = vector.load %arg9[%c0_55, %c0_56] : memref<1x128xf32, #tpu.memory_space<vmem>>, vector<1x128xf32>
    %cst_57 = arith.constant dense<0.000000e+00> : vector<64xf32>
    %117 = vector.multi_reduction <add>, %114, %cst_57 [1] : vector<64x128xf32> to vector<64xf32>
    %118 = vector.shape_cast %117 : vector<64xf32> to vector<64x1xf32>
    %cst_58 = arith.constant 1.280000e+02 : f32
    %119 = vector.broadcast %cst_58 : f32 to vector<64x1xf32>
    %120 = arith.divf %118, %119 : vector<64x1xf32>
    %121 = arith.mulf %114, %114 : vector<64x128xf32>
    %cst_59 = arith.constant dense<0.000000e+00> : vector<64xf32>
    %122 = vector.multi_reduction <add>, %121, %cst_59 [1] : vector<64x128xf32> to vector<64xf32>
    %123 = vector.shape_cast %122 : vector<64xf32> to vector<64x1xf32>
    %cst_60 = arith.constant 1.280000e+02 : f32
    %124 = vector.broadcast %cst_60 : f32 to vector<64x1xf32>
    %125 = arith.divf %123, %124 : vector<64x1xf32>
    %126 = arith.mulf %120, %120 : vector<64x1xf32>
    %127 = arith.subf %125, %126 : vector<64x1xf32>
    %128 = vector.broadcast %120 : vector<64x1xf32> to vector<64x128xf32>
    %129 = arith.subf %114, %128 : vector<64x128xf32>
    %cst_61 = arith.constant 9.99999997E-7 : f32
    %130 = vector.broadcast %cst_61 : f32 to vector<64x1xf32>
    %131 = arith.addf %127, %130 : vector<64x1xf32>
    %132 = math.rsqrt %131 : vector<64x1xf32>
    %133 = vector.broadcast %132 : vector<64x1xf32> to vector<64x128xf32>
    %134 = arith.mulf %129, %133 : vector<64x128xf32>
    %135 = vector.broadcast %115 : vector<1x128xf32> to vector<64x128xf32>
    %136 = arith.mulf %134, %135 : vector<64x128xf32>
    %137 = vector.broadcast %116 : vector<1x128xf32> to vector<64x128xf32>
    %138 = arith.addf %136, %137 : vector<64x128xf32>
    %139 = arith.truncf %138 : vector<64x128xf32> to vector<64x128xbf16>
    %c0_62 = arith.constant 0 : index
    %c0_63 = arith.constant 0 : index
    %140 = vector.load %arg10[%c0_62, %c0_63] : memref<128x512xbf16, #tpu.memory_space<vmem>>, vector<128x512xbf16>
    %cst_64 = arith.constant dense<0.000000e+00> : vector<64x512xf32>
    %141 = tpu.matmul %139, %140, %cst_64 {dimension_numbers = #tpu.dot_dimension_numbers<[1], [0], [0], [1], [0, 0, 1, 1], [], []>} : vector<64x128xbf16>, vector<128x512xbf16>, vector<64x512xf32> -> vector<64x512xf32>
    %c0_65 = arith.constant 0 : index
    %c0_66 = arith.constant 0 : index
    %142 = vector.load %arg11[%c0_65, %c0_66] : memref<1x512xf32, #tpu.memory_space<vmem>>, vector<1x512xf32>
    %143 = vector.broadcast %142 : vector<1x512xf32> to vector<64x512xf32>
    %144 = arith.addf %141, %143 : vector<64x512xf32>
    %cst_67 = arith.constant 5.000000e-01 : f32
    %145 = vector.broadcast %cst_67 : f32 to vector<64x512xf32>
    %146 = arith.mulf %145, %144 : vector<64x512xf32>
    %cst_68 = arith.constant 4.471500e-02 : f32
    %147 = vector.broadcast %cst_68 : f32 to vector<64x512xf32>
    %148 = arith.mulf %147, %144 : vector<64x512xf32>
    %149 = arith.mulf %148, %144 : vector<64x512xf32>
    %150 = arith.mulf %149, %144 : vector<64x512xf32>
    %151 = arith.addf %144, %150 : vector<64x512xf32>
    %cst_69 = arith.constant 0.797884583 : f32
    %152 = vector.broadcast %cst_69 : f32 to vector<64x512xf32>
    %153 = arith.mulf %152, %151 : vector<64x512xf32>
    %154 = math.tanh %153 : vector<64x512xf32>
    %cst_70 = arith.constant 1.000000e+00 : f32
    %155 = vector.broadcast %cst_70 : f32 to vector<64x512xf32>
    %156 = arith.addf %155, %154 : vector<64x512xf32>
    %157 = arith.mulf %146, %156 : vector<64x512xf32>
    %158 = arith.truncf %157 : vector<64x512xf32> to vector<64x512xbf16>
    %c0_71 = arith.constant 0 : index
    %c0_72 = arith.constant 0 : index
    %159 = vector.load %arg12[%c0_71, %c0_72] : memref<512x128xbf16, #tpu.memory_space<vmem>>, vector<512x128xbf16>
    %cst_73 = arith.constant dense<0.000000e+00> : vector<64x128xf32>
    %160 = tpu.matmul %158, %159, %cst_73 {dimension_numbers = #tpu.dot_dimension_numbers<[1], [0], [0], [1], [0, 0, 1, 1], [], []>} : vector<64x512xbf16>, vector<512x128xbf16>, vector<64x128xf32> -> vector<64x128xf32>
    %161 = arith.addf %114, %160 : vector<64x128xf32>
    %c0_74 = arith.constant 0 : index
    %c0_75 = arith.constant 0 : index
    %162 = vector.load %arg13[%c0_74, %c0_75] : memref<1x128xf32, #tpu.memory_space<vmem>>, vector<1x128xf32>
    %163 = vector.broadcast %162 : vector<1x128xf32> to vector<64x128xf32>
    %164 = arith.addf %161, %163 : vector<64x128xf32>
    %c0_76 = arith.constant 0 : index
    %c0_77 = arith.constant 0 : index
    %c0_78 = arith.constant 0 : index
    %165 = vector.load %arg14[%c0_76, %c0_77, %c0_78] : memref<1x64x128xf32, #tpu.memory_space<vmem>>, vector<1x64x128xf32>
    %166 = vector.shape_cast %165 : vector<1x64x128xf32> to vector<64x128xf32>
    %167 = vector.shape_cast %164 : vector<64x128xf32> to vector<1x64x128xf32>
    tpu.vector_store %arg14[%c0_76, %c0_77, %c0_78], %167 {strides = array<i32>} : memref<1x64x128xf32, #tpu.memory_space<vmem>>, vector<1x64x128xf32>,
    return
  }
  func.func @transform_0(%arg0: i32) -> (i32, i32, i32) {
    %c0_i32 = arith.constant 0 : i32
    %c0_i32_0 = arith.constant 0 : i32
    %c0_i32_1 = arith.constant 0 : i32
    return %arg0, %c0_i32, %c0_i32_0 : i32, i32, i32
  }
  func.func @transform_1(%arg0: i32) -> (i32, i32) {
    %c0_i32 = arith.constant 0 : i32
    %c0_i32_0 = arith.constant 0 : i32
    %c0_i32_1 = arith.constant 0 : i32
    return %c0_i32, %c0_i32_0 : i32, i32
  }
  func.func @transform_2(%arg0: i32) -> (i32, i32) {
    %c0_i32 = arith.constant 0 : i32
    %c0_i32_0 = arith.constant 0 : i32
    %c0_i32_1 = arith.constant 0 : i32
    return %c0_i32, %c0_i32_0 : i32, i32
  }
  func.func @transform_3(%arg0: i32) -> (i32, i32) {
    %c0_i32 = arith.constant 0 : i32
    %c0_i32_0 = arith.constant 0 : i32
    %c0_i32_1 = arith.constant 0 : i32
    return %c0_i32, %c0_i32_0 : i32, i32
  }
  func.func @transform_4(%arg0: i32) -> (i32, i32) {
    %c0_i32 = arith.constant 0 : i32
    %c0_i32_0 = arith.constant 0 : i32
    %c0_i32_1 = arith.constant 0 : i32
    return %c0_i32, %c0_i32_0 : i32, i32
  }
  func.func @transform_5(%arg0: i32) -> (i32, i32, i32) {
    %c0_i32 = arith.constant 0 : i32
    %c0_i32_0 = arith.constant 0 : i32
    %c0_i32_1 = arith.constant 0 : i32
    %c0_i32_2 = arith.constant 0 : i32
    return %c0_i32, %c0_i32_0, %c0_i32_1 : i32, i32, i32
  }
  func.func @transform_6(%arg0: i32) -> (i32, i32) {
    %c0_i32 = arith.constant 0 : i32
    %c0_i32_0 = arith.constant 0 : i32
    %c0_i32_1 = arith.constant 0 : i32
    return %c0_i32, %c0_i32_0 : i32, i32
  }
  func.func @transform_7(%arg0: i32) -> (i32, i32) {
    %c0_i32 = arith.constant 0 : i32
    %c0_i32_0 = arith.constant 0 : i32
    %c0_i32_1 = arith.constant 0 : i32
    return %c0_i32, %c0_i32_0 : i32, i32
  }
  func.func @transform_8(%arg0: i32) -> (i32, i32) {
    %c0_i32 = arith.constant 0 : i32
    %c0_i32_0 = arith.constant 0 : i32
    %c0_i32_1 = arith.constant 0 : i32
    return %c0_i32, %c0_i32_0 : i32, i32
  }
  func.func @transform_9(%arg0: i32) -> (i32, i32) {
    %c0_i32 = arith.constant 0 : i32
    %c0_i32_0 = arith.constant 0 : i32
    %c0_i32_1 = arith.constant 0 : i32
    return %c0_i32, %c0_i32_0 : i32, i32
  }
  func.func @transform_10(%arg0: i32) -> (i32, i32) {
    %c0_i32 = arith.constant 0 : i32
    %c0_i32_0 = arith.constant 0 : i32
    %c0_i32_1 = arith.constant 0 : i32
    return %c0_i32, %c0_i32_0 : i32, i32
  }
  func.func @transform_11(%arg0: i32) -> (i32, i32) {
    %c0_i32 = arith.constant 0 : i32
    %c0_i32_0 = arith.constant 0 : i32
    %c0_i32_1 = arith.constant 0 : i32
    return %c0_i32, %c0_i32_0 : i32, i32
  }
  func.func @transform_12(%arg0: i32) -> (i32, i32) {
    %c0_i32 = arith.constant 0 : i32
    %c0_i32_0 = arith.constant 0 : i32
    %c0_i32_1 = arith.constant 0 : i32
    return %c0_i32, %c0_i32_0 : i32, i32
  }
  func.func @transform_13(%arg0: i32) -> (i32, i32, i32) {
    %c0_i32 = arith.constant 0 : i32
    %c0_i32_0 = arith.constant 0 : i32
    %c0_i32_1 = arith.constant 0 : i32
    return %arg0, %c0_i32, %c0_i32_0 : i32, i32, i32
  }
}

module attributes {stable_mosaic.version = 11 : i64} {
  func.func @_double_conv_kernel(%arg0: memref<2x10x10x128xbf16, #tpu.memory_space<vmem>>, %arg1: memref<1152x128xbf16, #tpu.memory_space<vmem>>, %arg2: memref<1x128xf32, #tpu.memory_space<vmem>>, %arg3: memref<1x128xf32, #tpu.memory_space<vmem>>, %arg4: memref<1152x128xbf16, #tpu.memory_space<vmem>>, %arg5: memref<1x128xf32, #tpu.memory_space<vmem>>, %arg6: memref<1x128xf32, #tpu.memory_space<vmem>>, %arg7: memref<128x128xf32, #tpu.memory_space<vmem>>) attributes {dimension_semantics = [], scalar_prefetch = 0 : i64, scratch_operands = 0 : i64, tpu.core_type = #tpu.core_type<tc>} {
    %c0 = arith.constant 0 : index
    %c0_0 = arith.constant 0 : index
    %0 = vector.load %arg1[%c0, %c0_0] : memref<1152x128xbf16, #tpu.memory_space<vmem>>, vector<1152x128xbf16>
    %c0_1 = arith.constant 0 : index
    %c0_2 = arith.constant 0 : index
    %c0_3 = arith.constant 0 : index
    %c0_4 = arith.constant 0 : index
    %1 = vector.load %arg0[%c0_1, %c0_2, %c0_3, %c0_4] : memref<2x10x10x128xbf16, #tpu.memory_space<vmem>>, vector<2x8x8x128xbf16>
    %2 = vector.shape_cast %1 : vector<2x8x8x128xbf16> to vector<128x128xbf16>
    %c0_5 = arith.constant 0 : index
    %c0_6 = arith.constant 0 : index
    %c1 = arith.constant 1 : index
    %c0_7 = arith.constant 0 : index
    %3 = vector.load %arg0[%c0_5, %c0_6, %c1, %c0_7] : memref<2x10x10x128xbf16, #tpu.memory_space<vmem>>, vector<2x8x8x128xbf16>
    %4 = vector.shape_cast %3 : vector<2x8x8x128xbf16> to vector<128x128xbf16>
    %c0_8 = arith.constant 0 : index
    %c0_9 = arith.constant 0 : index
    %c2 = arith.constant 2 : index
    %c0_10 = arith.constant 0 : index
    %5 = vector.load %arg0[%c0_8, %c0_9, %c2, %c0_10] : memref<2x10x10x128xbf16, #tpu.memory_space<vmem>>, vector<2x8x8x128xbf16>
    %6 = vector.shape_cast %5 : vector<2x8x8x128xbf16> to vector<128x128xbf16>
    %7 = tpu.concatenate %2, %4, %6 in 1 : vector<128x128xbf16>, vector<128x128xbf16>, vector<128x128xbf16> -> vector<128x384xbf16>
    %8 = vector.extract_strided_slice %0 {offsets = [0, 0], sizes = [384, 128], strides = [1, 1]} : vector<1152x128xbf16> to vector<384x128xbf16>
    %cst = arith.constant dense<0.000000e+00> : vector<128x128xf32>
    %9 = tpu.matmul %7, %8, %cst {dimension_numbers = #tpu.dot_dimension_numbers<[1], [0], [0], [1], [0, 0, 1, 1], [], []>} : vector<128x384xbf16>, vector<384x128xbf16>, vector<128x128xf32> -> vector<128x128xf32>
    %c0_11 = arith.constant 0 : index
    %c1_12 = arith.constant 1 : index
    %c0_13 = arith.constant 0 : index
    %c0_14 = arith.constant 0 : index
    %10 = vector.load %arg0[%c0_11, %c1_12, %c0_13, %c0_14] : memref<2x10x10x128xbf16, #tpu.memory_space<vmem>>, vector<2x8x8x128xbf16>
    %11 = vector.shape_cast %10 : vector<2x8x8x128xbf16> to vector<128x128xbf16>
    %c0_15 = arith.constant 0 : index
    %c1_16 = arith.constant 1 : index
    %c1_17 = arith.constant 1 : index
    %c0_18 = arith.constant 0 : index
    %12 = vector.load %arg0[%c0_15, %c1_16, %c1_17, %c0_18] : memref<2x10x10x128xbf16, #tpu.memory_space<vmem>>, vector<2x8x8x128xbf16>
    %13 = vector.shape_cast %12 : vector<2x8x8x128xbf16> to vector<128x128xbf16>
    %c0_19 = arith.constant 0 : index
    %c1_20 = arith.constant 1 : index
    %c2_21 = arith.constant 2 : index
    %c0_22 = arith.constant 0 : index
    %14 = vector.load %arg0[%c0_19, %c1_20, %c2_21, %c0_22] : memref<2x10x10x128xbf16, #tpu.memory_space<vmem>>, vector<2x8x8x128xbf16>
    %15 = vector.shape_cast %14 : vector<2x8x8x128xbf16> to vector<128x128xbf16>
    %16 = tpu.concatenate %11, %13, %15 in 1 : vector<128x128xbf16>, vector<128x128xbf16>, vector<128x128xbf16> -> vector<128x384xbf16>
    %17 = vector.extract_strided_slice %0 {offsets = [384, 0], sizes = [384, 128], strides = [1, 1]} : vector<1152x128xbf16> to vector<384x128xbf16>
    %cst_23 = arith.constant dense<0.000000e+00> : vector<128x128xf32>
    %18 = tpu.matmul %16, %17, %cst_23 {dimension_numbers = #tpu.dot_dimension_numbers<[1], [0], [0], [1], [0, 0, 1, 1], [], []>} : vector<128x384xbf16>, vector<384x128xbf16>, vector<128x128xf32> -> vector<128x128xf32>
    %19 = arith.addf %9, %18 : vector<128x128xf32>
    %c0_24 = arith.constant 0 : index
    %c2_25 = arith.constant 2 : index
    %c0_26 = arith.constant 0 : index
    %c0_27 = arith.constant 0 : index
    %20 = vector.load %arg0[%c0_24, %c2_25, %c0_26, %c0_27] : memref<2x10x10x128xbf16, #tpu.memory_space<vmem>>, vector<2x8x8x128xbf16>
    %21 = vector.shape_cast %20 : vector<2x8x8x128xbf16> to vector<128x128xbf16>
    %c0_28 = arith.constant 0 : index
    %c2_29 = arith.constant 2 : index
    %c1_30 = arith.constant 1 : index
    %c0_31 = arith.constant 0 : index
    %22 = vector.load %arg0[%c0_28, %c2_29, %c1_30, %c0_31] : memref<2x10x10x128xbf16, #tpu.memory_space<vmem>>, vector<2x8x8x128xbf16>
    %23 = vector.shape_cast %22 : vector<2x8x8x128xbf16> to vector<128x128xbf16>
    %c0_32 = arith.constant 0 : index
    %c2_33 = arith.constant 2 : index
    %c2_34 = arith.constant 2 : index
    %c0_35 = arith.constant 0 : index
    %24 = vector.load %arg0[%c0_32, %c2_33, %c2_34, %c0_35] : memref<2x10x10x128xbf16, #tpu.memory_space<vmem>>, vector<2x8x8x128xbf16>
    %25 = vector.shape_cast %24 : vector<2x8x8x128xbf16> to vector<128x128xbf16>
    %26 = tpu.concatenate %21, %23, %25 in 1 : vector<128x128xbf16>, vector<128x128xbf16>, vector<128x128xbf16> -> vector<128x384xbf16>
    %27 = vector.extract_strided_slice %0 {offsets = [768, 0], sizes = [384, 128], strides = [1, 1]} : vector<1152x128xbf16> to vector<384x128xbf16>
    %cst_36 = arith.constant dense<0.000000e+00> : vector<128x128xf32>
    %28 = tpu.matmul %26, %27, %cst_36 {dimension_numbers = #tpu.dot_dimension_numbers<[1], [0], [0], [1], [0, 0, 1, 1], [], []>} : vector<128x384xbf16>, vector<384x128xbf16>, vector<128x128xf32> -> vector<128x128xf32>
    %29 = arith.addf %19, %28 : vector<128x128xf32>
    %c0_37 = arith.constant 0 : index
    %c0_38 = arith.constant 0 : index
    %30 = vector.load %arg2[%c0_37, %c0_38] : memref<1x128xf32, #tpu.memory_space<vmem>>, vector<1x128xf32>
    %c0_39 = arith.constant 0 : index
    %c0_40 = arith.constant 0 : index
    %31 = vector.load %arg3[%c0_39, %c0_40] : memref<1x128xf32, #tpu.memory_space<vmem>>, vector<1x128xf32>
    %cst_41 = arith.constant dense<0.000000e+00> : vector<128xf32>
    %32 = vector.multi_reduction <add>, %29, %cst_41 [0] : vector<128x128xf32> to vector<128xf32>
    %33 = vector.shape_cast %32 : vector<128xf32> to vector<1x128xf32>
    %cst_42 = arith.constant 7.812500e-03 : f32
    %34 = vector.broadcast %cst_42 : f32 to vector<1x128xf32>
    %35 = arith.mulf %33, %34 : vector<1x128xf32>
    %36 = arith.mulf %29, %29 : vector<128x128xf32>
    %cst_43 = arith.constant dense<0.000000e+00> : vector<128xf32>
    %37 = vector.multi_reduction <add>, %36, %cst_43 [0] : vector<128x128xf32> to vector<128xf32>
    %38 = vector.shape_cast %37 : vector<128xf32> to vector<1x128xf32>
    %cst_44 = arith.constant 7.812500e-03 : f32
    %39 = vector.broadcast %cst_44 : f32 to vector<1x128xf32>
    %40 = arith.mulf %38, %39 : vector<1x128xf32>
    %41 = arith.mulf %35, %35 : vector<1x128xf32>
    %42 = arith.subf %40, %41 : vector<1x128xf32>
    %cst_45 = arith.constant 9.99999974E-6 : f32
    %43 = vector.broadcast %cst_45 : f32 to vector<1x128xf32>
    %44 = arith.addf %42, %43 : vector<1x128xf32>
    %45 = math.rsqrt %44 : vector<1x128xf32>
    %46 = arith.mulf %30, %45 : vector<1x128xf32>
    %47 = arith.mulf %35, %46 : vector<1x128xf32>
    %48 = arith.subf %31, %47 : vector<1x128xf32>
    %49 = vector.broadcast %46 : vector<1x128xf32> to vector<128x128xf32>
    %50 = arith.mulf %29, %49 : vector<128x128xf32>
    %51 = vector.broadcast %48 : vector<1x128xf32> to vector<128x128xf32>
    %52 = arith.addf %50, %51 : vector<128x128xf32>
    %cst_46 = arith.constant 0.000000e+00 : f32
    %53 = vector.broadcast %cst_46 : f32 to vector<128x128xf32>
    %54 = arith.maximumf %52, %53 : vector<128x128xf32>
    %55 = arith.truncf %54 : vector<128x128xf32> to vector<128x128xbf16>
    %56 = vector.shape_cast %55 : vector<128x128xbf16> to vector<2x8x8x128xbf16>
    %cst_47 = arith.constant 0.000000e+00 : bf16
    %57 = vector.broadcast %cst_47 : bf16 to vector<2x8x1x128xbf16>
    %cst_48 = arith.constant 0.000000e+00 : bf16
    %58 = vector.broadcast %cst_48 : bf16 to vector<2x1x10x128xbf16>
    %59 = tpu.concatenate %57, %56, %57 in 2 : vector<2x8x1x128xbf16>, vector<2x8x8x128xbf16>, vector<2x8x1x128xbf16> -> vector<2x8x10x128xbf16>
    %60 = tpu.concatenate %58, %59, %58 in 1 : vector<2x1x10x128xbf16>, vector<2x8x10x128xbf16>, vector<2x1x10x128xbf16> -> vector<2x10x10x128xbf16>
    %c0_49 = arith.constant 0 : index
    %c0_50 = arith.constant 0 : index
    %61 = vector.load %arg4[%c0_49, %c0_50] : memref<1152x128xbf16, #tpu.memory_space<vmem>>, vector<1152x128xbf16>
    %62 = vector.extract_strided_slice %60 {offsets = [0, 0, 0, 0], sizes = [2, 8, 8, 128], strides = [1, 1, 1, 1]} : vector<2x10x10x128xbf16> to vector<2x8x8x128xbf16>
    %63 = vector.shape_cast %62 : vector<2x8x8x128xbf16> to vector<128x128xbf16>
    %64 = vector.extract_strided_slice %60 {offsets = [0, 0, 1, 0], sizes = [2, 8, 8, 128], strides = [1, 1, 1, 1]} : vector<2x10x10x128xbf16> to vector<2x8x8x128xbf16>
    %65 = vector.shape_cast %64 : vector<2x8x8x128xbf16> to vector<128x128xbf16>
    %66 = vector.extract_strided_slice %60 {offsets = [0, 0, 2, 0], sizes = [2, 8, 8, 128], strides = [1, 1, 1, 1]} : vector<2x10x10x128xbf16> to vector<2x8x8x128xbf16>
    %67 = vector.shape_cast %66 : vector<2x8x8x128xbf16> to vector<128x128xbf16>
    %68 = tpu.concatenate %63, %65, %67 in 1 : vector<128x128xbf16>, vector<128x128xbf16>, vector<128x128xbf16> -> vector<128x384xbf16>
    %69 = vector.extract_strided_slice %61 {offsets = [0, 0], sizes = [384, 128], strides = [1, 1]} : vector<1152x128xbf16> to vector<384x128xbf16>
    %cst_51 = arith.constant dense<0.000000e+00> : vector<128x128xf32>
    %70 = tpu.matmul %68, %69, %cst_51 {dimension_numbers = #tpu.dot_dimension_numbers<[1], [0], [0], [1], [0, 0, 1, 1], [], []>} : vector<128x384xbf16>, vector<384x128xbf16>, vector<128x128xf32> -> vector<128x128xf32>
    %71 = vector.extract_strided_slice %60 {offsets = [0, 1, 0, 0], sizes = [2, 8, 8, 128], strides = [1, 1, 1, 1]} : vector<2x10x10x128xbf16> to vector<2x8x8x128xbf16>
    %72 = vector.shape_cast %71 : vector<2x8x8x128xbf16> to vector<128x128xbf16>
    %73 = vector.extract_strided_slice %60 {offsets = [0, 1, 1, 0], sizes = [2, 8, 8, 128], strides = [1, 1, 1, 1]} : vector<2x10x10x128xbf16> to vector<2x8x8x128xbf16>
    %74 = vector.shape_cast %73 : vector<2x8x8x128xbf16> to vector<128x128xbf16>
    %75 = vector.extract_strided_slice %60 {offsets = [0, 1, 2, 0], sizes = [2, 8, 8, 128], strides = [1, 1, 1, 1]} : vector<2x10x10x128xbf16> to vector<2x8x8x128xbf16>
    %76 = vector.shape_cast %75 : vector<2x8x8x128xbf16> to vector<128x128xbf16>
    %77 = tpu.concatenate %72, %74, %76 in 1 : vector<128x128xbf16>, vector<128x128xbf16>, vector<128x128xbf16> -> vector<128x384xbf16>
    %78 = vector.extract_strided_slice %61 {offsets = [384, 0], sizes = [384, 128], strides = [1, 1]} : vector<1152x128xbf16> to vector<384x128xbf16>
    %cst_52 = arith.constant dense<0.000000e+00> : vector<128x128xf32>
    %79 = tpu.matmul %77, %78, %cst_52 {dimension_numbers = #tpu.dot_dimension_numbers<[1], [0], [0], [1], [0, 0, 1, 1], [], []>} : vector<128x384xbf16>, vector<384x128xbf16>, vector<128x128xf32> -> vector<128x128xf32>
    %80 = arith.addf %70, %79 : vector<128x128xf32>
    %81 = vector.extract_strided_slice %60 {offsets = [0, 2, 0, 0], sizes = [2, 8, 8, 128], strides = [1, 1, 1, 1]} : vector<2x10x10x128xbf16> to vector<2x8x8x128xbf16>
    %82 = vector.shape_cast %81 : vector<2x8x8x128xbf16> to vector<128x128xbf16>
    %83 = vector.extract_strided_slice %60 {offsets = [0, 2, 1, 0], sizes = [2, 8, 8, 128], strides = [1, 1, 1, 1]} : vector<2x10x10x128xbf16> to vector<2x8x8x128xbf16>
    %84 = vector.shape_cast %83 : vector<2x8x8x128xbf16> to vector<128x128xbf16>
    %85 = vector.extract_strided_slice %60 {offsets = [0, 2, 2, 0], sizes = [2, 8, 8, 128], strides = [1, 1, 1, 1]} : vector<2x10x10x128xbf16> to vector<2x8x8x128xbf16>
    %86 = vector.shape_cast %85 : vector<2x8x8x128xbf16> to vector<128x128xbf16>
    %87 = tpu.concatenate %82, %84, %86 in 1 : vector<128x128xbf16>, vector<128x128xbf16>, vector<128x128xbf16> -> vector<128x384xbf16>
    %88 = vector.extract_strided_slice %61 {offsets = [768, 0], sizes = [384, 128], strides = [1, 1]} : vector<1152x128xbf16> to vector<384x128xbf16>
    %cst_53 = arith.constant dense<0.000000e+00> : vector<128x128xf32>
    %89 = tpu.matmul %87, %88, %cst_53 {dimension_numbers = #tpu.dot_dimension_numbers<[1], [0], [0], [1], [0, 0, 1, 1], [], []>} : vector<128x384xbf16>, vector<384x128xbf16>, vector<128x128xf32> -> vector<128x128xf32>
    %90 = arith.addf %80, %89 : vector<128x128xf32>
    %c0_54 = arith.constant 0 : index
    %c0_55 = arith.constant 0 : index
    %91 = vector.load %arg5[%c0_54, %c0_55] : memref<1x128xf32, #tpu.memory_space<vmem>>, vector<1x128xf32>
    %c0_56 = arith.constant 0 : index
    %c0_57 = arith.constant 0 : index
    %92 = vector.load %arg6[%c0_56, %c0_57] : memref<1x128xf32, #tpu.memory_space<vmem>>, vector<1x128xf32>
    %cst_58 = arith.constant dense<0.000000e+00> : vector<128xf32>
    %93 = vector.multi_reduction <add>, %90, %cst_58 [0] : vector<128x128xf32> to vector<128xf32>
    %94 = vector.shape_cast %93 : vector<128xf32> to vector<1x128xf32>
    %cst_59 = arith.constant 7.812500e-03 : f32
    %95 = vector.broadcast %cst_59 : f32 to vector<1x128xf32>
    %96 = arith.mulf %94, %95 : vector<1x128xf32>
    %97 = arith.mulf %90, %90 : vector<128x128xf32>
    %cst_60 = arith.constant dense<0.000000e+00> : vector<128xf32>
    %98 = vector.multi_reduction <add>, %97, %cst_60 [0] : vector<128x128xf32> to vector<128xf32>
    %99 = vector.shape_cast %98 : vector<128xf32> to vector<1x128xf32>
    %cst_61 = arith.constant 7.812500e-03 : f32
    %100 = vector.broadcast %cst_61 : f32 to vector<1x128xf32>
    %101 = arith.mulf %99, %100 : vector<1x128xf32>
    %102 = arith.mulf %96, %96 : vector<1x128xf32>
    %103 = arith.subf %101, %102 : vector<1x128xf32>
    %cst_62 = arith.constant 9.99999974E-6 : f32
    %104 = vector.broadcast %cst_62 : f32 to vector<1x128xf32>
    %105 = arith.addf %103, %104 : vector<1x128xf32>
    %106 = math.rsqrt %105 : vector<1x128xf32>
    %107 = arith.mulf %91, %106 : vector<1x128xf32>
    %108 = arith.mulf %96, %107 : vector<1x128xf32>
    %109 = arith.subf %92, %108 : vector<1x128xf32>
    %110 = vector.broadcast %107 : vector<1x128xf32> to vector<128x128xf32>
    %111 = arith.mulf %90, %110 : vector<128x128xf32>
    %112 = vector.broadcast %109 : vector<1x128xf32> to vector<128x128xf32>
    %113 = arith.addf %111, %112 : vector<128x128xf32>
    %cst_63 = arith.constant 0.000000e+00 : f32
    %114 = vector.broadcast %cst_63 : f32 to vector<128x128xf32>
    %115 = arith.maximumf %113, %114 : vector<128x128xf32>
    %c0_64 = arith.constant 0 : index
    %c0_65 = arith.constant 0 : index
    %116 = vector.load %arg7[%c0_64, %c0_65] : memref<128x128xf32, #tpu.memory_space<vmem>>, vector<128x128xf32>
    tpu.vector_store %arg7[%c0_64, %c0_65], %115 {strides = array<i32>} : memref<128x128xf32, #tpu.memory_space<vmem>>, vector<128x128xf32>,
    return
  }
}

</mosaic_0001>

<llo_original>
// kernel: up_forward.4
$region0: #{up_forward.4}
  #allocation0 [shape = 'u32[]', space=smem, size = 0x4, offset = 0x4, fixed_abs, tag = 'smem constant byte address 0x4 - core index']
  #allocation1 [shape = 'u32[144,128]{1,0:T(1,128)}', space=vmem, size = 0x12000, scoped, tag = 'internal scratch']
  %s0 = inlined_call_operand.vmem [shape: bf16[2,16,128], index: 0, kind: input, shape index: {}]
  %s1 = inlined_call_operand.vmem [shape: bf16[128,256], index: 1, kind: input, shape index: {}]
  %s2 = inlined_call_operand.vmem [shape: f32[256,4], index: 2, kind: input, shape index: {}]
  %s3 = inlined_call_operand.vmem [shape: f32[4,256], index: 3, kind: input, shape index: {}]
  %s4 = inlined_call_operand.vmem [shape: f32[1,256], index: 4, kind: input, shape index: {}]
  %s5 = inlined_call_operand.vmem [shape: f32[1,256], index: 5, kind: input, shape index: {}]
  %s6 = inlined_call_operand.vmem [shape: f32[2,16,256], index: 6, kind: output, shape index: {}]
  %s7 = sld [smem:[#allocation0]]
  $region57: #{up_forward.4} parent=0
    _
  %s9 = ssub.s32 1, %s7
  %s10 = scalar_select 0, %s9, %s7
  loop: start=0, step=1, limit=4
  $region2: #{up_forward.4} parent=0 // loop_pre_header
    _
  $region3: #{up_forward.4} parent=0 // loop_header
    %s12 = sphi 0, %s16
    %p13 = scmp.ge.s32.totalorder %s12, 4
    %s22 = sphi 0, %s24
    %s25 = sphi 0, %s22
    %s26 = sphi 0, %s25
    %s42 = sphi 0, %s26
    %s46 = sphi 0, %s46
    %s48 = sphi 0, %s46
    %s49 = sphi 0, %s48
    %s63 = sphi 0, %s49
    %s67 = sphi 0, %s67
    %s69 = sphi 0, %s67
    %s70 = sphi 0, %s69
    %s84 = sphi 0, %s70
    %s88 = sphi 0, %s88
    %s90 = sphi 0, %s88
    %s91 = sphi 0, %s90
    %s105 = sphi 0, %s91
    %s109 = sphi 0, %s109
    %s111 = sphi 0, %s109
    %s112 = sphi 0, %s111
    %s126 = sphi 0, %s112
    %s130 = sphi 0, %s130
    %s132 = sphi 0, %s130
    %s133 = sphi 0, %s132
    %s147 = sphi 0, %s133
    %s153 = sphi 0, %s155
    %s156 = sphi 0, %s153
    %s157 = sphi 0, %s156
    %s173 = sphi 0, %s157
  $region4: #{up_forward.4} parent=0 // loop_header_branch
    %15 = sbr.rel (%p13) target = $region8
  $region5: #{up_forward.4} parent=0 // loop_body
    %s17 = ssub.s32 %s12, 1
    %s18 = ssub.s32 %s12, 2
    %s19 = sadd.s32 %s12, 1
    %s20 = ssub.s32 %s12, %s19
    %p21 = scmp.eq.s32.totalorder %s20, 0
    %s23 = sadd.s32 %s22, 1
    %s24 = scalar_select %p21, %s22, %s23
    %p27 = pneg %p21
    %p28 = scmp.eq.s32.totalorder %s12, 1
    %p29 = por %p27, %p28
    %p30 = scmp.ne.s32.totalorder %s22, %s25
    %p31 = scmp.eq.s32.totalorder %s12, 0
    %p32 = por %p30, %p31
    %p33 = scmp.ne.s32.totalorder %s22, %s25
    %p34 = scmp.eq.s32.totalorder %s17, 1
    %p35 = por %p33, %p34
    %p36 = scmp.ne.s32.totalorder %s25, %s26
    %p37 = scmp.eq.s32.totalorder %s17, 0
    %p38 = por %p36, %p37
    %p39 = scmp.ne.s32.totalorder %s25, %s26
    %p40 = scmp.eq.s32.totalorder %s18, 1
    %p41 = por %p39, %p40
    %p43 = scmp.ne.s32.totalorder %s26, %s42
    %p44 = scmp.eq.s32.totalorder %s18, 0
    %p45 = por %p43, %p44
    %s47 = sadd.s32 %s46, 1
    %p50 = scmp.eq.s32.totalorder %s12, 1
    %p51 = scmp.ne.s32.totalorder %s46, %s48
    %p52 = scmp.eq.s32.totalorder %s12, 0
    %p53 = por %p51, %p52
    %p54 = scmp.ne.s32.totalorder %s46, %s48
    %p55 = scmp.eq.s32.totalorder %s17, 1
    %p56 = por %p54, %p55
    %p57 = scmp.ne.s32.totalorder %s48, %s49
    %p58 = scmp.eq.s32.totalorder %s17, 0
    %p59 = por %p57, %p58
    %p60 = scmp.ne.s32.totalorder %s48, %s49
    %p61 = scmp.eq.s32.totalorder %s18, 1
    %p62 = por %p60, %p61
    %p64 = scmp.ne.s32.totalorder %s49, %s63
    %p65 = scmp.eq.s32.totalorder %s18, 0
    %p66 = por %p64, %p65
    %s68 = sadd.s32 %s67, 1
    %p71 = scmp.eq.s32.totalorder %s12, 1
    %p72 = scmp.ne.s32.totalorder %s67, %s69
    %p73 = scmp.eq.s32.totalorder %s12, 0
    %p74 = por %p72, %p73
    %p75 = scmp.ne.s32.totalorder %s67, %s69
    %p76 = scmp.eq.s32.totalorder %s17, 1
    %p77 = por %p75, %p76
    %p78 = scmp.ne.s32.totalorder %s69, %s70
    %p79 = scmp.eq.s32.totalorder %s17, 0
    %p80 = por %p78, %p79
    %p81 = scmp.ne.s32.totalorder %s69, %s70
    %p82 = scmp.eq.s32.totalorder %s18, 1
    %p83 = por %p81, %p82
    %p85 = scmp.ne.s32.totalorder %s70, %s84
    %p86 = scmp.eq.s32.totalorder %s18, 0
    %p87 = por %p85, %p86
    %s89 = sadd.s32 %s88, 1
    %p92 = scmp.eq.s32.totalorder %s12, 1
    %p93 = scmp.ne.s32.totalorder %s88, %s90
    %p94 = scmp.eq.s32.totalorder %s12, 0
    %p95 = por %p93, %p94
    %p96 = scmp.ne.s32.totalorder %s88, %s90
    %p97 = scmp.eq.s32.totalorder %s17, 1
    %p98 = por %p96, %p97
    %p99 = scmp.ne.s32.totalorder %s90, %s91
    %p100 = scmp.eq.s32.totalorder %s17, 0
    %p101 = por %p99, %p100
    %p102 = scmp.ne.s32.totalorder %s90, %s91
    %p103 = scmp.eq.s32.totalorder %s18, 1
    %p104 = por %p102, %p103
    %p106 = scmp.ne.s32.totalorder %s91, %s105
    %p107 = scmp.eq.s32.totalorder %s18, 0
    %p108 = por %p106, %p107
    %s110 = sadd.s32 %s109, 1
    %p113 = scmp.eq.s32.totalorder %s12, 1
    %p114 = scmp.ne.s32.totalorder %s109, %s111
    %p115 = scmp.eq.s32.totalorder %s12, 0
    %p116 = por %p114, %p115
    %p117 = scmp.ne.s32.totalorder %s109, %s111
    %p118 = scmp.eq.s32.totalorder %s17, 1
    %p119 = por %p117, %p118
    %p120 = scmp.ne.s32.totalorder %s111, %s112
    %p121 = scmp.eq.s32.totalorder %s17, 0
    %p122 = por %p120, %p121
    %p123 = scmp.ne.s32.totalorder %s111, %s112
    %p124 = scmp.eq.s32.totalorder %s18, 1
    %p125 = por %p123, %p124
    %p127 = scmp.ne.s32.totalorder %s112, %s126
    %p128 = scmp.eq.s32.totalorder %s18, 0
    %p129 = por %p127, %p128
    %s131 = sadd.s32 %s130, 1
    %p134 = scmp.eq.s32.totalorder %s12, 1
    %p135 = scmp.ne.s32.totalorder %s130, %s132
    %p136 = scmp.eq.s32.totalorder %s12, 0
    %p137 = por %p135, %p136
    %p138 = scmp.ne.s32.totalorder %s130, %s132
    %p139 = scmp.eq.s32.totalorder %s17, 1
    %p140 = por %p138, %p139
    %p141 = scmp.ne.s32.totalorder %s132, %s133
    %p142 = scmp.eq.s32.totalorder %s17, 0
    %p143 = por %p141, %p142
    %p144 = scmp.ne.s32.totalorder %s132, %s133
    %p145 = scmp.eq.s32.totalorder %s18, 1
    %p146 = por %p144, %p145
    %p148 = scmp.ne.s32.totalorder %s133, %s147
    %p149 = scmp.eq.s32.totalorder %s18, 0
    %p150 = por %p148, %p149
    %s151 = ssub.s32 %s12, %s19
    %p152 = scmp.eq.s32.totalorder %s151, 0
    %s154 = sadd.s32 %s153, 1
    %s155 = scalar_select %p152, %s153, %s154
    %p158 = pneg %p152
    %p159 = scmp.eq.s32.totalorder %s12, 1
    %p160 = por %p158, %p159
    %p161 = scmp.ne.s32.totalorder %s153, %s156
    %p162 = scmp.eq.s32.totalorder %s12, 0
    %p163 = por %p161, %p162
    %p164 = scmp.ne.s32.totalorder %s153, %s156
    %p165 = scmp.eq.s32.totalorder %s17, 1
    %p166 = por %p164, %p165
    %p167 = scmp.ne.s32.totalorder %s156, %s157
    %p168 = scmp.eq.s32.totalorder %s17, 0
    %p169 = por %p167, %p168
    %p170 = scmp.ne.s32.totalorder %s156, %s157
    %p171 = scmp.eq.s32.totalorder %s18, 1
    %p172 = por %p170, %p171
    %p174 = scmp.ne.s32.totalorder %s157, %s173
    %p175 = scmp.eq.s32.totalorder %s18, 0
    %p176 = por %p174, %p175
    %p177 = scmp.le.s32.totalorder 1, %s12
    %p178 = scmp.lt.s32.totalorder %s12, 3
    %p179 = pnand %p177, %p178
    %p180 = pneg %p179
    // Predicated region
    $region9: #{up_forward.4} parent=5 // pred_check
      _
    $region10: #{up_forward.4} parent=5 // pred_check_branch
      %182 = sbr.rel (%p179) target = $region12
    $region11: #{up_forward.4} parent=5 // pred_region
      %s183 = ssub.s32 %s12, 1
      // Predicated region
      $region13: #{up_forward.4} parent=11 // pred_check
        %p184 = pneg %p59
      $region14: #{up_forward.4} parent=11 // pred_check_branch
        %186 = sbr.rel (%p184) target = $region16
      $region15: #{up_forward.4} parent=11 // pred_region
        _
      $region16: #{up_forward.4} parent=11 // pred_fallthru
        _
      // Predicated region
      $region17: #{up_forward.4} parent=11 // pred_check
        %p187 = pneg %p80
      $region18: #{up_forward.4} parent=11 // pred_check_branch
        %189 = sbr.rel (%p187) target = $region20
      $region19: #{up_forward.4} parent=11 // pred_region
        _
      $region20: #{up_forward.4} parent=11 // pred_fallthru
        _
      // Predicated region
      $region21: #{up_forward.4} parent=11 // pred_check
        %p190 = pneg %p101
      $region22: #{up_forward.4} parent=11 // pred_check_branch
        %192 = sbr.rel (%p190) target = $region24
      $region23: #{up_forward.4} parent=11 // pred_region
        _
      $region24: #{up_forward.4} parent=11 // pred_fallthru
        _
      // Predicated region
      $region25: #{up_forward.4} parent=11 // pred_check
        %p193 = pneg %p122
      $region26: #{up_forward.4} parent=11 // pred_check_branch
        %195 = sbr.rel (%p193) target = $region28
      $region27: #{up_forward.4} parent=11 // pred_region
        _
      $region28: #{up_forward.4} parent=11 // pred_fallthru
        _
      // Predicated region
      $region29: #{up_forward.4} parent=11 // pred_check
        %p196 = pneg %p143
      $region30: #{up_forward.4} parent=11 // pred_check_branch
        %198 = sbr.rel (%p196) target = $region32
      $region31: #{up_forward.4} parent=11 // pred_region
        _
      $region32: #{up_forward.4} parent=11 // pred_fallthru
        _
    $region12: #{up_forward.4} parent=5 // pred_fallthru
      _
    %p199 = scmp.lt.s32.totalorder %s12, 2
    // Predicated region
    $region33: #{up_forward.4} parent=5 // pred_check
      %p200 = pneg %p199
    $region34: #{up_forward.4} parent=5 // pred_check_branch
      %202 = sbr.rel (%p200) target = $region36
    $region35: #{up_forward.4} parent=5 // pred_region
      // Predicated region
      $region37: #{up_forward.4} parent=35 // pred_check
        %p203 = pneg %p32
      $region38: #{up_forward.4} parent=35 // pred_check_branch
        %205 = sbr.rel (%p203) target = $region40
      $region39: #{up_forward.4} parent=35 // pred_region
        %p206 = scmp.lt.s32.totalorder %s12, 1
        %s207 = scalar_select %p206, %s12, 1
        %s208 = smul.addr %s207, 2
        %s209 = smul.addr %s208, 4
        %s210 = scalar_lea.vmem %s0, %s209
      $region40: #{up_forward.4} parent=35 // pred_fallthru
        _
    $region36: #{up_forward.4} parent=5 // pred_fallthru
      _
    %p211 = scmp.le.s32.totalorder 1, %s12
    %p212 = scmp.lt.s32.totalorder %s12, 3
    %p213 = pnand %p211, %p212
    %p214 = pneg %p213
    // Predicated region
    $region41: #{up_forward.4} parent=5 // pred_check
      _
    $region42: #{up_forward.4} parent=5 // pred_check_branch
      %216 = sbr.rel (%p213) target = $region44
    $region43: #{up_forward.4} parent=5 // pred_region
      %s217 = ssub.s32 %s12, 1
      %p218 = scmp.lt.s32.totalorder %s17, 1
      %s219 = scalar_select %p218, %s17, 1
      %s220 = smul.addr %s219, 2
      %s221 = smul.addr %s220, 4
      %s222 = scalar_lea.vmem %s0, %s221
      %p223 = pneg %p38
      %p224 = pneg %p35
      %p225 = pneg %p59
      %p226 = pneg %p56
      %p227 = pneg %p80
      %p228 = pneg %p77
      %p229 = pneg %p101
      %p230 = pneg %p98
      %p231 = pneg %p122
      %p232 = pneg %p119
      %p233 = pneg %p143
      %p234 = pneg %p140
      %p235 = pneg %p169
      %p236 = pneg %p166
      %p237 = scmp.lt.s32.totalorder %s17, 1
      %s238 = scalar_select %p237, %s17, 1
      %s239 = smul.addr %s238, 4
      %s240 = smul.addr %s239, 8
      %s241 = scalar_lea.vmem %s6, %s240
      %p242 = scmp.lt.s32.totalorder %s17, 1
      %s243 = scalar_select %p242, %s17, 1
      %s244 = smul.addr %s243, 2
      %s245 = smul.addr %s244, 4
      %s246 = scalar_lea.vmem %s0, %s245
      %p247 = scmp.lt.s32.totalorder %s17, 1
      %s248 = scalar_select %p247, %s17, 1
      %s249 = smul.addr %s248, 4
      %s250 = smul.addr %s249, 8
      %s251 = scalar_lea.vmem %s6, %s250
      %v253 = vld [vmem:[%s246] sm:$0xf]
      %v254 = vld [vmem:[%s246 + $0x4] sm:$0xf]
      %v255 = vld [vmem:[%s1] sm:$0xff]
      %v256 = vld [vmem:[%s1 + $0x8] sm:$0xff]
      %v257 = vld [vmem:[%s1 + $0x10] sm:$0xff]
      %v258 = vld [vmem:[%s1 + $0x18] sm:$0xff]
      %v259 = vld [vmem:[%s1 + $0x20] sm:$0xff]
      %v260 = vld [vmem:[%s1 + $0x28] sm:$0xff]
      %v261 = vld [vmem:[%s1 + $0x30] sm:$0xff]
      %v262 = vld [vmem:[%s1 + $0x38] sm:$0xff]
      %v263 = vld [vmem:[%s1 + $0x40] sm:$0xff]
      %v264 = vld [vmem:[%s1 + $0x48] sm:$0xff]
      %v265 = vld [vmem:[%s1 + $0x50] sm:$0xff]
      %v266 = vld [vmem:[%s1 + $0x58] sm:$0xff]
      %v267 = vld [vmem:[%s1 + $0x60] sm:$0xff]
      %v268 = vld [vmem:[%s1 + $0x68] sm:$0xff]
      %v269 = vld [vmem:[%s1 + $0x70] sm:$0xff]
      %v270 = vld [vmem:[%s1 + $0x78] sm:$0xff]
      %v273 = vunpack.c.l.b16 %v253
      %v274 = vunpack.c.l.b16 %v254
      %v275 = vpack.c.b16 %v274, %v273
      %v293 = vunpack.c.l.b16 %v255
      %v294 = vunpack.c.h.b16 %v255
      %v295 = vunpack.c.l.b16 %v256
      %v296 = vunpack.c.h.b16 %v256
      %v297 = vunpack.c.l.b16 %v257
      %v298 = vunpack.c.h.b16 %v257
      %v299 = vunpack.c.l.b16 %v258
      %v300 = vunpack.c.h.b16 %v258
      %v301 = vunpack.c.l.b16 %v259
      %v302 = vunpack.c.h.b16 %v259
      %v303 = vunpack.c.l.b16 %v260
      %v304 = vunpack.c.h.b16 %v260
      %v305 = vunpack.c.l.b16 %v261
      %v306 = vunpack.c.h.b16 %v261
      %v307 = vunpack.c.l.b16 %v262
      %v308 = vunpack.c.h.b16 %v262
      %v309 = vunpack.c.l.b16 %v263
      %v310 = vunpack.c.h.b16 %v263
      %v311 = vunpack.c.l.b16 %v264
      %v312 = vunpack.c.h.b16 %v264
      %v313 = vunpack.c.l.b16 %v265
      %v314 = vunpack.c.h.b16 %v265
      %v315 = vunpack.c.l.b16 %v266
      %v316 = vunpack.c.h.b16 %v266
      %v317 = vunpack.c.l.b16 %v267
      %v318 = vunpack.c.h.b16 %v267
      %v319 = vunpack.c.l.b16 %v268
      %v320 = vunpack.c.h.b16 %v268
      %v321 = vunpack.c.l.b16 %v269
      %v322 = vunpack.c.h.b16 %v269
      %v323 = vunpack.c.l.b16 %v270
      %v324 = vunpack.c.h.b16 %v270
      %v325 = vpack.c.b16 %v295, %v293
      %v326 = vpack.c.b16 %v296, %v294
      %v327 = vpack.c.b16 %v299, %v297
      %v328 = vpack.c.b16 %v300, %v298
      %v329 = vpack.c.b16 %v303, %v301
      %v330 = vpack.c.b16 %v304, %v302
      %v331 = vpack.c.b16 %v307, %v305
      %v332 = vpack.c.b16 %v308, %v306
      %v333 = vpack.c.b16 %v311, %v309
      %v334 = vpack.c.b16 %v312, %v310
      %v335 = vpack.c.b16 %v315, %v313
      %v336 = vpack.c.b16 %v316, %v314
      %v337 = vpack.c.b16 %v319, %v317
      %v338 = vpack.c.b16 %v320, %v318
      %v339 = vpack.c.b16 %v323, %v321
      %v340 = vpack.c.b16 %v324, %v322
      %357 = vmatprep.subr.bf16.mxu0 %v326
      %358 = vmatpush1.bf16.msra.mxu0 %v325
      %359 = vmatprep.subr.bf16.mxu0 %v328
      %360 = vmatpush1.bf16.msra.mxu0 %v327
      %361 = vmatprep.subr.bf16.mxu0 %v330
      %362 = vmatpush1.bf16.msra.mxu0 %v329
      %363 = vmatprep.subr.bf16.mxu0 %v332
      %364 = vmatpush1.bf16.msra.mxu0 %v331
      %365 = vmatprep.subr.bf16.mxu0 %v334
      %366 = vmatpush1.bf16.msra.mxu0 %v333
      %367 = vmatprep.subr.bf16.mxu0 %v336
      %368 = vmatpush1.bf16.msra.mxu0 %v335
      %369 = vmatprep.subr.bf16.mxu0 %v338
      %370 = vmatpush1.bf16.msra.mxu0 %v337
      %371 = vmatprep.subr.bf16.mxu0 %v340
      %372 = vmatpush1.bf16.msra.mxu0 %v339
      %373 = vmatprep.subr.bf16.mxu0 0
      %374 = vmatpush1.bf16.msra.mxu0 0
      %375 = vmatprep.subr.bf16.mxu0 0
      %376 = vmatpush1.bf16.msra.mxu0 0
      %377 = vmatprep.subr.bf16.mxu0 0
      %378 = vmatpush1.bf16.msra.mxu0 0
      %379 = vmatprep.subr.bf16.mxu0 0
      %380 = vmatpush1.bf16.msra.mxu0 0
      %381 = vmatprep.subr.bf16.mxu0 0
      %382 = vmatpush1.bf16.msra.mxu0 0
      %383 = vmatprep.subr.bf16.mxu0 0
      %384 = vmatpush1.bf16.msra.mxu0 0
      %385 = vmatprep.subr.bf16.mxu0 0
      %386 = vmatpush1.bf16.msra.mxu0 0
      %387 = vmatprep.subr.bf16.mxu0 0
      %388 = vmatpush1.bf16.msra.mxu0 0
      %389 = vmatprep.mubr.bf16.mxu0 0
      %390 = vmatmul.mubr.bf16.gmra.mrb[0].mxu0 %v275
      %v391 = vpop.f32.mrb[0].mxu0
      %v392 = vadd.f32 0.0, %v391
      %v393 = vpop.f32.mrb[0].mxu0
      %v394 = vadd.f32 0.0, %v393
      %v395 = vpop.f32.mrb[0].mxu0
      %v396 = vadd.f32 0.0, %v395
      %v397 = vpop.f32.mrb[0].mxu0
      %v398 = vadd.f32 0.0, %v397
      %399 = vdwg.mxu0
      %v400 = vld [vmem:[%s2] sm:$0xff]
      %v401 = vld [vmem:[%s2 + $0x8] sm:$0xff]
      %v402 = vld [vmem:[%s2 + $0x10] sm:$0xff]
      %v403 = vld [vmem:[%s2 + $0x18] sm:$0xff]
      %v404 = vld [vmem:[%s2 + $0x20] sm:$0xff]
      %v405 = vld [vmem:[%s2 + $0x28] sm:$0xff]
      %v406 = vld [vmem:[%s2 + $0x30] sm:$0xff]
      %v407 = vld [vmem:[%s2 + $0x38] sm:$0xff]
      %v408 = vld [vmem:[%s2 + $0x40] sm:$0xff]
      %v409 = vld [vmem:[%s2 + $0x48] sm:$0xff]
      %v410 = vld [vmem:[%s2 + $0x50] sm:$0xff]
      %v411 = vld [vmem:[%s2 + $0x58] sm:$0xff]
      %v412 = vld [vmem:[%s2 + $0x60] sm:$0xff]
      %v413 = vld [vmem:[%s2 + $0x68] sm:$0xff]
      %v414 = vld [vmem:[%s2 + $0x70] sm:$0xff]
      %v415 = vld [vmem:[%s2 + $0x78] sm:$0xff]
      %v416 = vld [vmem:[%s2 + $0x80] sm:$0xff]
      %v417 = vld [vmem:[%s2 + $0x88] sm:$0xff]
      %v418 = vld [vmem:[%s2 + $0x90] sm:$0xff]
      %v419 = vld [vmem:[%s2 + $0x98] sm:$0xff]
      %v420 = vld [vmem:[%s2 + $0xa0] sm:$0xff]
      %v421 = vld [vmem:[%s2 + $0xa8] sm:$0xff]
      %v422 = vld [vmem:[%s2 + $0xb0] sm:$0xff]
      %v423 = vld [vmem:[%s2 + $0xb8] sm:$0xff]
      %v424 = vld [vmem:[%s2 + $0xc0] sm:$0xff]
      %v425 = vld [vmem:[%s2 + $0xc8] sm:$0xff]
      %v426 = vld [vmem:[%s2 + $0xd0] sm:$0xff]
      %v427 = vld [vmem:[%s2 + $0xd8] sm:$0xff]
      %v428 = vld [vmem:[%s2 + $0xe0] sm:$0xff]
      %v429 = vld [vmem:[%s2 + $0xe8] sm:$0xff]
      %v430 = vld [vmem:[%s2 + $0xf0] sm:$0xff]
      %v431 = vld [vmem:[%s2 + $0xf8] sm:$0xff]
      %432 = vmatprep.subr.mxu0 0.0
      %433 = vmatpush1.msra.mxu0 %v400
      %434 = vmatprep.subr.mxu0 0.0
      %435 = vmatpush1.msra.mxu0 %v401
      %436 = vmatprep.subr.mxu0 0.0
      %437 = vmatpush1.msra.mxu0 %v402
      %438 = vmatprep.subr.mxu0 0.0
      %439 = vmatpush1.msra.mxu0 %v403
      %440 = vmatprep.subr.mxu0 0.0
      %441 = vmatpush1.msra.mxu0 %v404
      %442 = vmatprep.subr.mxu0 0.0
      %443 = vmatpush1.msra.mxu0 %v405
      %444 = vmatprep.subr.mxu0 0.0
      %445 = vmatpush1.msra.mxu0 %v406
      %446 = vmatprep.subr.mxu0 0.0
      %447 = vmatpush1.msra.mxu0 %v407
      %448 = vmatprep.subr.mxu0 0.0
      %449 = vmatpush1.msra.mxu0 %v408
      %450 = vmatprep.subr.mxu0 0.0
      %451 = vmatpush1.msra.mxu0 %v409
      %452 = vmatprep.subr.mxu0 0.0
      %453 = vmatpush1.msra.mxu0 %v410
      %454 = vmatprep.subr.mxu0 0.0
      %455 = vmatpush1.msra.mxu0 %v411
      %456 = vmatprep.subr.mxu0 0.0
      %457 = vmatpush1.msra.mxu0 %v412
      %458 = vmatprep.subr.mxu0 0.0
      %459 = vmatpush1.msra.mxu0 %v413
      %460 = vmatprep.subr.mxu0 0.0
      %461 = vmatpush1.msra.mxu0 %v414
      %462 = vmatprep.subr.mxu0 0.0
      %463 = vmatpush1.msra.mxu0 %v415
      %464 = vmatprep.subr.mxu0 0.0
      %465 = vmatpush1.msra.mxu0 %v416
      %466 = vmatprep.subr.mxu0 0.0
      %467 = vmatpush1.msra.mxu0 %v417
      %468 = vmatprep.subr.mxu0 0.0
      %469 = vmatpush1.msra.mxu0 %v418
      %470 = vmatprep.subr.mxu0 0.0
      %471 = vmatpush1.msra.mxu0 %v419
      %472 = vmatprep.subr.mxu0 0.0
      %473 = vmatpush1.msra.mxu0 %v420
      %474 = vmatprep.subr.mxu0 0.0
      %475 = vmatpush1.msra.mxu0 %v421
      %476 = vmatprep.subr.mxu0 0.0
      %477 = vmatpush1.msra.mxu0 %v422
      %478 = vmatprep.subr.mxu0 0.0
      %479 = vmatpush1.msra.mxu0 %v423
      %480 = vmatprep.subr.mxu0 0.0
      %481 = vmatpush1.msra.mxu0 %v424
      %482 = vmatprep.subr.mxu0 0.0
      %483 = vmatpush1.msra.mxu0 %v425
      %484 = vmatprep.subr.mxu0 0.0
      %485 = vmatpush1.msra.mxu0 %v426
      %486 = vmatprep.subr.mxu0 0.0
      %487 = vmatpush1.msra.mxu0 %v427
      %488 = vmatprep.subr.mxu0 0.0
      %489 = vmatpush1.msra.mxu0 %v428
      %490 = vmatprep.subr.mxu0 0.0
      %491 = vmatpush1.msra.mxu0 %v429
      %492 = vmatprep.subr.mxu0 0.0
      %493 = vmatpush1.msra.mxu0 %v430
      %494 = vmatprep.subr.mxu0 0.0
      %495 = vmatpush1.msra.mxu0 %v431
      %496 = vmatprep.mubr.f32.mxu0 %v394
      %497 = vmatmul.mubr.f32.gmra.mrb[0].mxu0 %v392
      %v498 = vpop.f32.mrb[0].mxu0
      %v499 = vadd.f32 0.0, %v498
      %v500 = vpop.f32.mrb[0].mxu0
      %501 = vmatprep.mubr.f32.mxu0 %v398
      %502 = vmatmul.mubr.f32.gmra.mrb[0].mxu0 %v396
      %v503 = vpop.f32.mrb[0].mxu0
      %v504 = vadd.f32 0.0, %v503
      %v505 = vpop.f32.mrb[0].mxu0
      %506 = vdwg.mxu0
      %v507 = vmul.f32 %v499, 0.015625
      %v508 = vmul.f32 %v504, 0.015625
      %v509 = vmul.f32 %v392, %v392
      %v510 = vmul.f32 %v394, %v394
      %v511 = vmul.f32 %v396, %v396
      %v512 = vmul.f32 %v398, %v398
      %513 = vmatprep.subr.mxu0 0.0
      %514 = vmatpush1.msra.mxu0 %v400
      %515 = vmatprep.subr.mxu0 0.0
      %516 = vmatpush1.msra.mxu0 %v401
      %517 = vmatprep.subr.mxu0 0.0
      %518 = vmatpush1.msra.mxu0 %v402
      %519 = vmatprep.subr.mxu0 0.0
      %520 = vmatpush1.msra.mxu0 %v403
      %521 = vmatprep.subr.mxu0 0.0
      %522 = vmatpush1.msra.mxu0 %v404
      %523 = vmatprep.subr.mxu0 0.0
      %524 = vmatpush1.msra.mxu0 %v405
      %525 = vmatprep.subr.mxu0 0.0
      %526 = vmatpush1.msra.mxu0 %v406
      %527 = vmatprep.subr.mxu0 0.0
      %528 = vmatpush1.msra.mxu0 %v407
      %529 = vmatprep.subr.mxu0 0.0
      %530 = vmatpush1.msra.mxu0 %v408
      %531 = vmatprep.subr.mxu0 0.0
      %532 = vmatpush1.msra.mxu0 %v409
      %533 = vmatprep.subr.mxu0 0.0
      %534 = vmatpush1.msra.mxu0 %v410
      %535 = vmatprep.subr.mxu0 0.0
      %536 = vmatpush1.msra.mxu0 %v411
      %537 = vmatprep.subr.mxu0 0.0
      %538 = vmatpush1.msra.mxu0 %v412
      %539 = vmatprep.subr.mxu0 0.0
      %540 = vmatpush1.msra.mxu0 %v413
      %541 = vmatprep.subr.mxu0 0.0
      %542 = vmatpush1.msra.mxu0 %v414
      %543 = vmatprep.subr.mxu0 0.0
      %544 = vmatpush1.msra.mxu0 %v415
      %545 = vmatprep.subr.mxu0 0.0
      %546 = vmatpush1.msra.mxu0 %v416
      %547 = vmatprep.subr.mxu0 0.0
      %548 = vmatpush1.msra.mxu0 %v417
      %549 = vmatprep.subr.mxu0 0.0
      %550 = vmatpush1.msra.mxu0 %v418
      %551 = vmatprep.subr.mxu0 0.0
      %552 = vmatpush1.msra.mxu0 %v419
      %553 = vmatprep.subr.mxu0 0.0
      %554 = vmatpush1.msra.mxu0 %v420
      %555 = vmatprep.subr.mxu0 0.0
      %556 = vmatpush1.msra.mxu0 %v421
      %557 = vmatprep.subr.mxu0 0.0
      %558 = vmatpush1.msra.mxu0 %v422
      %559 = vmatprep.subr.mxu0 0.0
      %560 = vmatpush1.msra.mxu0 %v423
      %561 = vmatprep.subr.mxu0 0.0
      %562 = vmatpush1.msra.mxu0 %v424
      %563 = vmatprep.subr.mxu0 0.0
      %564 = vmatpush1.msra.mxu0 %v425
      %565 = vmatprep.subr.mxu0 0.0
      %566 = vmatpush1.msra.mxu0 %v426
      %567 = vmatprep.subr.mxu0 0.0
      %568 = vmatpush1.msra.mxu0 %v427
      %569 = vmatprep.subr.mxu0 0.0
      %570 = vmatpush1.msra.mxu0 %v428
      %571 = vmatprep.subr.mxu0 0.0
      %572 = vmatpush1.msra.mxu0 %v429
      %573 = vmatprep.subr.mxu0 0.0
      %574 = vmatpush1.msra.mxu0 %v430
      %575 = vmatprep.subr.mxu0 0.0
      %576 = vmatpush1.msra.mxu0 %v431
      %577 = vmatprep.mubr.f32.mxu0 %v510
      %578 = vmatmul.mubr.f32.gmra.mrb[0].mxu0 %v509
      %v579 = vpop.f32.mrb[0].mxu0
      %v580 = vadd.f32 0.0, %v579
      %v581 = vpop.f32.mrb[0].mxu0
      %582 = vmatprep.mubr.f32.mxu0 %v512
      %583 = vmatmul.mubr.f32.gmra.mrb[0].mxu0 %v511
      %v584 = vpop.f32.mrb[0].mxu0
      %v585 = vadd.f32 0.0, %v584
      %v586 = vpop.f32.mrb[0].mxu0
      %587 = vdwg.mxu0
      %v588 = vmul.f32 %v580, 0.015625
      %v589 = vmul.f32 %v585, 0.015625
      %v590 = vmul.f32 %v507, %v507
      %v591 = vmul.f32 %v508, %v508
      %v592 = vsub.f32 %v588, %v590
      %v593 = vsub.f32 %v589, %v591
      %v594 = vadd.f32 %v592, 1e-05
      %v595 = vadd.f32 %v593, 1e-05
      %v596 = vrsqrt.pop %v594
      %v597 = vrsqrt.pop %v595
      %v598 = vld [vmem:[%s3] sm:$0xff]
      %v600 = vcombine.high %v598, %v598
      %vm601 = vcmask 31744
      %v603 = vsel %vm601, %v507, 0
      %v606 = vsel %vm601, %v508, 0
      %vm608 = vcmask 1043456
      %v609 = vsel %vm608, %v598, 0
      %v611 = vsel %vm608, %v600, 0
      %613 = vmatprep.subr.mxu0 %v611
      %614 = vmatpush1.msra.mxu0 %v609
      %615 = vmatprep.subr.mxu0 0.0
      %616 = vmatpush1.msra.mxu0 0.0
      %617 = vmatprep.subr.mxu0 0.0
      %618 = vmatpush1.msra.mxu0 0.0
      %619 = vmatprep.subr.mxu0 0.0
      %620 = vmatpush1.msra.mxu0 0.0
      %621 = vmatprep.subr.mxu0 0.0
      %622 = vmatpush1.msra.mxu0 0.0
      %623 = vmatprep.subr.mxu0 0.0
      %624 = vmatpush1.msra.mxu0 0.0
      %625 = vmatprep.subr.mxu0 0.0
      %626 = vmatpush1.msra.mxu0 0.0
      %627 = vmatprep.subr.mxu0 0.0
      %628 = vmatpush1.msra.mxu0 0.0
      %629 = vmatprep.subr.mxu0 0.0
      %630 = vmatpush1.msra.mxu0 0.0
      %631 = vmatprep.subr.mxu0 0.0
      %632 = vmatpush1.msra.mxu0 0.0
      %633 = vmatprep.subr.mxu0 0.0
      %634 = vmatpush1.msra.mxu0 0.0
      %635 = vmatprep.subr.mxu0 0.0
      %636 = vmatpush1.msra.mxu0 0.0
      %637 = vmatprep.subr.mxu0 0.0
      %638 = vmatpush1.msra.mxu0 0.0
      %639 = vmatprep.subr.mxu0 0.0
      %640 = vmatpush1.msra.mxu0 0.0
      %641 = vmatprep.subr.mxu0 0.0
      %642 = vmatpush1.msra.mxu0 0.0
      %643 = vmatprep.subr.mxu0 0.0
      %644 = vmatpush1.msra.mxu0 0.0
      %645 = vmatprep.subr.mxu0 0.0
      %646 = vmatpush1.msra.mxu0 0.0
      %647 = vmatprep.subr.mxu0 0.0
      %648 = vmatpush1.msra.mxu0 0.0
      %649 = vmatprep.subr.mxu0 0.0
      %650 = vmatpush1.msra.mxu0 0.0
      %651 = vmatprep.subr.mxu0 0.0
      %652 = vmatpush1.msra.mxu0 0.0
      %653 = vmatprep.subr.mxu0 0.0
      %654 = vmatpush1.msra.mxu0 0.0
      %655 = vmatprep.subr.mxu0 0.0
      %656 = vmatpush1.msra.mxu0 0.0
      %657 = vmatprep.subr.mxu0 0.0
      %658 = vmatpush1.msra.mxu0 0.0
      %659 = vmatprep.subr.mxu0 0.0
      %660 = vmatpush1.msra.mxu0 0.0
      %661 = vmatprep.subr.mxu0 0.0
      %662 = vmatpush1.msra.mxu0 0.0
      %663 = vmatprep.subr.mxu0 0.0
      %664 = vmatpush1.msra.mxu0 0.0
      %665 = vmatprep.subr.mxu0 0.0
      %666 = vmatpush1.msra.mxu0 0.0
      %667 = vmatprep.subr.mxu0 0.0
      %668 = vmatpush1.msra.mxu0 0.0
      %669 = vmatprep.subr.mxu0 0.0
      %670 = vmatpush1.msra.mxu0 0.0
      %671 = vmatprep.subr.mxu0 0.0
      %672 = vmatpush1.msra.mxu0 0.0
      %673 = vmatprep.subr.mxu0 0.0
      %674 = vmatpush1.msra.mxu0 0.0
      %675 = vmatprep.subr.mxu0 0.0
      %676 = vmatpush1.msra.mxu0 0.0
      %677 = vmatprep.mubr.f32.mxu0 0.0
      %678 = vmatmul.mubr.f32.gmra.mrb[0].mxu0 %v603
      %v679 = vpop.f32.mrb[0].mxu0
      %v680 = vadd.f32 0.0, %v679
      %v681 = vpop.f32.mrb[0].mxu0
      %v682 = vadd.f32 0.0, %v681
      %683 = vmatprep.mubr.f32.mxu0 0.0
      %684 = vmatmul.mubr.f32.gmra.mrb[0].mxu0 %v606
      %v685 = vpop.f32.mrb[0].mxu0
      %v686 = vadd.f32 0.0, %v685
      %v687 = vpop.f32.mrb[0].mxu0
      %v688 = vadd.f32 0.0, %v687
      %689 = vdwg.mxu0
      %v691 = vsel %vm601, %v596, 0
      %v694 = vsel %vm601, %v597, 0
      %696 = vmatprep.subr.mxu0 %v611
      %697 = vmatpush1.msra.mxu0 %v609
      %698 = vmatprep.subr.mxu0 0.0
      %699 = vmatpush1.msra.mxu0 0.0
      %700 = vmatprep.subr.mxu0 0.0
      %701 = vmatpush1.msra.mxu0 0.0
      %702 = vmatprep.subr.mxu0 0.0
      %703 = vmatpush1.msra.mxu0 0.0
      %704 = vmatprep.subr.mxu0 0.0
      %705 = vmatpush1.msra.mxu0 0.0
      %706 = vmatprep.subr.mxu0 0.0
      %707 = vmatpush1.msra.mxu0 0.0
      %708 = vmatprep.subr.mxu0 0.0
      %709 = vmatpush1.msra.mxu0 0.0
      %710 = vmatprep.subr.mxu0 0.0
      %711 = vmatpush1.msra.mxu0 0.0
      %712 = vmatprep.subr.mxu0 0.0
      %713 = vmatpush1.msra.mxu0 0.0
      %714 = vmatprep.subr.mxu0 0.0
      %715 = vmatpush1.msra.mxu0 0.0
      %716 = vmatprep.subr.mxu0 0.0
      %717 = vmatpush1.msra.mxu0 0.0
      %718 = vmatprep.subr.mxu0 0.0
      %719 = vmatpush1.msra.mxu0 0.0
      %720 = vmatprep.subr.mxu0 0.0
      %721 = vmatpush1.msra.mxu0 0.0
      %722 = vmatprep.subr.mxu0 0.0
      %723 = vmatpush1.msra.mxu0 0.0
      %724 = vmatprep.subr.mxu0 0.0
      %725 = vmatpush1.msra.mxu0 0.0
      %726 = vmatprep.subr.mxu0 0.0
      %727 = vmatpush1.msra.mxu0 0.0
      %728 = vmatprep.subr.mxu0 0.0
      %729 = vmatpush1.msra.mxu0 0.0
      %730 = vmatprep.subr.mxu0 0.0
      %731 = vmatpush1.msra.mxu0 0.0
      %732 = vmatprep.subr.mxu0 0.0
      %733 = vmatpush1.msra.mxu0 0.0
      %734 = vmatprep.subr.mxu0 0.0
      %735 = vmatpush1.msra.mxu0 0.0
      %736 = vmatprep.subr.mxu0 0.0
      %737 = vmatpush1.msra.mxu0 0.0
      %738 = vmatprep.subr.mxu0 0.0
      %739 = vmatpush1.msra.mxu0 0.0
      %740 = vmatprep.subr.mxu0 0.0
      %741 = vmatpush1.msra.mxu0 0.0
      %742 = vmatprep.subr.mxu0 0.0
      %743 = vmatpush1.msra.mxu0 0.0
      %744 = vmatprep.subr.mxu0 0.0
      %745 = vmatpush1.msra.mxu0 0.0
      %746 = vmatprep.subr.mxu0 0.0
      %747 = vmatpush1.msra.mxu0 0.0
      %748 = vmatprep.subr.mxu0 0.0
      %749 = vmatpush1.msra.mxu0 0.0
      %750 = vmatprep.subr.mxu0 0.0
      %751 = vmatpush1.msra.mxu0 0.0
      %752 = vmatprep.subr.mxu0 0.0
      %753 = vmatpush1.msra.mxu0 0.0
      %754 = vmatprep.subr.mxu0 0.0
      %755 = vmatpush1.msra.mxu0 0.0
      %756 = vmatprep.subr.mxu0 0.0
      %757 = vmatpush1.msra.mxu0 0.0
      %758 = vmatprep.subr.mxu0 0.0
      %759 = vmatpush1.msra.mxu0 0.0
      %760 = vmatprep.mubr.f32.mxu0 0.0
      %761 = vmatmul.mubr.f32.gmra.mrb[0].mxu0 %v691
      %v762 = vpop.f32.mrb[0].mxu0
      %v763 = vadd.f32 0.0, %v762
      %v764 = vpop.f32.mrb[0].mxu0
      %v765 = vadd.f32 0.0, %v764
      %766 = vmatprep.mubr.f32.mxu0 0.0
      %767 = vmatmul.mubr.f32.gmra.mrb[0].mxu0 %v694
      %v768 = vpop.f32.mrb[0].mxu0
      %v769 = vadd.f32 0.0, %v768
      %v770 = vpop.f32.mrb[0].mxu0
      %v771 = vadd.f32 0.0, %v770
      %772 = vdwg.mxu0
      %v773 = vsub.f32 %v392, %v680
      %v774 = vsub.f32 %v394, %v682
      %v775 = vsub.f32 %v396, %v686
      %v776 = vsub.f32 %v398, %v688
      %v777 = vmul.f32 %v773, %v763
      %v778 = vmul.f32 %v774, %v765
      %v779 = vmul.f32 %v775, %v769
      %v780 = vmul.f32 %v776, %v771
      %v781 = vld [vmem:[%s4] sm:$0x3]
      %v783 = vlaneseq
      %v784 = vshrl.u32 %v783, 7
      %v785 = vsub.s32 0, %v784
      %v786 = vrot.slane %v781, %v785
      %v787 = vlaneseq
      %v788 = vshrl.u32 %v787, 7
      %v789 = vsub.s32 1, %v788
      %v790 = vrot.slane %v781, %v789
      %v793 = vmul.f32 %v777, %v786
      %v794 = vmul.f32 %v778, %v790
      %v795 = vmul.f32 %v779, %v786
      %v796 = vmul.f32 %v780, %v790
      %v797 = vld [vmem:[%s5] sm:$0x3]
      %v799 = vlaneseq
      %v800 = vshrl.u32 %v799, 7
      %v801 = vsub.s32 0, %v800
      %v802 = vrot.slane %v797, %v801
      %v803 = vlaneseq
      %v804 = vshrl.u32 %v803, 7
      %v805 = vsub.s32 1, %v804
      %v806 = vrot.slane %v797, %v805
      %v809 = vadd.f32 %v793, %v802
      %v810 = vadd.f32 %v794, %v806
      %v811 = vadd.f32 %v795, %v802
      %v812 = vadd.f32 %v796, %v806
      %813 = vst [vmem:[%s251] sm:$0xff] %v809
      %814 = vst [vmem:[%s251 + $0x8] sm:$0xff] %v810
      %815 = vst [vmem:[%s251 + $0x10] sm:$0xff] %v811
      %816 = vst [vmem:[%s251 + $0x18] sm:$0xff] %v812
      %p817 = scmp.lt.s32.totalorder %s17, 1
      %s818 = scalar_select %p817, %s17, 1
      %s819 = smul.addr %s818, 4
      %s820 = smul.addr %s819, 8
      %s821 = scalar_lea.vmem %s6, %s820
      // Predicated region
      $region45: #{up_forward.4} parent=43 // pred_check
        %p822 = pneg %p166
      $region46: #{up_forward.4} parent=43 // pred_check_branch
        %824 = sbr.rel (%p822) target = $region48
      $region47: #{up_forward.4} parent=43 // pred_region
        _
      $region48: #{up_forward.4} parent=43 // pred_fallthru
        _
    $region44: #{up_forward.4} parent=5 // pred_fallthru
      _
    %p825 = scmp.le.s32.totalorder 2, %s12
    // Predicated region
    $region49: #{up_forward.4} parent=5 // pred_check
      %p826 = pneg %p825
    $region50: #{up_forward.4} parent=5 // pred_check_branch
      %828 = sbr.rel (%p826) target = $region52
    $region51: #{up_forward.4} parent=5 // pred_region
      %s829 = ssub.s32 %s12, 2
      // Predicated region
      $region53: #{up_forward.4} parent=51 // pred_check
        %p830 = pneg %p172
      $region54: #{up_forward.4} parent=51 // pred_check_branch
        %832 = sbr.rel (%p830) target = $region56
      $region55: #{up_forward.4} parent=51 // pred_region
        %p833 = scmp.lt.s32.totalorder %s18, 1
        %s834 = scalar_select %p833, %s18, 1
        %s835 = smul.addr %s834, 4
        %s836 = smul.addr %s835, 8
        %s837 = scalar_lea.vmem %s6, %s836
      $region56: #{up_forward.4} parent=51 // pred_fallthru
        _
    $region52: #{up_forward.4} parent=5 // pred_fallthru
      _
  $region6: #{up_forward.4} parent=0 // loop_footer
    %s16 = sadd.s32 1, %s12
  $region7: #{up_forward.4} parent=0 // loop_footer_branch
    %11 = sbr.rel target = $region3
  $region8: #{up_forward.4} parent=0 // loop_exit
    _

// kernel: up_forward.5
$region0: #{up_forward.5}
  #allocation0 [shape = 'u32[]', space=smem, size = 0x4, offset = 0x4, fixed_abs, tag = 'smem constant byte address 0x4 - core index']
  #allocation1 [shape = 'u32[144,128]{1,0:T(1,128)}', space=vmem, size = 0x12000, scoped, tag = 'internal scratch']
  #allocation2 [shape = 'f32[64,384]{1,0:T(8,128)}', space=vmem, size = 0x18000, scoped, tag = 'scratch operand']
  %s0 = inlined_call_operand.vmem [shape: f32[2,64,128], index: 0, kind: input, shape index: {}]
  %s1 = inlined_call_operand.vmem [shape: f32[1,128], index: 1, kind: input, shape index: {}]
  %s2 = inlined_call_operand.vmem [shape: f32[1,128], index: 2, kind: input, shape index: {}]
  %s3 = inlined_call_operand.vmem [shape: bf16[128,384], index: 3, kind: input, shape index: {}]
  %s4 = inlined_call_operand.vmem [shape: f32[1,384], index: 4, kind: input, shape index: {}]
  %s5 = inlined_call_operand.vmem [shape: bf16[4,32,128], index: 5, kind: input, shape index: {}]
  %s6 = inlined_call_operand.vmem [shape: f32[1,128], index: 6, kind: input, shape index: {}]
  %s7 = inlined_call_operand.vmem [shape: f32[1,128], index: 7, kind: input, shape index: {}]
  %s8 = inlined_call_operand.vmem [shape: f32[1,128], index: 8, kind: input, shape index: {}]
  %s9 = inlined_call_operand.vmem [shape: bf16[128,512], index: 9, kind: input, shape index: {}]
  %s10 = inlined_call_operand.vmem [shape: f32[1,512], index: 10, kind: input, shape index: {}]
  %s11 = inlined_call_operand.vmem [shape: bf16[512,128], index: 11, kind: input, shape index: {}]
  %s12 = inlined_call_operand.vmem [shape: f32[1,128], index: 12, kind: input, shape index: {}]
  %s13 = inlined_call_operand.vmem [shape: f32[2,64,128], index: 13, kind: output, shape index: {}]
  %s14 = sld [smem:[#allocation0]]
  $region85: #{up_forward.5} parent=0
    _
  %s16 = ssub.s32 1, %s14
  %s17 = scalar_select 0, %s16, %s14
  loop: start=0, step=1, limit=4
  $region2: #{up_forward.5} parent=0 // loop_pre_header
    _
  $region3: #{up_forward.5} parent=0 // loop_header
    %s19 = sphi 0, %s23
    %p20 = scmp.ge.s32.totalorder %s19, 4
    %s29 = sphi 0, %s31
    %s32 = sphi 0, %s29
    %s33 = sphi 0, %s32
    %s49 = sphi 0, %s33
    %s53 = sphi 0, %s53
    %s55 = sphi 0, %s53
    %s56 = sphi 0, %s55
    %s70 = sphi 0, %s56
    %s74 = sphi 0, %s74
    %s76 = sphi 0, %s74
    %s77 = sphi 0, %s76
    %s91 = sphi 0, %s77
    %s95 = sphi 0, %s95
    %s97 = sphi 0, %s95
    %s98 = sphi 0, %s97
    %s112 = sphi 0, %s98
    %s116 = sphi 0, %s116
    %s118 = sphi 0, %s116
    %s119 = sphi 0, %s118
    %s133 = sphi 0, %s119
    %s137 = sphi 0, %s137
    %s139 = sphi 0, %s137
    %s140 = sphi 0, %s139
    %s154 = sphi 0, %s140
    %s158 = sphi 0, %s158
    %s160 = sphi 0, %s158
    %s161 = sphi 0, %s160
    %s175 = sphi 0, %s161
    %s179 = sphi 0, %s179
    %s181 = sphi 0, %s179
    %s182 = sphi 0, %s181
    %s196 = sphi 0, %s182
    %s200 = sphi 0, %s200
    %s202 = sphi 0, %s200
    %s203 = sphi 0, %s202
    %s217 = sphi 0, %s203
    %s221 = sphi 0, %s221
    %s223 = sphi 0, %s221
    %s224 = sphi 0, %s223
    %s238 = sphi 0, %s224
    %s242 = sphi 0, %s242
    %s244 = sphi 0, %s242
    %s245 = sphi 0, %s244
    %s259 = sphi 0, %s245
    %s263 = sphi 0, %s263
    %s265 = sphi 0, %s263
    %s266 = sphi 0, %s265
    %s280 = sphi 0, %s266
    %s284 = sphi 0, %s284
    %s286 = sphi 0, %s284
    %s287 = sphi 0, %s286
    %s301 = sphi 0, %s287
    %s307 = sphi 0, %s309
    %s310 = sphi 0, %s307
    %s311 = sphi 0, %s310
    %s327 = sphi 0, %s311
  $region4: #{up_forward.5} parent=0 // loop_header_branch
    %22 = sbr.rel (%p20) target = $region8
  $region5: #{up_forward.5} parent=0 // loop_body
    %s24 = ssub.s32 %s19, 1
    %s25 = ssub.s32 %s19, 2
    %s26 = sadd.s32 %s19, 1
    %s27 = ssub.s32 %s19, %s26
    %p28 = scmp.eq.s32.totalorder %s27, 0
    %s30 = sadd.s32 %s29, 1
    %s31 = scalar_select %p28, %s29, %s30
    %p34 = pneg %p28
    %p35 = scmp.eq.s32.totalorder %s19, 1
    %p36 = por %p34, %p35
    %p37 = scmp.ne.s32.totalorder %s29, %s32
    %p38 = scmp.eq.s32.totalorder %s19, 0
    %p39 = por %p37, %p38
    %p40 = scmp.ne.s32.totalorder %s29, %s32
    %p41 = scmp.eq.s32.totalorder %s24, 1
    %p42 = por %p40, %p41
    %p43 = scmp.ne.s32.totalorder %s32, %s33
    %p44 = scmp.eq.s32.totalorder %s24, 0
    %p45 = por %p43, %p44
    %p46 = scmp.ne.s32.totalorder %s32, %s33
    %p47 = scmp.eq.s32.totalorder %s25, 1
    %p48 = por %p46, %p47
    %p50 = scmp.ne.s32.totalorder %s33, %s49
    %p51 = scmp.eq.s32.totalorder %s25, 0
    %p52 = por %p50, %p51
    %s54 = sadd.s32 %s53, 1
    %p57 = scmp.eq.s32.totalorder %s19, 1
    %p58 = scmp.ne.s32.totalorder %s53, %s55
    %p59 = scmp.eq.s32.totalorder %s19, 0
    %p60 = por %p58, %p59
    %p61 = scmp.ne.s32.totalorder %s53, %s55
    %p62 = scmp.eq.s32.totalorder %s24, 1
    %p63 = por %p61, %p62
    %p64 = scmp.ne.s32.totalorder %s55, %s56
    %p65 = scmp.eq.s32.totalorder %s24, 0
    %p66 = por %p64, %p65
    %p67 = scmp.ne.s32.totalorder %s55, %s56
    %p68 = scmp.eq.s32.totalorder %s25, 1
    %p69 = por %p67, %p68
    %p71 = scmp.ne.s32.totalorder %s56, %s70
    %p72 = scmp.eq.s32.totalorder %s25, 0
    %p73 = por %p71, %p72
    %s75 = sadd.s32 %s74, 1
    %p78 = scmp.eq.s32.totalorder %s19, 1
    %p79 = scmp.ne.s32.totalorder %s74, %s76
    %p80 = scmp.eq.s32.totalorder %s19, 0
    %p81 = por %p79, %p80
    %p82 = scmp.ne.s32.totalorder %s74, %s76
    %p83 = scmp.eq.s32.totalorder %s24, 1
    %p84 = por %p82, %p83
    %p85 = scmp.ne.s32.totalorder %s76, %s77
    %p86 = scmp.eq.s32.totalorder %s24, 0
    %p87 = por %p85, %p86
    %p88 = scmp.ne.s32.totalorder %s76, %s77
    %p89 = scmp.eq.s32.totalorder %s25, 1
    %p90 = por %p88, %p89
    %p92 = scmp.ne.s32.totalorder %s77, %s91
    %p93 = scmp.eq.s32.totalorder %s25, 0
    %p94 = por %p92, %p93
    %s96 = sadd.s32 %s95, 1
    %p99 = scmp.eq.s32.totalorder %s19, 1
    %p100 = scmp.ne.s32.totalorder %s95, %s97
    %p101 = scmp.eq.s32.totalorder %s19, 0
    %p102 = por %p100, %p101
    %p103 = scmp.ne.s32.totalorder %s95, %s97
    %p104 = scmp.eq.s32.totalorder %s24, 1
    %p105 = por %p103, %p104
    %p106 = scmp.ne.s32.totalorder %s97, %s98
    %p107 = scmp.eq.s32.totalorder %s24, 0
    %p108 = por %p106, %p107
    %p109 = scmp.ne.s32.totalorder %s97, %s98
    %p110 = scmp.eq.s32.totalorder %s25, 1
    %p111 = por %p109, %p110
    %p113 = scmp.ne.s32.totalorder %s98, %s112
    %p114 = scmp.eq.s32.totalorder %s25, 0
    %p115 = por %p113, %p114
    %s117 = sadd.s32 %s116, 1
    %p120 = scmp.eq.s32.totalorder %s19, 1
    %p121 = scmp.ne.s32.totalorder %s116, %s118
    %p122 = scmp.eq.s32.totalorder %s19, 0
    %p123 = por %p121, %p122
    %p124 = scmp.ne.s32.totalorder %s116, %s118
    %p125 = scmp.eq.s32.totalorder %s24, 1
    %p126 = por %p124, %p125
    %p127 = scmp.ne.s32.totalorder %s118, %s119
    %p128 = scmp.eq.s32.totalorder %s24, 0
    %p129 = por %p127, %p128
    %p130 = scmp.ne.s32.totalorder %s118, %s119
    %p131 = scmp.eq.s32.totalorder %s25, 1
    %p132 = por %p130, %p131
    %p134 = scmp.ne.s32.totalorder %s119, %s133
    %p135 = scmp.eq.s32.totalorder %s25, 0
    %p136 = por %p134, %p135
    %s138 = sadd.s32 %s137, 1
    %p141 = scmp.eq.s32.totalorder %s19, 1
    %p142 = scmp.ne.s32.totalorder %s137, %s139
    %p143 = scmp.eq.s32.totalorder %s19, 0
    %p144 = por %p142, %p143
    %p145 = scmp.ne.s32.totalorder %s137, %s139
    %p146 = scmp.eq.s32.totalorder %s24, 1
    %p147 = por %p145, %p146
    %p148 = scmp.ne.s32.totalorder %s139, %s140
    %p149 = scmp.eq.s32.totalorder %s24, 0
    %p150 = por %p148, %p149
    %p151 = scmp.ne.s32.totalorder %s139, %s140
    %p152 = scmp.eq.s32.totalorder %s25, 1
    %p153 = por %p151, %p152
    %p155 = scmp.ne.s32.totalorder %s140, %s154
    %p156 = scmp.eq.s32.totalorder %s25, 0
    %p157 = por %p155, %p156
    %s159 = sadd.s32 %s158, 1
    %p162 = scmp.eq.s32.totalorder %s19, 1
    %p163 = scmp.ne.s32.totalorder %s158, %s160
    %p164 = scmp.eq.s32.totalorder %s19, 0
    %p165 = por %p163, %p164
    %p166 = scmp.ne.s32.totalorder %s158, %s160
    %p167 = scmp.eq.s32.totalorder %s24, 1
    %p168 = por %p166, %p167
    %p169 = scmp.ne.s32.totalorder %s160, %s161
    %p170 = scmp.eq.s32.totalorder %s24, 0
    %p171 = por %p169, %p170
    %p172 = scmp.ne.s32.totalorder %s160, %s161
    %p173 = scmp.eq.s32.totalorder %s25, 1
    %p174 = por %p172, %p173
    %p176 = scmp.ne.s32.totalorder %s161, %s175
    %p177 = scmp.eq.s32.totalorder %s25, 0
    %p178 = por %p176, %p177
    %s180 = sadd.s32 %s179, 1
    %p183 = scmp.eq.s32.totalorder %s19, 1
    %p184 = scmp.ne.s32.totalorder %s179, %s181
    %p185 = scmp.eq.s32.totalorder %s19, 0
    %p186 = por %p184, %p185
    %p187 = scmp.ne.s32.totalorder %s179, %s181
    %p188 = scmp.eq.s32.totalorder %s24, 1
    %p189 = por %p187, %p188
    %p190 = scmp.ne.s32.totalorder %s181, %s182
    %p191 = scmp.eq.s32.totalorder %s24, 0
    %p192 = por %p190, %p191
    %p193 = scmp.ne.s32.totalorder %s181, %s182
    %p194 = scmp.eq.s32.totalorder %s25, 1
    %p195 = por %p193, %p194
    %p197 = scmp.ne.s32.totalorder %s182, %s196
    %p198 = scmp.eq.s32.totalorder %s25, 0
    %p199 = por %p197, %p198
    %s201 = sadd.s32 %s200, 1
    %p204 = scmp.eq.s32.totalorder %s19, 1
    %p205 = scmp.ne.s32.totalorder %s200, %s202
    %p206 = scmp.eq.s32.totalorder %s19, 0
    %p207 = por %p205, %p206
    %p208 = scmp.ne.s32.totalorder %s200, %s202
    %p209 = scmp.eq.s32.totalorder %s24, 1
    %p210 = por %p208, %p209
    %p211 = scmp.ne.s32.totalorder %s202, %s203
    %p212 = scmp.eq.s32.totalorder %s24, 0
    %p213 = por %p211, %p212
    %p214 = scmp.ne.s32.totalorder %s202, %s203
    %p215 = scmp.eq.s32.totalorder %s25, 1
    %p216 = por %p214, %p215
    %p218 = scmp.ne.s32.totalorder %s203, %s217
    %p219 = scmp.eq.s32.totalorder %s25, 0
    %p220 = por %p218, %p219
    %s222 = sadd.s32 %s221, 1
    %p225 = scmp.eq.s32.totalorder %s19, 1
    %p226 = scmp.ne.s32.totalorder %s221, %s223
    %p227 = scmp.eq.s32.totalorder %s19, 0
    %p228 = por %p226, %p227
    %p229 = scmp.ne.s32.totalorder %s221, %s223
    %p230 = scmp.eq.s32.totalorder %s24, 1
    %p231 = por %p229, %p230
    %p232 = scmp.ne.s32.totalorder %s223, %s224
    %p233 = scmp.eq.s32.totalorder %s24, 0
    %p234 = por %p232, %p233
    %p235 = scmp.ne.s32.totalorder %s223, %s224
    %p236 = scmp.eq.s32.totalorder %s25, 1
    %p237 = por %p235, %p236
    %p239 = scmp.ne.s32.totalorder %s224, %s238
    %p240 = scmp.eq.s32.totalorder %s25, 0
    %p241 = por %p239, %p240
    %s243 = sadd.s32 %s242, 1
    %p246 = scmp.eq.s32.totalorder %s19, 1
    %p247 = scmp.ne.s32.totalorder %s242, %s244
    %p248 = scmp.eq.s32.totalorder %s19, 0
    %p249 = por %p247, %p248
    %p250 = scmp.ne.s32.totalorder %s242, %s244
    %p251 = scmp.eq.s32.totalorder %s24, 1
    %p252 = por %p250, %p251
    %p253 = scmp.ne.s32.totalorder %s244, %s245
    %p254 = scmp.eq.s32.totalorder %s24, 0
    %p255 = por %p253, %p254
    %p256 = scmp.ne.s32.totalorder %s244, %s245
    %p257 = scmp.eq.s32.totalorder %s25, 1
    %p258 = por %p256, %p257
    %p260 = scmp.ne.s32.totalorder %s245, %s259
    %p261 = scmp.eq.s32.totalorder %s25, 0
    %p262 = por %p260, %p261
    %s264 = sadd.s32 %s263, 1
    %p267 = scmp.eq.s32.totalorder %s19, 1
    %p268 = scmp.ne.s32.totalorder %s263, %s265
    %p269 = scmp.eq.s32.totalorder %s19, 0
    %p270 = por %p268, %p269
    %p271 = scmp.ne.s32.totalorder %s263, %s265
    %p272 = scmp.eq.s32.totalorder %s24, 1
    %p273 = por %p271, %p272
    %p274 = scmp.ne.s32.totalorder %s265, %s266
    %p275 = scmp.eq.s32.totalorder %s24, 0
    %p276 = por %p274, %p275
    %p277 = scmp.ne.s32.totalorder %s265, %s266
    %p278 = scmp.eq.s32.totalorder %s25, 1
    %p279 = por %p277, %p278
    %p281 = scmp.ne.s32.totalorder %s266, %s280
    %p282 = scmp.eq.s32.totalorder %s25, 0
    %p283 = por %p281, %p282
    %s285 = sadd.s32 %s284, 1
    %p288 = scmp.eq.s32.totalorder %s19, 1
    %p289 = scmp.ne.s32.totalorder %s284, %s286
    %p290 = scmp.eq.s32.totalorder %s19, 0
    %p291 = por %p289, %p290
    %p292 = scmp.ne.s32.totalorder %s284, %s286
    %p293 = scmp.eq.s32.totalorder %s24, 1
    %p294 = por %p292, %p293
    %p295 = scmp.ne.s32.totalorder %s286, %s287
    %p296 = scmp.eq.s32.totalorder %s24, 0
    %p297 = por %p295, %p296
    %p298 = scmp.ne.s32.totalorder %s286, %s287
    %p299 = scmp.eq.s32.totalorder %s25, 1
    %p300 = por %p298, %p299
    %p302 = scmp.ne.s32.totalorder %s287, %s301
    %p303 = scmp.eq.s32.totalorder %s25, 0
    %p304 = por %p302, %p303
    %s305 = ssub.s32 %s19, %s26
    %p306 = scmp.eq.s32.totalorder %s305, 0
    %s308 = sadd.s32 %s307, 1
    %s309 = scalar_select %p306, %s307, %s308
    %p312 = pneg %p306
    %p313 = scmp.eq.s32.totalorder %s19, 1
    %p314 = por %p312, %p313
    %p315 = scmp.ne.s32.totalorder %s307, %s310
    %p316 = scmp.eq.s32.totalorder %s19, 0
    %p317 = por %p315, %p316
    %p318 = scmp.ne.s32.totalorder %s307, %s310
    %p319 = scmp.eq.s32.totalorder %s24, 1
    %p320 = por %p318, %p319
    %p321 = scmp.ne.s32.totalorder %s310, %s311
    %p322 = scmp.eq.s32.totalorder %s24, 0
    %p323 = por %p321, %p322
    %p324 = scmp.ne.s32.totalorder %s310, %s311
    %p325 = scmp.eq.s32.totalorder %s25, 1
    %p326 = por %p324, %p325
    %p328 = scmp.ne.s32.totalorder %s311, %s327
    %p329 = scmp.eq.s32.totalorder %s25, 0
    %p330 = por %p328, %p329
    %p331 = scmp.le.s32.totalorder 1, %s19
    %p332 = scmp.lt.s32.totalorder %s19, 3
    %p333 = pnand %p331, %p332
    %p334 = pneg %p333
    // Predicated region
    $region9: #{up_forward.5} parent=5 // pred_check
      _
    $region10: #{up_forward.5} parent=5 // pred_check_branch
      %336 = sbr.rel (%p333) target = $region12
    $region11: #{up_forward.5} parent=5 // pred_region
      %s337 = ssub.s32 %s19, 1
      // Predicated region
      $region13: #{up_forward.5} parent=11 // pred_check
        %p338 = pneg %p66
      $region14: #{up_forward.5} parent=11 // pred_check_branch
        %340 = sbr.rel (%p338) target = $region16
      $region15: #{up_forward.5} parent=11 // pred_region
        _
      $region16: #{up_forward.5} parent=11 // pred_fallthru
        _
      // Predicated region
      $region17: #{up_forward.5} parent=11 // pred_check
        %p341 = pneg %p87
      $region18: #{up_forward.5} parent=11 // pred_check_branch
        %343 = sbr.rel (%p341) target = $region20
      $region19: #{up_forward.5} parent=11 // pred_region
        _
      $region20: #{up_forward.5} parent=11 // pred_fallthru
        _
      // Predicated region
      $region21: #{up_forward.5} parent=11 // pred_check
        %p344 = pneg %p108
      $region22: #{up_forward.5} parent=11 // pred_check_branch
        %346 = sbr.rel (%p344) target = $region24
      $region23: #{up_forward.5} parent=11 // pred_region
        _
      $region24: #{up_forward.5} parent=11 // pred_fallthru
        _
      // Predicated region
      $region25: #{up_forward.5} parent=11 // pred_check
        %p347 = pneg %p129
      $region26: #{up_forward.5} parent=11 // pred_check_branch
        %349 = sbr.rel (%p347) target = $region28
      $region27: #{up_forward.5} parent=11 // pred_region
        _
      $region28: #{up_forward.5} parent=11 // pred_fallthru
        _
      // Predicated region
      $region29: #{up_forward.5} parent=11 // pred_check
        %p350 = pneg %p150
      $region30: #{up_forward.5} parent=11 // pred_check_branch
        %352 = sbr.rel (%p350) target = $region32
      $region31: #{up_forward.5} parent=11 // pred_region
        _
      $region32: #{up_forward.5} parent=11 // pred_fallthru
        _
      // Predicated region
      $region33: #{up_forward.5} parent=11 // pred_check
        %p353 = pneg %p171
      $region34: #{up_forward.5} parent=11 // pred_check_branch
        %355 = sbr.rel (%p353) target = $region36
      $region35: #{up_forward.5} parent=11 // pred_region
        _
      $region36: #{up_forward.5} parent=11 // pred_fallthru
        _
      // Predicated region
      $region37: #{up_forward.5} parent=11 // pred_check
        %p356 = pneg %p192
      $region38: #{up_forward.5} parent=11 // pred_check_branch
        %358 = sbr.rel (%p356) target = $region40
      $region39: #{up_forward.5} parent=11 // pred_region
        _
      $region40: #{up_forward.5} parent=11 // pred_fallthru
        _
      // Predicated region
      $region41: #{up_forward.5} parent=11 // pred_check
        %p359 = pneg %p213
      $region42: #{up_forward.5} parent=11 // pred_check_branch
        %361 = sbr.rel (%p359) target = $region44
      $region43: #{up_forward.5} parent=11 // pred_region
        _
      $region44: #{up_forward.5} parent=11 // pred_fallthru
        _
      // Predicated region
      $region45: #{up_forward.5} parent=11 // pred_check
        %p362 = pneg %p234
      $region46: #{up_forward.5} parent=11 // pred_check_branch
        %364 = sbr.rel (%p362) target = $region48
      $region47: #{up_forward.5} parent=11 // pred_region
        _
      $region48: #{up_forward.5} parent=11 // pred_fallthru
        _
      // Predicated region
      $region49: #{up_forward.5} parent=11 // pred_check
        %p365 = pneg %p255
      $region50: #{up_forward.5} parent=11 // pred_check_branch
        %367 = sbr.rel (%p365) target = $region52
      $region51: #{up_forward.5} parent=11 // pred_region
        _
      $region52: #{up_forward.5} parent=11 // pred_fallthru
        _
      // Predicated region
      $region53: #{up_forward.5} parent=11 // pred_check
        %p368 = pneg %p276
      $region54: #{up_forward.5} parent=11 // pred_check_branch
        %370 = sbr.rel (%p368) target = $region56
      $region55: #{up_forward.5} parent=11 // pred_region
        _
      $region56: #{up_forward.5} parent=11 // pred_fallthru
        _
      // Predicated region
      $region57: #{up_forward.5} parent=11 // pred_check
        %p371 = pneg %p297
      $region58: #{up_forward.5} parent=11 // pred_check_branch
        %373 = sbr.rel (%p371) target = $region60
      $region59: #{up_forward.5} parent=11 // pred_region
        _
      $region60: #{up_forward.5} parent=11 // pred_fallthru
        _
    $region12: #{up_forward.5} parent=5 // pred_fallthru
      _
    %p374 = scmp.lt.s32.totalorder %s19, 2
    // Predicated region
    $region61: #{up_forward.5} parent=5 // pred_check
      %p375 = pneg %p374
    $region62: #{up_forward.5} parent=5 // pred_check_branch
      %377 = sbr.rel (%p375) target = $region64
    $region63: #{up_forward.5} parent=5 // pred_region
      // Predicated region
      $region65: #{up_forward.5} parent=63 // pred_check
        %p378 = pneg %p39
      $region66: #{up_forward.5} parent=63 // pred_check_branch
        %380 = sbr.rel (%p378) target = $region68
      $region67: #{up_forward.5} parent=63 // pred_region
        %p381 = scmp.lt.s32.totalorder %s19, 1
        %s382 = scalar_select %p381, %s19, 1
        %s383 = smul.addr %s382, 8
        %s384 = smul.addr %s383, 8
        %s385 = scalar_lea.vmem %s0, %s384
      $region68: #{up_forward.5} parent=63 // pred_fallthru
        _
    $region64: #{up_forward.5} parent=5 // pred_fallthru
      _
    %p386 = scmp.le.s32.totalorder 1, %s19
    %p387 = scmp.lt.s32.totalorder %s19, 3
    %p388 = pnand %p386, %p387
    %p389 = pneg %p388
    // Predicated region
    $region69: #{up_forward.5} parent=5 // pred_check
      _
    $region70: #{up_forward.5} parent=5 // pred_check_branch
      %391 = sbr.rel (%p388) target = $region72
    $region71: #{up_forward.5} parent=5 // pred_region
      %s392 = ssub.s32 %s19, 1
      %p393 = scmp.lt.s32.totalorder %s24, 1
      %s394 = scalar_select %p393, %s24, 1
      %s395 = smul.addr %s394, 8
      %s396 = smul.addr %s395, 8
      %s397 = scalar_lea.vmem %s0, %s396
      %p398 = pneg %p45
      %p399 = pneg %p42
      %p400 = pneg %p66
      %p401 = pneg %p63
      %p402 = pneg %p87
      %p403 = pneg %p84
      %p404 = pneg %p108
      %p405 = pneg %p105
      %p406 = pneg %p129
      %p407 = pneg %p126
      %p408 = pneg %p150
      %p409 = pneg %p147
      %p410 = pneg %p171
      %p411 = pneg %p168
      %p412 = pneg %p192
      %p413 = pneg %p189
      %p414 = pneg %p213
      %p415 = pneg %p210
      %p416 = pneg %p234
      %p417 = pneg %p231
      %p418 = pneg %p255
      %p419 = pneg %p252
      %p420 = pneg %p276
      %p421 = pneg %p273
      %p422 = pneg %p297
      %p423 = pneg %p294
      %p424 = pneg %p323
      %p425 = pneg %p320
      %p426 = scmp.lt.s32.totalorder %s24, 1
      %s427 = scalar_select %p426, %s24, 1
      %s428 = smul.addr %s427, 8
      %s429 = smul.addr %s428, 8
      %s430 = scalar_lea.vmem %s13, %s429
      %p431 = scmp.lt.s32.totalorder %s24, 1
      %s432 = scalar_select %p431, %s24, 1
      %s433 = smul.addr %s432, 8
      %s434 = smul.addr %s433, 8
      %s435 = scalar_lea.vmem %s0, %s434
      %p436 = scmp.lt.s32.totalorder %s24, 1
      %s437 = scalar_select %p436, %s24, 1
      %s438 = smul.addr %s437, 8
      %s439 = smul.addr %s438, 8
      %s440 = scalar_lea.vmem %s13, %s439
      %v442 = vld [vmem:[%s435] sm:$0xff]
      %v443 = vld [vmem:[%s435 + $0x8] sm:$0xff]
      %v444 = vld [vmem:[%s435 + $0x10] sm:$0xff]
      %v445 = vld [vmem:[%s435 + $0x18] sm:$0xff]
      %v446 = vld [vmem:[%s435 + $0x20] sm:$0xff]
      %v447 = vld [vmem:[%s435 + $0x28] sm:$0xff]
      %v448 = vld [vmem:[%s435 + $0x30] sm:$0xff]
      %v449 = vld [vmem:[%s435 + $0x38] sm:$0xff]
      %v450 = vld [vmem:[%s1] sm:$0x1]
      %v451 = vld [vmem:[%s2] sm:$0x1]
      %452 = vadd.xlane.f32.xlu0 %v442
      %v453 = vpop.xlane.xlu0 %452
      %454 = vadd.xlane.f32.xlu0 %v443
      %v455 = vpop.xlane.xlu0 %454
      %456 = vadd.xlane.f32.xlu0 %v444
      %v457 = vpop.xlane.xlu0 %456
      %458 = vadd.xlane.f32.xlu0 %v445
      %v459 = vpop.xlane.xlu0 %458
      %460 = vadd.xlane.f32.xlu0 %v446
      %v461 = vpop.xlane.xlu0 %460
      %462 = vadd.xlane.f32.xlu0 %v447
      %v463 = vpop.xlane.xlu0 %462
      %464 = vadd.xlane.f32.xlu0 %v448
      %v465 = vpop.xlane.xlu0 %464
      %466 = vadd.xlane.f32.xlu0 %v449
      %v467 = vpop.xlane.xlu0 %466
      %v468 = vrcp.pop 128.0
      %v469 = vmul.f32 %v453, %v468
      %v470 = vmul.f32 %v455, %v468
      %v471 = vmul.f32 %v457, %v468
      %v472 = vmul.f32 %v459, %v468
      %v473 = vmul.f32 %v461, %v468
      %v474 = vmul.f32 %v463, %v468
      %v475 = vmul.f32 %v465, %v468
      %v476 = vmul.f32 %v467, %v468
      %v477 = vmul.f32 %v442, %v442
      %v478 = vmul.f32 %v443, %v443
      %v479 = vmul.f32 %v444, %v444
      %v480 = vmul.f32 %v445, %v445
      %v481 = vmul.f32 %v446, %v446
      %v482 = vmul.f32 %v447, %v447
      %v483 = vmul.f32 %v448, %v448
      %v484 = vmul.f32 %v449, %v449
      %485 = vadd.xlane.f32.xlu0 %v477
      %v486 = vpop.xlane.xlu0 %485
      %487 = vadd.xlane.f32.xlu0 %v478
      %v488 = vpop.xlane.xlu0 %487
      %489 = vadd.xlane.f32.xlu0 %v479
      %v490 = vpop.xlane.xlu0 %489
      %491 = vadd.xlane.f32.xlu0 %v480
      %v492 = vpop.xlane.xlu0 %491
      %493 = vadd.xlane.f32.xlu0 %v481
      %v494 = vpop.xlane.xlu0 %493
      %495 = vadd.xlane.f32.xlu0 %v482
      %v496 = vpop.xlane.xlu0 %495
      %497 = vadd.xlane.f32.xlu0 %v483
      %v498 = vpop.xlane.xlu0 %497
      %499 = vadd.xlane.f32.xlu0 %v484
      %v500 = vpop.xlane.xlu0 %499
      %v501 = vmul.f32 %v486, %v468
      %v502 = vmul.f32 %v488, %v468
      %v503 = vmul.f32 %v490, %v468
      %v504 = vmul.f32 %v492, %v468
      %v505 = vmul.f32 %v494, %v468
      %v506 = vmul.f32 %v496, %v468
      %v507 = vmul.f32 %v498, %v468
      %v508 = vmul.f32 %v500, %v468
      %v509 = vmul.f32 %v469, %v469
      %v510 = vmul.f32 %v470, %v470
      %v511 = vmul.f32 %v471, %v471
      %v512 = vmul.f32 %v472, %v472
      %v513 = vmul.f32 %v473, %v473
      %v514 = vmul.f32 %v474, %v474
      %v515 = vmul.f32 %v475, %v475
      %v516 = vmul.f32 %v476, %v476
      %v517 = vsub.f32 %v501, %v509
      %v518 = vsub.f32 %v502, %v510
      %v519 = vsub.f32 %v503, %v511
      %v520 = vsub.f32 %v504, %v512
      %v521 = vsub.f32 %v505, %v513
      %v522 = vsub.f32 %v506, %v514
      %v523 = vsub.f32 %v507, %v515
      %v524 = vsub.f32 %v508, %v516
      %v525 = vsub.f32 %v442, %v469
      %v526 = vsub.f32 %v443, %v470
      %v527 = vsub.f32 %v444, %v471
      %v528 = vsub.f32 %v445, %v472
      %v529 = vsub.f32 %v446, %v473
      %v530 = vsub.f32 %v447, %v474
      %v531 = vsub.f32 %v448, %v475
      %v532 = vsub.f32 %v449, %v476
      %v533 = vadd.f32 %v517, 1e-06
      %v534 = vadd.f32 %v518, 1e-06
      %v535 = vadd.f32 %v519, 1e-06
      %v536 = vadd.f32 %v520, 1e-06
      %v537 = vadd.f32 %v521, 1e-06
      %v538 = vadd.f32 %v522, 1e-06
      %v539 = vadd.f32 %v523, 1e-06
      %v540 = vadd.f32 %v524, 1e-06
      %v541 = vrsqrt.pop %v533
      %v542 = vrsqrt.pop %v534
      %v543 = vrsqrt.pop %v535
      %v544 = vrsqrt.pop %v536
      %v545 = vrsqrt.pop %v537
      %v546 = vrsqrt.pop %v538
      %v547 = vrsqrt.pop %v539
      %v548 = vrsqrt.pop %v540
      %v549 = vmul.f32 %v525, %v541
      %v550 = vmul.f32 %v526, %v542
      %v551 = vmul.f32 %v527, %v543
      %v552 = vmul.f32 %v528, %v544
      %v553 = vmul.f32 %v529, %v545
      %v554 = vmul.f32 %v530, %v546
      %v555 = vmul.f32 %v531, %v547
      %v556 = vmul.f32 %v532, %v548
      %v558 = vlaneseq
      %v559 = vshrl.u32 %v558, 7
      %v560 = vsub.s32 0, %v559
      %v561 = vrot.slane %v450, %v560
      %v563 = vmul.f32 %v549, %v561
      %v564 = vmul.f32 %v550, %v561
      %v565 = vmul.f32 %v551, %v561
      %v566 = vmul.f32 %v552, %v561
      %v567 = vmul.f32 %v553, %v561
      %v568 = vmul.f32 %v554, %v561
      %v569 = vmul.f32 %v555, %v561
      %v570 = vmul.f32 %v556, %v561
      %v572 = vlaneseq
      %v573 = vshrl.u32 %v572, 7
      %v574 = vsub.s32 0, %v573
      %v575 = vrot.slane %v451, %v574
      %v577 = vadd.f32 %v563, %v575
      %v578 = vadd.f32 %v564, %v575
      %v579 = vadd.f32 %v565, %v575
      %v580 = vadd.f32 %v566, %v575
      %v581 = vadd.f32 %v567, %v575
      %v582 = vadd.f32 %v568, %v575
      %v583 = vadd.f32 %v569, %v575
      %v584 = vadd.f32 %v570, %v575
      %v585 = vpack.c.bf16 %v578, %v577
      %v586 = vpack.c.bf16 %v580, %v579
      %v587 = vpack.c.bf16 %v582, %v581
      %v588 = vpack.c.bf16 %v584, %v583
      %v589 = vld [vmem:[%s3] sm:$0xff]
      %v590 = vld [vmem:[%s3 + $0x8] sm:$0xf]
      %v591 = vld [vmem:[%s3 + $0xc] sm:$0xff]
      %v592 = vld [vmem:[%s3 + $0x14] sm:$0xf]
      %v593 = vld [vmem:[%s3 + $0x18] sm:$0xff]
      %v594 = vld [vmem:[%s3 + $0x20] sm:$0xf]
      %v595 = vld [vmem:[%s3 + $0x24] sm:$0xff]
      %v596 = vld [vmem:[%s3 + $0x2c] sm:$0xf]
      %v597 = vld [vmem:[%s3 + $0x30] sm:$0xff]
      %v598 = vld [vmem:[%s3 + $0x38] sm:$0xf]
      %v599 = vld [vmem:[%s3 + $0x3c] sm:$0xff]
      %v600 = vld [vmem:[%s3 + $0x44] sm:$0xf]
      %v601 = vld [vmem:[%s3 + $0x48] sm:$0xff]
      %v602 = vld [vmem:[%s3 + $0x50] sm:$0xf]
      %v603 = vld [vmem:[%s3 + $0x54] sm:$0xff]
      %v604 = vld [vmem:[%s3 + $0x5c] sm:$0xf]
      %v605 = vld [vmem:[%s3 + $0x60] sm:$0xff]
      %v606 = vld [vmem:[%s3 + $0x68] sm:$0xf]
      %v607 = vld [vmem:[%s3 + $0x6c] sm:$0xff]
      %v608 = vld [vmem:[%s3 + $0x74] sm:$0xf]
      %v609 = vld [vmem:[%s3 + $0x78] sm:$0xff]
      %v610 = vld [vmem:[%s3 + $0x80] sm:$0xf]
      %v611 = vld [vmem:[%s3 + $0x84] sm:$0xff]
      %v612 = vld [vmem:[%s3 + $0x8c] sm:$0xf]
      %v613 = vld [vmem:[%s3 + $0x90] sm:$0xff]
      %v614 = vld [vmem:[%s3 + $0x98] sm:$0xf]
      %v615 = vld [vmem:[%s3 + $0x9c] sm:$0xff]
      %v616 = vld [vmem:[%s3 + $0xa4] sm:$0xf]
      %v617 = vld [vmem:[%s3 + $0xa8] sm:$0xff]
      %v618 = vld [vmem:[%s3 + $0xb0] sm:$0xf]
      %v619 = vld [vmem:[%s3 + $0xb4] sm:$0xff]
      %v620 = vld [vmem:[%s3 + $0xbc] sm:$0xf]
      %v621 = vld [vmem:[%s4] sm:$0x7]
      %v623 = vlaneseq
      %v624 = vshrl.u32 %v623, 7
      %v625 = vsub.s32 0, %v624
      %v626 = vrot.slane %v621, %v625
      %v627 = vlaneseq
      %v628 = vshrl.u32 %v627, 7
      %v629 = vsub.s32 1, %v628
      %v630 = vrot.slane %v621, %v629
      %v631 = vlaneseq
      %v632 = vshrl.u32 %v631, 7
      %v633 = vsub.s32 2, %v632
      %v634 = vrot.slane %v621, %v633
      %v670 = vunpack.c.l.b16 %v589
      %v671 = vunpack.c.h.b16 %v589
      %v672 = vunpack.c.l.b16 %v590
      %v673 = vunpack.c.l.b16 %v591
      %v674 = vunpack.c.h.b16 %v591
      %v675 = vunpack.c.l.b16 %v592
      %v676 = vunpack.c.l.b16 %v593
      %v677 = vunpack.c.h.b16 %v593
      %v678 = vunpack.c.l.b16 %v594
      %v679 = vunpack.c.l.b16 %v595
      %v680 = vunpack.c.h.b16 %v595
      %v681 = vunpack.c.l.b16 %v596
      %v682 = vunpack.c.l.b16 %v597
      %v683 = vunpack.c.h.b16 %v597
      %v684 = vunpack.c.l.b16 %v598
      %v685 = vunpack.c.l.b16 %v599
      %v686 = vunpack.c.h.b16 %v599
      %v687 = vunpack.c.l.b16 %v600
      %v688 = vunpack.c.l.b16 %v601
      %v689 = vunpack.c.h.b16 %v601
      %v690 = vunpack.c.l.b16 %v602
      %v691 = vunpack.c.l.b16 %v603
      %v692 = vunpack.c.h.b16 %v603
      %v693 = vunpack.c.l.b16 %v604
      %v694 = vunpack.c.l.b16 %v605
      %v695 = vunpack.c.h.b16 %v605
      %v696 = vunpack.c.l.b16 %v606
      %v697 = vunpack.c.l.b16 %v607
      %v698 = vunpack.c.h.b16 %v607
      %v699 = vunpack.c.l.b16 %v608
      %v700 = vunpack.c.l.b16 %v609
      %v701 = vunpack.c.h.b16 %v609
      %v702 = vunpack.c.l.b16 %v610
      %v703 = vunpack.c.l.b16 %v611
      %v704 = vunpack.c.h.b16 %v611
      %v705 = vunpack.c.l.b16 %v612
      %v706 = vunpack.c.l.b16 %v613
      %v707 = vunpack.c.h.b16 %v613
      %v708 = vunpack.c.l.b16 %v614
      %v709 = vunpack.c.l.b16 %v615
      %v710 = vunpack.c.h.b16 %v615
      %v711 = vunpack.c.l.b16 %v616
      %v712 = vunpack.c.l.b16 %v617
      %v713 = vunpack.c.h.b16 %v617
      %v714 = vunpack.c.l.b16 %v618
      %v715 = vunpack.c.l.b16 %v619
      %v716 = vunpack.c.h.b16 %v619
      %v717 = vunpack.c.l.b16 %v620
      %v718 = vpack.c.b16 %v673, %v670
      %v719 = vpack.c.b16 %v674, %v671
      %v720 = vpack.c.b16 %v675, %v672
      %v721 = vpack.c.b16 %v679, %v676
      %v722 = vpack.c.b16 %v680, %v677
      %v723 = vpack.c.b16 %v681, %v678
      %v724 = vpack.c.b16 %v685, %v682
      %v725 = vpack.c.b16 %v686, %v683
      %v726 = vpack.c.b16 %v687, %v684
      %v727 = vpack.c.b16 %v691, %v688
      %v728 = vpack.c.b16 %v692, %v689
      %v729 = vpack.c.b16 %v693, %v690
      %v730 = vpack.c.b16 %v697, %v694
      %v731 = vpack.c.b16 %v698, %v695
      %v732 = vpack.c.b16 %v699, %v696
      %v733 = vpack.c.b16 %v703, %v700
      %v734 = vpack.c.b16 %v704, %v701
      %v735 = vpack.c.b16 %v705, %v702
      %v736 = vpack.c.b16 %v709, %v706
      %v737 = vpack.c.b16 %v710, %v707
      %v738 = vpack.c.b16 %v711, %v708
      %v739 = vpack.c.b16 %v715, %v712
      %v740 = vpack.c.b16 %v716, %v713
      %v741 = vpack.c.b16 %v717, %v714
      %766 = vmatprep.subr.bf16.mxu0 %v719
      %767 = vmatpush1.bf16.msra.mxu0 %v718
      %768 = vmatprep.subr.bf16.mxu0 %v722
      %769 = vmatpush1.bf16.msra.mxu0 %v721
      %770 = vmatprep.subr.bf16.mxu0 %v725
      %771 = vmatpush1.bf16.msra.mxu0 %v724
      %772 = vmatprep.subr.bf16.mxu0 %v728
      %773 = vmatpush1.bf16.msra.mxu0 %v727
      %774 = vmatprep.subr.bf16.mxu0 %v731
      %775 = vmatpush1.bf16.msra.mxu0 %v730
      %776 = vmatprep.subr.bf16.mxu0 %v734
      %777 = vmatpush1.bf16.msra.mxu0 %v733
      %778 = vmatprep.subr.bf16.mxu0 %v737
      %779 = vmatpush1.bf16.msra.mxu0 %v736
      %780 = vmatprep.subr.bf16.mxu0 %v740
      %781 = vmatpush1.bf16.msra.mxu0 %v739
      %782 = vmatprep.subr.bf16.mxu0 0
      %783 = vmatpush1.bf16.msra.mxu0 0
      %784 = vmatprep.subr.bf16.mxu0 0
      %785 = vmatpush1.bf16.msra.mxu0 0
      %786 = vmatprep.subr.bf16.mxu0 0
      %787 = vmatpush1.bf16.msra.mxu0 0
      %788 = vmatprep.subr.bf16.mxu0 0
      %789 = vmatpush1.bf16.msra.mxu0 0
      %790 = vmatprep.subr.bf16.mxu0 0
      %791 = vmatpush1.bf16.msra.mxu0 0
      %792 = vmatprep.subr.bf16.mxu0 0
      %793 = vmatpush1.bf16.msra.mxu0 0
      %794 = vmatprep.subr.bf16.mxu0 0
      %795 = vmatpush1.bf16.msra.mxu0 0
      %796 = vmatprep.subr.bf16.mxu0 0
      %797 = vmatpush1.bf16.msra.mxu0 0
      %798 = vmatprep.mubr.bf16.mxu0 0
      %799 = vmatmul.mubr.bf16.gmra.mrb[0].mxu0 %v585
      %v800 = vpop.f32.mrb[0].mxu0
      %v801 = vadd.f32 %v626, %v800
      %v802 = vpop.f32.mrb[0].mxu0
      %v803 = vadd.f32 %v630, %v802
      %v804 = vpop.f32.mrb[0].mxu0
      %v805 = vadd.f32 %v626, %v804
      %v806 = vpop.f32.mrb[0].mxu0
      %v807 = vadd.f32 %v630, %v806
      %808 = vmatprep.mubr.bf16.mxu0 0
      %809 = vmatmul.mubr.bf16.gmra.mrb[0].mxu0 %v586
      %v810 = vpop.f32.mrb[0].mxu0
      %v811 = vadd.f32 %v626, %v810
      %v812 = vpop.f32.mrb[0].mxu0
      %v813 = vadd.f32 %v630, %v812
      %v814 = vpop.f32.mrb[0].mxu0
      %v815 = vadd.f32 %v626, %v814
      %v816 = vpop.f32.mrb[0].mxu0
      %v817 = vadd.f32 %v630, %v816
      %818 = vmatprep.mubr.bf16.mxu0 0
      %819 = vmatmul.mubr.bf16.gmra.mrb[0].mxu0 %v587
      %v820 = vpop.f32.mrb[0].mxu0
      %v821 = vadd.f32 %v626, %v820
      %v822 = vpop.f32.mrb[0].mxu0
      %v823 = vadd.f32 %v630, %v822
      %v824 = vpop.f32.mrb[0].mxu0
      %v825 = vadd.f32 %v626, %v824
      %v826 = vpop.f32.mrb[0].mxu0
      %v827 = vadd.f32 %v630, %v826
      %828 = vmatprep.mubr.bf16.mxu0 0
      %829 = vmatmul.mubr.bf16.gmra.mrb[0].mxu0 %v588
      %v830 = vpop.f32.mrb[0].mxu0
      %v831 = vadd.f32 %v626, %v830
      %v832 = vpop.f32.mrb[0].mxu0
      %v833 = vadd.f32 %v630, %v832
      %v834 = vpop.f32.mrb[0].mxu0
      %v835 = vadd.f32 %v626, %v834
      %v836 = vpop.f32.mrb[0].mxu0
      %v837 = vadd.f32 %v630, %v836
      %838 = vdwg.mxu0
      %839 = vmatprep.subr.bf16.mxu0 0
      %840 = vmatpush1.bf16.msra.mxu0 %v720
      %841 = vmatprep.subr.bf16.mxu0 0
      %842 = vmatpush1.bf16.msra.mxu0 %v723
      %843 = vmatprep.subr.bf16.mxu0 0
      %844 = vmatpush1.bf16.msra.mxu0 %v726
      %845 = vmatprep.subr.bf16.mxu0 0
      %846 = vmatpush1.bf16.msra.mxu0 %v729
      %847 = vmatprep.subr.bf16.mxu0 0
      %848 = vmatpush1.bf16.msra.mxu0 %v732
      %849 = vmatprep.subr.bf16.mxu0 0
      %850 = vmatpush1.bf16.msra.mxu0 %v735
      %851 = vmatprep.subr.bf16.mxu0 0
      %852 = vmatpush1.bf16.msra.mxu0 %v738
      %853 = vmatprep.subr.bf16.mxu0 0
      %854 = vmatpush1.bf16.msra.mxu0 %v741
      %855 = vmatprep.subr.bf16.mxu0 0
      %856 = vmatpush1.bf16.msra.mxu0 0
      %857 = vmatprep.subr.bf16.mxu0 0
      %858 = vmatpush1.bf16.msra.mxu0 0
      %859 = vmatprep.subr.bf16.mxu0 0
      %860 = vmatpush1.bf16.msra.mxu0 0
      %861 = vmatprep.subr.bf16.mxu0 0
      %862 = vmatpush1.bf16.msra.mxu0 0
      %863 = vmatprep.subr.bf16.mxu0 0
      %864 = vmatpush1.bf16.msra.mxu0 0
      %865 = vmatprep.subr.bf16.mxu0 0
      %866 = vmatpush1.bf16.msra.mxu0 0
      %867 = vmatprep.subr.bf16.mxu0 0
      %868 = vmatpush1.bf16.msra.mxu0 0
      %869 = vmatprep.subr.bf16.mxu0 0
      %870 = vmatpush1.bf16.msra.mxu0 0
      %871 = vmatprep.mubr.bf16.mxu0 0
      %872 = vmatmul.mubr.bf16.gmra.mrb[0].mxu0 %v585
      %v873 = vpop.f32.mrb[0].mxu0
      %v874 = vadd.f32 %v634, %v873
      %v875 = vpop.f32.mrb[0].mxu0
      %v876 = vpop.f32.mrb[0].mxu0
      %v877 = vadd.f32 %v634, %v876
      %v878 = vpop.f32.mrb[0].mxu0
      %879 = vmatprep.mubr.bf16.mxu0 0
      %880 = vmatmul.mubr.bf16.gmra.mrb[0].mxu0 %v586
      %v881 = vpop.f32.mrb[0].mxu0
      %v882 = vadd.f32 %v634, %v881
      %v883 = vpop.f32.mrb[0].mxu0
      %v884 = vpop.f32.mrb[0].mxu0
      %v885 = vadd.f32 %v634, %v884
      %v886 = vpop.f32.mrb[0].mxu0
      %887 = vmatprep.mubr.bf16.mxu0 0
      %888 = vmatmul.mubr.bf16.gmra.mrb[0].mxu0 %v587
      %v889 = vpop.f32.mrb[0].mxu0
      %v890 = vadd.f32 %v634, %v889
      %v891 = vpop.f32.mrb[0].mxu0
      %v892 = vpop.f32.mrb[0].mxu0
      %v893 = vadd.f32 %v634, %v892
      %v894 = vpop.f32.mrb[0].mxu0
      %895 = vmatprep.mubr.bf16.mxu0 0
      %896 = vmatmul.mubr.bf16.gmra.mrb[0].mxu0 %v588
      %v897 = vpop.f32.mrb[0].mxu0
      %v898 = vadd.f32 %v634, %v897
      %v899 = vpop.f32.mrb[0].mxu0
      %v900 = vpop.f32.mrb[0].mxu0
      %v901 = vadd.f32 %v634, %v900
      %v902 = vpop.f32.mrb[0].mxu0
      %903 = vdwg.mxu0
      %904 = vst [vmem:[#allocation2] sm:$0xff] %v801
      %905 = vst [vmem:[#allocation2 + $0x8] sm:$0xff] %v803
      %906 = vst [vmem:[#allocation2 + $0x10] sm:$0xff] %v874
      %907 = vst [vmem:[#allocation2 + $0x18] sm:$0xff] %v805
      %908 = vst [vmem:[#allocation2 + $0x20] sm:$0xff] %v807
      %909 = vst [vmem:[#allocation2 + $0x28] sm:$0xff] %v877
      %910 = vst [vmem:[#allocation2 + $0x30] sm:$0xff] %v811
      %911 = vst [vmem:[#allocation2 + $0x38] sm:$0xff] %v813
      %912 = vst [vmem:[#allocation2 + $0x40] sm:$0xff] %v882
      %913 = vst [vmem:[#allocation2 + $0x48] sm:$0xff] %v815
      %914 = vst [vmem:[#allocation2 + $0x50] sm:$0xff] %v817
      %915 = vst [vmem:[#allocation2 + $0x58] sm:$0xff] %v885
      %916 = vst [vmem:[#allocation2 + $0x60] sm:$0xff] %v821
      %917 = vst [vmem:[#allocation2 + $0x68] sm:$0xff] %v823
      %918 = vst [vmem:[#allocation2 + $0x70] sm:$0xff] %v890
      %919 = vst [vmem:[#allocation2 + $0x78] sm:$0xff] %v825
      %920 = vst [vmem:[#allocation2 + $0x80] sm:$0xff] %v827
      %921 = vst [vmem:[#allocation2 + $0x88] sm:$0xff] %v893
      %922 = vst [vmem:[#allocation2 + $0x90] sm:$0xff] %v831
      %923 = vst [vmem:[#allocation2 + $0x98] sm:$0xff] %v833
      %924 = vst [vmem:[#allocation2 + $0xa0] sm:$0xff] %v898
      %925 = vst [vmem:[#allocation2 + $0xa8] sm:$0xff] %v835
      %926 = vst [vmem:[#allocation2 + $0xb0] sm:$0xff] %v837
      %927 = vst [vmem:[#allocation2 + $0xb8] sm:$0xff] %v901
      %v928 = vld [vmem:[#allocation2] sm:$0xff]
      %v929 = vld [vmem:[#allocation2 + $0x18] sm:$0xff]
      %v930 = vld [vmem:[#allocation2 + $0x30] sm:$0xff]
      %v931 = vld [vmem:[#allocation2 + $0x48] sm:$0xff]
      %v932 = vld [vmem:[#allocation2 + $0x60] sm:$0xff]
      %v933 = vld [vmem:[#allocation2 + $0x78] sm:$0xff]
      %v934 = vld [vmem:[#allocation2 + $0x90] sm:$0xff]
      %v935 = vld [vmem:[#allocation2 + $0xa8] sm:$0xff]
      %v936 = vmul.f32 %v928, 0.17677669
      %v937 = vmul.f32 %v929, 0.17677669
      %v938 = vmul.f32 %v930, 0.17677669
      %v939 = vmul.f32 %v931, 0.17677669
      %v940 = vmul.f32 %v932, 0.17677669
      %v941 = vmul.f32 %v933, 0.17677669
      %v942 = vmul.f32 %v934, 0.17677669
      %v943 = vmul.f32 %v935, 0.17677669
      %952 = vrot.lane.b32.xlu0 %v936, 96
      %v953 = vpop.permute.xlu0 %952
      %954 = vrot.lane.b32.xlu0 %v937, 96
      %v955 = vpop.permute.xlu0 %954
      %956 = vrot.lane.b32.xlu0 %v938, 96
      %v957 = vpop.permute.xlu0 %956
      %958 = vrot.lane.b32.xlu0 %v939, 96
      %v959 = vpop.permute.xlu0 %958
      %960 = vrot.lane.b32.xlu0 %v940, 96
      %v961 = vpop.permute.xlu0 %960
      %962 = vrot.lane.b32.xlu0 %v941, 96
      %v963 = vpop.permute.xlu0 %962
      %964 = vrot.lane.b32.xlu0 %v942, 96
      %v965 = vpop.permute.xlu0 %964
      %966 = vrot.lane.b32.xlu0 %v943, 96
      %v967 = vpop.permute.xlu0 %966
      %976 = vrot.lane.b32.xlu0 %v936, 64
      %v977 = vpop.permute.xlu0 %976
      %978 = vrot.lane.b32.xlu0 %v937, 64
      %v979 = vpop.permute.xlu0 %978
      %980 = vrot.lane.b32.xlu0 %v938, 64
      %v981 = vpop.permute.xlu0 %980
      %982 = vrot.lane.b32.xlu0 %v939, 64
      %v983 = vpop.permute.xlu0 %982
      %984 = vrot.lane.b32.xlu0 %v940, 64
      %v985 = vpop.permute.xlu0 %984
      %986 = vrot.lane.b32.xlu0 %v941, 64
      %v987 = vpop.permute.xlu0 %986
      %988 = vrot.lane.b32.xlu0 %v942, 64
      %v989 = vpop.permute.xlu0 %988
      %990 = vrot.lane.b32.xlu0 %v943, 64
      %v991 = vpop.permute.xlu0 %990
      %1000 = vrot.lane.b32.xlu0 %v936, 32
      %v1001 = vpop.permute.xlu0 %1000
      %1002 = vrot.lane.b32.xlu0 %v937, 32
      %v1003 = vpop.permute.xlu0 %1002
      %1004 = vrot.lane.b32.xlu0 %v938, 32
      %v1005 = vpop.permute.xlu0 %1004
      %1006 = vrot.lane.b32.xlu0 %v939, 32
      %v1007 = vpop.permute.xlu0 %1006
      %1008 = vrot.lane.b32.xlu0 %v940, 32
      %v1009 = vpop.permute.xlu0 %1008
      %1010 = vrot.lane.b32.xlu0 %v941, 32
      %v1011 = vpop.permute.xlu0 %1010
      %1012 = vrot.lane.b32.xlu0 %v942, 32
      %v1013 = vpop.permute.xlu0 %1012
      %1014 = vrot.lane.b32.xlu0 %v943, 32
      %v1015 = vpop.permute.xlu0 %1014
      %v1024 = vld [vmem:[#allocation2 + $0x8] sm:$0xff]
      %v1025 = vld [vmem:[#allocation2 + $0x20] sm:$0xff]
      %v1026 = vld [vmem:[#allocation2 + $0x38] sm:$0xff]
      %v1027 = vld [vmem:[#allocation2 + $0x50] sm:$0xff]
      %v1028 = vld [vmem:[#allocation2 + $0x68] sm:$0xff]
      %v1029 = vld [vmem:[#allocation2 + $0x80] sm:$0xff]
      %v1030 = vld [vmem:[#allocation2 + $0x98] sm:$0xff]
      %v1031 = vld [vmem:[#allocation2 + $0xb0] sm:$0xff]
      %1040 = vrot.lane.b32.xlu0 %v1024, 96
      %v1041 = vpop.permute.xlu0 %1040
      %1042 = vrot.lane.b32.xlu0 %v1025, 96
      %v1043 = vpop.permute.xlu0 %1042
      %1044 = vrot.lane.b32.xlu0 %v1026, 96
      %v1045 = vpop.permute.xlu0 %1044
      %1046 = vrot.lane.b32.xlu0 %v1027, 96
      %v1047 = vpop.permute.xlu0 %1046
      %1048 = vrot.lane.b32.xlu0 %v1028, 96
      %v1049 = vpop.permute.xlu0 %1048
      %1050 = vrot.lane.b32.xlu0 %v1029, 96
      %v1051 = vpop.permute.xlu0 %1050
      %1052 = vrot.lane.b32.xlu0 %v1030, 96
      %v1053 = vpop.permute.xlu0 %1052
      %1054 = vrot.lane.b32.xlu0 %v1031, 96
      %v1055 = vpop.permute.xlu0 %1054
      %1064 = vrot.lane.b32.xlu0 %v1024, 64
      %v1065 = vpop.permute.xlu0 %1064
      %1066 = vrot.lane.b32.xlu0 %v1025, 64
      %v1067 = vpop.permute.xlu0 %1066
      %1068 = vrot.lane.b32.xlu0 %v1026, 64
      %v1069 = vpop.permute.xlu0 %1068
      %1070 = vrot.lane.b32.xlu0 %v1027, 64
      %v1071 = vpop.permute.xlu0 %1070
      %1072 = vrot.lane.b32.xlu0 %v1028, 64
      %v1073 = vpop.permute.xlu0 %1072
      %1074 = vrot.lane.b32.xlu0 %v1029, 64
      %v1075 = vpop.permute.xlu0 %1074
      %1076 = vrot.lane.b32.xlu0 %v1030, 64
      %v1077 = vpop.permute.xlu0 %1076
      %1078 = vrot.lane.b32.xlu0 %v1031, 64
      %v1079 = vpop.permute.xlu0 %1078
      %1088 = vrot.lane.b32.xlu0 %v1024, 32
      %v1089 = vpop.permute.xlu0 %1088
      %1090 = vrot.lane.b32.xlu0 %v1025, 32
      %v1091 = vpop.permute.xlu0 %1090
      %1092 = vrot.lane.b32.xlu0 %v1026, 32
      %v1093 = vpop.permute.xlu0 %1092
      %1094 = vrot.lane.b32.xlu0 %v1027, 32
      %v1095 = vpop.permute.xlu0 %1094
      %1096 = vrot.lane.b32.xlu0 %v1028, 32
      %v1097 = vpop.permute.xlu0 %1096
      %1098 = vrot.lane.b32.xlu0 %v1029, 32
      %v1099 = vpop.permute.xlu0 %1098
      %1100 = vrot.lane.b32.xlu0 %v1030, 32
      %v1101 = vpop.permute.xlu0 %1100
      %1102 = vrot.lane.b32.xlu0 %v1031, 32
      %v1103 = vpop.permute.xlu0 %1102
      %v1112 = vld [vmem:[#allocation2 + $0x10] sm:$0xff]
      %v1113 = vld [vmem:[#allocation2 + $0x28] sm:$0xff]
      %v1114 = vld [vmem:[#allocation2 + $0x40] sm:$0xff]
      %v1115 = vld [vmem:[#allocation2 + $0x58] sm:$0xff]
      %v1116 = vld [vmem:[#allocation2 + $0x70] sm:$0xff]
      %v1117 = vld [vmem:[#allocation2 + $0x88] sm:$0xff]
      %v1118 = vld [vmem:[#allocation2 + $0xa0] sm:$0xff]
      %v1119 = vld [vmem:[#allocation2 + $0xb8] sm:$0xff]
      %1128 = vrot.lane.b32.xlu0 %v1112, 96
      %v1129 = vpop.permute.xlu0 %1128
      %1130 = vrot.lane.b32.xlu0 %v1113, 96
      %v1131 = vpop.permute.xlu0 %1130
      %1132 = vrot.lane.b32.xlu0 %v1114, 96
      %v1133 = vpop.permute.xlu0 %1132
      %1134 = vrot.lane.b32.xlu0 %v1115, 96
      %v1135 = vpop.permute.xlu0 %1134
      %1136 = vrot.lane.b32.xlu0 %v1116, 96
      %v1137 = vpop.permute.xlu0 %1136
      %1138 = vrot.lane.b32.xlu0 %v1117, 96
      %v1139 = vpop.permute.xlu0 %1138
      %1140 = vrot.lane.b32.xlu0 %v1118, 96
      %v1141 = vpop.permute.xlu0 %1140
      %1142 = vrot.lane.b32.xlu0 %v1119, 96
      %v1143 = vpop.permute.xlu0 %1142
      %1152 = vrot.lane.b32.xlu0 %v1112, 64
      %v1153 = vpop.permute.xlu0 %1152
      %1154 = vrot.lane.b32.xlu0 %v1113, 64
      %v1155 = vpop.permute.xlu0 %1154
      %1156 = vrot.lane.b32.xlu0 %v1114, 64
      %v1157 = vpop.permute.xlu0 %1156
      %1158 = vrot.lane.b32.xlu0 %v1115, 64
      %v1159 = vpop.permute.xlu0 %1158
      %1160 = vrot.lane.b32.xlu0 %v1116, 64
      %v1161 = vpop.permute.xlu0 %1160
      %1162 = vrot.lane.b32.xlu0 %v1117, 64
      %v1163 = vpop.permute.xlu0 %1162
      %1164 = vrot.lane.b32.xlu0 %v1118, 64
      %v1165 = vpop.permute.xlu0 %1164
      %1166 = vrot.lane.b32.xlu0 %v1119, 64
      %v1167 = vpop.permute.xlu0 %1166
      %1176 = vrot.lane.b32.xlu0 %v1112, 32
      %v1177 = vpop.permute.xlu0 %1176
      %1178 = vrot.lane.b32.xlu0 %v1113, 32
      %v1179 = vpop.permute.xlu0 %1178
      %1180 = vrot.lane.b32.xlu0 %v1114, 32
      %v1181 = vpop.permute.xlu0 %1180
      %1182 = vrot.lane.b32.xlu0 %v1115, 32
      %v1183 = vpop.permute.xlu0 %1182
      %1184 = vrot.lane.b32.xlu0 %v1116, 32
      %v1185 = vpop.permute.xlu0 %1184
      %1186 = vrot.lane.b32.xlu0 %v1117, 32
      %v1187 = vpop.permute.xlu0 %1186
      %1188 = vrot.lane.b32.xlu0 %v1118, 32
      %v1189 = vpop.permute.xlu0 %1188
      %1190 = vrot.lane.b32.xlu0 %v1119, 32
      %v1191 = vpop.permute.xlu0 %1190
      %v1200 = vpack.c.bf16 %v937, %v936
      %v1201 = vpack.c.bf16 %v939, %v938
      %v1202 = vpack.c.bf16 %v941, %v940
      %v1203 = vpack.c.bf16 %v943, %v942
      %v1204 = vpack.c.bf16 %v955, %v953
      %v1205 = vpack.c.bf16 %v959, %v957
      %v1206 = vpack.c.bf16 %v963, %v961
      %v1207 = vpack.c.bf16 %v967, %v965
      %v1208 = vpack.c.bf16 %v979, %v977
      %v1209 = vpack.c.bf16 %v983, %v981
      %v1210 = vpack.c.bf16 %v987, %v985
      %v1211 = vpack.c.bf16 %v991, %v989
      %v1212 = vpack.c.bf16 %v1003, %v1001
      %v1213 = vpack.c.bf16 %v1007, %v1005
      %v1214 = vpack.c.bf16 %v1011, %v1009
      %v1215 = vpack.c.bf16 %v1015, %v1013
      %v1216 = vpack.c.bf16 %v1025, %v1024
      %v1217 = vpack.c.bf16 %v1027, %v1026
      %v1218 = vpack.c.bf16 %v1029, %v1028
      %v1219 = vpack.c.bf16 %v1031, %v1030
      %v1220 = vpack.c.bf16 %v1043, %v1041
      %v1221 = vpack.c.bf16 %v1047, %v1045
      %v1222 = vpack.c.bf16 %v1051, %v1049
      %v1223 = vpack.c.bf16 %v1055, %v1053
      %v1224 = vpack.c.bf16 %v1067, %v1065
      %v1225 = vpack.c.bf16 %v1071, %v1069
      %v1226 = vpack.c.bf16 %v1075, %v1073
      %v1227 = vpack.c.bf16 %v1079, %v1077
      %v1228 = vpack.c.bf16 %v1091, %v1089
      %v1229 = vpack.c.bf16 %v1095, %v1093
      %v1230 = vpack.c.bf16 %v1099, %v1097
      %v1231 = vpack.c.bf16 %v1103, %v1101
      %vm1232 = vcmask 261120
      %v1234 = vsel %vm1232, %v1200, 0
      %v1237 = vsel %vm1232, %v1201, 0
      %v1240 = vsel %vm1232, %v1202, 0
      %v1243 = vsel %vm1232, %v1203, 0
      %v1246 = vsel %vm1232, %v1216, 0
      %v1249 = vsel %vm1232, %v1217, 0
      %v1252 = vsel %vm1232, %v1218, 0
      %v1255 = vsel %vm1232, %v1219, 0
      %1257 = vmatprep.subr.bf16.mxu0 0
      %1258 = vmatpush1.bf16.xpose.msra.mxu0 %v1246
      %1259 = vmatprep.subr.bf16.mxu0 0
      %1260 = vmatpush1.bf16.xpose.msra.mxu0 %v1249
      %1261 = vmatprep.subr.bf16.mxu0 0
      %1262 = vmatpush1.bf16.xpose.msra.mxu0 %v1252
      %1263 = vmatprep.subr.bf16.mxu0 0
      %1264 = vmatpush1.bf16.xpose.msra.mxu0 %v1255
      %1265 = vmatprep.subr.bf16.mxu0 0
      %1266 = vmatpush1.bf16.xpose.msra.mxu0 0
      %1267 = vmatprep.subr.bf16.mxu0 0
      %1268 = vmatpush1.bf16.xpose.msra.mxu0 0
      %1269 = vmatprep.subr.bf16.mxu0 0
      %1270 = vmatpush1.bf16.xpose.msra.mxu0 0
      %1271 = vmatprep.subr.bf16.mxu0 0
      %1272 = vmatpush1.bf16.xpose.msra.mxu0 0
      %1273 = vmatprep.subr.bf16.mxu0 0
      %1274 = vmatpush1.bf16.xpose.msra.mxu0 0
      %1275 = vmatprep.subr.bf16.mxu0 0
      %1276 = vmatpush1.bf16.xpose.msra.mxu0 0
      %1277 = vmatprep.subr.bf16.mxu0 0
      %1278 = vmatpush1.bf16.xpose.msra.mxu0 0
      %1279 = vmatprep.subr.bf16.mxu0 0
      %1280 = vmatpush1.bf16.xpose.msra.mxu0 0
      %1281 = vmatprep.subr.bf16.mxu0 0
      %1282 = vmatpush1.bf16.xpose.msra.mxu0 0
      %1283 = vmatprep.subr.bf16.mxu0 0
      %1284 = vmatpush1.bf16.xpose.msra.mxu0 0
      %1285 = vmatprep.subr.bf16.mxu0 0
      %1286 = vmatpush1.bf16.xpose.msra.mxu0 0
      %1287 = vmatprep.subr.bf16.mxu0 0
      %1288 = vmatpush1.bf16.xpose.msra.mxu0 0
      %1289 = vmatprep.mubr.bf16.mxu0 0
      %1290 = vmatmul.mubr.bf16.gmra.mrb[0].mxu0 %v1234
      %v1291 = vpop.f32.mrb[0].mxu0
      %v1292 = vadd.f32 0.0, %v1291
      %v1293 = vpop.f32.mrb[0].mxu0
      %v1294 = vpop.f32.mrb[0].mxu0
      %v1295 = vadd.f32 0.0, %v1294
      %v1296 = vpop.f32.mrb[0].mxu0
      %1297 = vmatprep.mubr.bf16.mxu0 0
      %1298 = vmatmul.mubr.bf16.gmra.mrb[0].mxu0 %v1237
      %v1299 = vpop.f32.mrb[0].mxu0
      %v1300 = vadd.f32 0.0, %v1299
      %v1301 = vpop.f32.mrb[0].mxu0
      %v1302 = vpop.f32.mrb[0].mxu0
      %v1303 = vadd.f32 0.0, %v1302
      %v1304 = vpop.f32.mrb[0].mxu0
      %1305 = vmatprep.mubr.bf16.mxu0 0
      %1306 = vmatmul.mubr.bf16.gmra.mrb[0].mxu0 %v1240
      %v1307 = vpop.f32.mrb[0].mxu0
      %v1308 = vadd.f32 0.0, %v1307
      %v1309 = vpop.f32.mrb[0].mxu0
      %v1310 = vpop.f32.mrb[0].mxu0
      %v1311 = vadd.f32 0.0, %v1310
      %v1312 = vpop.f32.mrb[0].mxu0
      %1313 = vmatprep.mubr.bf16.mxu0 0
      %1314 = vmatmul.mubr.bf16.gmra.mrb[0].mxu0 %v1243
      %v1315 = vpop.f32.mrb[0].mxu0
      %v1316 = vadd.f32 0.0, %v1315
      %v1317 = vpop.f32.mrb[0].mxu0
      %v1318 = vpop.f32.mrb[0].mxu0
      %v1319 = vadd.f32 0.0, %v1318
      %v1320 = vpop.f32.mrb[0].mxu0
      %1321 = vdwg.mxu0
      %v1323 = vsel %vm1232, %v1204, 0
      %v1326 = vsel %vm1232, %v1205, 0
      %v1329 = vsel %vm1232, %v1206, 0
      %v1332 = vsel %vm1232, %v1207, 0
      %v1335 = vsel %vm1232, %v1220, 0
      %v1338 = vsel %vm1232, %v1221, 0
      %v1341 = vsel %vm1232, %v1222, 0
      %v1344 = vsel %vm1232, %v1223, 0
      %1346 = vmatprep.subr.bf16.mxu0 0
      %1347 = vmatpush1.bf16.xpose.msra.mxu0 %v1335
      %1348 = vmatprep.subr.bf16.mxu0 0
      %1349 = vmatpush1.bf16.xpose.msra.mxu0 %v1338
      %1350 = vmatprep.subr.bf16.mxu0 0
      %1351 = vmatpush1.bf16.xpose.msra.mxu0 %v1341
      %1352 = vmatprep.subr.bf16.mxu0 0
      %1353 = vmatpush1.bf16.xpose.msra.mxu0 %v1344
      %1354 = vmatprep.subr.bf16.mxu0 0
      %1355 = vmatpush1.bf16.xpose.msra.mxu0 0
      %1356 = vmatprep.subr.bf16.mxu0 0
      %1357 = vmatpush1.bf16.xpose.msra.mxu0 0
      %1358 = vmatprep.subr.bf16.mxu0 0
      %1359 = vmatpush1.bf16.xpose.msra.mxu0 0
      %1360 = vmatprep.subr.bf16.mxu0 0
      %1361 = vmatpush1.bf16.xpose.msra.mxu0 0
      %1362 = vmatprep.subr.bf16.mxu0 0
      %1363 = vmatpush1.bf16.xpose.msra.mxu0 0
      %1364 = vmatprep.subr.bf16.mxu0 0
      %1365 = vmatpush1.bf16.xpose.msra.mxu0 0
      %1366 = vmatprep.subr.bf16.mxu0 0
      %1367 = vmatpush1.bf16.xpose.msra.mxu0 0
      %1368 = vmatprep.subr.bf16.mxu0 0
      %1369 = vmatpush1.bf16.xpose.msra.mxu0 0
      %1370 = vmatprep.subr.bf16.mxu0 0
      %1371 = vmatpush1.bf16.xpose.msra.mxu0 0
      %1372 = vmatprep.subr.bf16.mxu0 0
      %1373 = vmatpush1.bf16.xpose.msra.mxu0 0
      %1374 = vmatprep.subr.bf16.mxu0 0
      %1375 = vmatpush1.bf16.xpose.msra.mxu0 0
      %1376 = vmatprep.subr.bf16.mxu0 0
      %1377 = vmatpush1.bf16.xpose.msra.mxu0 0
      %1378 = vmatprep.mubr.bf16.mxu0 0
      %1379 = vmatmul.mubr.bf16.gmra.mrb[0].mxu0 %v1323
      %v1380 = vpop.f32.mrb[0].mxu0
      %v1381 = vadd.f32 0.0, %v1380
      %v1382 = vpop.f32.mrb[0].mxu0
      %v1383 = vpop.f32.mrb[0].mxu0
      %v1384 = vadd.f32 0.0, %v1383
      %v1385 = vpop.f32.mrb[0].mxu0
      %1386 = vmatprep.mubr.bf16.mxu0 0
      %1387 = vmatmul.mubr.bf16.gmra.mrb[0].mxu0 %v1326
      %v1388 = vpop.f32.mrb[0].mxu0
      %v1389 = vadd.f32 0.0, %v1388
      %v1390 = vpop.f32.mrb[0].mxu0
      %v1391 = vpop.f32.mrb[0].mxu0
      %v1392 = vadd.f32 0.0, %v1391
      %v1393 = vpop.f32.mrb[0].mxu0
      %1394 = vmatprep.mubr.bf16.mxu0 0
      %1395 = vmatmul.mubr.bf16.gmra.mrb[0].mxu0 %v1329
      %v1396 = vpop.f32.mrb[0].mxu0
      %v1397 = vadd.f32 0.0, %v1396
      %v1398 = vpop.f32.mrb[0].mxu0
      %v1399 = vpop.f32.mrb[0].mxu0
      %v1400 = vadd.f32 0.0, %v1399
      %v1401 = vpop.f32.mrb[0].mxu0
      %1402 = vmatprep.mubr.bf16.mxu0 0
      %1403 = vmatmul.mubr.bf16.gmra.mrb[0].mxu0 %v1332
      %v1404 = vpop.f32.mrb[0].mxu0
      %v1405 = vadd.f32 0.0, %v1404
      %v1406 = vpop.f32.mrb[0].mxu0
      %v1407 = vpop.f32.mrb[0].mxu0
      %v1408 = vadd.f32 0.0, %v1407
      %v1409 = vpop.f32.mrb[0].mxu0
      %1410 = vdwg.mxu0
      %v1412 = vsel %vm1232, %v1208, 0
      %v1415 = vsel %vm1232, %v1209, 0
      %v1418 = vsel %vm1232, %v1210, 0
      %v1421 = vsel %vm1232, %v1211, 0
      %v1424 = vsel %vm1232, %v1224, 0
      %v1427 = vsel %vm1232, %v1225, 0
      %v1430 = vsel %vm1232, %v1226, 0
      %v1433 = vsel %vm1232, %v1227, 0
      %1435 = vmatprep.subr.bf16.mxu0 0
      %1436 = vmatpush1.bf16.xpose.msra.mxu0 %v1424
      %1437 = vmatprep.subr.bf16.mxu0 0
      %1438 = vmatpush1.bf16.xpose.msra.mxu0 %v1427
      %1439 = vmatprep.subr.bf16.mxu0 0
      %1440 = vmatpush1.bf16.xpose.msra.mxu0 %v1430
      %1441 = vmatprep.subr.bf16.mxu0 0
      %1442 = vmatpush1.bf16.xpose.msra.mxu0 %v1433
      %1443 = vmatprep.subr.bf16.mxu0 0
      %1444 = vmatpush1.bf16.xpose.msra.mxu0 0
      %1445 = vmatprep.subr.bf16.mxu0 0
      %1446 = vmatpush1.bf16.xpose.msra.mxu0 0
      %1447 = vmatprep.subr.bf16.mxu0 0
      %1448 = vmatpush1.bf16.xpose.msra.mxu0 0
      %1449 = vmatprep.subr.bf16.mxu0 0
      %1450 = vmatpush1.bf16.xpose.msra.mxu0 0
      %1451 = vmatprep.subr.bf16.mxu0 0
      %1452 = vmatpush1.bf16.xpose.msra.mxu0 0
      %1453 = vmatprep.subr.bf16.mxu0 0
      %1454 = vmatpush1.bf16.xpose.msra.mxu0 0
      %1455 = vmatprep.subr.bf16.mxu0 0
      %1456 = vmatpush1.bf16.xpose.msra.mxu0 0
      %1457 = vmatprep.subr.bf16.mxu0 0
      %1458 = vmatpush1.bf16.xpose.msra.mxu0 0
      %1459 = vmatprep.subr.bf16.mxu0 0
      %1460 = vmatpush1.bf16.xpose.msra.mxu0 0
      %1461 = vmatprep.subr.bf16.mxu0 0
      %1462 = vmatpush1.bf16.xpose.msra.mxu0 0
      %1463 = vmatprep.subr.bf16.mxu0 0
      %1464 = vmatpush1.bf16.xpose.msra.mxu0 0
      %1465 = vmatprep.subr.bf16.mxu0 0
      %1466 = vmatpush1.bf16.xpose.msra.mxu0 0
      %1467 = vmatprep.mubr.bf16.mxu0 0
      %1468 = vmatmul.mubr.bf16.gmra.mrb[0].mxu0 %v1412
      %v1469 = vpop.f32.mrb[0].mxu0
      %v1470 = vadd.f32 0.0, %v1469
      %v1471 = vpop.f32.mrb[0].mxu0
      %v1472 = vpop.f32.mrb[0].mxu0
      %v1473 = vadd.f32 0.0, %v1472
      %v1474 = vpop.f32.mrb[0].mxu0
      %1475 = vmatprep.mubr.bf16.mxu0 0
      %1476 = vmatmul.mubr.bf16.gmra.mrb[0].mxu0 %v1415
      %v1477 = vpop.f32.mrb[0].mxu0
      %v1478 = vadd.f32 0.0, %v1477
      %v1479 = vpop.f32.mrb[0].mxu0
      %v1480 = vpop.f32.mrb[0].mxu0
      %v1481 = vadd.f32 0.0, %v1480
      %v1482 = vpop.f32.mrb[0].mxu0
      %1483 = vmatprep.mubr.bf16.mxu0 0
      %1484 = vmatmul.mubr.bf16.gmra.mrb[0].mxu0 %v1418
      %v1485 = vpop.f32.mrb[0].mxu0
      %v1486 = vadd.f32 0.0, %v1485
      %v1487 = vpop.f32.mrb[0].mxu0
      %v1488 = vpop.f32.mrb[0].mxu0
      %v1489 = vadd.f32 0.0, %v1488
      %v1490 = vpop.f32.mrb[0].mxu0
      %1491 = vmatprep.mubr.bf16.mxu0 0
      %1492 = vmatmul.mubr.bf16.gmra.mrb[0].mxu0 %v1421
      %v1493 = vpop.f32.mrb[0].mxu0
      %v1494 = vadd.f32 0.0, %v1493
      %v1495 = vpop.f32.mrb[0].mxu0
      %v1496 = vpop.f32.mrb[0].mxu0
      %v1497 = vadd.f32 0.0, %v1496
      %v1498 = vpop.f32.mrb[0].mxu0
      %1499 = vdwg.mxu0
      %v1501 = vsel %vm1232, %v1212, 0
      %v1504 = vsel %vm1232, %v1213, 0
      %v1507 = vsel %vm1232, %v1214, 0
      %v1510 = vsel %vm1232, %v1215, 0
      %v1513 = vsel %vm1232, %v1228, 0
      %v1516 = vsel %vm1232, %v1229, 0
      %v1519 = vsel %vm1232, %v1230, 0
      %v1522 = vsel %vm1232, %v1231, 0
      %1524 = vmatprep.subr.bf16.mxu0 0
      %1525 = vmatpush1.bf16.xpose.msra.mxu0 %v1513
      %1526 = vmatprep.subr.bf16.mxu0 0
      %1527 = vmatpush1.bf16.xpose.msra.mxu0 %v1516
      %1528 = vmatprep.subr.bf16.mxu0 0
      %1529 = vmatpush1.bf16.xpose.msra.mxu0 %v1519
      %1530 = vmatprep.subr.bf16.mxu0 0
      %1531 = vmatpush1.bf16.xpose.msra.mxu0 %v1522
      %1532 = vmatprep.subr.bf16.mxu0 0
      %1533 = vmatpush1.bf16.xpose.msra.mxu0 0
      %1534 = vmatprep.subr.bf16.mxu0 0
      %1535 = vmatpush1.bf16.xpose.msra.mxu0 0
      %1536 = vmatprep.subr.bf16.mxu0 0
      %1537 = vmatpush1.bf16.xpose.msra.mxu0 0
      %1538 = vmatprep.subr.bf16.mxu0 0
      %1539 = vmatpush1.bf16.xpose.msra.mxu0 0
      %1540 = vmatprep.subr.bf16.mxu0 0
      %1541 = vmatpush1.bf16.xpose.msra.mxu0 0
      %1542 = vmatprep.subr.bf16.mxu0 0
      %1543 = vmatpush1.bf16.xpose.msra.mxu0 0
      %1544 = vmatprep.subr.bf16.mxu0 0
      %1545 = vmatpush1.bf16.xpose.msra.mxu0 0
      %1546 = vmatprep.subr.bf16.mxu0 0
      %1547 = vmatpush1.bf16.xpose.msra.mxu0 0
      %1548 = vmatprep.subr.bf16.mxu0 0
      %1549 = vmatpush1.bf16.xpose.msra.mxu0 0
      %1550 = vmatprep.subr.bf16.mxu0 0
      %1551 = vmatpush1.bf16.xpose.msra.mxu0 0
      %1552 = vmatprep.subr.bf16.mxu0 0
      %1553 = vmatpush1.bf16.xpose.msra.mxu0 0
      %1554 = vmatprep.subr.bf16.mxu0 0
      %1555 = vmatpush1.bf16.xpose.msra.mxu0 0
      %1556 = vmatprep.mubr.bf16.mxu0 0
      %1557 = vmatmul.mubr.bf16.gmra.mrb[0].mxu0 %v1501
      %v1558 = vpop.f32.mrb[0].mxu0
      %v1559 = vadd.f32 0.0, %v1558
      %v1560 = vpop.f32.mrb[0].mxu0
      %v1561 = vpop.f32.mrb[0].mxu0
      %v1562 = vadd.f32 0.0, %v1561
      %v1563 = vpop.f32.mrb[0].mxu0
      %1564 = vmatprep.mubr.bf16.mxu0 0
      %1565 = vmatmul.mubr.bf16.gmra.mrb[0].mxu0 %v1504
      %v1566 = vpop.f32.mrb[0].mxu0
      %v1567 = vadd.f32 0.0, %v1566
      %v1568 = vpop.f32.mrb[0].mxu0
      %v1569 = vpop.f32.mrb[0].mxu0
      %v1570 = vadd.f32 0.0, %v1569
      %v1571 = vpop.f32.mrb[0].mxu0
      %1572 = vmatprep.mubr.bf16.mxu0 0
      %1573 = vmatmul.mubr.bf16.gmra.mrb[0].mxu0 %v1507
      %v1574 = vpop.f32.mrb[0].mxu0
      %v1575 = vadd.f32 0.0, %v1574
      %v1576 = vpop.f32.mrb[0].mxu0
      %v1577 = vpop.f32.mrb[0].mxu0
      %v1578 = vadd.f32 0.0, %v1577
      %v1579 = vpop.f32.mrb[0].mxu0
      %1580 = vmatprep.mubr.bf16.mxu0 0
      %1581 = vmatmul.mubr.bf16.gmra.mrb[0].mxu0 %v1510
      %v1582 = vpop.f32.mrb[0].mxu0
      %v1583 = vadd.f32 0.0, %v1582
      %v1584 = vpop.f32.mrb[0].mxu0
      %v1585 = vpop.f32.mrb[0].mxu0
      %v1586 = vadd.f32 0.0, %v1585
      %v1587 = vpop.f32.mrb[0].mxu0
      %1588 = vdwg.mxu0
      %vm1589 = vcmask 523264
      %v1590 = vsel %vm1589, %v1292, -inf
      %1591 = vmax.xlane.f32.xlu0 %v1590
      %v1592 = vpop.xlane.xlu0 %1591
      %v1593 = vsel %vm1589, %v1295, -inf
      %1594 = vmax.xlane.f32.xlu0 %v1593
      %v1595 = vpop.xlane.xlu0 %1594
      %v1596 = vsel %vm1589, %v1300, -inf
      %1597 = vmax.xlane.f32.xlu0 %v1596
      %v1598 = vpop.xlane.xlu0 %1597
      %v1599 = vsel %vm1589, %v1303, -inf
      %1600 = vmax.xlane.f32.xlu0 %v1599
      %v1601 = vpop.xlane.xlu0 %1600
      %v1602 = vsel %vm1589, %v1308, -inf
      %1603 = vmax.xlane.f32.xlu0 %v1602
      %v1604 = vpop.xlane.xlu0 %1603
      %v1605 = vsel %vm1589, %v1311, -inf
      %1606 = vmax.xlane.f32.xlu0 %v1605
      %v1607 = vpop.xlane.xlu0 %1606
      %v1608 = vsel %vm1589, %v1316, -inf
      %1609 = vmax.xlane.f32.xlu0 %v1608
      %v1610 = vpop.xlane.xlu0 %1609
      %v1611 = vsel %vm1589, %v1319, -inf
      %1612 = vmax.xlane.f32.xlu0 %v1611
      %v1613 = vpop.xlane.xlu0 %1612
      %v1614 = vsel %vm1589, %v1381, -inf
      %1615 = vmax.xlane.f32.xlu0 %v1614
      %v1616 = vpop.xlane.xlu0 %1615
      %v1617 = vsel %vm1589, %v1384, -inf
      %1618 = vmax.xlane.f32.xlu0 %v1617
      %v1619 = vpop.xlane.xlu0 %1618
      %v1620 = vsel %vm1589, %v1389, -inf
      %1621 = vmax.xlane.f32.xlu0 %v1620
      %v1622 = vpop.xlane.xlu0 %1621
      %v1623 = vsel %vm1589, %v1392, -inf
      %1624 = vmax.xlane.f32.xlu0 %v1623
      %v1625 = vpop.xlane.xlu0 %1624
      %v1626 = vsel %vm1589, %v1397, -inf
      %1627 = vmax.xlane.f32.xlu0 %v1626
      %v1628 = vpop.xlane.xlu0 %1627
      %v1629 = vsel %vm1589, %v1400, -inf
      %1630 = vmax.xlane.f32.xlu0 %v1629
      %v1631 = vpop.xlane.xlu0 %1630
      %v1632 = vsel %vm1589, %v1405, -inf
      %1633 = vmax.xlane.f32.xlu0 %v1632
      %v1634 = vpop.xlane.xlu0 %1633
      %v1635 = vsel %vm1589, %v1408, -inf
      %1636 = vmax.xlane.f32.xlu0 %v1635
      %v1637 = vpop.xlane.xlu0 %1636
      %v1638 = vsel %vm1589, %v1470, -inf
      %1639 = vmax.xlane.f32.xlu0 %v1638
      %v1640 = vpop.xlane.xlu0 %1639
      %v1641 = vsel %vm1589, %v1473, -inf
      %1642 = vmax.xlane.f32.xlu0 %v1641
      %v1643 = vpop.xlane.xlu0 %1642
      %v1644 = vsel %vm1589, %v1478, -inf
      %1645 = vmax.xlane.f32.xlu0 %v1644
      %v1646 = vpop.xlane.xlu0 %1645
      %v1647 = vsel %vm1589, %v1481, -inf
      %1648 = vmax.xlane.f32.xlu0 %v1647
      %v1649 = vpop.xlane.xlu0 %1648
      %v1650 = vsel %vm1589, %v1486, -inf
      %1651 = vmax.xlane.f32.xlu0 %v1650
      %v1652 = vpop.xlane.xlu0 %1651
      %v1653 = vsel %vm1589, %v1489, -inf
      %1654 = vmax.xlane.f32.xlu0 %v1653
      %v1655 = vpop.xlane.xlu0 %1654
      %v1656 = vsel %vm1589, %v1494, -inf
      %1657 = vmax.xlane.f32.xlu0 %v1656
      %v1658 = vpop.xlane.xlu0 %1657
      %v1659 = vsel %vm1589, %v1497, -inf
      %1660 = vmax.xlane.f32.xlu0 %v1659
      %v1661 = vpop.xlane.xlu0 %1660
      %v1662 = vsel %vm1589, %v1559, -inf
      %1663 = vmax.xlane.f32.xlu0 %v1662
      %v1664 = vpop.xlane.xlu0 %1663
      %v1665 = vsel %vm1589, %v1562, -inf
      %1666 = vmax.xlane.f32.xlu0 %v1665
      %v1667 = vpop.xlane.xlu0 %1666
      %v1668 = vsel %vm1589, %v1567, -inf
      %1669 = vmax.xlane.f32.xlu0 %v1668
      %v1670 = vpop.xlane.xlu0 %1669
      %v1671 = vsel %vm1589, %v1570, -inf
      %1672 = vmax.xlane.f32.xlu0 %v1671
      %v1673 = vpop.xlane.xlu0 %1672
      %v1674 = vsel %vm1589, %v1575, -inf
      %1675 = vmax.xlane.f32.xlu0 %v1674
      %v1676 = vpop.xlane.xlu0 %1675
      %v1677 = vsel %vm1589, %v1578, -inf
      %1678 = vmax.xlane.f32.xlu0 %v1677
      %v1679 = vpop.xlane.xlu0 %1678
      %v1680 = vsel %vm1589, %v1583, -inf
      %1681 = vmax.xlane.f32.xlu0 %v1680
      %v1682 = vpop.xlane.xlu0 %1681
      %v1683 = vsel %vm1589, %v1586, -inf
      %1684 = vmax.xlane.f32.xlu0 %v1683
      %v1685 = vpop.xlane.xlu0 %1684
      %v1686 = vsub.f32 %v1292, %v1592
      %v1687 = vsub.f32 %v1295, %v1595
      %v1688 = vsub.f32 %v1300, %v1598
      %v1689 = vsub.f32 %v1303, %v1601
      %v1690 = vsub.f32 %v1308, %v1604
      %v1691 = vsub.f32 %v1311, %v1607
      %v1692 = vsub.f32 %v1316, %v1610
      %v1693 = vsub.f32 %v1319, %v1613
      %v1694 = vsub.f32 %v1381, %v1616
      %v1695 = vsub.f32 %v1384, %v1619
      %v1696 = vsub.f32 %v1389, %v1622
      %v1697 = vsub.f32 %v1392, %v1625
      %v1698 = vsub.f32 %v1397, %v1628
      %v1699 = vsub.f32 %v1400, %v1631
      %v1700 = vsub.f32 %v1405, %v1634
      %v1701 = vsub.f32 %v1408, %v1637
      %v1702 = vsub.f32 %v1470, %v1640
      %v1703 = vsub.f32 %v1473, %v1643
      %v1704 = vsub.f32 %v1478, %v1646
      %v1705 = vsub.f32 %v1481, %v1649
      %v1706 = vsub.f32 %v1486, %v1652
      %v1707 = vsub.f32 %v1489, %v1655
      %v1708 = vsub.f32 %v1494, %v1658
      %v1709 = vsub.f32 %v1497, %v1661
      %v1710 = vsub.f32 %v1559, %v1664
      %v1711 = vsub.f32 %v1562, %v1667
      %v1712 = vsub.f32 %v1567, %v1670
      %v1713 = vsub.f32 %v1570, %v1673
      %v1714 = vsub.f32 %v1575, %v1676
      %v1715 = vsub.f32 %v1578, %v1679
      %v1716 = vsub.f32 %v1583, %v1682
      %v1717 = vsub.f32 %v1586, %v1685
      %v1718 = vmul.f32 %v1686, 1.442695
      %v1719 = vpow.pop %v1718
      %v1720 = vmul.f32 %v1687, 1.442695
      %v1721 = vpow.pop %v1720
      %v1722 = vmul.f32 %v1688, 1.442695
      %v1723 = vpow.pop %v1722
      %v1724 = vmul.f32 %v1689, 1.442695
      %v1725 = vpow.pop %v1724
      %v1726 = vmul.f32 %v1690, 1.442695
      %v1727 = vpow.pop %v1726
      %v1728 = vmul.f32 %v1691, 1.442695
      %v1729 = vpow.pop %v1728
      %v1730 = vmul.f32 %v1692, 1.442695
      %v1731 = vpow.pop %v1730
      %v1732 = vmul.f32 %v1693, 1.442695
      %v1733 = vpow.pop %v1732
      %v1734 = vmul.f32 %v1694, 1.442695
      %v1735 = vpow.pop %v1734
      %v1736 = vmul.f32 %v1695, 1.442695
      %v1737 = vpow.pop %v1736
      %v1738 = vmul.f32 %v1696, 1.442695
      %v1739 = vpow.pop %v1738
      %v1740 = vmul.f32 %v1697, 1.442695
      %v1741 = vpow.pop %v1740
      %v1742 = vmul.f32 %v1698, 1.442695
      %v1743 = vpow.pop %v1742
      %v1744 = vmul.f32 %v1699, 1.442695
      %v1745 = vpow.pop %v1744
      %v1746 = vmul.f32 %v1700, 1.442695
      %v1747 = vpow.pop %v1746
      %v1748 = vmul.f32 %v1701, 1.442695
      %v1749 = vpow.pop %v1748
      %v1750 = vmul.f32 %v1702, 1.442695
      %v1751 = vpow.pop %v1750
      %v1752 = vmul.f32 %v1703, 1.442695
      %v1753 = vpow.pop %v1752
      %v1754 = vmul.f32 %v1704, 1.442695
      %v1755 = vpow.pop %v1754
      %v1756 = vmul.f32 %v1705, 1.442695
      %v1757 = vpow.pop %v1756
      %v1758 = vmul.f32 %v1706, 1.442695
      %v1759 = vpow.pop %v1758
      %v1760 = vmul.f32 %v1707, 1.442695
      %v1761 = vpow.pop %v1760
      %v1762 = vmul.f32 %v1708, 1.442695
      %v1763 = vpow.pop %v1762
      %v1764 = vmul.f32 %v1709, 1.442695
      %v1765 = vpow.pop %v1764
      %v1766 = vmul.f32 %v1710, 1.442695
      %v1767 = vpow.pop %v1766
      %v1768 = vmul.f32 %v1711, 1.442695
      %v1769 = vpow.pop %v1768
      %v1770 = vmul.f32 %v1712, 1.442695
      %v1771 = vpow.pop %v1770
      %v1772 = vmul.f32 %v1713, 1.442695
      %v1773 = vpow.pop %v1772
      %v1774 = vmul.f32 %v1714, 1.442695
      %v1775 = vpow.pop %v1774
      %v1776 = vmul.f32 %v1715, 1.442695
      %v1777 = vpow.pop %v1776
      %v1778 = vmul.f32 %v1716, 1.442695
      %v1779 = vpow.pop %v1778
      %v1780 = vmul.f32 %v1717, 1.442695
      %v1781 = vpow.pop %v1780
      %v1782 = vsel %vm1589, %v1719, 0.0
      %1783 = vadd.xlane.f32.xlu0 %v1782
      %v1784 = vpop.xlane.xlu0 %1783
      %v1785 = vsel %vm1589, %v1721, 0.0
      %1786 = vadd.xlane.f32.xlu0 %v1785
      %v1787 = vpop.xlane.xlu0 %1786
      %v1788 = vsel %vm1589, %v1723, 0.0
      %1789 = vadd.xlane.f32.xlu0 %v1788
      %v1790 = vpop.xlane.xlu0 %1789
      %v1791 = vsel %vm1589, %v1725, 0.0
      %1792 = vadd.xlane.f32.xlu0 %v1791
      %v1793 = vpop.xlane.xlu0 %1792
      %v1794 = vsel %vm1589, %v1727, 0.0
      %1795 = vadd.xlane.f32.xlu0 %v1794
      %v1796 = vpop.xlane.xlu0 %1795
      %v1797 = vsel %vm1589, %v1729, 0.0
      %1798 = vadd.xlane.f32.xlu0 %v1797
      %v1799 = vpop.xlane.xlu0 %1798
      %v1800 = vsel %vm1589, %v1731, 0.0
      %1801 = vadd.xlane.f32.xlu0 %v1800
      %v1802 = vpop.xlane.xlu0 %1801
      %v1803 = vsel %vm1589, %v1733, 0.0
      %1804 = vadd.xlane.f32.xlu0 %v1803
      %v1805 = vpop.xlane.xlu0 %1804
      %v1806 = vsel %vm1589, %v1735, 0.0
      %1807 = vadd.xlane.f32.xlu0 %v1806
      %v1808 = vpop.xlane.xlu0 %1807
      %v1809 = vsel %vm1589, %v1737, 0.0
      %1810 = vadd.xlane.f32.xlu0 %v1809
      %v1811 = vpop.xlane.xlu0 %1810
      %v1812 = vsel %vm1589, %v1739, 0.0
      %1813 = vadd.xlane.f32.xlu0 %v1812
      %v1814 = vpop.xlane.xlu0 %1813
      %v1815 = vsel %vm1589, %v1741, 0.0
      %1816 = vadd.xlane.f32.xlu0 %v1815
      %v1817 = vpop.xlane.xlu0 %1816
      %v1818 = vsel %vm1589, %v1743, 0.0
      %1819 = vadd.xlane.f32.xlu0 %v1818
      %v1820 = vpop.xlane.xlu0 %1819
      %v1821 = vsel %vm1589, %v1745, 0.0
      %1822 = vadd.xlane.f32.xlu0 %v1821
      %v1823 = vpop.xlane.xlu0 %1822
      %v1824 = vsel %vm1589, %v1747, 0.0
      %1825 = vadd.xlane.f32.xlu0 %v1824
      %v1826 = vpop.xlane.xlu0 %1825
      %v1827 = vsel %vm1589, %v1749, 0.0
      %1828 = vadd.xlane.f32.xlu0 %v1827
      %v1829 = vpop.xlane.xlu0 %1828
      %v1830 = vsel %vm1589, %v1751, 0.0
      %1831 = vadd.xlane.f32.xlu0 %v1830
      %v1832 = vpop.xlane.xlu0 %1831
      %v1833 = vsel %vm1589, %v1753, 0.0
      %1834 = vadd.xlane.f32.xlu0 %v1833
      %v1835 = vpop.xlane.xlu0 %1834
      %v1836 = vsel %vm1589, %v1755, 0.0
      %1837 = vadd.xlane.f32.xlu0 %v1836
      %v1838 = vpop.xlane.xlu0 %1837
      %v1839 = vsel %vm1589, %v1757, 0.0
      %1840 = vadd.xlane.f32.xlu0 %v1839
      %v1841 = vpop.xlane.xlu0 %1840
      %v1842 = vsel %vm1589, %v1759, 0.0
      %1843 = vadd.xlane.f32.xlu0 %v1842
      %v1844 = vpop.xlane.xlu0 %1843
      %v1845 = vsel %vm1589, %v1761, 0.0
      %1846 = vadd.xlane.f32.xlu0 %v1845
      %v1847 = vpop.xlane.xlu0 %1846
      %v1848 = vsel %vm1589, %v1763, 0.0
      %1849 = vadd.xlane.f32.xlu0 %v1848
      %v1850 = vpop.xlane.xlu0 %1849
      %v1851 = vsel %vm1589, %v1765, 0.0
      %1852 = vadd.xlane.f32.xlu0 %v1851
      %v1853 = vpop.xlane.xlu0 %1852
      %v1854 = vsel %vm1589, %v1767, 0.0
      %1855 = vadd.xlane.f32.xlu0 %v1854
      %v1856 = vpop.xlane.xlu0 %1855
      %v1857 = vsel %vm1589, %v1769, 0.0
      %1858 = vadd.xlane.f32.xlu0 %v1857
      %v1859 = vpop.xlane.xlu0 %1858
      %v1860 = vsel %vm1589, %v1771, 0.0
      %1861 = vadd.xlane.f32.xlu0 %v1860
      %v1862 = vpop.xlane.xlu0 %1861
      %v1863 = vsel %vm1589, %v1773, 0.0
      %1864 = vadd.xlane.f32.xlu0 %v1863
      %v1865 = vpop.xlane.xlu0 %1864
      %v1866 = vsel %vm1589, %v1775, 0.0
      %1867 = vadd.xlane.f32.xlu0 %v1866
      %v1868 = vpop.xlane.xlu0 %1867
      %v1869 = vsel %vm1589, %v1777, 0.0
      %1870 = vadd.xlane.f32.xlu0 %v1869
      %v1871 = vpop.xlane.xlu0 %1870
      %v1872 = vsel %vm1589, %v1779, 0.0
      %1873 = vadd.xlane.f32.xlu0 %v1872
      %v1874 = vpop.xlane.xlu0 %1873
      %v1875 = vsel %vm1589, %v1781, 0.0
      %1876 = vadd.xlane.f32.xlu0 %v1875
      %v1877 = vpop.xlane.xlu0 %1876
      %v1878 = vrcp.pop %v1784
      %v1879 = vrcp.pop %v1787
      %v1880 = vrcp.pop %v1790
      %v1881 = vrcp.pop %v1793
      %v1882 = vrcp.pop %v1796
      %v1883 = vrcp.pop %v1799
      %v1884 = vrcp.pop %v1802
      %v1885 = vrcp.pop %v1805
      %v1886 = vrcp.pop %v1808
      %v1887 = vrcp.pop %v1811
      %v1888 = vrcp.pop %v1814
      %v1889 = vrcp.pop %v1817
      %v1890 = vrcp.pop %v1820
      %v1891 = vrcp.pop %v1823
      %v1892 = vrcp.pop %v1826
      %v1893 = vrcp.pop %v1829
      %v1894 = vrcp.pop %v1832
      %v1895 = vrcp.pop %v1835
      %v1896 = vrcp.pop %v1838
      %v1897 = vrcp.pop %v1841
      %v1898 = vrcp.pop %v1844
      %v1899 = vrcp.pop %v1847
      %v1900 = vrcp.pop %v1850
      %v1901 = vrcp.pop %v1853
      %v1902 = vrcp.pop %v1856
      %v1903 = vrcp.pop %v1859
      %v1904 = vrcp.pop %v1862
      %v1905 = vrcp.pop %v1865
      %v1906 = vrcp.pop %v1868
      %v1907 = vrcp.pop %v1871
      %v1908 = vrcp.pop %v1874
      %v1909 = vrcp.pop %v1877
      %v1910 = vmul.f32 %v1719, %v1878
      %v1911 = vmul.f32 %v1721, %v1879
      %v1912 = vmul.f32 %v1723, %v1880
      %v1913 = vmul.f32 %v1725, %v1881
      %v1914 = vmul.f32 %v1727, %v1882
      %v1915 = vmul.f32 %v1729, %v1883
      %v1916 = vmul.f32 %v1731, %v1884
      %v1917 = vmul.f32 %v1733, %v1885
      %v1918 = vmul.f32 %v1735, %v1886
      %v1919 = vmul.f32 %v1737, %v1887
      %v1920 = vmul.f32 %v1739, %v1888
      %v1921 = vmul.f32 %v1741, %v1889
      %v1922 = vmul.f32 %v1743, %v1890
      %v1923 = vmul.f32 %v1745, %v1891
      %v1924 = vmul.f32 %v1747, %v1892
      %v1925 = vmul.f32 %v1749, %v1893
      %v1926 = vmul.f32 %v1751, %v1894
      %v1927 = vmul.f32 %v1753, %v1895
      %v1928 = vmul.f32 %v1755, %v1896
      %v1929 = vmul.f32 %v1757, %v1897
      %v1930 = vmul.f32 %v1759, %v1898
      %v1931 = vmul.f32 %v1761, %v1899
      %v1932 = vmul.f32 %v1763, %v1900
      %v1933 = vmul.f32 %v1765, %v1901
      %v1934 = vmul.f32 %v1767, %v1902
      %v1935 = vmul.f32 %v1769, %v1903
      %v1936 = vmul.f32 %v1771, %v1904
      %v1937 = vmul.f32 %v1773, %v1905
      %v1938 = vmul.f32 %v1775, %v1906
      %v1939 = vmul.f32 %v1777, %v1907
      %v1940 = vmul.f32 %v1779, %v1908
      %v1941 = vmul.f32 %v1781, %v1909
      %v1942 = vpack.c.bf16 %v1911, %v1910
      %v1943 = vpack.c.bf16 %v1913, %v1912
      %v1944 = vpack.c.bf16 %v1915, %v1914
      %v1945 = vpack.c.bf16 %v1917, %v1916
      %v1946 = vpack.c.bf16 %v1919, %v1918
      %v1947 = vpack.c.bf16 %v1921, %v1920
      %v1948 = vpack.c.bf16 %v1923, %v1922
      %v1949 = vpack.c.bf16 %v1925, %v1924
      %v1950 = vpack.c.bf16 %v1927, %v1926
      %v1951 = vpack.c.bf16 %v1929, %v1928
      %v1952 = vpack.c.bf16 %v1931, %v1930
      %v1953 = vpack.c.bf16 %v1933, %v1932
      %v1954 = vpack.c.bf16 %v1935, %v1934
      %v1955 = vpack.c.bf16 %v1937, %v1936
      %v1956 = vpack.c.bf16 %v1939, %v1938
      %v1957 = vpack.c.bf16 %v1941, %v1940
      %v1958 = vpack.c.bf16 %v1113, %v1112
      %v1959 = vpack.c.bf16 %v1115, %v1114
      %v1960 = vpack.c.bf16 %v1117, %v1116
      %v1961 = vpack.c.bf16 %v1119, %v1118
      %v1962 = vpack.c.bf16 %v1131, %v1129
      %v1963 = vpack.c.bf16 %v1135, %v1133
      %v1964 = vpack.c.bf16 %v1139, %v1137
      %v1965 = vpack.c.bf16 %v1143, %v1141
      %v1966 = vpack.c.bf16 %v1155, %v1153
      %v1967 = vpack.c.bf16 %v1159, %v1157
      %v1968 = vpack.c.bf16 %v1163, %v1161
      %v1969 = vpack.c.bf16 %v1167, %v1165
      %v1970 = vpack.c.bf16 %v1179, %v1177
      %v1971 = vpack.c.bf16 %v1183, %v1181
      %v1972 = vpack.c.bf16 %v1187, %v1185
      %v1973 = vpack.c.bf16 %v1191, %v1189
      %v1975 = vsel %vm1589, %v1942, 0
      %v1978 = vsel %vm1589, %v1943, 0
      %v1981 = vsel %vm1589, %v1944, 0
      %v1984 = vsel %vm1589, %v1945, 0
      %1986 = vmatprep.subr.bf16.mxu0 0
      %1987 = vmatpush1.bf16.msra.mxu0 %v1958
      %1988 = vmatprep.subr.bf16.mxu0 0
      %1989 = vmatpush1.bf16.msra.mxu0 %v1959
      %1990 = vmatprep.subr.bf16.mxu0 0
      %1991 = vmatpush1.bf16.msra.mxu0 %v1960
      %1992 = vmatprep.subr.bf16.mxu0 0
      %1993 = vmatpush1.bf16.msra.mxu0 %v1961
      %1994 = vmatprep.subr.bf16.mxu0 0
      %1995 = vmatpush1.bf16.msra.mxu0 0
      %1996 = vmatprep.subr.bf16.mxu0 0
      %1997 = vmatpush1.bf16.msra.mxu0 0
      %1998 = vmatprep.subr.bf16.mxu0 0
      %1999 = vmatpush1.bf16.msra.mxu0 0
      %2000 = vmatprep.subr.bf16.mxu0 0
      %2001 = vmatpush1.bf16.msra.mxu0 0
      %2002 = vmatprep.subr.bf16.mxu0 0
      %2003 = vmatpush1.bf16.msra.mxu0 0
      %2004 = vmatprep.subr.bf16.mxu0 0
      %2005 = vmatpush1.bf16.msra.mxu0 0
      %2006 = vmatprep.subr.bf16.mxu0 0
      %2007 = vmatpush1.bf16.msra.mxu0 0
      %2008 = vmatprep.subr.bf16.mxu0 0
      %2009 = vmatpush1.bf16.msra.mxu0 0
      %2010 = vmatprep.subr.bf16.mxu0 0
      %2011 = vmatpush1.bf16.msra.mxu0 0
      %2012 = vmatprep.subr.bf16.mxu0 0
      %2013 = vmatpush1.bf16.msra.mxu0 0
      %2014 = vmatprep.subr.bf16.mxu0 0
      %2015 = vmatpush1.bf16.msra.mxu0 0
      %2016 = vmatprep.subr.bf16.mxu0 0
      %2017 = vmatpush1.bf16.msra.mxu0 0
      %2018 = vmatprep.mubr.bf16.mxu0 0
      %2019 = vmatmul.mubr.bf16.gmra.mrb[0].mxu0 %v1975
      %v2020 = vpop.f32.mrb[0].mxu0
      %v2021 = vadd.f32 0.0, %v2020
      %v2022 = vpop.f32.mrb[0].mxu0
      %v2023 = vpop.f32.mrb[0].mxu0
      %v2024 = vadd.f32 0.0, %v2023
      %v2025 = vpop.f32.mrb[0].mxu0
      %2026 = vmatprep.mubr.bf16.mxu0 0
      %2027 = vmatmul.mubr.bf16.gmra.mrb[0].mxu0 %v1978
      %v2028 = vpop.f32.mrb[0].mxu0
      %v2029 = vadd.f32 0.0, %v2028
      %v2030 = vpop.f32.mrb[0].mxu0
      %v2031 = vpop.f32.mrb[0].mxu0
      %v2032 = vadd.f32 0.0, %v2031
      %v2033 = vpop.f32.mrb[0].mxu0
      %2034 = vmatprep.mubr.bf16.mxu0 0
      %2035 = vmatmul.mubr.bf16.gmra.mrb[0].mxu0 %v1981
      %v2036 = vpop.f32.mrb[0].mxu0
      %v2037 = vadd.f32 0.0, %v2036
      %v2038 = vpop.f32.mrb[0].mxu0
      %v2039 = vpop.f32.mrb[0].mxu0
      %v2040 = vadd.f32 0.0, %v2039
      %v2041 = vpop.f32.mrb[0].mxu0
      %2042 = vmatprep.mubr.bf16.mxu0 0
      %2043 = vmatmul.mubr.bf16.gmra.mrb[0].mxu0 %v1984
      %v2044 = vpop.f32.mrb[0].mxu0
      %v2045 = vadd.f32 0.0, %v2044
      %v2046 = vpop.f32.mrb[0].mxu0
      %v2047 = vpop.f32.mrb[0].mxu0
      %v2048 = vadd.f32 0.0, %v2047
      %v2049 = vpop.f32.mrb[0].mxu0
      %2050 = vdwg.mxu0
      %v2052 = vsel %vm1589, %v1946, 0
      %v2055 = vsel %vm1589, %v1947, 0
      %v2058 = vsel %vm1589, %v1948, 0
      %v2061 = vsel %vm1589, %v1949, 0
      %2063 = vmatprep.subr.bf16.mxu0 0
      %2064 = vmatpush1.bf16.msra.mxu0 %v1962
      %2065 = vmatprep.subr.bf16.mxu0 0
      %2066 = vmatpush1.bf16.msra.mxu0 %v1963
      %2067 = vmatprep.subr.bf16.mxu0 0
      %2068 = vmatpush1.bf16.msra.mxu0 %v1964
      %2069 = vmatprep.subr.bf16.mxu0 0
      %2070 = vmatpush1.bf16.msra.mxu0 %v1965
      %2071 = vmatprep.subr.bf16.mxu0 0
      %2072 = vmatpush1.bf16.msra.mxu0 0
      %2073 = vmatprep.subr.bf16.mxu0 0
      %2074 = vmatpush1.bf16.msra.mxu0 0
      %2075 = vmatprep.subr.bf16.mxu0 0
      %2076 = vmatpush1.bf16.msra.mxu0 0
      %2077 = vmatprep.subr.bf16.mxu0 0
      %2078 = vmatpush1.bf16.msra.mxu0 0
      %2079 = vmatprep.subr.bf16.mxu0 0
      %2080 = vmatpush1.bf16.msra.mxu0 0
      %2081 = vmatprep.subr.bf16.mxu0 0
      %2082 = vmatpush1.bf16.msra.mxu0 0
      %2083 = vmatprep.subr.bf16.mxu0 0
      %2084 = vmatpush1.bf16.msra.mxu0 0
      %2085 = vmatprep.subr.bf16.mxu0 0
      %2086 = vmatpush1.bf16.msra.mxu0 0
      %2087 = vmatprep.subr.bf16.mxu0 0
      %2088 = vmatpush1.bf16.msra.mxu0 0
      %2089 = vmatprep.subr.bf16.mxu0 0
      %2090 = vmatpush1.bf16.msra.mxu0 0
      %2091 = vmatprep.subr.bf16.mxu0 0
      %2092 = vmatpush1.bf16.msra.mxu0 0
      %2093 = vmatprep.subr.bf16.mxu0 0
      %2094 = vmatpush1.bf16.msra.mxu0 0
      %2095 = vmatprep.mubr.bf16.mxu0 0
      %2096 = vmatmul.mubr.bf16.gmra.mrb[0].mxu0 %v2052
      %v2097 = vpop.f32.mrb[0].mxu0
      %v2098 = vadd.f32 0.0, %v2097
      %v2099 = vpop.f32.mrb[0].mxu0
      %v2100 = vpop.f32.mrb[0].mxu0
      %v2101 = vadd.f32 0.0, %v2100
      %v2102 = vpop.f32.mrb[0].mxu0
      %2103 = vmatprep.mubr.bf16.mxu0 0
      %2104 = vmatmul.mubr.bf16.gmra.mrb[0].mxu0 %v2055
      %v2105 = vpop.f32.mrb[0].mxu0
      %v2106 = vadd.f32 0.0, %v2105
      %v2107 = vpop.f32.mrb[0].mxu0
      %v2108 = vpop.f32.mrb[0].mxu0
      %v2109 = vadd.f32 0.0, %v2108
      %v2110 = vpop.f32.mrb[0].mxu0
      %2111 = vmatprep.mubr.bf16.mxu0 0
      %2112 = vmatmul.mubr.bf16.gmra.mrb[0].mxu0 %v2058
      %v2113 = vpop.f32.mrb[0].mxu0
      %v2114 = vadd.f32 0.0, %v2113
      %v2115 = vpop.f32.mrb[0].mxu0
      %v2116 = vpop.f32.mrb[0].mxu0
      %v2117 = vadd.f32 0.0, %v2116
      %v2118 = vpop.f32.mrb[0].mxu0
      %2119 = vmatprep.mubr.bf16.mxu0 0
      %2120 = vmatmul.mubr.bf16.gmra.mrb[0].mxu0 %v2061
      %v2121 = vpop.f32.mrb[0].mxu0
      %v2122 = vadd.f32 0.0, %v2121
      %v2123 = vpop.f32.mrb[0].mxu0
      %v2124 = vpop.f32.mrb[0].mxu0
      %v2125 = vadd.f32 0.0, %v2124
      %v2126 = vpop.f32.mrb[0].mxu0
      %2127 = vdwg.mxu0
      %v2129 = vsel %vm1589, %v1950, 0
      %v2132 = vsel %vm1589, %v1951, 0
      %v2135 = vsel %vm1589, %v1952, 0
      %v2138 = vsel %vm1589, %v1953, 0
      %2140 = vmatprep.subr.bf16.mxu0 0
      %2141 = vmatpush1.bf16.msra.mxu0 %v1966
      %2142 = vmatprep.subr.bf16.mxu0 0
      %2143 = vmatpush1.bf16.msra.mxu0 %v1967
      %2144 = vmatprep.subr.bf16.mxu0 0
      %2145 = vmatpush1.bf16.msra.mxu0 %v1968
      %2146 = vmatprep.subr.bf16.mxu0 0
      %2147 = vmatpush1.bf16.msra.mxu0 %v1969
      %2148 = vmatprep.subr.bf16.mxu0 0
      %2149 = vmatpush1.bf16.msra.mxu0 0
      %2150 = vmatprep.subr.bf16.mxu0 0
      %2151 = vmatpush1.bf16.msra.mxu0 0
      %2152 = vmatprep.subr.bf16.mxu0 0
      %2153 = vmatpush1.bf16.msra.mxu0 0
      %2154 = vmatprep.subr.bf16.mxu0 0
      %2155 = vmatpush1.bf16.msra.mxu0 0
      %2156 = vmatprep.subr.bf16.mxu0 0
      %2157 = vmatpush1.bf16.msra.mxu0 0
      %2158 = vmatprep.subr.bf16.mxu0 0
      %2159 = vmatpush1.bf16.msra.mxu0 0
      %2160 = vmatprep.subr.bf16.mxu0 0
      %2161 = vmatpush1.bf16.msra.mxu0 0
      %2162 = vmatprep.subr.bf16.mxu0 0
      %2163 = vmatpush1.bf16.msra.mxu0 0
      %2164 = vmatprep.subr.bf16.mxu0 0
      %2165 = vmatpush1.bf16.msra.mxu0 0
      %2166 = vmatprep.subr.bf16.mxu0 0
      %2167 = vmatpush1.bf16.msra.mxu0 0
      %2168 = vmatprep.subr.bf16.mxu0 0
      %2169 = vmatpush1.bf16.msra.mxu0 0
      %2170 = vmatprep.subr.bf16.mxu0 0
      %2171 = vmatpush1.bf16.msra.mxu0 0
      %2172 = vmatprep.mubr.bf16.mxu0 0
      %2173 = vmatmul.mubr.bf16.gmra.mrb[0].mxu0 %v2129
      %v2174 = vpop.f32.mrb[0].mxu0
      %v2175 = vadd.f32 0.0, %v2174
      %v2176 = vpop.f32.mrb[0].mxu0
      %v2177 = vpop.f32.mrb[0].mxu0
      %v2178 = vadd.f32 0.0, %v2177
      %v2179 = vpop.f32.mrb[0].mxu0
      %2180 = vmatprep.mubr.bf16.mxu0 0
      %2181 = vmatmul.mubr.bf16.gmra.mrb[0].mxu0 %v2132
      %v2182 = vpop.f32.mrb[0].mxu0
      %v2183 = vadd.f32 0.0, %v2182
      %v2184 = vpop.f32.mrb[0].mxu0
      %v2185 = vpop.f32.mrb[0].mxu0
      %v2186 = vadd.f32 0.0, %v2185
      %v2187 = vpop.f32.mrb[0].mxu0
      %2188 = vmatprep.mubr.bf16.mxu0 0
      %2189 = vmatmul.mubr.bf16.gmra.mrb[0].mxu0 %v2135
      %v2190 = vpop.f32.mrb[0].mxu0
      %v2191 = vadd.f32 0.0, %v2190
      %v2192 = vpop.f32.mrb[0].mxu0
      %v2193 = vpop.f32.mrb[0].mxu0
      %v2194 = vadd.f32 0.0, %v2193
      %v2195 = vpop.f32.mrb[0].mxu0
      %2196 = vmatprep.mubr.bf16.mxu0 0
      %2197 = vmatmul.mubr.bf16.gmra.mrb[0].mxu0 %v2138
      %v2198 = vpop.f32.mrb[0].mxu0
      %v2199 = vadd.f32 0.0, %v2198
      %v2200 = vpop.f32.mrb[0].mxu0
      %v2201 = vpop.f32.mrb[0].mxu0
      %v2202 = vadd.f32 0.0, %v2201
      %v2203 = vpop.f32.mrb[0].mxu0
      %2204 = vdwg.mxu0
      %v2206 = vsel %vm1589, %v1954, 0
      %v2209 = vsel %vm1589, %v1955, 0
      %v2212 = vsel %vm1589, %v1956, 0
      %v2215 = vsel %vm1589, %v1957, 0
      %2217 = vmatprep.subr.bf16.mxu0 0
      %2218 = vmatpush1.bf16.msra.mxu0 %v1970
      %2219 = vmatprep.subr.bf16.mxu0 0
      %2220 = vmatpush1.bf16.msra.mxu0 %v1971
      %2221 = vmatprep.subr.bf16.mxu0 0
      %2222 = vmatpush1.bf16.msra.mxu0 %v1972
      %2223 = vmatprep.subr.bf16.mxu0 0
      %2224 = vmatpush1.bf16.msra.mxu0 %v1973
      %2225 = vmatprep.subr.bf16.mxu0 0
      %2226 = vmatpush1.bf16.msra.mxu0 0
      %2227 = vmatprep.subr.bf16.mxu0 0
      %2228 = vmatpush1.bf16.msra.mxu0 0
      %2229 = vmatprep.subr.bf16.mxu0 0
      %2230 = vmatpush1.bf16.msra.mxu0 0
      %2231 = vmatprep.subr.bf16.mxu0 0
      %2232 = vmatpush1.bf16.msra.mxu0 0
      %2233 = vmatprep.subr.bf16.mxu0 0
      %2234 = vmatpush1.bf16.msra.mxu0 0
      %2235 = vmatprep.subr.bf16.mxu0 0
      %2236 = vmatpush1.bf16.msra.mxu0 0
      %2237 = vmatprep.subr.bf16.mxu0 0
      %2238 = vmatpush1.bf16.msra.mxu0 0
      %2239 = vmatprep.subr.bf16.mxu0 0
      %2240 = vmatpush1.bf16.msra.mxu0 0
      %2241 = vmatprep.subr.bf16.mxu0 0
      %2242 = vmatpush1.bf16.msra.mxu0 0
      %2243 = vmatprep.subr.bf16.mxu0 0
      %2244 = vmatpush1.bf16.msra.mxu0 0
      %2245 = vmatprep.subr.bf16.mxu0 0
      %2246 = vmatpush1.bf16.msra.mxu0 0
      %2247 = vmatprep.subr.bf16.mxu0 0
      %2248 = vmatpush1.bf16.msra.mxu0 0
      %2249 = vmatprep.mubr.bf16.mxu0 0
      %2250 = vmatmul.mubr.bf16.gmra.mrb[0].mxu0 %v2206
      %v2251 = vpop.f32.mrb[0].mxu0
      %v2252 = vadd.f32 0.0, %v2251
      %v2253 = vpop.f32.mrb[0].mxu0
      %v2254 = vpop.f32.mrb[0].mxu0
      %v2255 = vadd.f32 0.0, %v2254
      %v2256 = vpop.f32.mrb[0].mxu0
      %2257 = vmatprep.mubr.bf16.mxu0 0
      %2258 = vmatmul.mubr.bf16.gmra.mrb[0].mxu0 %v2209
      %v2259 = vpop.f32.mrb[0].mxu0
      %v2260 = vadd.f32 0.0, %v2259
      %v2261 = vpop.f32.mrb[0].mxu0
      %v2262 = vpop.f32.mrb[0].mxu0
      %v2263 = vadd.f32 0.0, %v2262
      %v2264 = vpop.f32.mrb[0].mxu0
      %2265 = vmatprep.mubr.bf16.mxu0 0
      %2266 = vmatmul.mubr.bf16.gmra.mrb[0].mxu0 %v2212
      %v2267 = vpop.f32.mrb[0].mxu0
      %v2268 = vadd.f32 0.0, %v2267
      %v2269 = vpop.f32.mrb[0].mxu0
      %v2270 = vpop.f32.mrb[0].mxu0
      %v2271 = vadd.f32 0.0, %v2270
      %v2272 = vpop.f32.mrb[0].mxu0
      %2273 = vmatprep.mubr.bf16.mxu0 0
      %2274 = vmatmul.mubr.bf16.gmra.mrb[0].mxu0 %v2215
      %v2275 = vpop.f32.mrb[0].mxu0
      %v2276 = vadd.f32 0.0, %v2275
      %v2277 = vpop.f32.mrb[0].mxu0
      %v2278 = vpop.f32.mrb[0].mxu0
      %v2279 = vadd.f32 0.0, %v2278
      %v2280 = vpop.f32.mrb[0].mxu0
      %2281 = vdwg.mxu0
      %v2282 = vpack.c.bf16 %v2024, %v2021
      %v2283 = vpack.c.bf16 %v2032, %v2029
      %v2284 = vpack.c.bf16 %v2040, %v2037
      %v2285 = vpack.c.bf16 %v2048, %v2045
      %v2286 = vld [vmem:[%s5] sm:$0xf]
      %v2287 = vld [vmem:[%s5 + $0x4] sm:$0xf]
      %v2288 = vld [vmem:[%s5 + $0x8] sm:$0xf]
      %v2289 = vld [vmem:[%s5 + $0xc] sm:$0xf]
      %v2290 = vpack.c.bf16 %v2101, %v2098
      %v2291 = vpack.c.bf16 %v2109, %v2106
      %v2292 = vpack.c.bf16 %v2117, %v2114
      %v2293 = vpack.c.bf16 %v2125, %v2122
      %s2294 = scalar_lea.vmem %s5, 16
      %v2295 = vld [vmem:[%s2294] sm:$0xf]
      %v2296 = vld [vmem:[%s2294 + $0x4] sm:$0xf]
      %v2297 = vld [vmem:[%s2294 + $0x8] sm:$0xf]
      %v2298 = vld [vmem:[%s2294 + $0xc] sm:$0xf]
      %v2303 = vunpack.c.l.b16 %v2295
      %v2304 = vunpack.c.l.b16 %v2296
      %v2305 = vunpack.c.l.b16 %v2297
      %v2306 = vunpack.c.l.b16 %v2298
      %v2307 = vpack.c.b16 %v2304, %v2303
      %v2308 = vpack.c.b16 %v2306, %v2305
      %v2312 = vsel %vm1232, %v2290, 0
      %v2315 = vsel %vm1232, %v2291, 0
      %v2318 = vsel %vm1232, %v2292, 0
      %v2321 = vsel %vm1232, %v2293, 0
      %2323 = vmatprep.subr.bf16.mxu0 0
      %2324 = vmatpush1.bf16.msra.mxu0 %v2307
      %2325 = vmatprep.subr.bf16.mxu0 0
      %2326 = vmatpush1.bf16.msra.mxu0 %v2308
      %2327 = vmatprep.subr.bf16.mxu0 0
      %2328 = vmatpush1.bf16.msra.mxu0 0
      %2329 = vmatprep.subr.bf16.mxu0 0
      %2330 = vmatpush1.bf16.msra.mxu0 0
      %2331 = vmatprep.subr.bf16.mxu0 0
      %2332 = vmatpush1.bf16.msra.mxu0 0
      %2333 = vmatprep.subr.bf16.mxu0 0
      %2334 = vmatpush1.bf16.msra.mxu0 0
      %2335 = vmatprep.subr.bf16.mxu0 0
      %2336 = vmatpush1.bf16.msra.mxu0 0
      %2337 = vmatprep.subr.bf16.mxu0 0
      %2338 = vmatpush1.bf16.msra.mxu0 0
      %2339 = vmatprep.subr.bf16.mxu0 0
      %2340 = vmatpush1.bf16.msra.mxu0 0
      %2341 = vmatprep.subr.bf16.mxu0 0
      %2342 = vmatpush1.bf16.msra.mxu0 0
      %2343 = vmatprep.subr.bf16.mxu0 0
      %2344 = vmatpush1.bf16.msra.mxu0 0
      %2345 = vmatprep.subr.bf16.mxu0 0
      %2346 = vmatpush1.bf16.msra.mxu0 0
      %2347 = vmatprep.subr.bf16.mxu0 0
      %2348 = vmatpush1.bf16.msra.mxu0 0
      %2349 = vmatprep.subr.bf16.mxu0 0
      %2350 = vmatpush1.bf16.msra.mxu0 0
      %2351 = vmatprep.subr.bf16.mxu0 0
      %2352 = vmatpush1.bf16.msra.mxu0 0
      %2353 = vmatprep.subr.bf16.mxu0 0
      %2354 = vmatpush1.bf16.msra.mxu0 0
      %2355 = vmatprep.mubr.bf16.mxu0 0
      %2356 = vmatmul.mubr.bf16.gmra.mrb[0].mxu0 %v2312
      %v2357 = vpop.f32.mrb[0].mxu0
      %v2358 = vadd.f32 0.0, %v2357
      %v2359 = vpop.f32.mrb[0].mxu0
      %v2360 = vpop.f32.mrb[0].mxu0
      %v2361 = vadd.f32 0.0, %v2360
      %v2362 = vpop.f32.mrb[0].mxu0
      %2363 = vmatprep.mubr.bf16.mxu0 0
      %2364 = vmatmul.mubr.bf16.gmra.mrb[0].mxu0 %v2315
      %v2365 = vpop.f32.mrb[0].mxu0
      %v2366 = vadd.f32 0.0, %v2365
      %v2367 = vpop.f32.mrb[0].mxu0
      %v2368 = vpop.f32.mrb[0].mxu0
      %v2369 = vadd.f32 0.0, %v2368
      %v2370 = vpop.f32.mrb[0].mxu0
      %2371 = vmatprep.mubr.bf16.mxu0 0
      %2372 = vmatmul.mubr.bf16.gmra.mrb[0].mxu0 %v2318
      %v2373 = vpop.f32.mrb[0].mxu0
      %v2374 = vadd.f32 0.0, %v2373
      %v2375 = vpop.f32.mrb[0].mxu0
      %v2376 = vpop.f32.mrb[0].mxu0
      %v2377 = vadd.f32 0.0, %v2376
      %v2378 = vpop.f32.mrb[0].mxu0
      %2379 = vmatprep.mubr.bf16.mxu0 0
      %2380 = vmatmul.mubr.bf16.gmra.mrb[0].mxu0 %v2321
      %v2381 = vpop.f32.mrb[0].mxu0
      %v2382 = vadd.f32 0.0, %v2381
      %v2383 = vpop.f32.mrb[0].mxu0
      %v2384 = vpop.f32.mrb[0].mxu0
      %v2385 = vadd.f32 0.0, %v2384
      %v2386 = vpop.f32.mrb[0].mxu0
      %2387 = vdwg.mxu0
      %v2392 = vunpack.c.l.b16 %v2286
      %v2393 = vunpack.c.l.b16 %v2287
      %v2394 = vunpack.c.l.b16 %v2288
      %v2395 = vunpack.c.l.b16 %v2289
      %v2396 = vpack.c.b16 %v2393, %v2392
      %v2397 = vpack.c.b16 %v2395, %v2394
      %v2401 = vsel %vm1232, %v2282, 0
      %v2404 = vsel %vm1232, %v2283, 0
      %v2407 = vsel %vm1232, %v2284, 0
      %v2410 = vsel %vm1232, %v2285, 0
      %2412 = vmatprep.subr.bf16.mxu0 0
      %2413 = vmatpush1.bf16.msra.mxu0 %v2396
      %2414 = vmatprep.subr.bf16.mxu0 0
      %2415 = vmatpush1.bf16.msra.mxu0 %v2397
      %2416 = vmatprep.subr.bf16.mxu0 0
      %2417 = vmatpush1.bf16.msra.mxu0 0
      %2418 = vmatprep.subr.bf16.mxu0 0
      %2419 = vmatpush1.bf16.msra.mxu0 0
      %2420 = vmatprep.subr.bf16.mxu0 0
      %2421 = vmatpush1.bf16.msra.mxu0 0
      %2422 = vmatprep.subr.bf16.mxu0 0
      %2423 = vmatpush1.bf16.msra.mxu0 0
      %2424 = vmatprep.subr.bf16.mxu0 0
      %2425 = vmatpush1.bf16.msra.mxu0 0
      %2426 = vmatprep.subr.bf16.mxu0 0
      %2427 = vmatpush1.bf16.msra.mxu0 0
      %2428 = vmatprep.subr.bf16.mxu0 0
      %2429 = vmatpush1.bf16.msra.mxu0 0
      %2430 = vmatprep.subr.bf16.mxu0 0
      %2431 = vmatpush1.bf16.msra.mxu0 0
      %2432 = vmatprep.subr.bf16.mxu0 0
      %2433 = vmatpush1.bf16.msra.mxu0 0
      %2434 = vmatprep.subr.bf16.mxu0 0
      %2435 = vmatpush1.bf16.msra.mxu0 0
      %2436 = vmatprep.subr.bf16.mxu0 0
      %2437 = vmatpush1.bf16.msra.mxu0 0
      %2438 = vmatprep.subr.bf16.mxu0 0
      %2439 = vmatpush1.bf16.msra.mxu0 0
      %2440 = vmatprep.subr.bf16.mxu0 0
      %2441 = vmatpush1.bf16.msra.mxu0 0
      %2442 = vmatprep.subr.bf16.mxu0 0
      %2443 = vmatpush1.bf16.msra.mxu0 0
      %2444 = vmatprep.mubr.bf16.mxu0 0
      %2445 = vmatmul.mubr.bf16.gmra.mrb[0].mxu0 %v2401
      %v2446 = vpop.f32.mrb[0].mxu0
      %v2447 = vadd.f32 %v2358, %v2446
      %v2448 = vpop.f32.mrb[0].mxu0
      %v2449 = vpop.f32.mrb[0].mxu0
      %v2450 = vadd.f32 %v2361, %v2449
      %v2451 = vpop.f32.mrb[0].mxu0
      %2452 = vmatprep.mubr.bf16.mxu0 0
      %2453 = vmatmul.mubr.bf16.gmra.mrb[0].mxu0 %v2404
      %v2454 = vpop.f32.mrb[0].mxu0
      %v2455 = vadd.f32 %v2366, %v2454
      %v2456 = vpop.f32.mrb[0].mxu0
      %v2457 = vpop.f32.mrb[0].mxu0
      %v2458 = vadd.f32 %v2369, %v2457
      %v2459 = vpop.f32.mrb[0].mxu0
      %2460 = vmatprep.mubr.bf16.mxu0 0
      %2461 = vmatmul.mubr.bf16.gmra.mrb[0].mxu0 %v2407
      %v2462 = vpop.f32.mrb[0].mxu0
      %v2463 = vadd.f32 %v2374, %v2462
      %v2464 = vpop.f32.mrb[0].mxu0
      %v2465 = vpop.f32.mrb[0].mxu0
      %v2466 = vadd.f32 %v2377, %v2465
      %v2467 = vpop.f32.mrb[0].mxu0
      %2468 = vmatprep.mubr.bf16.mxu0 0
      %2469 = vmatmul.mubr.bf16.gmra.mrb[0].mxu0 %v2410
      %v2470 = vpop.f32.mrb[0].mxu0
      %v2471 = vadd.f32 %v2382, %v2470
      %v2472 = vpop.f32.mrb[0].mxu0
      %v2473 = vpop.f32.mrb[0].mxu0
      %v2474 = vadd.f32 %v2385, %v2473
      %v2475 = vpop.f32.mrb[0].mxu0
      %2476 = vdwg.mxu0
      %v2477 = vpack.c.bf16 %v2178, %v2175
      %v2478 = vpack.c.bf16 %v2186, %v2183
      %v2479 = vpack.c.bf16 %v2194, %v2191
      %v2480 = vpack.c.bf16 %v2202, %v2199
      %s2481 = scalar_lea.vmem %s5, 32
      %v2482 = vld [vmem:[%s2481] sm:$0xf]
      %v2483 = vld [vmem:[%s2481 + $0x4] sm:$0xf]
      %v2484 = vld [vmem:[%s2481 + $0x8] sm:$0xf]
      %v2485 = vld [vmem:[%s2481 + $0xc] sm:$0xf]
      %v2490 = vunpack.c.l.b16 %v2482
      %v2491 = vunpack.c.l.b16 %v2483
      %v2492 = vunpack.c.l.b16 %v2484
      %v2493 = vunpack.c.l.b16 %v2485
      %v2494 = vpack.c.b16 %v2491, %v2490
      %v2495 = vpack.c.b16 %v2493, %v2492
      %v2499 = vsel %vm1232, %v2477, 0
      %v2502 = vsel %vm1232, %v2478, 0
      %v2505 = vsel %vm1232, %v2479, 0
      %v2508 = vsel %vm1232, %v2480, 0
      %2510 = vmatprep.subr.bf16.mxu0 0
      %2511 = vmatpush1.bf16.msra.mxu0 %v2494
      %2512 = vmatprep.subr.bf16.mxu0 0
      %2513 = vmatpush1.bf16.msra.mxu0 %v2495
      %2514 = vmatprep.subr.bf16.mxu0 0
      %2515 = vmatpush1.bf16.msra.mxu0 0
      %2516 = vmatprep.subr.bf16.mxu0 0
      %2517 = vmatpush1.bf16.msra.mxu0 0
      %2518 = vmatprep.subr.bf16.mxu0 0
      %2519 = vmatpush1.bf16.msra.mxu0 0
      %2520 = vmatprep.subr.bf16.mxu0 0
      %2521 = vmatpush1.bf16.msra.mxu0 0
      %2522 = vmatprep.subr.bf16.mxu0 0
      %2523 = vmatpush1.bf16.msra.mxu0 0
      %2524 = vmatprep.subr.bf16.mxu0 0
      %2525 = vmatpush1.bf16.msra.mxu0 0
      %2526 = vmatprep.subr.bf16.mxu0 0
      %2527 = vmatpush1.bf16.msra.mxu0 0
      %2528 = vmatprep.subr.bf16.mxu0 0
      %2529 = vmatpush1.bf16.msra.mxu0 0
      %2530 = vmatprep.subr.bf16.mxu0 0
      %2531 = vmatpush1.bf16.msra.mxu0 0
      %2532 = vmatprep.subr.bf16.mxu0 0
      %2533 = vmatpush1.bf16.msra.mxu0 0
      %2534 = vmatprep.subr.bf16.mxu0 0
      %2535 = vmatpush1.bf16.msra.mxu0 0
      %2536 = vmatprep.subr.bf16.mxu0 0
      %2537 = vmatpush1.bf16.msra.mxu0 0
      %2538 = vmatprep.subr.bf16.mxu0 0
      %2539 = vmatpush1.bf16.msra.mxu0 0
      %2540 = vmatprep.subr.bf16.mxu0 0
      %2541 = vmatpush1.bf16.msra.mxu0 0
      %2542 = vmatprep.mubr.bf16.mxu0 0
      %2543 = vmatmul.mubr.bf16.gmra.mrb[0].mxu0 %v2499
      %v2544 = vpop.f32.mrb[0].mxu0
      %v2545 = vadd.f32 0.0, %v2544
      %v2546 = vpop.f32.mrb[0].mxu0
      %v2547 = vpop.f32.mrb[0].mxu0
      %v2548 = vadd.f32 0.0, %v2547
      %v2549 = vpop.f32.mrb[0].mxu0
      %2550 = vmatprep.mubr.bf16.mxu0 0
      %2551 = vmatmul.mubr.bf16.gmra.mrb[0].mxu0 %v2502
      %v2552 = vpop.f32.mrb[0].mxu0
      %v2553 = vadd.f32 0.0, %v2552
      %v2554 = vpop.f32.mrb[0].mxu0
      %v2555 = vpop.f32.mrb[0].mxu0
      %v2556 = vadd.f32 0.0, %v2555
      %v2557 = vpop.f32.mrb[0].mxu0
      %2558 = vmatprep.mubr.bf16.mxu0 0
      %2559 = vmatmul.mubr.bf16.gmra.mrb[0].mxu0 %v2505
      %v2560 = vpop.f32.mrb[0].mxu0
      %v2561 = vadd.f32 0.0, %v2560
      %v2562 = vpop.f32.mrb[0].mxu0
      %v2563 = vpop.f32.mrb[0].mxu0
      %v2564 = vadd.f32 0.0, %v2563
      %v2565 = vpop.f32.mrb[0].mxu0
      %2566 = vmatprep.mubr.bf16.mxu0 0
      %2567 = vmatmul.mubr.bf16.gmra.mrb[0].mxu0 %v2508
      %v2568 = vpop.f32.mrb[0].mxu0
      %v2569 = vadd.f32 0.0, %v2568
      %v2570 = vpop.f32.mrb[0].mxu0
      %v2571 = vpop.f32.mrb[0].mxu0
      %v2572 = vadd.f32 0.0, %v2571
      %v2573 = vpop.f32.mrb[0].mxu0
      %2574 = vdwg.mxu0
      %v2575 = vadd.f32 %v2447, %v2545
      %v2576 = vadd.f32 %v2450, %v2548
      %v2577 = vadd.f32 %v2455, %v2553
      %v2578 = vadd.f32 %v2458, %v2556
      %v2579 = vadd.f32 %v2463, %v2561
      %v2580 = vadd.f32 %v2466, %v2564
      %v2581 = vadd.f32 %v2471, %v2569
      %v2582 = vadd.f32 %v2474, %v2572
      %v2583 = vpack.c.bf16 %v2255, %v2252
      %v2584 = vpack.c.bf16 %v2263, %v2260
      %v2585 = vpack.c.bf16 %v2271, %v2268
      %v2586 = vpack.c.bf16 %v2279, %v2276
      %s2587 = scalar_lea.vmem %s5, 48
      %v2588 = vld [vmem:[%s2587] sm:$0xf]
      %v2589 = vld [vmem:[%s2587 + $0x4] sm:$0xf]
      %v2590 = vld [vmem:[%s2587 + $0x8] sm:$0xf]
      %v2591 = vld [vmem:[%s2587 + $0xc] sm:$0xf]
      %v2596 = vunpack.c.l.b16 %v2588
      %v2597 = vunpack.c.l.b16 %v2589
      %v2598 = vunpack.c.l.b16 %v2590
      %v2599 = vunpack.c.l.b16 %v2591
      %v2600 = vpack.c.b16 %v2597, %v2596
      %v2601 = vpack.c.b16 %v2599, %v2598
      %v2605 = vsel %vm1232, %v2583, 0
      %v2608 = vsel %vm1232, %v2584, 0
      %v2611 = vsel %vm1232, %v2585, 0
      %v2614 = vsel %vm1232, %v2586, 0
      %2616 = vmatprep.subr.bf16.mxu0 0
      %2617 = vmatpush1.bf16.msra.mxu0 %v2600
      %2618 = vmatprep.subr.bf16.mxu0 0
      %2619 = vmatpush1.bf16.msra.mxu0 %v2601
      %2620 = vmatprep.subr.bf16.mxu0 0
      %2621 = vmatpush1.bf16.msra.mxu0 0
      %2622 = vmatprep.subr.bf16.mxu0 0
      %2623 = vmatpush1.bf16.msra.mxu0 0
      %2624 = vmatprep.subr.bf16.mxu0 0
      %2625 = vmatpush1.bf16.msra.mxu0 0
      %2626 = vmatprep.subr.bf16.mxu0 0
      %2627 = vmatpush1.bf16.msra.mxu0 0
      %2628 = vmatprep.subr.bf16.mxu0 0
      %2629 = vmatpush1.bf16.msra.mxu0 0
      %2630 = vmatprep.subr.bf16.mxu0 0
      %2631 = vmatpush1.bf16.msra.mxu0 0
      %2632 = vmatprep.subr.bf16.mxu0 0
      %2633 = vmatpush1.bf16.msra.mxu0 0
      %2634 = vmatprep.subr.bf16.mxu0 0
      %2635 = vmatpush1.bf16.msra.mxu0 0
      %2636 = vmatprep.subr.bf16.mxu0 0
      %2637 = vmatpush1.bf16.msra.mxu0 0
      %2638 = vmatprep.subr.bf16.mxu0 0
      %2639 = vmatpush1.bf16.msra.mxu0 0
      %2640 = vmatprep.subr.bf16.mxu0 0
      %2641 = vmatpush1.bf16.msra.mxu0 0
      %2642 = vmatprep.subr.bf16.mxu0 0
      %2643 = vmatpush1.bf16.msra.mxu0 0
      %2644 = vmatprep.subr.bf16.mxu0 0
      %2645 = vmatpush1.bf16.msra.mxu0 0
      %2646 = vmatprep.subr.bf16.mxu0 0
      %2647 = vmatpush1.bf16.msra.mxu0 0
      %2648 = vmatprep.mubr.bf16.mxu0 0
      %2649 = vmatmul.mubr.bf16.gmra.mrb[0].mxu0 %v2605
      %v2650 = vpop.f32.mrb[0].mxu0
      %v2651 = vadd.f32 0.0, %v2650
      %v2652 = vpop.f32.mrb[0].mxu0
      %v2653 = vpop.f32.mrb[0].mxu0
      %v2654 = vadd.f32 0.0, %v2653
      %v2655 = vpop.f32.mrb[0].mxu0
      %2656 = vmatprep.mubr.bf16.mxu0 0
      %2657 = vmatmul.mubr.bf16.gmra.mrb[0].mxu0 %v2608
      %v2658 = vpop.f32.mrb[0].mxu0
      %v2659 = vadd.f32 0.0, %v2658
      %v2660 = vpop.f32.mrb[0].mxu0
      %v2661 = vpop.f32.mrb[0].mxu0
      %v2662 = vadd.f32 0.0, %v2661
      %v2663 = vpop.f32.mrb[0].mxu0
      %2664 = vmatprep.mubr.bf16.mxu0 0
      %2665 = vmatmul.mubr.bf16.gmra.mrb[0].mxu0 %v2611
      %v2666 = vpop.f32.mrb[0].mxu0
      %v2667 = vadd.f32 0.0, %v2666
      %v2668 = vpop.f32.mrb[0].mxu0
      %v2669 = vpop.f32.mrb[0].mxu0
      %v2670 = vadd.f32 0.0, %v2669
      %v2671 = vpop.f32.mrb[0].mxu0
      %2672 = vmatprep.mubr.bf16.mxu0 0
      %2673 = vmatmul.mubr.bf16.gmra.mrb[0].mxu0 %v2614
      %v2674 = vpop.f32.mrb[0].mxu0
      %v2675 = vadd.f32 0.0, %v2674
      %v2676 = vpop.f32.mrb[0].mxu0
      %v2677 = vpop.f32.mrb[0].mxu0
      %v2678 = vadd.f32 0.0, %v2677
      %v2679 = vpop.f32.mrb[0].mxu0
      %2680 = vdwg.mxu0
      %v2681 = vadd.f32 %v2575, %v2651
      %v2682 = vadd.f32 %v2576, %v2654
      %v2683 = vadd.f32 %v2577, %v2659
      %v2684 = vadd.f32 %v2578, %v2662
      %v2685 = vadd.f32 %v2579, %v2667
      %v2686 = vadd.f32 %v2580, %v2670
      %v2687 = vadd.f32 %v2581, %v2675
      %v2688 = vadd.f32 %v2582, %v2678
      %v2689 = vadd.f32 %v442, %v2681
      %v2690 = vadd.f32 %v443, %v2682
      %v2691 = vadd.f32 %v444, %v2683
      %v2692 = vadd.f32 %v445, %v2684
      %v2693 = vadd.f32 %v446, %v2685
      %v2694 = vadd.f32 %v447, %v2686
      %v2695 = vadd.f32 %v448, %v2687
      %v2696 = vadd.f32 %v449, %v2688
      %v2697 = vld [vmem:[%s6] sm:$0x1]
      %v2699 = vlaneseq
      %v2700 = vshrl.u32 %v2699, 7
      %v2701 = vsub.s32 0, %v2700
      %v2702 = vrot.slane %v2697, %v2701
      %v2704 = vadd.f32 %v2689, %v2702
      %v2705 = vadd.f32 %v2690, %v2702
      %v2706 = vadd.f32 %v2691, %v2702
      %v2707 = vadd.f32 %v2692, %v2702
      %v2708 = vadd.f32 %v2693, %v2702
      %v2709 = vadd.f32 %v2694, %v2702
      %v2710 = vadd.f32 %v2695, %v2702
      %v2711 = vadd.f32 %v2696, %v2702
      %v2712 = vld [vmem:[%s7] sm:$0x1]
      %v2713 = vld [vmem:[%s8] sm:$0x1]
      %2714 = vadd.xlane.f32.xlu0 %v2704
      %v2715 = vpop.xlane.xlu0 %2714
      %2716 = vadd.xlane.f32.xlu0 %v2705
      %v2717 = vpop.xlane.xlu0 %2716
      %2718 = vadd.xlane.f32.xlu0 %v2706
      %v2719 = vpop.xlane.xlu0 %2718
      %2720 = vadd.xlane.f32.xlu0 %v2707
      %v2721 = vpop.xlane.xlu0 %2720
      %2722 = vadd.xlane.f32.xlu0 %v2708
      %v2723 = vpop.xlane.xlu0 %2722
      %2724 = vadd.xlane.f32.xlu0 %v2709
      %v2725 = vpop.xlane.xlu0 %2724
      %2726 = vadd.xlane.f32.xlu0 %v2710
      %v2727 = vpop.xlane.xlu0 %2726
      %2728 = vadd.xlane.f32.xlu0 %v2711
      %v2729 = vpop.xlane.xlu0 %2728
      %v2730 = vmul.f32 %v2715, %v468
      %v2731 = vmul.f32 %v2717, %v468
      %v2732 = vmul.f32 %v2719, %v468
      %v2733 = vmul.f32 %v2721, %v468
      %v2734 = vmul.f32 %v2723, %v468
      %v2735 = vmul.f32 %v2725, %v468
      %v2736 = vmul.f32 %v2727, %v468
      %v2737 = vmul.f32 %v2729, %v468
      %v2738 = vmul.f32 %v2704, %v2704
      %v2739 = vmul.f32 %v2705, %v2705
      %v2740 = vmul.f32 %v2706, %v2706
      %v2741 = vmul.f32 %v2707, %v2707
      %v2742 = vmul.f32 %v2708, %v2708
      %v2743 = vmul.f32 %v2709, %v2709
      %v2744 = vmul.f32 %v2710, %v2710
      %v2745 = vmul.f32 %v2711, %v2711
      %2746 = vadd.xlane.f32.xlu0 %v2738
      %v2747 = vpop.xlane.xlu0 %2746
      %2748 = vadd.xlane.f32.xlu0 %v2739
      %v2749 = vpop.xlane.xlu0 %2748
      %2750 = vadd.xlane.f32.xlu0 %v2740
      %v2751 = vpop.xlane.xlu0 %2750
      %2752 = vadd.xlane.f32.xlu0 %v2741
      %v2753 = vpop.xlane.xlu0 %2752
      %2754 = vadd.xlane.f32.xlu0 %v2742
      %v2755 = vpop.xlane.xlu0 %2754
      %2756 = vadd.xlane.f32.xlu0 %v2743
      %v2757 = vpop.xlane.xlu0 %2756
      %2758 = vadd.xlane.f32.xlu0 %v2744
      %v2759 = vpop.xlane.xlu0 %2758
      %2760 = vadd.xlane.f32.xlu0 %v2745
      %v2761 = vpop.xlane.xlu0 %2760
      %v2762 = vmul.f32 %v2747, %v468
      %v2763 = vmul.f32 %v2749, %v468
      %v2764 = vmul.f32 %v2751, %v468
      %v2765 = vmul.f32 %v2753, %v468
      %v2766 = vmul.f32 %v2755, %v468
      %v2767 = vmul.f32 %v2757, %v468
      %v2768 = vmul.f32 %v2759, %v468
      %v2769 = vmul.f32 %v2761, %v468
      %v2770 = vmul.f32 %v2730, %v2730
      %v2771 = vmul.f32 %v2731, %v2731
      %v2772 = vmul.f32 %v2732, %v2732
      %v2773 = vmul.f32 %v2733, %v2733
      %v2774 = vmul.f32 %v2734, %v2734
      %v2775 = vmul.f32 %v2735, %v2735
      %v2776 = vmul.f32 %v2736, %v2736
      %v2777 = vmul.f32 %v2737, %v2737
      %v2778 = vsub.f32 %v2762, %v2770
      %v2779 = vsub.f32 %v2763, %v2771
      %v2780 = vsub.f32 %v2764, %v2772
      %v2781 = vsub.f32 %v2765, %v2773
      %v2782 = vsub.f32 %v2766, %v2774
      %v2783 = vsub.f32 %v2767, %v2775
      %v2784 = vsub.f32 %v2768, %v2776
      %v2785 = vsub.f32 %v2769, %v2777
      %v2786 = vsub.f32 %v2704, %v2730
      %v2787 = vsub.f32 %v2705, %v2731
      %v2788 = vsub.f32 %v2706, %v2732
      %v2789 = vsub.f32 %v2707, %v2733
      %v2790 = vsub.f32 %v2708, %v2734
      %v2791 = vsub.f32 %v2709, %v2735
      %v2792 = vsub.f32 %v2710, %v2736
      %v2793 = vsub.f32 %v2711, %v2737
      %v2794 = vadd.f32 %v2778, 1e-06
      %v2795 = vadd.f32 %v2779, 1e-06
      %v2796 = vadd.f32 %v2780, 1e-06
      %v2797 = vadd.f32 %v2781, 1e-06
      %v2798 = vadd.f32 %v2782, 1e-06
      %v2799 = vadd.f32 %v2783, 1e-06
      %v2800 = vadd.f32 %v2784, 1e-06
      %v2801 = vadd.f32 %v2785, 1e-06
      %v2802 = vrsqrt.pop %v2794
      %v2803 = vrsqrt.pop %v2795
      %v2804 = vrsqrt.pop %v2796
      %v2805 = vrsqrt.pop %v2797
      %v2806 = vrsqrt.pop %v2798
      %v2807 = vrsqrt.pop %v2799
      %v2808 = vrsqrt.pop %v2800
      %v2809 = vrsqrt.pop %v2801
      %v2810 = vmul.f32 %v2786, %v2802
      %v2811 = vmul.f32 %v2787, %v2803
      %v2812 = vmul.f32 %v2788, %v2804
      %v2813 = vmul.f32 %v2789, %v2805
      %v2814 = vmul.f32 %v2790, %v2806
      %v2815 = vmul.f32 %v2791, %v2807
      %v2816 = vmul.f32 %v2792, %v2808
      %v2817 = vmul.f32 %v2793, %v2809
      %v2819 = vlaneseq
      %v2820 = vshrl.u32 %v2819, 7
      %v2821 = vsub.s32 0, %v2820
      %v2822 = vrot.slane %v2712, %v2821
      %v2824 = vmul.f32 %v2810, %v2822
      %v2825 = vmul.f32 %v2811, %v2822
      %v2826 = vmul.f32 %v2812, %v2822
      %v2827 = vmul.f32 %v2813, %v2822
      %v2828 = vmul.f32 %v2814, %v2822
      %v2829 = vmul.f32 %v2815, %v2822
      %v2830 = vmul.f32 %v2816, %v2822
      %v2831 = vmul.f32 %v2817, %v2822
      %v2833 = vlaneseq
      %v2834 = vshrl.u32 %v2833, 7
      %v2835 = vsub.s32 0, %v2834
      %v2836 = vrot.slane %v2713, %v2835
      %v2838 = vadd.f32 %v2824, %v2836
      %v2839 = vadd.f32 %v2825, %v2836
      %v2840 = vadd.f32 %v2826, %v2836
      %v2841 = vadd.f32 %v2827, %v2836
      %v2842 = vadd.f32 %v2828, %v2836
      %v2843 = vadd.f32 %v2829, %v2836
      %v2844 = vadd.f32 %v2830, %v2836
      %v2845 = vadd.f32 %v2831, %v2836
      %v2846 = vpack.c.bf16 %v2839, %v2838
      %v2847 = vpack.c.bf16 %v2841, %v2840
      %v2848 = vpack.c.bf16 %v2843, %v2842
      %v2849 = vpack.c.bf16 %v2845, %v2844
      %v2850 = vld [vmem:[%s9] sm:$0xff]
      %v2851 = vld [vmem:[%s9 + $0x8] sm:$0xff]
      %v2852 = vld [vmem:[%s9 + $0x10] sm:$0xff]
      %v2853 = vld [vmem:[%s9 + $0x18] sm:$0xff]
      %v2854 = vld [vmem:[%s9 + $0x20] sm:$0xff]
      %v2855 = vld [vmem:[%s9 + $0x28] sm:$0xff]
      %v2856 = vld [vmem:[%s9 + $0x30] sm:$0xff]
      %v2857 = vld [vmem:[%s9 + $0x38] sm:$0xff]
      %v2858 = vld [vmem:[%s9 + $0x40] sm:$0xff]
      %v2859 = vld [vmem:[%s9 + $0x48] sm:$0xff]
      %v2860 = vld [vmem:[%s9 + $0x50] sm:$0xff]
      %v2861 = vld [vmem:[%s9 + $0x58] sm:$0xff]
      %v2862 = vld [vmem:[%s9 + $0x60] sm:$0xff]
      %v2863 = vld [vmem:[%s9 + $0x68] sm:$0xff]
      %v2864 = vld [vmem:[%s9 + $0x70] sm:$0xff]
      %v2865 = vld [vmem:[%s9 + $0x78] sm:$0xff]
      %v2866 = vld [vmem:[%s9 + $0x80] sm:$0xff]
      %v2867 = vld [vmem:[%s9 + $0x88] sm:$0xff]
      %v2868 = vld [vmem:[%s9 + $0x90] sm:$0xff]
      %v2869 = vld [vmem:[%s9 + $0x98] sm:$0xff]
      %v2870 = vld [vmem:[%s9 + $0xa0] sm:$0xff]
      %v2871 = vld [vmem:[%s9 + $0xa8] sm:$0xff]
      %v2872 = vld [vmem:[%s9 + $0xb0] sm:$0xff]
      %v2873 = vld [vmem:[%s9 + $0xb8] sm:$0xff]
      %v2874 = vld [vmem:[%s9 + $0xc0] sm:$0xff]
      %v2875 = vld [vmem:[%s9 + $0xc8] sm:$0xff]
      %v2876 = vld [vmem:[%s9 + $0xd0] sm:$0xff]
      %v2877 = vld [vmem:[%s9 + $0xd8] sm:$0xff]
      %v2878 = vld [vmem:[%s9 + $0xe0] sm:$0xff]
      %v2879 = vld [vmem:[%s9 + $0xe8] sm:$0xff]
      %v2880 = vld [vmem:[%s9 + $0xf0] sm:$0xff]
      %v2881 = vld [vmem:[%s9 + $0xf8] sm:$0xff]
      %v2882 = vld [vmem:[%s10] sm:$0xf]
      %v2884 = vlaneseq
      %v2885 = vshrl.u32 %v2884, 7
      %v2886 = vsub.s32 0, %v2885
      %v2887 = vrot.slane %v2882, %v2886
      %v2888 = vlaneseq
      %v2889 = vshrl.u32 %v2888, 7
      %v2890 = vsub.s32 1, %v2889
      %v2891 = vrot.slane %v2882, %v2890
      %v2892 = vlaneseq
      %v2893 = vshrl.u32 %v2892, 7
      %v2894 = vsub.s32 2, %v2893
      %v2895 = vrot.slane %v2882, %v2894
      %v2896 = vlaneseq
      %v2897 = vshrl.u32 %v2896, 7
      %v2898 = vsub.s32 3, %v2897
      %v2899 = vrot.slane %v2882, %v2898
      %v2936 = vunpack.c.l.b16 %v2850
      %v2937 = vunpack.c.h.b16 %v2850
      %v2938 = vunpack.c.l.b16 %v2851
      %v2939 = vunpack.c.h.b16 %v2851
      %v2940 = vunpack.c.l.b16 %v2852
      %v2941 = vunpack.c.h.b16 %v2852
      %v2942 = vunpack.c.l.b16 %v2853
      %v2943 = vunpack.c.h.b16 %v2853
      %v2944 = vunpack.c.l.b16 %v2854
      %v2945 = vunpack.c.h.b16 %v2854
      %v2946 = vunpack.c.l.b16 %v2855
      %v2947 = vunpack.c.h.b16 %v2855
      %v2948 = vunpack.c.l.b16 %v2856
      %v2949 = vunpack.c.h.b16 %v2856
      %v2950 = vunpack.c.l.b16 %v2857
      %v2951 = vunpack.c.h.b16 %v2857
      %v2952 = vunpack.c.l.b16 %v2858
      %v2953 = vunpack.c.h.b16 %v2858
      %v2954 = vunpack.c.l.b16 %v2859
      %v2955 = vunpack.c.h.b16 %v2859
      %v2956 = vunpack.c.l.b16 %v2860
      %v2957 = vunpack.c.h.b16 %v2860
      %v2958 = vunpack.c.l.b16 %v2861
      %v2959 = vunpack.c.h.b16 %v2861
      %v2960 = vunpack.c.l.b16 %v2862
      %v2961 = vunpack.c.h.b16 %v2862
      %v2962 = vunpack.c.l.b16 %v2863
      %v2963 = vunpack.c.h.b16 %v2863
      %v2964 = vunpack.c.l.b16 %v2864
      %v2965 = vunpack.c.h.b16 %v2864
      %v2966 = vunpack.c.l.b16 %v2865
      %v2967 = vunpack.c.h.b16 %v2865
      %v2968 = vunpack.c.l.b16 %v2866
      %v2969 = vunpack.c.h.b16 %v2866
      %v2970 = vunpack.c.l.b16 %v2867
      %v2971 = vunpack.c.h.b16 %v2867
      %v2972 = vunpack.c.l.b16 %v2868
      %v2973 = vunpack.c.h.b16 %v2868
      %v2974 = vunpack.c.l.b16 %v2869
      %v2975 = vunpack.c.h.b16 %v2869
      %v2976 = vunpack.c.l.b16 %v2870
      %v2977 = vunpack.c.h.b16 %v2870
      %v2978 = vunpack.c.l.b16 %v2871
      %v2979 = vunpack.c.h.b16 %v2871
      %v2980 = vunpack.c.l.b16 %v2872
      %v2981 = vunpack.c.h.b16 %v2872
      %v2982 = vunpack.c.l.b16 %v2873
      %v2983 = vunpack.c.h.b16 %v2873
      %v2984 = vunpack.c.l.b16 %v2874
      %v2985 = vunpack.c.h.b16 %v2874
      %v2986 = vunpack.c.l.b16 %v2875
      %v2987 = vunpack.c.h.b16 %v2875
      %v2988 = vunpack.c.l.b16 %v2876
      %v2989 = vunpack.c.h.b16 %v2876
      %v2990 = vunpack.c.l.b16 %v2877
      %v2991 = vunpack.c.h.b16 %v2877
      %v2992 = vunpack.c.l.b16 %v2878
      %v2993 = vunpack.c.h.b16 %v2878
      %v2994 = vunpack.c.l.b16 %v2879
      %v2995 = vunpack.c.h.b16 %v2879
      %v2996 = vunpack.c.l.b16 %v2880
      %v2997 = vunpack.c.h.b16 %v2880
      %v2998 = vunpack.c.l.b16 %v2881
      %v2999 = vunpack.c.h.b16 %v2881
      %v3000 = vpack.c.b16 %v2940, %v2936
      %v3001 = vpack.c.b16 %v2941, %v2937
      %v3002 = vpack.c.b16 %v2942, %v2938
      %v3003 = vpack.c.b16 %v2943, %v2939
      %v3004 = vpack.c.b16 %v2948, %v2944
      %v3005 = vpack.c.b16 %v2949, %v2945
      %v3006 = vpack.c.b16 %v2950, %v2946
      %v3007 = vpack.c.b16 %v2951, %v2947
      %v3008 = vpack.c.b16 %v2956, %v2952
      %v3009 = vpack.c.b16 %v2957, %v2953
      %v3010 = vpack.c.b16 %v2958, %v2954
      %v3011 = vpack.c.b16 %v2959, %v2955
      %v3012 = vpack.c.b16 %v2964, %v2960
      %v3013 = vpack.c.b16 %v2965, %v2961
      %v3014 = vpack.c.b16 %v2966, %v2962
      %v3015 = vpack.c.b16 %v2967, %v2963
      %v3016 = vpack.c.b16 %v2972, %v2968
      %v3017 = vpack.c.b16 %v2973, %v2969
      %v3018 = vpack.c.b16 %v2974, %v2970
      %v3019 = vpack.c.b16 %v2975, %v2971
      %v3020 = vpack.c.b16 %v2980, %v2976
      %v3021 = vpack.c.b16 %v2981, %v2977
      %v3022 = vpack.c.b16 %v2982, %v2978
      %v3023 = vpack.c.b16 %v2983, %v2979
      %v3024 = vpack.c.b16 %v2988, %v2984
      %v3025 = vpack.c.b16 %v2989, %v2985
      %v3026 = vpack.c.b16 %v2990, %v2986
      %v3027 = vpack.c.b16 %v2991, %v2987
      %v3028 = vpack.c.b16 %v2996, %v2992
      %v3029 = vpack.c.b16 %v2997, %v2993
      %v3030 = vpack.c.b16 %v2998, %v2994
      %v3031 = vpack.c.b16 %v2999, %v2995
      %3064 = vmatprep.subr.bf16.mxu0 %v3001
      %3065 = vmatpush1.bf16.msra.mxu0 %v3000
      %3066 = vmatprep.subr.bf16.mxu0 %v3005
      %3067 = vmatpush1.bf16.msra.mxu0 %v3004
      %3068 = vmatprep.subr.bf16.mxu0 %v3009
      %3069 = vmatpush1.bf16.msra.mxu0 %v3008
      %3070 = vmatprep.subr.bf16.mxu0 %v3013
      %3071 = vmatpush1.bf16.msra.mxu0 %v3012
      %3072 = vmatprep.subr.bf16.mxu0 %v3017
      %3073 = vmatpush1.bf16.msra.mxu0 %v3016
      %3074 = vmatprep.subr.bf16.mxu0 %v3021
      %3075 = vmatpush1.bf16.msra.mxu0 %v3020
      %3076 = vmatprep.subr.bf16.mxu0 %v3025
      %3077 = vmatpush1.bf16.msra.mxu0 %v3024
      %3078 = vmatprep.subr.bf16.mxu0 %v3029
      %3079 = vmatpush1.bf16.msra.mxu0 %v3028
      %3080 = vmatprep.subr.bf16.mxu0 0
      %3081 = vmatpush1.bf16.msra.mxu0 0
      %3082 = vmatprep.subr.bf16.mxu0 0
      %3083 = vmatpush1.bf16.msra.mxu0 0
      %3084 = vmatprep.subr.bf16.mxu0 0
      %3085 = vmatpush1.bf16.msra.mxu0 0
      %3086 = vmatprep.subr.bf16.mxu0 0
      %3087 = vmatpush1.bf16.msra.mxu0 0
      %3088 = vmatprep.subr.bf16.mxu0 0
      %3089 = vmatpush1.bf16.msra.mxu0 0
      %3090 = vmatprep.subr.bf16.mxu0 0
      %3091 = vmatpush1.bf16.msra.mxu0 0
      %3092 = vmatprep.subr.bf16.mxu0 0
      %3093 = vmatpush1.bf16.msra.mxu0 0
      %3094 = vmatprep.subr.bf16.mxu0 0
      %3095 = vmatpush1.bf16.msra.mxu0 0
      %3096 = vmatprep.mubr.bf16.mxu0 0
      %3097 = vmatmul.mubr.bf16.gmra.mrb[0].mxu0 %v2846
      %v3098 = vpop.f32.mrb[0].mxu0
      %v3099 = vadd.f32 %v2887, %v3098
      %v3100 = vpop.f32.mrb[0].mxu0
      %v3101 = vadd.f32 %v2891, %v3100
      %v3102 = vpop.f32.mrb[0].mxu0
      %v3103 = vadd.f32 %v2887, %v3102
      %v3104 = vpop.f32.mrb[0].mxu0
      %v3105 = vadd.f32 %v2891, %v3104
      %3106 = vmatprep.mubr.bf16.mxu0 0
      %3107 = vmatmul.mubr.bf16.gmra.mrb[0].mxu0 %v2847
      %v3108 = vpop.f32.mrb[0].mxu0
      %v3109 = vadd.f32 %v2887, %v3108
      %v3110 = vpop.f32.mrb[0].mxu0
      %v3111 = vadd.f32 %v2891, %v3110
      %v3112 = vpop.f32.mrb[0].mxu0
      %v3113 = vadd.f32 %v2887, %v3112
      %v3114 = vpop.f32.mrb[0].mxu0
      %v3115 = vadd.f32 %v2891, %v3114
      %3116 = vmatprep.mubr.bf16.mxu0 0
      %3117 = vmatmul.mubr.bf16.gmra.mrb[0].mxu0 %v2848
      %v3118 = vpop.f32.mrb[0].mxu0
      %v3119 = vadd.f32 %v2887, %v3118
      %v3120 = vpop.f32.mrb[0].mxu0
      %v3121 = vadd.f32 %v2891, %v3120
      %v3122 = vpop.f32.mrb[0].mxu0
      %v3123 = vadd.f32 %v2887, %v3122
      %v3124 = vpop.f32.mrb[0].mxu0
      %v3125 = vadd.f32 %v2891, %v3124
      %3126 = vmatprep.mubr.bf16.mxu0 0
      %3127 = vmatmul.mubr.bf16.gmra.mrb[0].mxu0 %v2849
      %v3128 = vpop.f32.mrb[0].mxu0
      %v3129 = vadd.f32 %v2887, %v3128
      %v3130 = vpop.f32.mrb[0].mxu0
      %v3131 = vadd.f32 %v2891, %v3130
      %v3132 = vpop.f32.mrb[0].mxu0
      %v3133 = vadd.f32 %v2887, %v3132
      %v3134 = vpop.f32.mrb[0].mxu0
      %v3135 = vadd.f32 %v2891, %v3134
      %3136 = vdwg.mxu0
      %3137 = vmatprep.subr.bf16.mxu0 %v3003
      %3138 = vmatpush1.bf16.msra.mxu0 %v3002
      %3139 = vmatprep.subr.bf16.mxu0 %v3007
      %3140 = vmatpush1.bf16.msra.mxu0 %v3006
      %3141 = vmatprep.subr.bf16.mxu0 %v3011
      %3142 = vmatpush1.bf16.msra.mxu0 %v3010
      %3143 = vmatprep.subr.bf16.mxu0 %v3015
      %3144 = vmatpush1.bf16.msra.mxu0 %v3014
      %3145 = vmatprep.subr.bf16.mxu0 %v3019
      %3146 = vmatpush1.bf16.msra.mxu0 %v3018
      %3147 = vmatprep.subr.bf16.mxu0 %v3023
      %3148 = vmatpush1.bf16.msra.mxu0 %v3022
      %3149 = vmatprep.subr.bf16.mxu0 %v3027
      %3150 = vmatpush1.bf16.msra.mxu0 %v3026
      %3151 = vmatprep.subr.bf16.mxu0 %v3031
      %3152 = vmatpush1.bf16.msra.mxu0 %v3030
      %3153 = vmatprep.subr.bf16.mxu0 0
      %3154 = vmatpush1.bf16.msra.mxu0 0
      %3155 = vmatprep.subr.bf16.mxu0 0
      %3156 = vmatpush1.bf16.msra.mxu0 0
      %3157 = vmatprep.subr.bf16.mxu0 0
      %3158 = vmatpush1.bf16.msra.mxu0 0
      %3159 = vmatprep.subr.bf16.mxu0 0
      %3160 = vmatpush1.bf16.msra.mxu0 0
      %3161 = vmatprep.subr.bf16.mxu0 0
      %3162 = vmatpush1.bf16.msra.mxu0 0
      %3163 = vmatprep.subr.bf16.mxu0 0
      %3164 = vmatpush1.bf16.msra.mxu0 0
      %3165 = vmatprep.subr.bf16.mxu0 0
      %3166 = vmatpush1.bf16.msra.mxu0 0
      %3167 = vmatprep.subr.bf16.mxu0 0
      %3168 = vmatpush1.bf16.msra.mxu0 0
      %3169 = vmatprep.mubr.bf16.mxu0 0
      %3170 = vmatmul.mubr.bf16.gmra.mrb[0].mxu0 %v2846
      %v3171 = vpop.f32.mrb[0].mxu0
      %v3172 = vadd.f32 %v2895, %v3171
      %v3173 = vpop.f32.mrb[0].mxu0
      %v3174 = vadd.f32 %v2899, %v3173
      %v3175 = vpop.f32.mrb[0].mxu0
      %v3176 = vadd.f32 %v2895, %v3175
      %v3177 = vpop.f32.mrb[0].mxu0
      %v3178 = vadd.f32 %v2899, %v3177
      %3179 = vmatprep.mubr.bf16.mxu0 0
      %3180 = vmatmul.mubr.bf16.gmra.mrb[0].mxu0 %v2847
      %v3181 = vpop.f32.mrb[0].mxu0
      %v3182 = vadd.f32 %v2895, %v3181
      %v3183 = vpop.f32.mrb[0].mxu0
      %v3184 = vadd.f32 %v2899, %v3183
      %v3185 = vpop.f32.mrb[0].mxu0
      %v3186 = vadd.f32 %v2895, %v3185
      %v3187 = vpop.f32.mrb[0].mxu0
      %v3188 = vadd.f32 %v2899, %v3187
      %3189 = vmatprep.mubr.bf16.mxu0 0
      %3190 = vmatmul.mubr.bf16.gmra.mrb[0].mxu0 %v2848
      %v3191 = vpop.f32.mrb[0].mxu0
      %v3192 = vadd.f32 %v2895, %v3191
      %v3193 = vpop.f32.mrb[0].mxu0
      %v3194 = vadd.f32 %v2899, %v3193
      %v3195 = vpop.f32.mrb[0].mxu0
      %v3196 = vadd.f32 %v2895, %v3195
      %v3197 = vpop.f32.mrb[0].mxu0
      %v3198 = vadd.f32 %v2899, %v3197
      %3199 = vmatprep.mubr.bf16.mxu0 0
      %3200 = vmatmul.mubr.bf16.gmra.mrb[0].mxu0 %v2849
      %v3201 = vpop.f32.mrb[0].mxu0
      %v3202 = vadd.f32 %v2895, %v3201
      %v3203 = vpop.f32.mrb[0].mxu0
      %v3204 = vadd.f32 %v2899, %v3203
      %v3205 = vpop.f32.mrb[0].mxu0
      %v3206 = vadd.f32 %v2895, %v3205
      %v3207 = vpop.f32.mrb[0].mxu0
      %v3208 = vadd.f32 %v2899, %v3207
      %3209 = vdwg.mxu0
      %v3210 = vmul.f32 %v3099, 0.5
      %v3211 = vmul.f32 %v3101, 0.5
      %v3212 = vmul.f32 %v3172, 0.5
      %v3213 = vmul.f32 %v3174, 0.5
      %v3214 = vmul.f32 %v3103, 0.5
      %v3215 = vmul.f32 %v3105, 0.5
      %v3216 = vmul.f32 %v3176, 0.5
      %v3217 = vmul.f32 %v3178, 0.5
      %v3218 = vmul.f32 %v3109, 0.5
      %v3219 = vmul.f32 %v3111, 0.5
      %v3220 = vmul.f32 %v3182, 0.5
      %v3221 = vmul.f32 %v3184, 0.5
      %v3222 = vmul.f32 %v3113, 0.5
      %v3223 = vmul.f32 %v3115, 0.5
      %v3224 = vmul.f32 %v3186, 0.5
      %v3225 = vmul.f32 %v3188, 0.5
      %v3226 = vmul.f32 %v3119, 0.5
      %v3227 = vmul.f32 %v3121, 0.5
      %v3228 = vmul.f32 %v3192, 0.5
      %v3229 = vmul.f32 %v3194, 0.5
      %v3230 = vmul.f32 %v3123, 0.5
      %v3231 = vmul.f32 %v3125, 0.5
      %v3232 = vmul.f32 %v3196, 0.5
      %v3233 = vmul.f32 %v3198, 0.5
      %v3234 = vmul.f32 %v3129, 0.5
      %v3235 = vmul.f32 %v3131, 0.5
      %v3236 = vmul.f32 %v3202, 0.5
      %v3237 = vmul.f32 %v3204, 0.5
      %v3238 = vmul.f32 %v3133, 0.5
      %v3239 = vmul.f32 %v3135, 0.5
      %v3240 = vmul.f32 %v3206, 0.5
      %v3241 = vmul.f32 %v3208, 0.5
      %v3242 = vmul.f32 %v3099, 0.044715
      %v3243 = vmul.f32 %v3101, 0.044715
      %v3244 = vmul.f32 %v3172, 0.044715
      %v3245 = vmul.f32 %v3174, 0.044715
      %v3246 = vmul.f32 %v3103, 0.044715
      %v3247 = vmul.f32 %v3105, 0.044715
      %v3248 = vmul.f32 %v3176, 0.044715
      %v3249 = vmul.f32 %v3178, 0.044715
      %v3250 = vmul.f32 %v3109, 0.044715
      %v3251 = vmul.f32 %v3111, 0.044715
      %v3252 = vmul.f32 %v3182, 0.044715
      %v3253 = vmul.f32 %v3184, 0.044715
      %v3254 = vmul.f32 %v3113, 0.044715
      %v3255 = vmul.f32 %v3115, 0.044715
      %v3256 = vmul.f32 %v3186, 0.044715
      %v3257 = vmul.f32 %v3188, 0.044715
      %v3258 = vmul.f32 %v3119, 0.044715
      %v3259 = vmul.f32 %v3121, 0.044715
      %v3260 = vmul.f32 %v3192, 0.044715
      %v3261 = vmul.f32 %v3194, 0.044715
      %v3262 = vmul.f32 %v3123, 0.044715
      %v3263 = vmul.f32 %v3125, 0.044715
      %v3264 = vmul.f32 %v3196, 0.044715
      %v3265 = vmul.f32 %v3198, 0.044715
      %v3266 = vmul.f32 %v3129, 0.044715
      %v3267 = vmul.f32 %v3131, 0.044715
      %v3268 = vmul.f32 %v3202, 0.044715
      %v3269 = vmul.f32 %v3204, 0.044715
      %v3270 = vmul.f32 %v3133, 0.044715
      %v3271 = vmul.f32 %v3135, 0.044715
      %v3272 = vmul.f32 %v3206, 0.044715
      %v3273 = vmul.f32 %v3208, 0.044715
      %v3274 = vmul.f32 %v3242, %v3099
      %v3275 = vmul.f32 %v3243, %v3101
      %v3276 = vmul.f32 %v3244, %v3172
      %v3277 = vmul.f32 %v3245, %v3174
      %v3278 = vmul.f32 %v3246, %v3103
      %v3279 = vmul.f32 %v3247, %v3105
      %v3280 = vmul.f32 %v3248, %v3176
      %v3281 = vmul.f32 %v3249, %v3178
      %v3282 = vmul.f32 %v3250, %v3109
      %v3283 = vmul.f32 %v3251, %v3111
      %v3284 = vmul.f32 %v3252, %v3182
      %v3285 = vmul.f32 %v3253, %v3184
      %v3286 = vmul.f32 %v3254, %v3113
      %v3287 = vmul.f32 %v3255, %v3115
      %v3288 = vmul.f32 %v3256, %v3186
      %v3289 = vmul.f32 %v3257, %v3188
      %v3290 = vmul.f32 %v3258, %v3119
      %v3291 = vmul.f32 %v3259, %v3121
      %v3292 = vmul.f32 %v3260, %v3192
      %v3293 = vmul.f32 %v3261, %v3194
      %v3294 = vmul.f32 %v3262, %v3123
      %v3295 = vmul.f32 %v3263, %v3125
      %v3296 = vmul.f32 %v3264, %v3196
      %v3297 = vmul.f32 %v3265, %v3198
      %v3298 = vmul.f32 %v3266, %v3129
      %v3299 = vmul.f32 %v3267, %v3131
      %v3300 = vmul.f32 %v3268, %v3202
      %v3301 = vmul.f32 %v3269, %v3204
      %v3302 = vmul.f32 %v3270, %v3133
      %v3303 = vmul.f32 %v3271, %v3135
      %v3304 = vmul.f32 %v3272, %v3206
      %v3305 = vmul.f32 %v3273, %v3208
      %v3306 = vmul.f32 %v3274, %v3099
      %v3307 = vmul.f32 %v3275, %v3101
      %v3308 = vmul.f32 %v3276, %v3172
      %v3309 = vmul.f32 %v3277, %v3174
      %v3310 = vmul.f32 %v3278, %v3103
      %v3311 = vmul.f32 %v3279, %v3105
      %v3312 = vmul.f32 %v3280, %v3176
      %v3313 = vmul.f32 %v3281, %v3178
      %v3314 = vmul.f32 %v3282, %v3109
      %v3315 = vmul.f32 %v3283, %v3111
      %v3316 = vmul.f32 %v3284, %v3182
      %v3317 = vmul.f32 %v3285, %v3184
      %v3318 = vmul.f32 %v3286, %v3113
      %v3319 = vmul.f32 %v3287, %v3115
      %v3320 = vmul.f32 %v3288, %v3186
      %v3321 = vmul.f32 %v3289, %v3188
      %v3322 = vmul.f32 %v3290, %v3119
      %v3323 = vmul.f32 %v3291, %v3121
      %v3324 = vmul.f32 %v3292, %v3192
      %v3325 = vmul.f32 %v3293, %v3194
      %v3326 = vmul.f32 %v3294, %v3123
      %v3327 = vmul.f32 %v3295, %v3125
      %v3328 = vmul.f32 %v3296, %v3196
      %v3329 = vmul.f32 %v3297, %v3198
      %v3330 = vmul.f32 %v3298, %v3129
      %v3331 = vmul.f32 %v3299, %v3131
      %v3332 = vmul.f32 %v3300, %v3202
      %v3333 = vmul.f32 %v3301, %v3204
      %v3334 = vmul.f32 %v3302, %v3133
      %v3335 = vmul.f32 %v3303, %v3135
      %v3336 = vmul.f32 %v3304, %v3206
      %v3337 = vmul.f32 %v3305, %v3208
      %v3338 = vadd.f32 %v3099, %v3306
      %v3339 = vadd.f32 %v3101, %v3307
      %v3340 = vadd.f32 %v3172, %v3308
      %v3341 = vadd.f32 %v3174, %v3309
      %v3342 = vadd.f32 %v3103, %v3310
      %v3343 = vadd.f32 %v3105, %v3311
      %v3344 = vadd.f32 %v3176, %v3312
      %v3345 = vadd.f32 %v3178, %v3313
      %v3346 = vadd.f32 %v3109, %v3314
      %v3347 = vadd.f32 %v3111, %v3315
      %v3348 = vadd.f32 %v3182, %v3316
      %v3349 = vadd.f32 %v3184, %v3317
      %v3350 = vadd.f32 %v3113, %v3318
      %v3351 = vadd.f32 %v3115, %v3319
      %v3352 = vadd.f32 %v3186, %v3320
      %v3353 = vadd.f32 %v3188, %v3321
      %v3354 = vadd.f32 %v3119, %v3322
      %v3355 = vadd.f32 %v3121, %v3323
      %v3356 = vadd.f32 %v3192, %v3324
      %v3357 = vadd.f32 %v3194, %v3325
      %v3358 = vadd.f32 %v3123, %v3326
      %v3359 = vadd.f32 %v3125, %v3327
      %v3360 = vadd.f32 %v3196, %v3328
      %v3361 = vadd.f32 %v3198, %v3329
      %v3362 = vadd.f32 %v3129, %v3330
      %v3363 = vadd.f32 %v3131, %v3331
      %v3364 = vadd.f32 %v3202, %v3332
      %v3365 = vadd.f32 %v3204, %v3333
      %v3366 = vadd.f32 %v3133, %v3334
      %v3367 = vadd.f32 %v3135, %v3335
      %v3368 = vadd.f32 %v3206, %v3336
      %v3369 = vadd.f32 %v3208, %v3337
      %v3370 = vmul.f32 %v3338, 0.7978846
      %v3371 = vmul.f32 %v3339, 0.7978846
      %v3372 = vmul.f32 %v3340, 0.7978846
      %v3373 = vmul.f32 %v3341, 0.7978846
      %v3374 = vmul.f32 %v3342, 0.7978846
      %v3375 = vmul.f32 %v3343, 0.7978846
      %v3376 = vmul.f32 %v3344, 0.7978846
      %v3377 = vmul.f32 %v3345, 0.7978846
      %v3378 = vmul.f32 %v3346, 0.7978846
      %v3379 = vmul.f32 %v3347, 0.7978846
      %v3380 = vmul.f32 %v3348, 0.7978846
      %v3381 = vmul.f32 %v3349, 0.7978846
      %v3382 = vmul.f32 %v3350, 0.7978846
      %v3383 = vmul.f32 %v3351, 0.7978846
      %v3384 = vmul.f32 %v3352, 0.7978846
      %v3385 = vmul.f32 %v3353, 0.7978846
      %v3386 = vmul.f32 %v3354, 0.7978846
      %v3387 = vmul.f32 %v3355, 0.7978846
      %v3388 = vmul.f32 %v3356, 0.7978846
      %v3389 = vmul.f32 %v3357, 0.7978846
      %v3390 = vmul.f32 %v3358, 0.7978846
      %v3391 = vmul.f32 %v3359, 0.7978846
      %v3392 = vmul.f32 %v3360, 0.7978846
      %v3393 = vmul.f32 %v3361, 0.7978846
      %v3394 = vmul.f32 %v3362, 0.7978846
      %v3395 = vmul.f32 %v3363, 0.7978846
      %v3396 = vmul.f32 %v3364, 0.7978846
      %v3397 = vmul.f32 %v3365, 0.7978846
      %v3398 = vmul.f32 %v3366, 0.7978846
      %v3399 = vmul.f32 %v3367, 0.7978846
      %v3400 = vmul.f32 %v3368, 0.7978846
      %v3401 = vmul.f32 %v3369, 0.7978846
      %v3402 = vtanh.pop %v3370
      %v3403 = vtanh.pop %v3371
      %v3404 = vtanh.pop %v3372
      %v3405 = vtanh.pop %v3373
      %v3406 = vtanh.pop %v3374
      %v3407 = vtanh.pop %v3375
      %v3408 = vtanh.pop %v3376
      %v3409 = vtanh.pop %v3377
      %v3410 = vtanh.pop %v3378
      %v3411 = vtanh.pop %v3379
      %v3412 = vtanh.pop %v3380
      %v3413 = vtanh.pop %v3381
      %v3414 = vtanh.pop %v3382
      %v3415 = vtanh.pop %v3383
      %v3416 = vtanh.pop %v3384
      %v3417 = vtanh.pop %v3385
      %v3418 = vtanh.pop %v3386
      %v3419 = vtanh.pop %v3387
      %v3420 = vtanh.pop %v3388
      %v3421 = vtanh.pop %v3389
      %v3422 = vtanh.pop %v3390
      %v3423 = vtanh.pop %v3391
      %v3424 = vtanh.pop %v3392
      %v3425 = vtanh.pop %v3393
      %v3426 = vtanh.pop %v3394
      %v3427 = vtanh.pop %v3395
      %v3428 = vtanh.pop %v3396
      %v3429 = vtanh.pop %v3397
      %v3430 = vtanh.pop %v3398
      %v3431 = vtanh.pop %v3399
      %v3432 = vtanh.pop %v3400
      %v3433 = vtanh.pop %v3401
      %v3434 = vadd.f32 %v3402, 1.0
      %v3435 = vadd.f32 %v3403, 1.0
      %v3436 = vadd.f32 %v3404, 1.0
      %v3437 = vadd.f32 %v3405, 1.0
      %v3438 = vadd.f32 %v3406, 1.0
      %v3439 = vadd.f32 %v3407, 1.0
      %v3440 = vadd.f32 %v3408, 1.0
      %v3441 = vadd.f32 %v3409, 1.0
      %v3442 = vadd.f32 %v3410, 1.0
      %v3443 = vadd.f32 %v3411, 1.0
      %v3444 = vadd.f32 %v3412, 1.0
      %v3445 = vadd.f32 %v3413, 1.0
      %v3446 = vadd.f32 %v3414, 1.0
      %v3447 = vadd.f32 %v3415, 1.0
      %v3448 = vadd.f32 %v3416, 1.0
      %v3449 = vadd.f32 %v3417, 1.0
      %v3450 = vadd.f32 %v3418, 1.0
      %v3451 = vadd.f32 %v3419, 1.0
      %v3452 = vadd.f32 %v3420, 1.0
      %v3453 = vadd.f32 %v3421, 1.0
      %v3454 = vadd.f32 %v3422, 1.0
      %v3455 = vadd.f32 %v3423, 1.0
      %v3456 = vadd.f32 %v3424, 1.0
      %v3457 = vadd.f32 %v3425, 1.0
      %v3458 = vadd.f32 %v3426, 1.0
      %v3459 = vadd.f32 %v3427, 1.0
      %v3460 = vadd.f32 %v3428, 1.0
      %v3461 = vadd.f32 %v3429, 1.0
      %v3462 = vadd.f32 %v3430, 1.0
      %v3463 = vadd.f32 %v3431, 1.0
      %v3464 = vadd.f32 %v3432, 1.0
      %v3465 = vadd.f32 %v3433, 1.0
      %v3466 = vmul.f32 %v3210, %v3434
      %v3467 = vmul.f32 %v3211, %v3435
      %v3468 = vmul.f32 %v3212, %v3436
      %v3469 = vmul.f32 %v3213, %v3437
      %v3470 = vmul.f32 %v3214, %v3438
      %v3471 = vmul.f32 %v3215, %v3439
      %v3472 = vmul.f32 %v3216, %v3440
      %v3473 = vmul.f32 %v3217, %v3441
      %v3474 = vmul.f32 %v3218, %v3442
      %v3475 = vmul.f32 %v3219, %v3443
      %v3476 = vmul.f32 %v3220, %v3444
      %v3477 = vmul.f32 %v3221, %v3445
      %v3478 = vmul.f32 %v3222, %v3446
      %v3479 = vmul.f32 %v3223, %v3447
      %v3480 = vmul.f32 %v3224, %v3448
      %v3481 = vmul.f32 %v3225, %v3449
      %v3482 = vmul.f32 %v3226, %v3450
      %v3483 = vmul.f32 %v3227, %v3451
      %v3484 = vmul.f32 %v3228, %v3452
      %v3485 = vmul.f32 %v3229, %v3453
      %v3486 = vmul.f32 %v3230, %v3454
      %v3487 = vmul.f32 %v3231, %v3455
      %v3488 = vmul.f32 %v3232, %v3456
      %v3489 = vmul.f32 %v3233, %v3457
      %v3490 = vmul.f32 %v3234, %v3458
      %v3491 = vmul.f32 %v3235, %v3459
      %v3492 = vmul.f32 %v3236, %v3460
      %v3493 = vmul.f32 %v3237, %v3461
      %v3494 = vmul.f32 %v3238, %v3462
      %v3495 = vmul.f32 %v3239, %v3463
      %v3496 = vmul.f32 %v3240, %v3464
      %v3497 = vmul.f32 %v3241, %v3465
      %v3498 = vpack.c.bf16 %v3470, %v3466
      %v3499 = vpack.c.bf16 %v3471, %v3467
      %v3500 = vpack.c.bf16 %v3472, %v3468
      %v3501 = vpack.c.bf16 %v3473, %v3469
      %v3502 = vpack.c.bf16 %v3478, %v3474
      %v3503 = vpack.c.bf16 %v3479, %v3475
      %v3504 = vpack.c.bf16 %v3480, %v3476
      %v3505 = vpack.c.bf16 %v3481, %v3477
      %v3506 = vpack.c.bf16 %v3486, %v3482
      %v3507 = vpack.c.bf16 %v3487, %v3483
      %v3508 = vpack.c.bf16 %v3488, %v3484
      %v3509 = vpack.c.bf16 %v3489, %v3485
      %v3510 = vpack.c.bf16 %v3494, %v3490
      %v3511 = vpack.c.bf16 %v3495, %v3491
      %v3512 = vpack.c.bf16 %v3496, %v3492
      %v3513 = vpack.c.bf16 %v3497, %v3493
      %v3514 = vld [vmem:[%s11] sm:$0xf]
      %v3515 = vld [vmem:[%s11 + $0x4] sm:$0xf]
      %v3516 = vld [vmem:[%s11 + $0x8] sm:$0xf]
      %v3517 = vld [vmem:[%s11 + $0xc] sm:$0xf]
      %v3518 = vld [vmem:[%s11 + $0x10] sm:$0xf]
      %v3519 = vld [vmem:[%s11 + $0x14] sm:$0xf]
      %v3520 = vld [vmem:[%s11 + $0x18] sm:$0xf]
      %v3521 = vld [vmem:[%s11 + $0x1c] sm:$0xf]
      %v3522 = vld [vmem:[%s11 + $0x20] sm:$0xf]
      %v3523 = vld [vmem:[%s11 + $0x24] sm:$0xf]
      %v3524 = vld [vmem:[%s11 + $0x28] sm:$0xf]
      %v3525 = vld [vmem:[%s11 + $0x2c] sm:$0xf]
      %v3526 = vld [vmem:[%s11 + $0x30] sm:$0xf]
      %v3527 = vld [vmem:[%s11 + $0x34] sm:$0xf]
      %v3528 = vld [vmem:[%s11 + $0x38] sm:$0xf]
      %v3529 = vld [vmem:[%s11 + $0x3c] sm:$0xf]
      %v3530 = vld [vmem:[%s11 + $0x40] sm:$0xf]
      %v3531 = vld [vmem:[%s11 + $0x44] sm:$0xf]
      %v3532 = vld [vmem:[%s11 + $0x48] sm:$0xf]
      %v3533 = vld [vmem:[%s11 + $0x4c] sm:$0xf]
      %v3534 = vld [vmem:[%s11 + $0x50] sm:$0xf]
      %v3535 = vld [vmem:[%s11 + $0x54] sm:$0xf]
      %v3536 = vld [vmem:[%s11 + $0x58] sm:$0xf]
      %v3537 = vld [vmem:[%s11 + $0x5c] sm:$0xf]
      %v3538 = vld [vmem:[%s11 + $0x60] sm:$0xf]
      %v3539 = vld [vmem:[%s11 + $0x64] sm:$0xf]
      %v3540 = vld [vmem:[%s11 + $0x68] sm:$0xf]
      %v3541 = vld [vmem:[%s11 + $0x6c] sm:$0xf]
      %v3542 = vld [vmem:[%s11 + $0x70] sm:$0xf]
      %v3543 = vld [vmem:[%s11 + $0x74] sm:$0xf]
      %v3544 = vld [vmem:[%s11 + $0x78] sm:$0xf]
      %v3545 = vld [vmem:[%s11 + $0x7c] sm:$0xf]
      %v3546 = vld [vmem:[%s11 + $0x80] sm:$0xf]
      %v3547 = vld [vmem:[%s11 + $0x84] sm:$0xf]
      %v3548 = vld [vmem:[%s11 + $0x88] sm:$0xf]
      %v3549 = vld [vmem:[%s11 + $0x8c] sm:$0xf]
      %v3550 = vld [vmem:[%s11 + $0x90] sm:$0xf]
      %v3551 = vld [vmem:[%s11 + $0x94] sm:$0xf]
      %v3552 = vld [vmem:[%s11 + $0x98] sm:$0xf]
      %v3553 = vld [vmem:[%s11 + $0x9c] sm:$0xf]
      %v3554 = vld [vmem:[%s11 + $0xa0] sm:$0xf]
      %v3555 = vld [vmem:[%s11 + $0xa4] sm:$0xf]
      %v3556 = vld [vmem:[%s11 + $0xa8] sm:$0xf]
      %v3557 = vld [vmem:[%s11 + $0xac] sm:$0xf]
      %v3558 = vld [vmem:[%s11 + $0xb0] sm:$0xf]
      %v3559 = vld [vmem:[%s11 + $0xb4] sm:$0xf]
      %v3560 = vld [vmem:[%s11 + $0xb8] sm:$0xf]
      %v3561 = vld [vmem:[%s11 + $0xbc] sm:$0xf]
      %v3562 = vld [vmem:[%s11 + $0xc0] sm:$0xf]
      %v3563 = vld [vmem:[%s11 + $0xc4] sm:$0xf]
      %v3564 = vld [vmem:[%s11 + $0xc8] sm:$0xf]
      %v3565 = vld [vmem:[%s11 + $0xcc] sm:$0xf]
      %v3566 = vld [vmem:[%s11 + $0xd0] sm:$0xf]
      %v3567 = vld [vmem:[%s11 + $0xd4] sm:$0xf]
      %v3568 = vld [vmem:[%s11 + $0xd8] sm:$0xf]
      %v3569 = vld [vmem:[%s11 + $0xdc] sm:$0xf]
      %v3570 = vld [vmem:[%s11 + $0xe0] sm:$0xf]
      %v3571 = vld [vmem:[%s11 + $0xe4] sm:$0xf]
      %v3572 = vld [vmem:[%s11 + $0xe8] sm:$0xf]
      %v3573 = vld [vmem:[%s11 + $0xec] sm:$0xf]
      %v3574 = vld [vmem:[%s11 + $0xf0] sm:$0xf]
      %v3575 = vld [vmem:[%s11 + $0xf4] sm:$0xf]
      %v3576 = vld [vmem:[%s11 + $0xf8] sm:$0xf]
      %v3577 = vld [vmem:[%s11 + $0xfc] sm:$0xf]
      %v3642 = vunpack.c.l.b16 %v3514
      %v3643 = vunpack.c.l.b16 %v3515
      %v3644 = vunpack.c.l.b16 %v3516
      %v3645 = vunpack.c.l.b16 %v3517
      %v3646 = vunpack.c.l.b16 %v3518
      %v3647 = vunpack.c.l.b16 %v3519
      %v3648 = vunpack.c.l.b16 %v3520
      %v3649 = vunpack.c.l.b16 %v3521
      %v3650 = vunpack.c.l.b16 %v3522
      %v3651 = vunpack.c.l.b16 %v3523
      %v3652 = vunpack.c.l.b16 %v3524
      %v3653 = vunpack.c.l.b16 %v3525
      %v3654 = vunpack.c.l.b16 %v3526
      %v3655 = vunpack.c.l.b16 %v3527
      %v3656 = vunpack.c.l.b16 %v3528
      %v3657 = vunpack.c.l.b16 %v3529
      %v3658 = vunpack.c.l.b16 %v3530
      %v3659 = vunpack.c.l.b16 %v3531
      %v3660 = vunpack.c.l.b16 %v3532
      %v3661 = vunpack.c.l.b16 %v3533
      %v3662 = vunpack.c.l.b16 %v3534
      %v3663 = vunpack.c.l.b16 %v3535
      %v3664 = vunpack.c.l.b16 %v3536
      %v3665 = vunpack.c.l.b16 %v3537
      %v3666 = vunpack.c.l.b16 %v3538
      %v3667 = vunpack.c.l.b16 %v3539
      %v3668 = vunpack.c.l.b16 %v3540
      %v3669 = vunpack.c.l.b16 %v3541
      %v3670 = vunpack.c.l.b16 %v3542
      %v3671 = vunpack.c.l.b16 %v3543
      %v3672 = vunpack.c.l.b16 %v3544
      %v3673 = vunpack.c.l.b16 %v3545
      %v3674 = vunpack.c.l.b16 %v3546
      %v3675 = vunpack.c.l.b16 %v3547
      %v3676 = vunpack.c.l.b16 %v3548
      %v3677 = vunpack.c.l.b16 %v3549
      %v3678 = vunpack.c.l.b16 %v3550
      %v3679 = vunpack.c.l.b16 %v3551
      %v3680 = vunpack.c.l.b16 %v3552
      %v3681 = vunpack.c.l.b16 %v3553
      %v3682 = vunpack.c.l.b16 %v3554
      %v3683 = vunpack.c.l.b16 %v3555
      %v3684 = vunpack.c.l.b16 %v3556
      %v3685 = vunpack.c.l.b16 %v3557
      %v3686 = vunpack.c.l.b16 %v3558
      %v3687 = vunpack.c.l.b16 %v3559
      %v3688 = vunpack.c.l.b16 %v3560
      %v3689 = vunpack.c.l.b16 %v3561
      %v3690 = vunpack.c.l.b16 %v3562
      %v3691 = vunpack.c.l.b16 %v3563
      %v3692 = vunpack.c.l.b16 %v3564
      %v3693 = vunpack.c.l.b16 %v3565
      %v3694 = vunpack.c.l.b16 %v3566
      %v3695 = vunpack.c.l.b16 %v3567
      %v3696 = vunpack.c.l.b16 %v3568
      %v3697 = vunpack.c.l.b16 %v3569
      %v3698 = vunpack.c.l.b16 %v3570
      %v3699 = vunpack.c.l.b16 %v3571
      %v3700 = vunpack.c.l.b16 %v3572
      %v3701 = vunpack.c.l.b16 %v3573
      %v3702 = vunpack.c.l.b16 %v3574
      %v3703 = vunpack.c.l.b16 %v3575
      %v3704 = vunpack.c.l.b16 %v3576
      %v3705 = vunpack.c.l.b16 %v3577
      %v3706 = vpack.c.b16 %v3643, %v3642
      %v3707 = vpack.c.b16 %v3645, %v3644
      %v3708 = vpack.c.b16 %v3647, %v3646
      %v3709 = vpack.c.b16 %v3649, %v3648
      %v3710 = vpack.c.b16 %v3651, %v3650
      %v3711 = vpack.c.b16 %v3653, %v3652
      %v3712 = vpack.c.b16 %v3655, %v3654
      %v3713 = vpack.c.b16 %v3657, %v3656
      %v3714 = vpack.c.b16 %v3659, %v3658
      %v3715 = vpack.c.b16 %v3661, %v3660
      %v3716 = vpack.c.b16 %v3663, %v3662
      %v3717 = vpack.c.b16 %v3665, %v3664
      %v3718 = vpack.c.b16 %v3667, %v3666
      %v3719 = vpack.c.b16 %v3669, %v3668
      %v3720 = vpack.c.b16 %v3671, %v3670
      %v3721 = vpack.c.b16 %v3673, %v3672
      %v3722 = vpack.c.b16 %v3675, %v3674
      %v3723 = vpack.c.b16 %v3677, %v3676
      %v3724 = vpack.c.b16 %v3679, %v3678
      %v3725 = vpack.c.b16 %v3681, %v3680
      %v3726 = vpack.c.b16 %v3683, %v3682
      %v3727 = vpack.c.b16 %v3685, %v3684
      %v3728 = vpack.c.b16 %v3687, %v3686
      %v3729 = vpack.c.b16 %v3689, %v3688
      %v3730 = vpack.c.b16 %v3691, %v3690
      %v3731 = vpack.c.b16 %v3693, %v3692
      %v3732 = vpack.c.b16 %v3695, %v3694
      %v3733 = vpack.c.b16 %v3697, %v3696
      %v3734 = vpack.c.b16 %v3699, %v3698
      %v3735 = vpack.c.b16 %v3701, %v3700
      %v3736 = vpack.c.b16 %v3703, %v3702
      %v3737 = vpack.c.b16 %v3705, %v3704
      %3770 = vmatprep.subr.bf16.mxu0 0
      %3771 = vmatpush1.bf16.msra.mxu0 %v3706
      %3772 = vmatprep.subr.bf16.mxu0 0
      %3773 = vmatpush1.bf16.msra.mxu0 %v3707
      %3774 = vmatprep.subr.bf16.mxu0 0
      %3775 = vmatpush1.bf16.msra.mxu0 %v3708
      %3776 = vmatprep.subr.bf16.mxu0 0
      %3777 = vmatpush1.bf16.msra.mxu0 %v3709
      %3778 = vmatprep.subr.bf16.mxu0 0
      %3779 = vmatpush1.bf16.msra.mxu0 %v3710
      %3780 = vmatprep.subr.bf16.mxu0 0
      %3781 = vmatpush1.bf16.msra.mxu0 %v3711
      %3782 = vmatprep.subr.bf16.mxu0 0
      %3783 = vmatpush1.bf16.msra.mxu0 %v3712
      %3784 = vmatprep.subr.bf16.mxu0 0
      %3785 = vmatpush1.bf16.msra.mxu0 %v3713
      %3786 = vmatprep.subr.bf16.mxu0 0
      %3787 = vmatpush1.bf16.msra.mxu0 %v3714
      %3788 = vmatprep.subr.bf16.mxu0 0
      %3789 = vmatpush1.bf16.msra.mxu0 %v3715
      %3790 = vmatprep.subr.bf16.mxu0 0
      %3791 = vmatpush1.bf16.msra.mxu0 %v3716
      %3792 = vmatprep.subr.bf16.mxu0 0
      %3793 = vmatpush1.bf16.msra.mxu0 %v3717
      %3794 = vmatprep.subr.bf16.mxu0 0
      %3795 = vmatpush1.bf16.msra.mxu0 %v3718
      %3796 = vmatprep.subr.bf16.mxu0 0
      %3797 = vmatpush1.bf16.msra.mxu0 %v3719
      %3798 = vmatprep.subr.bf16.mxu0 0
      %3799 = vmatpush1.bf16.msra.mxu0 %v3720
      %3800 = vmatprep.subr.bf16.mxu0 0
      %3801 = vmatpush1.bf16.msra.mxu0 %v3721
      %3802 = vmatprep.mubr.bf16.mxu0 %v3499
      %3803 = vmatmul.mubr.bf16.gmra.mrb[0].mxu0 %v3498
      %v3804 = vpop.f32.mrb[0].mxu0
      %v3805 = vadd.f32 0.0, %v3804
      %v3806 = vpop.f32.mrb[0].mxu0
      %v3807 = vpop.f32.mrb[0].mxu0
      %v3808 = vadd.f32 0.0, %v3807
      %v3809 = vpop.f32.mrb[0].mxu0
      %3810 = vmatprep.mubr.bf16.mxu0 %v3503
      %3811 = vmatmul.mubr.bf16.gmra.mrb[0].mxu0 %v3502
      %v3812 = vpop.f32.mrb[0].mxu0
      %v3813 = vadd.f32 0.0, %v3812
      %v3814 = vpop.f32.mrb[0].mxu0
      %v3815 = vpop.f32.mrb[0].mxu0
      %v3816 = vadd.f32 0.0, %v3815
      %v3817 = vpop.f32.mrb[0].mxu0
      %3818 = vmatprep.mubr.bf16.mxu0 %v3507
      %3819 = vmatmul.mubr.bf16.gmra.mrb[0].mxu0 %v3506
      %v3820 = vpop.f32.mrb[0].mxu0
      %v3821 = vadd.f32 0.0, %v3820
      %v3822 = vpop.f32.mrb[0].mxu0
      %v3823 = vpop.f32.mrb[0].mxu0
      %v3824 = vadd.f32 0.0, %v3823
      %v3825 = vpop.f32.mrb[0].mxu0
      %3826 = vmatprep.mubr.bf16.mxu0 %v3511
      %3827 = vmatmul.mubr.bf16.gmra.mrb[0].mxu0 %v3510
      %v3828 = vpop.f32.mrb[0].mxu0
      %v3829 = vadd.f32 0.0, %v3828
      %v3830 = vpop.f32.mrb[0].mxu0
      %v3831 = vpop.f32.mrb[0].mxu0
      %v3832 = vadd.f32 0.0, %v3831
      %v3833 = vpop.f32.mrb[0].mxu0
      %3834 = vdwg.mxu0
      %3835 = vmatprep.subr.bf16.mxu0 0
      %3836 = vmatpush1.bf16.msra.mxu0 %v3722
      %3837 = vmatprep.subr.bf16.mxu0 0
      %3838 = vmatpush1.bf16.msra.mxu0 %v3723
      %3839 = vmatprep.subr.bf16.mxu0 0
      %3840 = vmatpush1.bf16.msra.mxu0 %v3724
      %3841 = vmatprep.subr.bf16.mxu0 0
      %3842 = vmatpush1.bf16.msra.mxu0 %v3725
      %3843 = vmatprep.subr.bf16.mxu0 0
      %3844 = vmatpush1.bf16.msra.mxu0 %v3726
      %3845 = vmatprep.subr.bf16.mxu0 0
      %3846 = vmatpush1.bf16.msra.mxu0 %v3727
      %3847 = vmatprep.subr.bf16.mxu0 0
      %3848 = vmatpush1.bf16.msra.mxu0 %v3728
      %3849 = vmatprep.subr.bf16.mxu0 0
      %3850 = vmatpush1.bf16.msra.mxu0 %v3729
      %3851 = vmatprep.subr.bf16.mxu0 0
      %3852 = vmatpush1.bf16.msra.mxu0 %v3730
      %3853 = vmatprep.subr.bf16.mxu0 0
      %3854 = vmatpush1.bf16.msra.mxu0 %v3731
      %3855 = vmatprep.subr.bf16.mxu0 0
      %3856 = vmatpush1.bf16.msra.mxu0 %v3732
      %3857 = vmatprep.subr.bf16.mxu0 0
      %3858 = vmatpush1.bf16.msra.mxu0 %v3733
      %3859 = vmatprep.subr.bf16.mxu0 0
      %3860 = vmatpush1.bf16.msra.mxu0 %v3734
      %3861 = vmatprep.subr.bf16.mxu0 0
      %3862 = vmatpush1.bf16.msra.mxu0 %v3735
      %3863 = vmatprep.subr.bf16.mxu0 0
      %3864 = vmatpush1.bf16.msra.mxu0 %v3736
      %3865 = vmatprep.subr.bf16.mxu0 0
      %3866 = vmatpush1.bf16.msra.mxu0 %v3737
      %3867 = vmatprep.mubr.bf16.mxu0 %v3501
      %3868 = vmatmul.mubr.bf16.gmra.mrb[0].mxu0 %v3500
      %v3869 = vpop.f32.mrb[0].mxu0
      %v3870 = vadd.f32 %v3805, %v3869
      %v3871 = vpop.f32.mrb[0].mxu0
      %v3872 = vpop.f32.mrb[0].mxu0
      %v3873 = vadd.f32 %v3808, %v3872
      %v3874 = vpop.f32.mrb[0].mxu0
      %3875 = vmatprep.mubr.bf16.mxu0 %v3505
      %3876 = vmatmul.mubr.bf16.gmra.mrb[0].mxu0 %v3504
      %v3877 = vpop.f32.mrb[0].mxu0
      %v3878 = vadd.f32 %v3813, %v3877
      %v3879 = vpop.f32.mrb[0].mxu0
      %v3880 = vpop.f32.mrb[0].mxu0
      %v3881 = vadd.f32 %v3816, %v3880
      %v3882 = vpop.f32.mrb[0].mxu0
      %3883 = vmatprep.mubr.bf16.mxu0 %v3509
      %3884 = vmatmul.mubr.bf16.gmra.mrb[0].mxu0 %v3508
      %v3885 = vpop.f32.mrb[0].mxu0
      %v3886 = vadd.f32 %v3821, %v3885
      %v3887 = vpop.f32.mrb[0].mxu0
      %v3888 = vpop.f32.mrb[0].mxu0
      %v3889 = vadd.f32 %v3824, %v3888
      %v3890 = vpop.f32.mrb[0].mxu0
      %3891 = vmatprep.mubr.bf16.mxu0 %v3513
      %3892 = vmatmul.mubr.bf16.gmra.mrb[0].mxu0 %v3512
      %v3893 = vpop.f32.mrb[0].mxu0
      %v3894 = vadd.f32 %v3829, %v3893
      %v3895 = vpop.f32.mrb[0].mxu0
      %v3896 = vpop.f32.mrb[0].mxu0
      %v3897 = vadd.f32 %v3832, %v3896
      %v3898 = vpop.f32.mrb[0].mxu0
      %3899 = vdwg.mxu0
      %v3900 = vadd.f32 %v2704, %v3870
      %v3901 = vadd.f32 %v2705, %v3873
      %v3902 = vadd.f32 %v2706, %v3878
      %v3903 = vadd.f32 %v2707, %v3881
      %v3904 = vadd.f32 %v2708, %v3886
      %v3905 = vadd.f32 %v2709, %v3889
      %v3906 = vadd.f32 %v2710, %v3894
      %v3907 = vadd.f32 %v2711, %v3897
      %v3908 = vld [vmem:[%s12] sm:$0x1]
      %v3910 = vlaneseq
      %v3911 = vshrl.u32 %v3910, 7
      %v3912 = vsub.s32 0, %v3911
      %v3913 = vrot.slane %v3908, %v3912
      %v3915 = vadd.f32 %v3900, %v3913
      %v3916 = vadd.f32 %v3901, %v3913
      %v3917 = vadd.f32 %v3902, %v3913
      %v3918 = vadd.f32 %v3903, %v3913
      %v3919 = vadd.f32 %v3904, %v3913
      %v3920 = vadd.f32 %v3905, %v3913
      %v3921 = vadd.f32 %v3906, %v3913
      %v3922 = vadd.f32 %v3907, %v3913
      %3923 = vst [vmem:[%s440] sm:$0xff] %v3915
      %3924 = vst [vmem:[%s440 + $0x8] sm:$0xff] %v3916
      %3925 = vst [vmem:[%s440 + $0x10] sm:$0xff] %v3917
      %3926 = vst [vmem:[%s440 + $0x18] sm:$0xff] %v3918
      %3927 = vst [vmem:[%s440 + $0x20] sm:$0xff] %v3919
      %3928 = vst [vmem:[%s440 + $0x28] sm:$0xff] %v3920
      %3929 = vst [vmem:[%s440 + $0x30] sm:$0xff] %v3921
      %3930 = vst [vmem:[%s440 + $0x38] sm:$0xff] %v3922
      %p3931 = scmp.lt.s32.totalorder %s24, 1
      %s3932 = scalar_select %p3931, %s24, 1
      %s3933 = smul.addr %s3932, 8
      %s3934 = smul.addr %s3933, 8
      %s3935 = scalar_lea.vmem %s13, %s3934
      // Predicated region
      $region73: #{up_forward.5} parent=71 // pred_check
        %p3936 = pneg %p320
      $region74: #{up_forward.5} parent=71 // pred_check_branch
        %3938 = sbr.rel (%p3936) target = $region76
      $region75: #{up_forward.5} parent=71 // pred_region
        _
      $region76: #{up_forward.5} parent=71 // pred_fallthru
        _
    $region72: #{up_forward.5} parent=5 // pred_fallthru
      _
    %p3939 = scmp.le.s32.totalorder 2, %s19
    // Predicated region
    $region77: #{up_forward.5} parent=5 // pred_check
      %p3940 = pneg %p3939
    $region78: #{up_forward.5} parent=5 // pred_check_branch
      %3942 = sbr.rel (%p3940) target = $region80
    $region79: #{up_forward.5} parent=5 // pred_region
      %s3943 = ssub.s32 %s19, 2
      // Predicated region
      $region81: #{up_forward.5} parent=79 // pred_check
        %p3944 = pneg %p326
      $region82: #{up_forward.5} parent=79 // pred_check_branch
        %3946 = sbr.rel (%p3944) target = $region84
      $region83: #{up_forward.5} parent=79 // pred_region
        %p3947 = scmp.lt.s32.totalorder %s25, 1
        %s3948 = scalar_select %p3947, %s25, 1
        %s3949 = smul.addr %s3948, 8
        %s3950 = smul.addr %s3949, 8
        %s3951 = scalar_lea.vmem %s13, %s3950
      $region84: #{up_forward.5} parent=79 // pred_fallthru
        _
    $region80: #{up_forward.5} parent=5 // pred_fallthru
      _
  $region6: #{up_forward.5} parent=0 // loop_footer
    %s23 = sadd.s32 1, %s19
  $region7: #{up_forward.5} parent=0 // loop_footer_branch
    %18 = sbr.rel target = $region3
  $region8: #{up_forward.5} parent=0 // loop_exit
    _

// kernel: up_forward.7
$region0: #{up_forward.7}
  #allocation0 [shape = 'u32[]', space=smem, size = 0x4, offset = 0x4, fixed_abs, tag = 'smem constant byte address 0x4 - core index']
  #allocation1 [shape = 'u32[144,128]{1,0:T(1,128)}', space=vmem, size = 0x12000, scoped, tag = 'internal scratch']
  %s0 = inlined_call_operand.vmem [shape: bf16[2,10,10,128], index: 0, kind: input, shape index: {}]
  %s1 = inlined_call_operand.vmem [shape: bf16[1152,128], index: 1, kind: input, shape index: {}]
  %s2 = inlined_call_operand.vmem [shape: f32[1,128], index: 2, kind: input, shape index: {}]
  %s3 = inlined_call_operand.vmem [shape: f32[1,128], index: 3, kind: input, shape index: {}]
  %s4 = inlined_call_operand.vmem [shape: bf16[1152,128], index: 4, kind: input, shape index: {}]
  %s5 = inlined_call_operand.vmem [shape: f32[1,128], index: 5, kind: input, shape index: {}]
  %s6 = inlined_call_operand.vmem [shape: f32[1,128], index: 6, kind: input, shape index: {}]
  %s7 = inlined_call_operand.hbm [shape: f32[128,128], index: 7, kind: output, shape index: {}]
  %s8 = sld [smem:[#allocation0]]
  $region38: #{up_forward.7} parent=0
    _
  %s10 = ssub.s32 1, %s8
  %s11 = scalar_select 0, %s10, %s8
  $region1: #{up_forward.7} parent=0
    #allocation2 [shape = 'u8[65536]{0}', space=vmem, size = 0x10000, scoped, tag = 'output window, operand 0, single buffered']
    #allocation3 [shape = 's32[1]{0}', space=sflag, size = 0x4, scoped, tag = 'scoped memory for up_forward.7']
    %12 = vsyncpa [#allocation3], 0
    // Predicated region
    $region2: #{up_forward.7} parent=1 // pred_check
      _
    $region3: #{up_forward.7} parent=1 // pred_check_branch
      %14 = sbr.rel (0) target = $region5
    $region4: #{up_forward.7} parent=1 // pred_region
      _
    $region5: #{up_forward.7} parent=1 // pred_fallthru
      _
    // Predicated region
    $region6: #{up_forward.7} parent=1 // pred_check
      _
    $region7: #{up_forward.7} parent=1 // pred_check_branch
      %16 = sbr.rel (0) target = $region9
    $region8: #{up_forward.7} parent=1 // pred_region
      _
    $region9: #{up_forward.7} parent=1 // pred_fallthru
      _
    // Predicated region
    $region10: #{up_forward.7} parent=1 // pred_check
      _
    $region11: #{up_forward.7} parent=1 // pred_check_branch
      %18 = sbr.rel (0) target = $region13
    $region12: #{up_forward.7} parent=1 // pred_region
      _
    $region13: #{up_forward.7} parent=1 // pred_fallthru
      _
    // Predicated region
    $region14: #{up_forward.7} parent=1 // pred_check
      _
    $region15: #{up_forward.7} parent=1 // pred_check_branch
      %20 = sbr.rel (0) target = $region17
    $region16: #{up_forward.7} parent=1 // pred_region
      _
    $region17: #{up_forward.7} parent=1 // pred_fallthru
      _
    // Predicated region
    $region18: #{up_forward.7} parent=1 // pred_check
      _
    $region19: #{up_forward.7} parent=1 // pred_check_branch
      %22 = sbr.rel (0) target = $region21
    $region20: #{up_forward.7} parent=1 // pred_region
      _
    $region21: #{up_forward.7} parent=1 // pred_fallthru
      _
    // Predicated region
    $region22: #{up_forward.7} parent=1 // pred_check
      _
    $region23: #{up_forward.7} parent=1 // pred_check_branch
      %24 = sbr.rel (0) target = $region25
    $region24: #{up_forward.7} parent=1 // pred_region
      _
    $region25: #{up_forward.7} parent=1 // pred_fallthru
      _
    // Predicated region
    $region26: #{up_forward.7} parent=1 // pred_check
      _
    $region27: #{up_forward.7} parent=1 // pred_check_branch
      %26 = sbr.rel (0) target = $region29
    $region28: #{up_forward.7} parent=1 // pred_region
      _
    $region29: #{up_forward.7} parent=1 // pred_fallthru
      _
    %v28 = vld [vmem:[%s1] sm:$0xf]
    %v29 = vld [vmem:[%s1 + $0x4] sm:$0xf]
    %v30 = vld [vmem:[%s1 + $0x8] sm:$0xf]
    %v31 = vld [vmem:[%s1 + $0xc] sm:$0xf]
    %v32 = vld [vmem:[%s1 + $0x10] sm:$0xf]
    %v33 = vld [vmem:[%s1 + $0x14] sm:$0xf]
    %v34 = vld [vmem:[%s1 + $0x18] sm:$0xf]
    %v35 = vld [vmem:[%s1 + $0x1c] sm:$0xf]
    %v36 = vld [vmem:[%s1 + $0x20] sm:$0xf]
    %v37 = vld [vmem:[%s1 + $0x24] sm:$0xf]
    %v38 = vld [vmem:[%s1 + $0x28] sm:$0xf]
    %v39 = vld [vmem:[%s1 + $0x2c] sm:$0xf]
    %v40 = vld [vmem:[%s1 + $0x30] sm:$0xf]
    %v41 = vld [vmem:[%s1 + $0x34] sm:$0xf]
    %v42 = vld [vmem:[%s1 + $0x38] sm:$0xf]
    %v43 = vld [vmem:[%s1 + $0x3c] sm:$0xf]
    %v44 = vld [vmem:[%s1 + $0x40] sm:$0xf]
    %v45 = vld [vmem:[%s1 + $0x44] sm:$0xf]
    %v46 = vld [vmem:[%s1 + $0x48] sm:$0xf]
    %v47 = vld [vmem:[%s1 + $0x4c] sm:$0xf]
    %v48 = vld [vmem:[%s1 + $0x50] sm:$0xf]
    %v49 = vld [vmem:[%s1 + $0x54] sm:$0xf]
    %v50 = vld [vmem:[%s1 + $0x58] sm:$0xf]
    %v51 = vld [vmem:[%s1 + $0x5c] sm:$0xf]
    %v52 = vld [vmem:[%s1 + $0x60] sm:$0xf]
    %v53 = vld [vmem:[%s1 + $0x64] sm:$0xf]
    %v54 = vld [vmem:[%s1 + $0x68] sm:$0xf]
    %v55 = vld [vmem:[%s1 + $0x6c] sm:$0xf]
    %v56 = vld [vmem:[%s1 + $0x70] sm:$0xf]
    %v57 = vld [vmem:[%s1 + $0x74] sm:$0xf]
    %v58 = vld [vmem:[%s1 + $0x78] sm:$0xf]
    %v59 = vld [vmem:[%s1 + $0x7c] sm:$0xf]
    %v60 = vld [vmem:[%s1 + $0x80] sm:$0xf]
    %v61 = vld [vmem:[%s1 + $0x84] sm:$0xf]
    %v62 = vld [vmem:[%s1 + $0x88] sm:$0xf]
    %v63 = vld [vmem:[%s1 + $0x8c] sm:$0xf]
    %v64 = vld [vmem:[%s1 + $0x90] sm:$0xf]
    %v65 = vld [vmem:[%s1 + $0x94] sm:$0xf]
    %v66 = vld [vmem:[%s1 + $0x98] sm:$0xf]
    %v67 = vld [vmem:[%s1 + $0x9c] sm:$0xf]
    %v68 = vld [vmem:[%s1 + $0xa0] sm:$0xf]
    %v69 = vld [vmem:[%s1 + $0xa4] sm:$0xf]
    %v70 = vld [vmem:[%s1 + $0xa8] sm:$0xf]
    %v71 = vld [vmem:[%s1 + $0xac] sm:$0xf]
    %v72 = vld [vmem:[%s1 + $0xb0] sm:$0xf]
    %v73 = vld [vmem:[%s1 + $0xb4] sm:$0xf]
    %v74 = vld [vmem:[%s1 + $0xb8] sm:$0xf]
    %v75 = vld [vmem:[%s1 + $0xbc] sm:$0xf]
    %v76 = vld [vmem:[%s1 + $0xc0] sm:$0xf]
    %v77 = vld [vmem:[%s1 + $0xc4] sm:$0xf]
    %v78 = vld [vmem:[%s1 + $0xc8] sm:$0xf]
    %v79 = vld [vmem:[%s1 + $0xcc] sm:$0xf]
    %v80 = vld [vmem:[%s1 + $0xd0] sm:$0xf]
    %v81 = vld [vmem:[%s1 + $0xd4] sm:$0xf]
    %v82 = vld [vmem:[%s1 + $0xd8] sm:$0xf]
    %v83 = vld [vmem:[%s1 + $0xdc] sm:$0xf]
    %v84 = vld [vmem:[%s1 + $0xe0] sm:$0xf]
    %v85 = vld [vmem:[%s1 + $0xe4] sm:$0xf]
    %v86 = vld [vmem:[%s1 + $0xe8] sm:$0xf]
    %v87 = vld [vmem:[%s1 + $0xec] sm:$0xf]
    %v88 = vld [vmem:[%s1 + $0xf0] sm:$0xf]
    %v89 = vld [vmem:[%s1 + $0xf4] sm:$0xf]
    %v90 = vld [vmem:[%s1 + $0xf8] sm:$0xf]
    %v91 = vld [vmem:[%s1 + $0xfc] sm:$0xf]
    %v92 = vld [vmem:[%s1 + $0x100] sm:$0xf]
    %v93 = vld [vmem:[%s1 + $0x104] sm:$0xf]
    %v94 = vld [vmem:[%s1 + $0x108] sm:$0xf]
    %v95 = vld [vmem:[%s1 + $0x10c] sm:$0xf]
    %v96 = vld [vmem:[%s1 + $0x110] sm:$0xf]
    %v97 = vld [vmem:[%s1 + $0x114] sm:$0xf]
    %v98 = vld [vmem:[%s1 + $0x118] sm:$0xf]
    %v99 = vld [vmem:[%s1 + $0x11c] sm:$0xf]
    %v100 = vld [vmem:[%s1 + $0x120] sm:$0xf]
    %v101 = vld [vmem:[%s1 + $0x124] sm:$0xf]
    %v102 = vld [vmem:[%s1 + $0x128] sm:$0xf]
    %v103 = vld [vmem:[%s1 + $0x12c] sm:$0xf]
    %v104 = vld [vmem:[%s1 + $0x130] sm:$0xf]
    %v105 = vld [vmem:[%s1 + $0x134] sm:$0xf]
    %v106 = vld [vmem:[%s1 + $0x138] sm:$0xf]
    %v107 = vld [vmem:[%s1 + $0x13c] sm:$0xf]
    %v108 = vld [vmem:[%s1 + $0x140] sm:$0xf]
    %v109 = vld [vmem:[%s1 + $0x144] sm:$0xf]
    %v110 = vld [vmem:[%s1 + $0x148] sm:$0xf]
    %v111 = vld [vmem:[%s1 + $0x14c] sm:$0xf]
    %v112 = vld [vmem:[%s1 + $0x150] sm:$0xf]
    %v113 = vld [vmem:[%s1 + $0x154] sm:$0xf]
    %v114 = vld [vmem:[%s1 + $0x158] sm:$0xf]
    %v115 = vld [vmem:[%s1 + $0x15c] sm:$0xf]
    %v116 = vld [vmem:[%s1 + $0x160] sm:$0xf]
    %v117 = vld [vmem:[%s1 + $0x164] sm:$0xf]
    %v118 = vld [vmem:[%s1 + $0x168] sm:$0xf]
    %v119 = vld [vmem:[%s1 + $0x16c] sm:$0xf]
    %v120 = vld [vmem:[%s1 + $0x170] sm:$0xf]
    %v121 = vld [vmem:[%s1 + $0x174] sm:$0xf]
    %v122 = vld [vmem:[%s1 + $0x178] sm:$0xf]
    %v123 = vld [vmem:[%s1 + $0x17c] sm:$0xf]
    %v124 = vld [vmem:[%s1 + $0x180] sm:$0xf]
    %v125 = vld [vmem:[%s1 + $0x184] sm:$0xf]
    %v126 = vld [vmem:[%s1 + $0x188] sm:$0xf]
    %v127 = vld [vmem:[%s1 + $0x18c] sm:$0xf]
    %v128 = vld [vmem:[%s1 + $0x190] sm:$0xf]
    %v129 = vld [vmem:[%s1 + $0x194] sm:$0xf]
    %v130 = vld [vmem:[%s1 + $0x198] sm:$0xf]
    %v131 = vld [vmem:[%s1 + $0x19c] sm:$0xf]
    %v132 = vld [vmem:[%s1 + $0x1a0] sm:$0xf]
    %v133 = vld [vmem:[%s1 + $0x1a4] sm:$0xf]
    %v134 = vld [vmem:[%s1 + $0x1a8] sm:$0xf]
    %v135 = vld [vmem:[%s1 + $0x1ac] sm:$0xf]
    %v136 = vld [vmem:[%s1 + $0x1b0] sm:$0xf]
    %v137 = vld [vmem:[%s1 + $0x1b4] sm:$0xf]
    %v138 = vld [vmem:[%s1 + $0x1b8] sm:$0xf]
    %v139 = vld [vmem:[%s1 + $0x1bc] sm:$0xf]
    %v140 = vld [vmem:[%s1 + $0x1c0] sm:$0xf]
    %v141 = vld [vmem:[%s1 + $0x1c4] sm:$0xf]
    %v142 = vld [vmem:[%s1 + $0x1c8] sm:$0xf]
    %v143 = vld [vmem:[%s1 + $0x1cc] sm:$0xf]
    %v144 = vld [vmem:[%s1 + $0x1d0] sm:$0xf]
    %v145 = vld [vmem:[%s1 + $0x1d4] sm:$0xf]
    %v146 = vld [vmem:[%s1 + $0x1d8] sm:$0xf]
    %v147 = vld [vmem:[%s1 + $0x1dc] sm:$0xf]
    %v148 = vld [vmem:[%s1 + $0x1e0] sm:$0xf]
    %v149 = vld [vmem:[%s1 + $0x1e4] sm:$0xf]
    %v150 = vld [vmem:[%s1 + $0x1e8] sm:$0xf]
    %v151 = vld [vmem:[%s1 + $0x1ec] sm:$0xf]
    %v152 = vld [vmem:[%s1 + $0x1f0] sm:$0xf]
    %v153 = vld [vmem:[%s1 + $0x1f4] sm:$0xf]
    %v154 = vld [vmem:[%s1 + $0x1f8] sm:$0xf]
    %v155 = vld [vmem:[%s1 + $0x1fc] sm:$0xf]
    %v156 = vld [vmem:[%s1 + $0x200] sm:$0xf]
    %v157 = vld [vmem:[%s1 + $0x204] sm:$0xf]
    %v158 = vld [vmem:[%s1 + $0x208] sm:$0xf]
    %v159 = vld [vmem:[%s1 + $0x20c] sm:$0xf]
    %v160 = vld [vmem:[%s1 + $0x210] sm:$0xf]
    %v161 = vld [vmem:[%s1 + $0x214] sm:$0xf]
    %v162 = vld [vmem:[%s1 + $0x218] sm:$0xf]
    %v163 = vld [vmem:[%s1 + $0x21c] sm:$0xf]
    %v164 = vld [vmem:[%s1 + $0x220] sm:$0xf]
    %v165 = vld [vmem:[%s1 + $0x224] sm:$0xf]
    %v166 = vld [vmem:[%s1 + $0x228] sm:$0xf]
    %v167 = vld [vmem:[%s1 + $0x22c] sm:$0xf]
    %v168 = vld [vmem:[%s1 + $0x230] sm:$0xf]
    %v169 = vld [vmem:[%s1 + $0x234] sm:$0xf]
    %v170 = vld [vmem:[%s1 + $0x238] sm:$0xf]
    %v171 = vld [vmem:[%s1 + $0x23c] sm:$0xf]
    %v172 = vld [vmem:[%s0] sm:$0xf]
    %v173 = vld [vmem:[%s0 + $0x8] sm:$0xf]
    %v174 = vld [vmem:[%s0 + $0x10] sm:$0xf]
    %v175 = vld [vmem:[%s0 + $0x18] sm:$0xf]
    %v176 = vld [vmem:[%s0 + $0x20] sm:$0xf]
    %v177 = vld [vmem:[%s0 + $0x28] sm:$0xf]
    %v178 = vld [vmem:[%s0 + $0x30] sm:$0xf]
    %v179 = vld [vmem:[%s0 + $0x38] sm:$0xf]
    %v180 = vld [vmem:[%s0 + $0x50] sm:$0xf]
    %v181 = vld [vmem:[%s0 + $0x58] sm:$0xf]
    %v182 = vld [vmem:[%s0 + $0x60] sm:$0xf]
    %v183 = vld [vmem:[%s0 + $0x68] sm:$0xf]
    %v184 = vld [vmem:[%s0 + $0x70] sm:$0xf]
    %v185 = vld [vmem:[%s0 + $0x78] sm:$0xf]
    %v186 = vld [vmem:[%s0 + $0x80] sm:$0xf]
    %v187 = vld [vmem:[%s0 + $0x88] sm:$0xf]
    %v188 = vld [vmem:[%s0 + $0x4] sm:$0x1]
    %v189 = vld [vmem:[%s0 + $0xc] sm:$0x1]
    %v190 = vld [vmem:[%s0 + $0x14] sm:$0x1]
    %v191 = vld [vmem:[%s0 + $0x1c] sm:$0x1]
    %v192 = vld [vmem:[%s0 + $0x24] sm:$0x1]
    %v193 = vld [vmem:[%s0 + $0x2c] sm:$0x1]
    %v194 = vld [vmem:[%s0 + $0x34] sm:$0x1]
    %v195 = vld [vmem:[%s0 + $0x3c] sm:$0x1]
    %v196 = vld [vmem:[%s0 + $0x54] sm:$0x1]
    %v197 = vld [vmem:[%s0 + $0x5c] sm:$0x1]
    %v198 = vld [vmem:[%s0 + $0x64] sm:$0x1]
    %v199 = vld [vmem:[%s0 + $0x6c] sm:$0x1]
    %v200 = vld [vmem:[%s0 + $0x74] sm:$0x1]
    %v201 = vld [vmem:[%s0 + $0x7c] sm:$0x1]
    %v202 = vld [vmem:[%s0 + $0x84] sm:$0x1]
    %v203 = vld [vmem:[%s0 + $0x8c] sm:$0x1]
    %vm204 = vsmask.f32 3328
    %vm205 = vsmask.f32 7440
    %vm206 = vmor %vm204, %vm205
    %v208 = vshrl.u32 %v172, 16
    %v210 = vrot.slane %v208, 4
    %v211 = vshll.u32 %v172, 16
    %v213 = vrot.slane %v211, 5
    %v214 = vor.u32 %v210, %v213
    %v215 = vrot.slane %v214, 4
    %v217 = vshll.u32 %v188, 16
    %v219 = vrot.slane %v217, 5
    %v220 = vsel %vm206, %v215, %v219
    %v222 = vshrl.u32 %v173, 16
    %v224 = vrot.slane %v222, 4
    %v225 = vshll.u32 %v173, 16
    %v227 = vrot.slane %v225, 5
    %v228 = vor.u32 %v224, %v227
    %v229 = vrot.slane %v228, 4
    %v231 = vshll.u32 %v189, 16
    %v233 = vrot.slane %v231, 5
    %v234 = vsel %vm206, %v229, %v233
    %v236 = vshrl.u32 %v174, 16
    %v238 = vrot.slane %v236, 4
    %v239 = vshll.u32 %v174, 16
    %v241 = vrot.slane %v239, 5
    %v242 = vor.u32 %v238, %v241
    %v243 = vrot.slane %v242, 4
    %v245 = vshll.u32 %v190, 16
    %v247 = vrot.slane %v245, 5
    %v248 = vsel %vm206, %v243, %v247
    %v250 = vshrl.u32 %v175, 16
    %v252 = vrot.slane %v250, 4
    %v253 = vshll.u32 %v175, 16
    %v255 = vrot.slane %v253, 5
    %v256 = vor.u32 %v252, %v255
    %v257 = vrot.slane %v256, 4
    %v259 = vshll.u32 %v191, 16
    %v261 = vrot.slane %v259, 5
    %v262 = vsel %vm206, %v257, %v261
    %v264 = vshrl.u32 %v176, 16
    %v266 = vrot.slane %v264, 4
    %v267 = vshll.u32 %v176, 16
    %v269 = vrot.slane %v267, 5
    %v270 = vor.u32 %v266, %v269
    %v271 = vrot.slane %v270, 4
    %v273 = vshll.u32 %v192, 16
    %v275 = vrot.slane %v273, 5
    %v276 = vsel %vm206, %v271, %v275
    %v278 = vshrl.u32 %v177, 16
    %v280 = vrot.slane %v278, 4
    %v281 = vshll.u32 %v177, 16
    %v283 = vrot.slane %v281, 5
    %v284 = vor.u32 %v280, %v283
    %v285 = vrot.slane %v284, 4
    %v287 = vshll.u32 %v193, 16
    %v289 = vrot.slane %v287, 5
    %v290 = vsel %vm206, %v285, %v289
    %v292 = vshrl.u32 %v178, 16
    %v294 = vrot.slane %v292, 4
    %v295 = vshll.u32 %v178, 16
    %v297 = vrot.slane %v295, 5
    %v298 = vor.u32 %v294, %v297
    %v299 = vrot.slane %v298, 4
    %v301 = vshll.u32 %v194, 16
    %v303 = vrot.slane %v301, 5
    %v304 = vsel %vm206, %v299, %v303
    %v306 = vshrl.u32 %v179, 16
    %v308 = vrot.slane %v306, 4
    %v309 = vshll.u32 %v179, 16
    %v311 = vrot.slane %v309, 5
    %v312 = vor.u32 %v308, %v311
    %v313 = vrot.slane %v312, 4
    %v315 = vshll.u32 %v195, 16
    %v317 = vrot.slane %v315, 5
    %v318 = vsel %vm206, %v313, %v317
    %v320 = vshrl.u32 %v180, 16
    %v322 = vrot.slane %v320, 4
    %v323 = vshll.u32 %v180, 16
    %v325 = vrot.slane %v323, 5
    %v326 = vor.u32 %v322, %v325
    %v327 = vrot.slane %v326, 4
    %v329 = vshll.u32 %v196, 16
    %v331 = vrot.slane %v329, 5
    %v332 = vsel %vm206, %v327, %v331
    %v334 = vshrl.u32 %v181, 16
    %v336 = vrot.slane %v334, 4
    %v337 = vshll.u32 %v181, 16
    %v339 = vrot.slane %v337, 5
    %v340 = vor.u32 %v336, %v339
    %v341 = vrot.slane %v340, 4
    %v343 = vshll.u32 %v197, 16
    %v345 = vrot.slane %v343, 5
    %v346 = vsel %vm206, %v341, %v345
    %v348 = vshrl.u32 %v182, 16
    %v350 = vrot.slane %v348, 4
    %v351 = vshll.u32 %v182, 16
    %v353 = vrot.slane %v351, 5
    %v354 = vor.u32 %v350, %v353
    %v355 = vrot.slane %v354, 4
    %v357 = vshll.u32 %v198, 16
    %v359 = vrot.slane %v357, 5
    %v360 = vsel %vm206, %v355, %v359
    %v362 = vshrl.u32 %v183, 16
    %v364 = vrot.slane %v362, 4
    %v365 = vshll.u32 %v183, 16
    %v367 = vrot.slane %v365, 5
    %v368 = vor.u32 %v364, %v367
    %v369 = vrot.slane %v368, 4
    %v371 = vshll.u32 %v199, 16
    %v373 = vrot.slane %v371, 5
    %v374 = vsel %vm206, %v369, %v373
    %v376 = vshrl.u32 %v184, 16
    %v378 = vrot.slane %v376, 4
    %v379 = vshll.u32 %v184, 16
    %v381 = vrot.slane %v379, 5
    %v382 = vor.u32 %v378, %v381
    %v383 = vrot.slane %v382, 4
    %v385 = vshll.u32 %v200, 16
    %v387 = vrot.slane %v385, 5
    %v388 = vsel %vm206, %v383, %v387
    %v390 = vshrl.u32 %v185, 16
    %v392 = vrot.slane %v390, 4
    %v393 = vshll.u32 %v185, 16
    %v395 = vrot.slane %v393, 5
    %v396 = vor.u32 %v392, %v395
    %v397 = vrot.slane %v396, 4
    %v399 = vshll.u32 %v201, 16
    %v401 = vrot.slane %v399, 5
    %v402 = vsel %vm206, %v397, %v401
    %v404 = vshrl.u32 %v186, 16
    %v406 = vrot.slane %v404, 4
    %v407 = vshll.u32 %v186, 16
    %v409 = vrot.slane %v407, 5
    %v410 = vor.u32 %v406, %v409
    %v411 = vrot.slane %v410, 4
    %v413 = vshll.u32 %v202, 16
    %v415 = vrot.slane %v413, 5
    %v416 = vsel %vm206, %v411, %v415
    %v418 = vshrl.u32 %v187, 16
    %v420 = vrot.slane %v418, 4
    %v421 = vshll.u32 %v187, 16
    %v423 = vrot.slane %v421, 5
    %v424 = vor.u32 %v420, %v423
    %v425 = vrot.slane %v424, 4
    %v427 = vshll.u32 %v203, 16
    %v429 = vrot.slane %v427, 5
    %v430 = vsel %vm206, %v425, %v429
    %v431 = vld [vmem:[%s0] sm:$0xe]
    %v432 = vld [vmem:[%s0 + $0x8] sm:$0xe]
    %v433 = vld [vmem:[%s0 + $0x10] sm:$0xe]
    %v434 = vld [vmem:[%s0 + $0x18] sm:$0xe]
    %v435 = vld [vmem:[%s0 + $0x20] sm:$0xe]
    %v436 = vld [vmem:[%s0 + $0x28] sm:$0xe]
    %v437 = vld [vmem:[%s0 + $0x30] sm:$0xe]
    %v438 = vld [vmem:[%s0 + $0x38] sm:$0xe]
    %v439 = vld [vmem:[%s0 + $0x50] sm:$0xe]
    %v440 = vld [vmem:[%s0 + $0x58] sm:$0xe]
    %v441 = vld [vmem:[%s0 + $0x60] sm:$0xe]
    %v442 = vld [vmem:[%s0 + $0x68] sm:$0xe]
    %v443 = vld [vmem:[%s0 + $0x70] sm:$0xe]
    %v444 = vld [vmem:[%s0 + $0x78] sm:$0xe]
    %v445 = vld [vmem:[%s0 + $0x80] sm:$0xe]
    %v446 = vld [vmem:[%s0 + $0x88] sm:$0xe]
    %vm479 = vcmask 1042432
    %vm480 = vcmask 1046532
    %vm481 = vmor %vm479, %vm480
    %v482 = vrot.slane %v431, 5
    %v483 = vrot.slane %v482, 4
    %v484 = vrot.slane %v188, 5
    %v485 = vsel %vm481, %v483, %v484
    %v486 = vrot.slane %v432, 5
    %v487 = vrot.slane %v486, 4
    %v488 = vrot.slane %v189, 5
    %v489 = vsel %vm481, %v487, %v488
    %v490 = vrot.slane %v433, 5
    %v491 = vrot.slane %v490, 4
    %v492 = vrot.slane %v190, 5
    %v493 = vsel %vm481, %v491, %v492
    %v494 = vrot.slane %v434, 5
    %v495 = vrot.slane %v494, 4
    %v496 = vrot.slane %v191, 5
    %v497 = vsel %vm481, %v495, %v496
    %v498 = vrot.slane %v435, 5
    %v499 = vrot.slane %v498, 4
    %v500 = vrot.slane %v192, 5
    %v501 = vsel %vm481, %v499, %v500
    %v502 = vrot.slane %v436, 5
    %v503 = vrot.slane %v502, 4
    %v504 = vrot.slane %v193, 5
    %v505 = vsel %vm481, %v503, %v504
    %v506 = vrot.slane %v437, 5
    %v507 = vrot.slane %v506, 4
    %v508 = vrot.slane %v194, 5
    %v509 = vsel %vm481, %v507, %v508
    %v510 = vrot.slane %v438, 5
    %v511 = vrot.slane %v510, 4
    %v512 = vrot.slane %v195, 5
    %v513 = vsel %vm481, %v511, %v512
    %v514 = vrot.slane %v439, 5
    %v515 = vrot.slane %v514, 4
    %v516 = vrot.slane %v196, 5
    %v517 = vsel %vm481, %v515, %v516
    %v518 = vrot.slane %v440, 5
    %v519 = vrot.slane %v518, 4
    %v520 = vrot.slane %v197, 5
    %v521 = vsel %vm481, %v519, %v520
    %v522 = vrot.slane %v441, 5
    %v523 = vrot.slane %v522, 4
    %v524 = vrot.slane %v198, 5
    %v525 = vsel %vm481, %v523, %v524
    %v526 = vrot.slane %v442, 5
    %v527 = vrot.slane %v526, 4
    %v528 = vrot.slane %v199, 5
    %v529 = vsel %vm481, %v527, %v528
    %v530 = vrot.slane %v443, 5
    %v531 = vrot.slane %v530, 4
    %v532 = vrot.slane %v200, 5
    %v533 = vsel %vm481, %v531, %v532
    %v534 = vrot.slane %v444, 5
    %v535 = vrot.slane %v534, 4
    %v536 = vrot.slane %v201, 5
    %v537 = vsel %vm481, %v535, %v536
    %v538 = vrot.slane %v445, 5
    %v539 = vrot.slane %v538, 4
    %v540 = vrot.slane %v202, 5
    %v541 = vsel %vm481, %v539, %v540
    %v542 = vrot.slane %v446, 5
    %v543 = vrot.slane %v542, 4
    %v544 = vrot.slane %v203, 5
    %v545 = vsel %vm481, %v543, %v544
    %v562 = vunpack.c.l.b16 %v172
    %v563 = vunpack.c.l.b16 %v173
    %v564 = vunpack.c.l.b16 %v174
    %v565 = vunpack.c.l.b16 %v175
    %v566 = vunpack.c.l.b16 %v176
    %v567 = vunpack.c.l.b16 %v177
    %v568 = vunpack.c.l.b16 %v178
    %v569 = vunpack.c.l.b16 %v179
    %v570 = vunpack.c.l.b16 %v180
    %v571 = vunpack.c.l.b16 %v181
    %v572 = vunpack.c.l.b16 %v182
    %v573 = vunpack.c.l.b16 %v183
    %v574 = vunpack.c.l.b16 %v184
    %v575 = vunpack.c.l.b16 %v185
    %v576 = vunpack.c.l.b16 %v186
    %v577 = vunpack.c.l.b16 %v187
    %v578 = vpack.c.b16 %v563, %v562
    %v579 = vpack.c.b16 %v565, %v564
    %v580 = vpack.c.b16 %v567, %v566
    %v581 = vpack.c.b16 %v569, %v568
    %v582 = vpack.c.b16 %v571, %v570
    %v583 = vpack.c.b16 %v573, %v572
    %v584 = vpack.c.b16 %v575, %v574
    %v585 = vpack.c.b16 %v577, %v576
    %v594 = vunpack.c.l.b16 %v220
    %v595 = vunpack.c.l.b16 %v234
    %v596 = vunpack.c.l.b16 %v248
    %v597 = vunpack.c.l.b16 %v262
    %v598 = vunpack.c.l.b16 %v276
    %v599 = vunpack.c.l.b16 %v290
    %v600 = vunpack.c.l.b16 %v304
    %v601 = vunpack.c.l.b16 %v318
    %v602 = vunpack.c.l.b16 %v332
    %v603 = vunpack.c.l.b16 %v346
    %v604 = vunpack.c.l.b16 %v360
    %v605 = vunpack.c.l.b16 %v374
    %v606 = vunpack.c.l.b16 %v388
    %v607 = vunpack.c.l.b16 %v402
    %v608 = vunpack.c.l.b16 %v416
    %v609 = vunpack.c.l.b16 %v430
    %v610 = vpack.c.b16 %v595, %v594
    %v611 = vpack.c.b16 %v597, %v596
    %v612 = vpack.c.b16 %v599, %v598
    %v613 = vpack.c.b16 %v601, %v600
    %v614 = vpack.c.b16 %v603, %v602
    %v615 = vpack.c.b16 %v605, %v604
    %v616 = vpack.c.b16 %v607, %v606
    %v617 = vpack.c.b16 %v609, %v608
    %v626 = vunpack.c.l.b16 %v485
    %v627 = vunpack.c.l.b16 %v489
    %v628 = vunpack.c.l.b16 %v493
    %v629 = vunpack.c.l.b16 %v497
    %v630 = vunpack.c.l.b16 %v501
    %v631 = vunpack.c.l.b16 %v505
    %v632 = vunpack.c.l.b16 %v509
    %v633 = vunpack.c.l.b16 %v513
    %v634 = vunpack.c.l.b16 %v517
    %v635 = vunpack.c.l.b16 %v521
    %v636 = vunpack.c.l.b16 %v525
    %v637 = vunpack.c.l.b16 %v529
    %v638 = vunpack.c.l.b16 %v533
    %v639 = vunpack.c.l.b16 %v537
    %v640 = vunpack.c.l.b16 %v541
    %v641 = vunpack.c.l.b16 %v545
    %v642 = vpack.c.b16 %v627, %v626
    %v643 = vpack.c.b16 %v629, %v628
    %v644 = vpack.c.b16 %v631, %v630
    %v645 = vpack.c.b16 %v633, %v632
    %v646 = vpack.c.b16 %v635, %v634
    %v647 = vpack.c.b16 %v637, %v636
    %v648 = vpack.c.b16 %v639, %v638
    %v649 = vpack.c.b16 %v641, %v640
    %s658 = scalar_lea.vmem %s0, 8
    %v659 = vld [vmem:[%s658] sm:$0xf]
    %v660 = vld [vmem:[%s658 + $0x8] sm:$0xf]
    %v661 = vld [vmem:[%s658 + $0x10] sm:$0xf]
    %v662 = vld [vmem:[%s658 + $0x18] sm:$0xf]
    %v663 = vld [vmem:[%s658 + $0x20] sm:$0xf]
    %v664 = vld [vmem:[%s658 + $0x28] sm:$0xf]
    %v665 = vld [vmem:[%s658 + $0x30] sm:$0xf]
    %v666 = vld [vmem:[%s658 + $0x38] sm:$0xf]
    %v667 = vld [vmem:[%s658 + $0x50] sm:$0xf]
    %v668 = vld [vmem:[%s658 + $0x58] sm:$0xf]
    %v669 = vld [vmem:[%s658 + $0x60] sm:$0xf]
    %v670 = vld [vmem:[%s658 + $0x68] sm:$0xf]
    %v671 = vld [vmem:[%s658 + $0x70] sm:$0xf]
    %v672 = vld [vmem:[%s658 + $0x78] sm:$0xf]
    %v673 = vld [vmem:[%s658 + $0x80] sm:$0xf]
    %v674 = vld [vmem:[%s658 + $0x88] sm:$0xf]
    %v675 = vld [vmem:[%s658 + $0x4] sm:$0x1]
    %v676 = vld [vmem:[%s658 + $0xc] sm:$0x1]
    %v677 = vld [vmem:[%s658 + $0x14] sm:$0x1]
    %v678 = vld [vmem:[%s658 + $0x1c] sm:$0x1]
    %v679 = vld [vmem:[%s658 + $0x24] sm:$0x1]
    %v680 = vld [vmem:[%s658 + $0x2c] sm:$0x1]
    %v681 = vld [vmem:[%s658 + $0x34] sm:$0x1]
    %v682 = vld [vmem:[%s658 + $0x3c] sm:$0x1]
    %v683 = vld [vmem:[%s658 + $0x54] sm:$0x1]
    %v684 = vld [vmem:[%s658 + $0x5c] sm:$0x1]
    %v685 = vld [vmem:[%s658 + $0x64] sm:$0x1]
    %v686 = vld [vmem:[%s658 + $0x6c] sm:$0x1]
    %v687 = vld [vmem:[%s658 + $0x74] sm:$0x1]
    %v688 = vld [vmem:[%s658 + $0x7c] sm:$0x1]
    %v689 = vld [vmem:[%s658 + $0x84] sm:$0x1]
    %v690 = vld [vmem:[%s658 + $0x8c] sm:$0x1]
    %v692 = vshrl.u32 %v659, 16
    %v694 = vrot.slane %v692, 4
    %v695 = vshll.u32 %v659, 16
    %v697 = vrot.slane %v695, 5
    %v698 = vor.u32 %v694, %v697
    %v699 = vrot.slane %v698, 4
    %v701 = vshll.u32 %v675, 16
    %v703 = vrot.slane %v701, 5
    %v704 = vsel %vm206, %v699, %v703
    %v706 = vshrl.u32 %v660, 16
    %v708 = vrot.slane %v706, 4
    %v709 = vshll.u32 %v660, 16
    %v711 = vrot.slane %v709, 5
    %v712 = vor.u32 %v708, %v711
    %v713 = vrot.slane %v712, 4
    %v715 = vshll.u32 %v676, 16
    %v717 = vrot.slane %v715, 5
    %v718 = vsel %vm206, %v713, %v717
    %v720 = vshrl.u32 %v661, 16
    %v722 = vrot.slane %v720, 4
    %v723 = vshll.u32 %v661, 16
    %v725 = vrot.slane %v723, 5
    %v726 = vor.u32 %v722, %v725
    %v727 = vrot.slane %v726, 4
    %v729 = vshll.u32 %v677, 16
    %v731 = vrot.slane %v729, 5
    %v732 = vsel %vm206, %v727, %v731
    %v734 = vshrl.u32 %v662, 16
    %v736 = vrot.slane %v734, 4
    %v737 = vshll.u32 %v662, 16
    %v739 = vrot.slane %v737, 5
    %v740 = vor.u32 %v736, %v739
    %v741 = vrot.slane %v740, 4
    %v743 = vshll.u32 %v678, 16
    %v745 = vrot.slane %v743, 5
    %v746 = vsel %vm206, %v741, %v745
    %v748 = vshrl.u32 %v663, 16
    %v750 = vrot.slane %v748, 4
    %v751 = vshll.u32 %v663, 16
    %v753 = vrot.slane %v751, 5
    %v754 = vor.u32 %v750, %v753
    %v755 = vrot.slane %v754, 4
    %v757 = vshll.u32 %v679, 16
    %v759 = vrot.slane %v757, 5
    %v760 = vsel %vm206, %v755, %v759
    %v762 = vshrl.u32 %v664, 16
    %v764 = vrot.slane %v762, 4
    %v765 = vshll.u32 %v664, 16
    %v767 = vrot.slane %v765, 5
    %v768 = vor.u32 %v764, %v767
    %v769 = vrot.slane %v768, 4
    %v771 = vshll.u32 %v680, 16
    %v773 = vrot.slane %v771, 5
    %v774 = vsel %vm206, %v769, %v773
    %v776 = vshrl.u32 %v665, 16
    %v778 = vrot.slane %v776, 4
    %v779 = vshll.u32 %v665, 16
    %v781 = vrot.slane %v779, 5
    %v782 = vor.u32 %v778, %v781
    %v783 = vrot.slane %v782, 4
    %v785 = vshll.u32 %v681, 16
    %v787 = vrot.slane %v785, 5
    %v788 = vsel %vm206, %v783, %v787
    %v790 = vshrl.u32 %v666, 16
    %v792 = vrot.slane %v790, 4
    %v793 = vshll.u32 %v666, 16
    %v795 = vrot.slane %v793, 5
    %v796 = vor.u32 %v792, %v795
    %v797 = vrot.slane %v796, 4
    %v799 = vshll.u32 %v682, 16
    %v801 = vrot.slane %v799, 5
    %v802 = vsel %vm206, %v797, %v801
    %v804 = vshrl.u32 %v667, 16
    %v806 = vrot.slane %v804, 4
    %v807 = vshll.u32 %v667, 16
    %v809 = vrot.slane %v807, 5
    %v810 = vor.u32 %v806, %v809
    %v811 = vrot.slane %v810, 4
    %v813 = vshll.u32 %v683, 16
    %v815 = vrot.slane %v813, 5
    %v816 = vsel %vm206, %v811, %v815
    %v818 = vshrl.u32 %v668, 16
    %v820 = vrot.slane %v818, 4
    %v821 = vshll.u32 %v668, 16
    %v823 = vrot.slane %v821, 5
    %v824 = vor.u32 %v820, %v823
    %v825 = vrot.slane %v824, 4
    %v827 = vshll.u32 %v684, 16
    %v829 = vrot.slane %v827, 5
    %v830 = vsel %vm206, %v825, %v829
    %v832 = vshrl.u32 %v669, 16
    %v834 = vrot.slane %v832, 4
    %v835 = vshll.u32 %v669, 16
    %v837 = vrot.slane %v835, 5
    %v838 = vor.u32 %v834, %v837
    %v839 = vrot.slane %v838, 4
    %v841 = vshll.u32 %v685, 16
    %v843 = vrot.slane %v841, 5
    %v844 = vsel %vm206, %v839, %v843
    %v846 = vshrl.u32 %v670, 16
    %v848 = vrot.slane %v846, 4
    %v849 = vshll.u32 %v670, 16
    %v851 = vrot.slane %v849, 5
    %v852 = vor.u32 %v848, %v851
    %v853 = vrot.slane %v852, 4
    %v855 = vshll.u32 %v686, 16
    %v857 = vrot.slane %v855, 5
    %v858 = vsel %vm206, %v853, %v857
    %v860 = vshrl.u32 %v671, 16
    %v862 = vrot.slane %v860, 4
    %v863 = vshll.u32 %v671, 16
    %v865 = vrot.slane %v863, 5
    %v866 = vor.u32 %v862, %v865
    %v867 = vrot.slane %v866, 4
    %v869 = vshll.u32 %v687, 16
    %v871 = vrot.slane %v869, 5
    %v872 = vsel %vm206, %v867, %v871
    %v874 = vshrl.u32 %v672, 16
    %v876 = vrot.slane %v874, 4
    %v877 = vshll.u32 %v672, 16
    %v879 = vrot.slane %v877, 5
    %v880 = vor.u32 %v876, %v879
    %v881 = vrot.slane %v880, 4
    %v883 = vshll.u32 %v688, 16
    %v885 = vrot.slane %v883, 5
    %v886 = vsel %vm206, %v881, %v885
    %v888 = vshrl.u32 %v673, 16
    %v890 = vrot.slane %v888, 4
    %v891 = vshll.u32 %v673, 16
    %v893 = vrot.slane %v891, 5
    %v894 = vor.u32 %v890, %v893
    %v895 = vrot.slane %v894, 4
    %v897 = vshll.u32 %v689, 16
    %v899 = vrot.slane %v897, 5
    %v900 = vsel %vm206, %v895, %v899
    %v902 = vshrl.u32 %v674, 16
    %v904 = vrot.slane %v902, 4
    %v905 = vshll.u32 %v674, 16
    %v907 = vrot.slane %v905, 5
    %v908 = vor.u32 %v904, %v907
    %v909 = vrot.slane %v908, 4
    %v911 = vshll.u32 %v690, 16
    %v913 = vrot.slane %v911, 5
    %v914 = vsel %vm206, %v909, %v913
    %v915 = vld [vmem:[%s658] sm:$0xe]
    %v916 = vld [vmem:[%s658 + $0x8] sm:$0xe]
    %v917 = vld [vmem:[%s658 + $0x10] sm:$0xe]
    %v918 = vld [vmem:[%s658 + $0x18] sm:$0xe]
    %v919 = vld [vmem:[%s658 + $0x20] sm:$0xe]
    %v920 = vld [vmem:[%s658 + $0x28] sm:$0xe]
    %v921 = vld [vmem:[%s658 + $0x30] sm:$0xe]
    %v922 = vld [vmem:[%s658 + $0x38] sm:$0xe]
    %v923 = vld [vmem:[%s658 + $0x50] sm:$0xe]
    %v924 = vld [vmem:[%s658 + $0x58] sm:$0xe]
    %v925 = vld [vmem:[%s658 + $0x60] sm:$0xe]
    %v926 = vld [vmem:[%s658 + $0x68] sm:$0xe]
    %v927 = vld [vmem:[%s658 + $0x70] sm:$0xe]
    %v928 = vld [vmem:[%s658 + $0x78] sm:$0xe]
    %v929 = vld [vmem:[%s658 + $0x80] sm:$0xe]
    %v930 = vld [vmem:[%s658 + $0x88] sm:$0xe]
    %v963 = vrot.slane %v915, 5
    %v964 = vrot.slane %v963, 4
    %v965 = vrot.slane %v675, 5
    %v966 = vsel %vm481, %v964, %v965
    %v967 = vrot.slane %v916, 5
    %v968 = vrot.slane %v967, 4
    %v969 = vrot.slane %v676, 5
    %v970 = vsel %vm481, %v968, %v969
    %v971 = vrot.slane %v917, 5
    %v972 = vrot.slane %v971, 4
    %v973 = vrot.slane %v677, 5
    %v974 = vsel %vm481, %v972, %v973
    %v975 = vrot.slane %v918, 5
    %v976 = vrot.slane %v975, 4
    %v977 = vrot.slane %v678, 5
    %v978 = vsel %vm481, %v976, %v977
    %v979 = vrot.slane %v919, 5
    %v980 = vrot.slane %v979, 4
    %v981 = vrot.slane %v679, 5
    %v982 = vsel %vm481, %v980, %v981
    %v983 = vrot.slane %v920, 5
    %v984 = vrot.slane %v983, 4
    %v985 = vrot.slane %v680, 5
    %v986 = vsel %vm481, %v984, %v985
    %v987 = vrot.slane %v921, 5
    %v988 = vrot.slane %v987, 4
    %v989 = vrot.slane %v681, 5
    %v990 = vsel %vm481, %v988, %v989
    %v991 = vrot.slane %v922, 5
    %v992 = vrot.slane %v991, 4
    %v993 = vrot.slane %v682, 5
    %v994 = vsel %vm481, %v992, %v993
    %v995 = vrot.slane %v923, 5
    %v996 = vrot.slane %v995, 4
    %v997 = vrot.slane %v683, 5
    %v998 = vsel %vm481, %v996, %v997
    %v999 = vrot.slane %v924, 5
    %v1000 = vrot.slane %v999, 4
    %v1001 = vrot.slane %v684, 5
    %v1002 = vsel %vm481, %v1000, %v1001
    %v1003 = vrot.slane %v925, 5
    %v1004 = vrot.slane %v1003, 4
    %v1005 = vrot.slane %v685, 5
    %v1006 = vsel %vm481, %v1004, %v1005
    %v1007 = vrot.slane %v926, 5
    %v1008 = vrot.slane %v1007, 4
    %v1009 = vrot.slane %v686, 5
    %v1010 = vsel %vm481, %v1008, %v1009
    %v1011 = vrot.slane %v927, 5
    %v1012 = vrot.slane %v1011, 4
    %v1013 = vrot.slane %v687, 5
    %v1014 = vsel %vm481, %v1012, %v1013
    %v1015 = vrot.slane %v928, 5
    %v1016 = vrot.slane %v1015, 4
    %v1017 = vrot.slane %v688, 5
    %v1018 = vsel %vm481, %v1016, %v1017
    %v1019 = vrot.slane %v929, 5
    %v1020 = vrot.slane %v1019, 4
    %v1021 = vrot.slane %v689, 5
    %v1022 = vsel %vm481, %v1020, %v1021
    %v1023 = vrot.slane %v930, 5
    %v1024 = vrot.slane %v1023, 4
    %v1025 = vrot.slane %v690, 5
    %v1026 = vsel %vm481, %v1024, %v1025
    %v1043 = vunpack.c.l.b16 %v659
    %v1044 = vunpack.c.l.b16 %v660
    %v1045 = vunpack.c.l.b16 %v661
    %v1046 = vunpack.c.l.b16 %v662
    %v1047 = vunpack.c.l.b16 %v663
    %v1048 = vunpack.c.l.b16 %v664
    %v1049 = vunpack.c.l.b16 %v665
    %v1050 = vunpack.c.l.b16 %v666
    %v1051 = vunpack.c.l.b16 %v667
    %v1052 = vunpack.c.l.b16 %v668
    %v1053 = vunpack.c.l.b16 %v669
    %v1054 = vunpack.c.l.b16 %v670
    %v1055 = vunpack.c.l.b16 %v671
    %v1056 = vunpack.c.l.b16 %v672
    %v1057 = vunpack.c.l.b16 %v673
    %v1058 = vunpack.c.l.b16 %v674
    %v1059 = vpack.c.b16 %v1044, %v1043
    %v1060 = vpack.c.b16 %v1046, %v1045
    %v1061 = vpack.c.b16 %v1048, %v1047
    %v1062 = vpack.c.b16 %v1050, %v1049
    %v1063 = vpack.c.b16 %v1052, %v1051
    %v1064 = vpack.c.b16 %v1054, %v1053
    %v1065 = vpack.c.b16 %v1056, %v1055
    %v1066 = vpack.c.b16 %v1058, %v1057
    %v1075 = vunpack.c.l.b16 %v704
    %v1076 = vunpack.c.l.b16 %v718
    %v1077 = vunpack.c.l.b16 %v732
    %v1078 = vunpack.c.l.b16 %v746
    %v1079 = vunpack.c.l.b16 %v760
    %v1080 = vunpack.c.l.b16 %v774
    %v1081 = vunpack.c.l.b16 %v788
    %v1082 = vunpack.c.l.b16 %v802
    %v1083 = vunpack.c.l.b16 %v816
    %v1084 = vunpack.c.l.b16 %v830
    %v1085 = vunpack.c.l.b16 %v844
    %v1086 = vunpack.c.l.b16 %v858
    %v1087 = vunpack.c.l.b16 %v872
    %v1088 = vunpack.c.l.b16 %v886
    %v1089 = vunpack.c.l.b16 %v900
    %v1090 = vunpack.c.l.b16 %v914
    %v1091 = vpack.c.b16 %v1076, %v1075
    %v1092 = vpack.c.b16 %v1078, %v1077
    %v1093 = vpack.c.b16 %v1080, %v1079
    %v1094 = vpack.c.b16 %v1082, %v1081
    %v1095 = vpack.c.b16 %v1084, %v1083
    %v1096 = vpack.c.b16 %v1086, %v1085
    %v1097 = vpack.c.b16 %v1088, %v1087
    %v1098 = vpack.c.b16 %v1090, %v1089
    %v1107 = vunpack.c.l.b16 %v966
    %v1108 = vunpack.c.l.b16 %v970
    %v1109 = vunpack.c.l.b16 %v974
    %v1110 = vunpack.c.l.b16 %v978
    %v1111 = vunpack.c.l.b16 %v982
    %v1112 = vunpack.c.l.b16 %v986
    %v1113 = vunpack.c.l.b16 %v990
    %v1114 = vunpack.c.l.b16 %v994
    %v1115 = vunpack.c.l.b16 %v998
    %v1116 = vunpack.c.l.b16 %v1002
    %v1117 = vunpack.c.l.b16 %v1006
    %v1118 = vunpack.c.l.b16 %v1010
    %v1119 = vunpack.c.l.b16 %v1014
    %v1120 = vunpack.c.l.b16 %v1018
    %v1121 = vunpack.c.l.b16 %v1022
    %v1122 = vunpack.c.l.b16 %v1026
    %v1123 = vpack.c.b16 %v1108, %v1107
    %v1124 = vpack.c.b16 %v1110, %v1109
    %v1125 = vpack.c.b16 %v1112, %v1111
    %v1126 = vpack.c.b16 %v1114, %v1113
    %v1127 = vpack.c.b16 %v1116, %v1115
    %v1128 = vpack.c.b16 %v1118, %v1117
    %v1129 = vpack.c.b16 %v1120, %v1119
    %v1130 = vpack.c.b16 %v1122, %v1121
    %v1187 = vunpack.c.l.b16 %v76
    %v1188 = vunpack.c.l.b16 %v77
    %v1189 = vunpack.c.l.b16 %v78
    %v1190 = vunpack.c.l.b16 %v79
    %v1191 = vunpack.c.l.b16 %v80
    %v1192 = vunpack.c.l.b16 %v81
    %v1193 = vunpack.c.l.b16 %v82
    %v1194 = vunpack.c.l.b16 %v83
    %v1195 = vunpack.c.l.b16 %v84
    %v1196 = vunpack.c.l.b16 %v85
    %v1197 = vunpack.c.l.b16 %v86
    %v1198 = vunpack.c.l.b16 %v87
    %v1199 = vunpack.c.l.b16 %v88
    %v1200 = vunpack.c.l.b16 %v89
    %v1201 = vunpack.c.l.b16 %v90
    %v1202 = vunpack.c.l.b16 %v91
    %v1203 = vunpack.c.l.b16 %v92
    %v1204 = vunpack.c.l.b16 %v93
    %v1205 = vunpack.c.l.b16 %v94
    %v1206 = vunpack.c.l.b16 %v95
    %v1207 = vunpack.c.l.b16 %v96
    %v1208 = vunpack.c.l.b16 %v97
    %v1209 = vunpack.c.l.b16 %v98
    %v1210 = vunpack.c.l.b16 %v99
    %v1211 = vunpack.c.l.b16 %v100
    %v1212 = vunpack.c.l.b16 %v101
    %v1213 = vunpack.c.l.b16 %v102
    %v1214 = vunpack.c.l.b16 %v103
    %v1215 = vunpack.c.l.b16 %v104
    %v1216 = vunpack.c.l.b16 %v105
    %v1217 = vunpack.c.l.b16 %v106
    %v1218 = vunpack.c.l.b16 %v107
    %v1219 = vunpack.c.l.b16 %v108
    %v1220 = vunpack.c.l.b16 %v109
    %v1221 = vunpack.c.l.b16 %v110
    %v1222 = vunpack.c.l.b16 %v111
    %v1223 = vunpack.c.l.b16 %v112
    %v1224 = vunpack.c.l.b16 %v113
    %v1225 = vunpack.c.l.b16 %v114
    %v1226 = vunpack.c.l.b16 %v115
    %v1227 = vunpack.c.l.b16 %v116
    %v1228 = vunpack.c.l.b16 %v117
    %v1229 = vunpack.c.l.b16 %v118
    %v1230 = vunpack.c.l.b16 %v119
    %v1231 = vunpack.c.l.b16 %v120
    %v1232 = vunpack.c.l.b16 %v121
    %v1233 = vunpack.c.l.b16 %v122
    %v1234 = vunpack.c.l.b16 %v123
    %v1235 = vpack.c.b16 %v1188, %v1187
    %v1236 = vpack.c.b16 %v1190, %v1189
    %v1237 = vpack.c.b16 %v1192, %v1191
    %v1238 = vpack.c.b16 %v1194, %v1193
    %v1239 = vpack.c.b16 %v1196, %v1195
    %v1240 = vpack.c.b16 %v1198, %v1197
    %v1241 = vpack.c.b16 %v1200, %v1199
    %v1242 = vpack.c.b16 %v1202, %v1201
    %v1243 = vpack.c.b16 %v1204, %v1203
    %v1244 = vpack.c.b16 %v1206, %v1205
    %v1245 = vpack.c.b16 %v1208, %v1207
    %v1246 = vpack.c.b16 %v1210, %v1209
    %v1247 = vpack.c.b16 %v1212, %v1211
    %v1248 = vpack.c.b16 %v1214, %v1213
    %v1249 = vpack.c.b16 %v1216, %v1215
    %v1250 = vpack.c.b16 %v1218, %v1217
    %v1251 = vpack.c.b16 %v1220, %v1219
    %v1252 = vpack.c.b16 %v1222, %v1221
    %v1253 = vpack.c.b16 %v1224, %v1223
    %v1254 = vpack.c.b16 %v1226, %v1225
    %v1255 = vpack.c.b16 %v1228, %v1227
    %v1256 = vpack.c.b16 %v1230, %v1229
    %v1257 = vpack.c.b16 %v1232, %v1231
    %v1258 = vpack.c.b16 %v1234, %v1233
    %1283 = vmatprep.subr.bf16.mxu0 0
    %1284 = vmatpush1.bf16.msra.mxu0 %v1235
    %1285 = vmatprep.subr.bf16.mxu0 0
    %1286 = vmatpush1.bf16.msra.mxu0 %v1236
    %1287 = vmatprep.subr.bf16.mxu0 0
    %1288 = vmatpush1.bf16.msra.mxu0 %v1237
    %1289 = vmatprep.subr.bf16.mxu0 0
    %1290 = vmatpush1.bf16.msra.mxu0 %v1238
    %1291 = vmatprep.subr.bf16.mxu0 0
    %1292 = vmatpush1.bf16.msra.mxu0 %v1239
    %1293 = vmatprep.subr.bf16.mxu0 0
    %1294 = vmatpush1.bf16.msra.mxu0 %v1240
    %1295 = vmatprep.subr.bf16.mxu0 0
    %1296 = vmatpush1.bf16.msra.mxu0 %v1241
    %1297 = vmatprep.subr.bf16.mxu0 0
    %1298 = vmatpush1.bf16.msra.mxu0 %v1242
    %1299 = vmatprep.subr.bf16.mxu0 0
    %1300 = vmatpush1.bf16.msra.mxu0 %v1243
    %1301 = vmatprep.subr.bf16.mxu0 0
    %1302 = vmatpush1.bf16.msra.mxu0 %v1244
    %1303 = vmatprep.subr.bf16.mxu0 0
    %1304 = vmatpush1.bf16.msra.mxu0 %v1245
    %1305 = vmatprep.subr.bf16.mxu0 0
    %1306 = vmatpush1.bf16.msra.mxu0 %v1246
    %1307 = vmatprep.subr.bf16.mxu0 0
    %1308 = vmatpush1.bf16.msra.mxu0 %v1247
    %1309 = vmatprep.subr.bf16.mxu0 0
    %1310 = vmatpush1.bf16.msra.mxu0 %v1248
    %1311 = vmatprep.subr.bf16.mxu0 0
    %1312 = vmatpush1.bf16.msra.mxu0 %v1249
    %1313 = vmatprep.subr.bf16.mxu0 0
    %1314 = vmatpush1.bf16.msra.mxu0 %v1250
    %1315 = vmatprep.mubr.bf16.mxu0 %v1091
    %1316 = vmatmul.mubr.bf16.gmra.mrb[0].mxu0 %v1059
    %v1317 = vpop.f32.mrb[0].mxu0
    %v1318 = vadd.f32 0.0, %v1317
    %v1319 = vpop.f32.mrb[0].mxu0
    %v1320 = vpop.f32.mrb[0].mxu0
    %v1321 = vadd.f32 0.0, %v1320
    %v1322 = vpop.f32.mrb[0].mxu0
    %1323 = vmatprep.mubr.bf16.mxu0 %v1092
    %1324 = vmatmul.mubr.bf16.gmra.mrb[0].mxu0 %v1060
    %v1325 = vpop.f32.mrb[0].mxu0
    %v1326 = vadd.f32 0.0, %v1325
    %v1327 = vpop.f32.mrb[0].mxu0
    %v1328 = vpop.f32.mrb[0].mxu0
    %v1329 = vadd.f32 0.0, %v1328
    %v1330 = vpop.f32.mrb[0].mxu0
    %1331 = vmatprep.mubr.bf16.mxu0 %v1093
    %1332 = vmatmul.mubr.bf16.gmra.mrb[0].mxu0 %v1061
    %v1333 = vpop.f32.mrb[0].mxu0
    %v1334 = vadd.f32 0.0, %v1333
    %v1335 = vpop.f32.mrb[0].mxu0
    %v1336 = vpop.f32.mrb[0].mxu0
    %v1337 = vadd.f32 0.0, %v1336
    %v1338 = vpop.f32.mrb[0].mxu0
    %1339 = vmatprep.mubr.bf16.mxu0 %v1094
    %1340 = vmatmul.mubr.bf16.gmra.mrb[0].mxu0 %v1062
    %v1341 = vpop.f32.mrb[0].mxu0
    %v1342 = vadd.f32 0.0, %v1341
    %v1343 = vpop.f32.mrb[0].mxu0
    %v1344 = vpop.f32.mrb[0].mxu0
    %v1345 = vadd.f32 0.0, %v1344
    %v1346 = vpop.f32.mrb[0].mxu0
    %1347 = vmatprep.mubr.bf16.mxu0 %v1095
    %1348 = vmatmul.mubr.bf16.gmra.mrb[0].mxu0 %v1063
    %v1349 = vpop.f32.mrb[0].mxu0
    %v1350 = vadd.f32 0.0, %v1349
    %v1351 = vpop.f32.mrb[0].mxu0
    %v1352 = vpop.f32.mrb[0].mxu0
    %v1353 = vadd.f32 0.0, %v1352
    %v1354 = vpop.f32.mrb[0].mxu0
    %1355 = vmatprep.mubr.bf16.mxu0 %v1096
    %1356 = vmatmul.mubr.bf16.gmra.mrb[0].mxu0 %v1064
    %v1357 = vpop.f32.mrb[0].mxu0
    %v1358 = vadd.f32 0.0, %v1357
    %v1359 = vpop.f32.mrb[0].mxu0
    %v1360 = vpop.f32.mrb[0].mxu0
    %v1361 = vadd.f32 0.0, %v1360
    %v1362 = vpop.f32.mrb[0].mxu0
    %1363 = vmatprep.mubr.bf16.mxu0 %v1097
    %1364 = vmatmul.mubr.bf16.gmra.mrb[0].mxu0 %v1065
    %v1365 = vpop.f32.mrb[0].mxu0
    %v1366 = vadd.f32 0.0, %v1365
    %v1367 = vpop.f32.mrb[0].mxu0
    %v1368 = vpop.f32.mrb[0].mxu0
    %v1369 = vadd.f32 0.0, %v1368
    %v1370 = vpop.f32.mrb[0].mxu0
    %1371 = vmatprep.mubr.bf16.mxu0 %v1098
    %1372 = vmatmul.mubr.bf16.gmra.mrb[0].mxu0 %v1066
    %v1373 = vpop.f32.mrb[0].mxu0
    %v1374 = vadd.f32 0.0, %v1373
    %v1375 = vpop.f32.mrb[0].mxu0
    %v1376 = vpop.f32.mrb[0].mxu0
    %v1377 = vadd.f32 0.0, %v1376
    %v1378 = vpop.f32.mrb[0].mxu0
    %1379 = vdwg.mxu0
    %1380 = vmatprep.subr.bf16.mxu0 0
    %1381 = vmatpush1.bf16.msra.mxu0 %v1251
    %1382 = vmatprep.subr.bf16.mxu0 0
    %1383 = vmatpush1.bf16.msra.mxu0 %v1252
    %1384 = vmatprep.subr.bf16.mxu0 0
    %1385 = vmatpush1.bf16.msra.mxu0 %v1253
    %1386 = vmatprep.subr.bf16.mxu0 0
    %1387 = vmatpush1.bf16.msra.mxu0 %v1254
    %1388 = vmatprep.subr.bf16.mxu0 0
    %1389 = vmatpush1.bf16.msra.mxu0 %v1255
    %1390 = vmatprep.subr.bf16.mxu0 0
    %1391 = vmatpush1.bf16.msra.mxu0 %v1256
    %1392 = vmatprep.subr.bf16.mxu0 0
    %1393 = vmatpush1.bf16.msra.mxu0 %v1257
    %1394 = vmatprep.subr.bf16.mxu0 0
    %1395 = vmatpush1.bf16.msra.mxu0 %v1258
    %1396 = vmatprep.subr.bf16.mxu0 0
    %1397 = vmatpush1.bf16.msra.mxu0 0
    %1398 = vmatprep.subr.bf16.mxu0 0
    %1399 = vmatpush1.bf16.msra.mxu0 0
    %1400 = vmatprep.subr.bf16.mxu0 0
    %1401 = vmatpush1.bf16.msra.mxu0 0
    %1402 = vmatprep.subr.bf16.mxu0 0
    %1403 = vmatpush1.bf16.msra.mxu0 0
    %1404 = vmatprep.subr.bf16.mxu0 0
    %1405 = vmatpush1.bf16.msra.mxu0 0
    %1406 = vmatprep.subr.bf16.mxu0 0
    %1407 = vmatpush1.bf16.msra.mxu0 0
    %1408 = vmatprep.subr.bf16.mxu0 0
    %1409 = vmatpush1.bf16.msra.mxu0 0
    %1410 = vmatprep.subr.bf16.mxu0 0
    %1411 = vmatpush1.bf16.msra.mxu0 0
    %1412 = vmatprep.mubr.bf16.mxu0 0
    %1413 = vmatmul.mubr.bf16.gmra.mrb[0].mxu0 %v1123
    %v1414 = vpop.f32.mrb[0].mxu0
    %v1415 = vadd.f32 %v1318, %v1414
    %v1416 = vpop.f32.mrb[0].mxu0
    %v1417 = vpop.f32.mrb[0].mxu0
    %v1418 = vadd.f32 %v1321, %v1417
    %v1419 = vpop.f32.mrb[0].mxu0
    %1420 = vmatprep.mubr.bf16.mxu0 0
    %1421 = vmatmul.mubr.bf16.gmra.mrb[0].mxu0 %v1124
    %v1422 = vpop.f32.mrb[0].mxu0
    %v1423 = vadd.f32 %v1326, %v1422
    %v1424 = vpop.f32.mrb[0].mxu0
    %v1425 = vpop.f32.mrb[0].mxu0
    %v1426 = vadd.f32 %v1329, %v1425
    %v1427 = vpop.f32.mrb[0].mxu0
    %1428 = vmatprep.mubr.bf16.mxu0 0
    %1429 = vmatmul.mubr.bf16.gmra.mrb[0].mxu0 %v1125
    %v1430 = vpop.f32.mrb[0].mxu0
    %v1431 = vadd.f32 %v1334, %v1430
    %v1432 = vpop.f32.mrb[0].mxu0
    %v1433 = vpop.f32.mrb[0].mxu0
    %v1434 = vadd.f32 %v1337, %v1433
    %v1435 = vpop.f32.mrb[0].mxu0
    %1436 = vmatprep.mubr.bf16.mxu0 0
    %1437 = vmatmul.mubr.bf16.gmra.mrb[0].mxu0 %v1126
    %v1438 = vpop.f32.mrb[0].mxu0
    %v1439 = vadd.f32 %v1342, %v1438
    %v1440 = vpop.f32.mrb[0].mxu0
    %v1441 = vpop.f32.mrb[0].mxu0
    %v1442 = vadd.f32 %v1345, %v1441
    %v1443 = vpop.f32.mrb[0].mxu0
    %1444 = vmatprep.mubr.bf16.mxu0 0
    %1445 = vmatmul.mubr.bf16.gmra.mrb[0].mxu0 %v1127
    %v1446 = vpop.f32.mrb[0].mxu0
    %v1447 = vadd.f32 %v1350, %v1446
    %v1448 = vpop.f32.mrb[0].mxu0
    %v1449 = vpop.f32.mrb[0].mxu0
    %v1450 = vadd.f32 %v1353, %v1449
    %v1451 = vpop.f32.mrb[0].mxu0
    %1452 = vmatprep.mubr.bf16.mxu0 0
    %1453 = vmatmul.mubr.bf16.gmra.mrb[0].mxu0 %v1128
    %v1454 = vpop.f32.mrb[0].mxu0
    %v1455 = vadd.f32 %v1358, %v1454
    %v1456 = vpop.f32.mrb[0].mxu0
    %v1457 = vpop.f32.mrb[0].mxu0
    %v1458 = vadd.f32 %v1361, %v1457
    %v1459 = vpop.f32.mrb[0].mxu0
    %1460 = vmatprep.mubr.bf16.mxu0 0
    %1461 = vmatmul.mubr.bf16.gmra.mrb[0].mxu0 %v1129
    %v1462 = vpop.f32.mrb[0].mxu0
    %v1463 = vadd.f32 %v1366, %v1462
    %v1464 = vpop.f32.mrb[0].mxu0
    %v1465 = vpop.f32.mrb[0].mxu0
    %v1466 = vadd.f32 %v1369, %v1465
    %v1467 = vpop.f32.mrb[0].mxu0
    %1468 = vmatprep.mubr.bf16.mxu0 0
    %1469 = vmatmul.mubr.bf16.gmra.mrb[0].mxu0 %v1130
    %v1470 = vpop.f32.mrb[0].mxu0
    %v1471 = vadd.f32 %v1374, %v1470
    %v1472 = vpop.f32.mrb[0].mxu0
    %v1473 = vpop.f32.mrb[0].mxu0
    %v1474 = vadd.f32 %v1377, %v1473
    %v1475 = vpop.f32.mrb[0].mxu0
    %1476 = vdwg.mxu0
    %v1525 = vunpack.c.l.b16 %v28
    %v1526 = vunpack.c.l.b16 %v29
    %v1527 = vunpack.c.l.b16 %v30
    %v1528 = vunpack.c.l.b16 %v31
    %v1529 = vunpack.c.l.b16 %v32
    %v1530 = vunpack.c.l.b16 %v33
    %v1531 = vunpack.c.l.b16 %v34
    %v1532 = vunpack.c.l.b16 %v35
    %v1533 = vunpack.c.l.b16 %v36
    %v1534 = vunpack.c.l.b16 %v37
    %v1535 = vunpack.c.l.b16 %v38
    %v1536 = vunpack.c.l.b16 %v39
    %v1537 = vunpack.c.l.b16 %v40
    %v1538 = vunpack.c.l.b16 %v41
    %v1539 = vunpack.c.l.b16 %v42
    %v1540 = vunpack.c.l.b16 %v43
    %v1541 = vunpack.c.l.b16 %v44
    %v1542 = vunpack.c.l.b16 %v45
    %v1543 = vunpack.c.l.b16 %v46
    %v1544 = vunpack.c.l.b16 %v47
    %v1545 = vunpack.c.l.b16 %v48
    %v1546 = vunpack.c.l.b16 %v49
    %v1547 = vunpack.c.l.b16 %v50
    %v1548 = vunpack.c.l.b16 %v51
    %v1549 = vunpack.c.l.b16 %v52
    %v1550 = vunpack.c.l.b16 %v53
    %v1551 = vunpack.c.l.b16 %v54
    %v1552 = vunpack.c.l.b16 %v55
    %v1553 = vunpack.c.l.b16 %v56
    %v1554 = vunpack.c.l.b16 %v57
    %v1555 = vunpack.c.l.b16 %v58
    %v1556 = vunpack.c.l.b16 %v59
    %v1557 = vunpack.c.l.b16 %v60
    %v1558 = vunpack.c.l.b16 %v61
    %v1559 = vunpack.c.l.b16 %v62
    %v1560 = vunpack.c.l.b16 %v63
    %v1561 = vunpack.c.l.b16 %v64
    %v1562 = vunpack.c.l.b16 %v65
    %v1563 = vunpack.c.l.b16 %v66
    %v1564 = vunpack.c.l.b16 %v67
    %v1565 = vunpack.c.l.b16 %v68
    %v1566 = vunpack.c.l.b16 %v69
    %v1567 = vunpack.c.l.b16 %v70
    %v1568 = vunpack.c.l.b16 %v71
    %v1569 = vunpack.c.l.b16 %v72
    %v1570 = vunpack.c.l.b16 %v73
    %v1571 = vunpack.c.l.b16 %v74
    %v1572 = vunpack.c.l.b16 %v75
    %v1573 = vpack.c.b16 %v1526, %v1525
    %v1574 = vpack.c.b16 %v1528, %v1527
    %v1575 = vpack.c.b16 %v1530, %v1529
    %v1576 = vpack.c.b16 %v1532, %v1531
    %v1577 = vpack.c.b16 %v1534, %v1533
    %v1578 = vpack.c.b16 %v1536, %v1535
    %v1579 = vpack.c.b16 %v1538, %v1537
    %v1580 = vpack.c.b16 %v1540, %v1539
    %v1581 = vpack.c.b16 %v1542, %v1541
    %v1582 = vpack.c.b16 %v1544, %v1543
    %v1583 = vpack.c.b16 %v1546, %v1545
    %v1584 = vpack.c.b16 %v1548, %v1547
    %v1585 = vpack.c.b16 %v1550, %v1549
    %v1586 = vpack.c.b16 %v1552, %v1551
    %v1587 = vpack.c.b16 %v1554, %v1553
    %v1588 = vpack.c.b16 %v1556, %v1555
    %v1589 = vpack.c.b16 %v1558, %v1557
    %v1590 = vpack.c.b16 %v1560, %v1559
    %v1591 = vpack.c.b16 %v1562, %v1561
    %v1592 = vpack.c.b16 %v1564, %v1563
    %v1593 = vpack.c.b16 %v1566, %v1565
    %v1594 = vpack.c.b16 %v1568, %v1567
    %v1595 = vpack.c.b16 %v1570, %v1569
    %v1596 = vpack.c.b16 %v1572, %v1571
    %1621 = vmatprep.subr.bf16.mxu0 0
    %1622 = vmatpush1.bf16.msra.mxu0 %v1573
    %1623 = vmatprep.subr.bf16.mxu0 0
    %1624 = vmatpush1.bf16.msra.mxu0 %v1574
    %1625 = vmatprep.subr.bf16.mxu0 0
    %1626 = vmatpush1.bf16.msra.mxu0 %v1575
    %1627 = vmatprep.subr.bf16.mxu0 0
    %1628 = vmatpush1.bf16.msra.mxu0 %v1576
    %1629 = vmatprep.subr.bf16.mxu0 0
    %1630 = vmatpush1.bf16.msra.mxu0 %v1577
    %1631 = vmatprep.subr.bf16.mxu0 0
    %1632 = vmatpush1.bf16.msra.mxu0 %v1578
    %1633 = vmatprep.subr.bf16.mxu0 0
    %1634 = vmatpush1.bf16.msra.mxu0 %v1579
    %1635 = vmatprep.subr.bf16.mxu0 0
    %1636 = vmatpush1.bf16.msra.mxu0 %v1580
    %1637 = vmatprep.subr.bf16.mxu0 0
    %1638 = vmatpush1.bf16.msra.mxu0 %v1581
    %1639 = vmatprep.subr.bf16.mxu0 0
    %1640 = vmatpush1.bf16.msra.mxu0 %v1582
    %1641 = vmatprep.subr.bf16.mxu0 0
    %1642 = vmatpush1.bf16.msra.mxu0 %v1583
    %1643 = vmatprep.subr.bf16.mxu0 0
    %1644 = vmatpush1.bf16.msra.mxu0 %v1584
    %1645 = vmatprep.subr.bf16.mxu0 0
    %1646 = vmatpush1.bf16.msra.mxu0 %v1585
    %1647 = vmatprep.subr.bf16.mxu0 0
    %1648 = vmatpush1.bf16.msra.mxu0 %v1586
    %1649 = vmatprep.subr.bf16.mxu0 0
    %1650 = vmatpush1.bf16.msra.mxu0 %v1587
    %1651 = vmatprep.subr.bf16.mxu0 0
    %1652 = vmatpush1.bf16.msra.mxu0 %v1588
    %1653 = vmatprep.mubr.bf16.mxu0 %v610
    %1654 = vmatmul.mubr.bf16.gmra.mrb[0].mxu0 %v578
    %v1655 = vpop.f32.mrb[0].mxu0
    %v1656 = vadd.f32 %v1415, %v1655
    %v1657 = vpop.f32.mrb[0].mxu0
    %v1658 = vpop.f32.mrb[0].mxu0
    %v1659 = vadd.f32 %v1418, %v1658
    %v1660 = vpop.f32.mrb[0].mxu0
    %1661 = vmatprep.mubr.bf16.mxu0 %v611
    %1662 = vmatmul.mubr.bf16.gmra.mrb[0].mxu0 %v579
    %v1663 = vpop.f32.mrb[0].mxu0
    %v1664 = vadd.f32 %v1423, %v1663
    %v1665 = vpop.f32.mrb[0].mxu0
    %v1666 = vpop.f32.mrb[0].mxu0
    %v1667 = vadd.f32 %v1426, %v1666
    %v1668 = vpop.f32.mrb[0].mxu0
    %1669 = vmatprep.mubr.bf16.mxu0 %v612
    %1670 = vmatmul.mubr.bf16.gmra.mrb[0].mxu0 %v580
    %v1671 = vpop.f32.mrb[0].mxu0
    %v1672 = vadd.f32 %v1431, %v1671
    %v1673 = vpop.f32.mrb[0].mxu0
    %v1674 = vpop.f32.mrb[0].mxu0
    %v1675 = vadd.f32 %v1434, %v1674
    %v1676 = vpop.f32.mrb[0].mxu0
    %1677 = vmatprep.mubr.bf16.mxu0 %v613
    %1678 = vmatmul.mubr.bf16.gmra.mrb[0].mxu0 %v581
    %v1679 = vpop.f32.mrb[0].mxu0
    %v1680 = vadd.f32 %v1439, %v1679
    %v1681 = vpop.f32.mrb[0].mxu0
    %v1682 = vpop.f32.mrb[0].mxu0
    %v1683 = vadd.f32 %v1442, %v1682
    %v1684 = vpop.f32.mrb[0].mxu0
    %1685 = vmatprep.mubr.bf16.mxu0 %v614
    %1686 = vmatmul.mubr.bf16.gmra.mrb[0].mxu0 %v582
    %v1687 = vpop.f32.mrb[0].mxu0
    %v1688 = vadd.f32 %v1447, %v1687
    %v1689 = vpop.f32.mrb[0].mxu0
    %v1690 = vpop.f32.mrb[0].mxu0
    %v1691 = vadd.f32 %v1450, %v1690
    %v1692 = vpop.f32.mrb[0].mxu0
    %1693 = vmatprep.mubr.bf16.mxu0 %v615
    %1694 = vmatmul.mubr.bf16.gmra.mrb[0].mxu0 %v583
    %v1695 = vpop.f32.mrb[0].mxu0
    %v1696 = vadd.f32 %v1455, %v1695
    %v1697 = vpop.f32.mrb[0].mxu0
    %v1698 = vpop.f32.mrb[0].mxu0
    %v1699 = vadd.f32 %v1458, %v1698
    %v1700 = vpop.f32.mrb[0].mxu0
    %1701 = vmatprep.mubr.bf16.mxu0 %v616
    %1702 = vmatmul.mubr.bf16.gmra.mrb[0].mxu0 %v584
    %v1703 = vpop.f32.mrb[0].mxu0
    %v1704 = vadd.f32 %v1463, %v1703
    %v1705 = vpop.f32.mrb[0].mxu0
    %v1706 = vpop.f32.mrb[0].mxu0
    %v1707 = vadd.f32 %v1466, %v1706
    %v1708 = vpop.f32.mrb[0].mxu0
    %1709 = vmatprep.mubr.bf16.mxu0 %v617
    %1710 = vmatmul.mubr.bf16.gmra.mrb[0].mxu0 %v585
    %v1711 = vpop.f32.mrb[0].mxu0
    %v1712 = vadd.f32 %v1471, %v1711
    %v1713 = vpop.f32.mrb[0].mxu0
    %v1714 = vpop.f32.mrb[0].mxu0
    %v1715 = vadd.f32 %v1474, %v1714
    %v1716 = vpop.f32.mrb[0].mxu0
    %1717 = vdwg.mxu0
    %1718 = vmatprep.subr.bf16.mxu0 0
    %1719 = vmatpush1.bf16.msra.mxu0 %v1589
    %1720 = vmatprep.subr.bf16.mxu0 0
    %1721 = vmatpush1.bf16.msra.mxu0 %v1590
    %1722 = vmatprep.subr.bf16.mxu0 0
    %1723 = vmatpush1.bf16.msra.mxu0 %v1591
    %1724 = vmatprep.subr.bf16.mxu0 0
    %1725 = vmatpush1.bf16.msra.mxu0 %v1592
    %1726 = vmatprep.subr.bf16.mxu0 0
    %1727 = vmatpush1.bf16.msra.mxu0 %v1593
    %1728 = vmatprep.subr.bf16.mxu0 0
    %1729 = vmatpush1.bf16.msra.mxu0 %v1594
    %1730 = vmatprep.subr.bf16.mxu0 0
    %1731 = vmatpush1.bf16.msra.mxu0 %v1595
    %1732 = vmatprep.subr.bf16.mxu0 0
    %1733 = vmatpush1.bf16.msra.mxu0 %v1596
    %1734 = vmatprep.subr.bf16.mxu0 0
    %1735 = vmatpush1.bf16.msra.mxu0 0
    %1736 = vmatprep.subr.bf16.mxu0 0
    %1737 = vmatpush1.bf16.msra.mxu0 0
    %1738 = vmatprep.subr.bf16.mxu0 0
    %1739 = vmatpush1.bf16.msra.mxu0 0
    %1740 = vmatprep.subr.bf16.mxu0 0
    %1741 = vmatpush1.bf16.msra.mxu0 0
    %1742 = vmatprep.subr.bf16.mxu0 0
    %1743 = vmatpush1.bf16.msra.mxu0 0
    %1744 = vmatprep.subr.bf16.mxu0 0
    %1745 = vmatpush1.bf16.msra.mxu0 0
    %1746 = vmatprep.subr.bf16.mxu0 0
    %1747 = vmatpush1.bf16.msra.mxu0 0
    %1748 = vmatprep.subr.bf16.mxu0 0
    %1749 = vmatpush1.bf16.msra.mxu0 0
    %1750 = vmatprep.mubr.bf16.mxu0 0
    %1751 = vmatmul.mubr.bf16.gmra.mrb[0].mxu0 %v642
    %v1752 = vpop.f32.mrb[0].mxu0
    %v1753 = vadd.f32 %v1656, %v1752
    %v1754 = vpop.f32.mrb[0].mxu0
    %v1755 = vpop.f32.mrb[0].mxu0
    %v1756 = vadd.f32 %v1659, %v1755
    %v1757 = vpop.f32.mrb[0].mxu0
    %1758 = vmatprep.mubr.bf16.mxu0 0
    %1759 = vmatmul.mubr.bf16.gmra.mrb[0].mxu0 %v643
    %v1760 = vpop.f32.mrb[0].mxu0
    %v1761 = vadd.f32 %v1664, %v1760
    %v1762 = vpop.f32.mrb[0].mxu0
    %v1763 = vpop.f32.mrb[0].mxu0
    %v1764 = vadd.f32 %v1667, %v1763
    %v1765 = vpop.f32.mrb[0].mxu0
    %1766 = vmatprep.mubr.bf16.mxu0 0
    %1767 = vmatmul.mubr.bf16.gmra.mrb[0].mxu0 %v644
    %v1768 = vpop.f32.mrb[0].mxu0
    %v1769 = vadd.f32 %v1672, %v1768
    %v1770 = vpop.f32.mrb[0].mxu0
    %v1771 = vpop.f32.mrb[0].mxu0
    %v1772 = vadd.f32 %v1675, %v1771
    %v1773 = vpop.f32.mrb[0].mxu0
    %1774 = vmatprep.mubr.bf16.mxu0 0
    %1775 = vmatmul.mubr.bf16.gmra.mrb[0].mxu0 %v645
    %v1776 = vpop.f32.mrb[0].mxu0
    %v1777 = vadd.f32 %v1680, %v1776
    %v1778 = vpop.f32.mrb[0].mxu0
    %v1779 = vpop.f32.mrb[0].mxu0
    %v1780 = vadd.f32 %v1683, %v1779
    %v1781 = vpop.f32.mrb[0].mxu0
    %1782 = vmatprep.mubr.bf16.mxu0 0
    %1783 = vmatmul.mubr.bf16.gmra.mrb[0].mxu0 %v646
    %v1784 = vpop.f32.mrb[0].mxu0
    %v1785 = vadd.f32 %v1688, %v1784
    %v1786 = vpop.f32.mrb[0].mxu0
    %v1787 = vpop.f32.mrb[0].mxu0
    %v1788 = vadd.f32 %v1691, %v1787
    %v1789 = vpop.f32.mrb[0].mxu0
    %1790 = vmatprep.mubr.bf16.mxu0 0
    %1791 = vmatmul.mubr.bf16.gmra.mrb[0].mxu0 %v647
    %v1792 = vpop.f32.mrb[0].mxu0
    %v1793 = vadd.f32 %v1696, %v1792
    %v1794 = vpop.f32.mrb[0].mxu0
    %v1795 = vpop.f32.mrb[0].mxu0
    %v1796 = vadd.f32 %v1699, %v1795
    %v1797 = vpop.f32.mrb[0].mxu0
    %1798 = vmatprep.mubr.bf16.mxu0 0
    %1799 = vmatmul.mubr.bf16.gmra.mrb[0].mxu0 %v648
    %v1800 = vpop.f32.mrb[0].mxu0
    %v1801 = vadd.f32 %v1704, %v1800
    %v1802 = vpop.f32.mrb[0].mxu0
    %v1803 = vpop.f32.mrb[0].mxu0
    %v1804 = vadd.f32 %v1707, %v1803
    %v1805 = vpop.f32.mrb[0].mxu0
    %1806 = vmatprep.mubr.bf16.mxu0 0
    %1807 = vmatmul.mubr.bf16.gmra.mrb[0].mxu0 %v649
    %v1808 = vpop.f32.mrb[0].mxu0
    %v1809 = vadd.f32 %v1712, %v1808
    %v1810 = vpop.f32.mrb[0].mxu0
    %v1811 = vpop.f32.mrb[0].mxu0
    %v1812 = vadd.f32 %v1715, %v1811
    %v1813 = vpop.f32.mrb[0].mxu0
    %1814 = vdwg.mxu0
    %s1815 = scalar_lea.vmem %s0, 16
    %v1816 = vld [vmem:[%s1815] sm:$0xf]
    %v1817 = vld [vmem:[%s1815 + $0x8] sm:$0xf]
    %v1818 = vld [vmem:[%s1815 + $0x10] sm:$0xf]
    %v1819 = vld [vmem:[%s1815 + $0x18] sm:$0xf]
    %v1820 = vld [vmem:[%s1815 + $0x20] sm:$0xf]
    %v1821 = vld [vmem:[%s1815 + $0x28] sm:$0xf]
    %v1822 = vld [vmem:[%s1815 + $0x30] sm:$0xf]
    %v1823 = vld [vmem:[%s1815 + $0x38] sm:$0xf]
    %v1824 = vld [vmem:[%s1815 + $0x50] sm:$0xf]
    %v1825 = vld [vmem:[%s1815 + $0x58] sm:$0xf]
    %v1826 = vld [vmem:[%s1815 + $0x60] sm:$0xf]
    %v1827 = vld [vmem:[%s1815 + $0x68] sm:$0xf]
    %v1828 = vld [vmem:[%s1815 + $0x70] sm:$0xf]
    %v1829 = vld [vmem:[%s1815 + $0x78] sm:$0xf]
    %v1830 = vld [vmem:[%s1815 + $0x80] sm:$0xf]
    %v1831 = vld [vmem:[%s1815 + $0x88] sm:$0xf]
    %v1832 = vld [vmem:[%s1815 + $0x4] sm:$0x1]
    %v1833 = vld [vmem:[%s1815 + $0xc] sm:$0x1]
    %v1834 = vld [vmem:[%s1815 + $0x14] sm:$0x1]
    %v1835 = vld [vmem:[%s1815 + $0x1c] sm:$0x1]
    %v1836 = vld [vmem:[%s1815 + $0x24] sm:$0x1]
    %v1837 = vld [vmem:[%s1815 + $0x2c] sm:$0x1]
    %v1838 = vld [vmem:[%s1815 + $0x34] sm:$0x1]
    %v1839 = vld [vmem:[%s1815 + $0x3c] sm:$0x1]
    %v1840 = vld [vmem:[%s1815 + $0x54] sm:$0x1]
    %v1841 = vld [vmem:[%s1815 + $0x5c] sm:$0x1]
    %v1842 = vld [vmem:[%s1815 + $0x64] sm:$0x1]
    %v1843 = vld [vmem:[%s1815 + $0x6c] sm:$0x1]
    %v1844 = vld [vmem:[%s1815 + $0x74] sm:$0x1]
    %v1845 = vld [vmem:[%s1815 + $0x7c] sm:$0x1]
    %v1846 = vld [vmem:[%s1815 + $0x84] sm:$0x1]
    %v1847 = vld [vmem:[%s1815 + $0x8c] sm:$0x1]
    %v1849 = vshrl.u32 %v1816, 16
    %v1851 = vrot.slane %v1849, 4
    %v1852 = vshll.u32 %v1816, 16
    %v1854 = vrot.slane %v1852, 5
    %v1855 = vor.u32 %v1851, %v1854
    %v1856 = vrot.slane %v1855, 4
    %v1858 = vshll.u32 %v1832, 16
    %v1860 = vrot.slane %v1858, 5
    %v1861 = vsel %vm206, %v1856, %v1860
    %v1863 = vshrl.u32 %v1817, 16
    %v1865 = vrot.slane %v1863, 4
    %v1866 = vshll.u32 %v1817, 16
    %v1868 = vrot.slane %v1866, 5
    %v1869 = vor.u32 %v1865, %v1868
    %v1870 = vrot.slane %v1869, 4
    %v1872 = vshll.u32 %v1833, 16
    %v1874 = vrot.slane %v1872, 5
    %v1875 = vsel %vm206, %v1870, %v1874
    %v1877 = vshrl.u32 %v1818, 16
    %v1879 = vrot.slane %v1877, 4
    %v1880 = vshll.u32 %v1818, 16
    %v1882 = vrot.slane %v1880, 5
    %v1883 = vor.u32 %v1879, %v1882
    %v1884 = vrot.slane %v1883, 4
    %v1886 = vshll.u32 %v1834, 16
    %v1888 = vrot.slane %v1886, 5
    %v1889 = vsel %vm206, %v1884, %v1888
    %v1891 = vshrl.u32 %v1819, 16
    %v1893 = vrot.slane %v1891, 4
    %v1894 = vshll.u32 %v1819, 16
    %v1896 = vrot.slane %v1894, 5
    %v1897 = vor.u32 %v1893, %v1896
    %v1898 = vrot.slane %v1897, 4
    %v1900 = vshll.u32 %v1835, 16
    %v1902 = vrot.slane %v1900, 5
    %v1903 = vsel %vm206, %v1898, %v1902
    %v1905 = vshrl.u32 %v1820, 16
    %v1907 = vrot.slane %v1905, 4
    %v1908 = vshll.u32 %v1820, 16
    %v1910 = vrot.slane %v1908, 5
    %v1911 = vor.u32 %v1907, %v1910
    %v1912 = vrot.slane %v1911, 4
    %v1914 = vshll.u32 %v1836, 16
    %v1916 = vrot.slane %v1914, 5
    %v1917 = vsel %vm206, %v1912, %v1916
    %v1919 = vshrl.u32 %v1821, 16
    %v1921 = vrot.slane %v1919, 4
    %v1922 = vshll.u32 %v1821, 16
    %v1924 = vrot.slane %v1922, 5
    %v1925 = vor.u32 %v1921, %v1924
    %v1926 = vrot.slane %v1925, 4
    %v1928 = vshll.u32 %v1837, 16
    %v1930 = vrot.slane %v1928, 5
    %v1931 = vsel %vm206, %v1926, %v1930
    %v1933 = vshrl.u32 %v1822, 16
    %v1935 = vrot.slane %v1933, 4
    %v1936 = vshll.u32 %v1822, 16
    %v1938 = vrot.slane %v1936, 5
    %v1939 = vor.u32 %v1935, %v1938
    %v1940 = vrot.slane %v1939, 4
    %v1942 = vshll.u32 %v1838, 16
    %v1944 = vrot.slane %v1942, 5
    %v1945 = vsel %vm206, %v1940, %v1944
    %v1947 = vshrl.u32 %v1823, 16
    %v1949 = vrot.slane %v1947, 4
    %v1950 = vshll.u32 %v1823, 16
    %v1952 = vrot.slane %v1950, 5
    %v1953 = vor.u32 %v1949, %v1952
    %v1954 = vrot.slane %v1953, 4
    %v1956 = vshll.u32 %v1839, 16
    %v1958 = vrot.slane %v1956, 5
    %v1959 = vsel %vm206, %v1954, %v1958
    %v1961 = vshrl.u32 %v1824, 16
    %v1963 = vrot.slane %v1961, 4
    %v1964 = vshll.u32 %v1824, 16
    %v1966 = vrot.slane %v1964, 5
    %v1967 = vor.u32 %v1963, %v1966
    %v1968 = vrot.slane %v1967, 4
    %v1970 = vshll.u32 %v1840, 16
    %v1972 = vrot.slane %v1970, 5
    %v1973 = vsel %vm206, %v1968, %v1972
    %v1975 = vshrl.u32 %v1825, 16
    %v1977 = vrot.slane %v1975, 4
    %v1978 = vshll.u32 %v1825, 16
    %v1980 = vrot.slane %v1978, 5
    %v1981 = vor.u32 %v1977, %v1980
    %v1982 = vrot.slane %v1981, 4
    %v1984 = vshll.u32 %v1841, 16
    %v1986 = vrot.slane %v1984, 5
    %v1987 = vsel %vm206, %v1982, %v1986
    %v1989 = vshrl.u32 %v1826, 16
    %v1991 = vrot.slane %v1989, 4
    %v1992 = vshll.u32 %v1826, 16
    %v1994 = vrot.slane %v1992, 5
    %v1995 = vor.u32 %v1991, %v1994
    %v1996 = vrot.slane %v1995, 4
    %v1998 = vshll.u32 %v1842, 16
    %v2000 = vrot.slane %v1998, 5
    %v2001 = vsel %vm206, %v1996, %v2000
    %v2003 = vshrl.u32 %v1827, 16
    %v2005 = vrot.slane %v2003, 4
    %v2006 = vshll.u32 %v1827, 16
    %v2008 = vrot.slane %v2006, 5
    %v2009 = vor.u32 %v2005, %v2008
    %v2010 = vrot.slane %v2009, 4
    %v2012 = vshll.u32 %v1843, 16
    %v2014 = vrot.slane %v2012, 5
    %v2015 = vsel %vm206, %v2010, %v2014
    %v2017 = vshrl.u32 %v1828, 16
    %v2019 = vrot.slane %v2017, 4
    %v2020 = vshll.u32 %v1828, 16
    %v2022 = vrot.slane %v2020, 5
    %v2023 = vor.u32 %v2019, %v2022
    %v2024 = vrot.slane %v2023, 4
    %v2026 = vshll.u32 %v1844, 16
    %v2028 = vrot.slane %v2026, 5
    %v2029 = vsel %vm206, %v2024, %v2028
    %v2031 = vshrl.u32 %v1829, 16
    %v2033 = vrot.slane %v2031, 4
    %v2034 = vshll.u32 %v1829, 16
    %v2036 = vrot.slane %v2034, 5
    %v2037 = vor.u32 %v2033, %v2036
    %v2038 = vrot.slane %v2037, 4
    %v2040 = vshll.u32 %v1845, 16
    %v2042 = vrot.slane %v2040, 5
    %v2043 = vsel %vm206, %v2038, %v2042
    %v2045 = vshrl.u32 %v1830, 16
    %v2047 = vrot.slane %v2045, 4
    %v2048 = vshll.u32 %v1830, 16
    %v2050 = vrot.slane %v2048, 5
    %v2051 = vor.u32 %v2047, %v2050
    %v2052 = vrot.slane %v2051, 4
    %v2054 = vshll.u32 %v1846, 16
    %v2056 = vrot.slane %v2054, 5
    %v2057 = vsel %vm206, %v2052, %v2056
    %v2059 = vshrl.u32 %v1831, 16
    %v2061 = vrot.slane %v2059, 4
    %v2062 = vshll.u32 %v1831, 16
    %v2064 = vrot.slane %v2062, 5
    %v2065 = vor.u32 %v2061, %v2064
    %v2066 = vrot.slane %v2065, 4
    %v2068 = vshll.u32 %v1847, 16
    %v2070 = vrot.slane %v2068, 5
    %v2071 = vsel %vm206, %v2066, %v2070
    %v2072 = vld [vmem:[%s1815] sm:$0xe]
    %v2073 = vld [vmem:[%s1815 + $0x8] sm:$0xe]
    %v2074 = vld [vmem:[%s1815 + $0x10] sm:$0xe]
    %v2075 = vld [vmem:[%s1815 + $0x18] sm:$0xe]
    %v2076 = vld [vmem:[%s1815 + $0x20] sm:$0xe]
    %v2077 = vld [vmem:[%s1815 + $0x28] sm:$0xe]
    %v2078 = vld [vmem:[%s1815 + $0x30] sm:$0xe]
    %v2079 = vld [vmem:[%s1815 + $0x38] sm:$0xe]
    %v2080 = vld [vmem:[%s1815 + $0x50] sm:$0xe]
    %v2081 = vld [vmem:[%s1815 + $0x58] sm:$0xe]
    %v2082 = vld [vmem:[%s1815 + $0x60] sm:$0xe]
    %v2083 = vld [vmem:[%s1815 + $0x68] sm:$0xe]
    %v2084 = vld [vmem:[%s1815 + $0x70] sm:$0xe]
    %v2085 = vld [vmem:[%s1815 + $0x78] sm:$0xe]
    %v2086 = vld [vmem:[%s1815 + $0x80] sm:$0xe]
    %v2087 = vld [vmem:[%s1815 + $0x88] sm:$0xe]
    %v2120 = vrot.slane %v2072, 5
    %v2121 = vrot.slane %v2120, 4
    %v2122 = vrot.slane %v1832, 5
    %v2123 = vsel %vm481, %v2121, %v2122
    %v2124 = vrot.slane %v2073, 5
    %v2125 = vrot.slane %v2124, 4
    %v2126 = vrot.slane %v1833, 5
    %v2127 = vsel %vm481, %v2125, %v2126
    %v2128 = vrot.slane %v2074, 5
    %v2129 = vrot.slane %v2128, 4
    %v2130 = vrot.slane %v1834, 5
    %v2131 = vsel %vm481, %v2129, %v2130
    %v2132 = vrot.slane %v2075, 5
    %v2133 = vrot.slane %v2132, 4
    %v2134 = vrot.slane %v1835, 5
    %v2135 = vsel %vm481, %v2133, %v2134
    %v2136 = vrot.slane %v2076, 5
    %v2137 = vrot.slane %v2136, 4
    %v2138 = vrot.slane %v1836, 5
    %v2139 = vsel %vm481, %v2137, %v2138
    %v2140 = vrot.slane %v2077, 5
    %v2141 = vrot.slane %v2140, 4
    %v2142 = vrot.slane %v1837, 5
    %v2143 = vsel %vm481, %v2141, %v2142
    %v2144 = vrot.slane %v2078, 5
    %v2145 = vrot.slane %v2144, 4
    %v2146 = vrot.slane %v1838, 5
    %v2147 = vsel %vm481, %v2145, %v2146
    %v2148 = vrot.slane %v2079, 5
    %v2149 = vrot.slane %v2148, 4
    %v2150 = vrot.slane %v1839, 5
    %v2151 = vsel %vm481, %v2149, %v2150
    %v2152 = vrot.slane %v2080, 5
    %v2153 = vrot.slane %v2152, 4
    %v2154 = vrot.slane %v1840, 5
    %v2155 = vsel %vm481, %v2153, %v2154
    %v2156 = vrot.slane %v2081, 5
    %v2157 = vrot.slane %v2156, 4
    %v2158 = vrot.slane %v1841, 5
    %v2159 = vsel %vm481, %v2157, %v2158
    %v2160 = vrot.slane %v2082, 5
    %v2161 = vrot.slane %v2160, 4
    %v2162 = vrot.slane %v1842, 5
    %v2163 = vsel %vm481, %v2161, %v2162
    %v2164 = vrot.slane %v2083, 5
    %v2165 = vrot.slane %v2164, 4
    %v2166 = vrot.slane %v1843, 5
    %v2167 = vsel %vm481, %v2165, %v2166
    %v2168 = vrot.slane %v2084, 5
    %v2169 = vrot.slane %v2168, 4
    %v2170 = vrot.slane %v1844, 5
    %v2171 = vsel %vm481, %v2169, %v2170
    %v2172 = vrot.slane %v2085, 5
    %v2173 = vrot.slane %v2172, 4
    %v2174 = vrot.slane %v1845, 5
    %v2175 = vsel %vm481, %v2173, %v2174
    %v2176 = vrot.slane %v2086, 5
    %v2177 = vrot.slane %v2176, 4
    %v2178 = vrot.slane %v1846, 5
    %v2179 = vsel %vm481, %v2177, %v2178
    %v2180 = vrot.slane %v2087, 5
    %v2181 = vrot.slane %v2180, 4
    %v2182 = vrot.slane %v1847, 5
    %v2183 = vsel %vm481, %v2181, %v2182
    %v2200 = vunpack.c.l.b16 %v1816
    %v2201 = vunpack.c.l.b16 %v1817
    %v2202 = vunpack.c.l.b16 %v1818
    %v2203 = vunpack.c.l.b16 %v1819
    %v2204 = vunpack.c.l.b16 %v1820
    %v2205 = vunpack.c.l.b16 %v1821
    %v2206 = vunpack.c.l.b16 %v1822
    %v2207 = vunpack.c.l.b16 %v1823
    %v2208 = vunpack.c.l.b16 %v1824
    %v2209 = vunpack.c.l.b16 %v1825
    %v2210 = vunpack.c.l.b16 %v1826
    %v2211 = vunpack.c.l.b16 %v1827
    %v2212 = vunpack.c.l.b16 %v1828
    %v2213 = vunpack.c.l.b16 %v1829
    %v2214 = vunpack.c.l.b16 %v1830
    %v2215 = vunpack.c.l.b16 %v1831
    %v2216 = vpack.c.b16 %v2201, %v2200
    %v2217 = vpack.c.b16 %v2203, %v2202
    %v2218 = vpack.c.b16 %v2205, %v2204
    %v2219 = vpack.c.b16 %v2207, %v2206
    %v2220 = vpack.c.b16 %v2209, %v2208
    %v2221 = vpack.c.b16 %v2211, %v2210
    %v2222 = vpack.c.b16 %v2213, %v2212
    %v2223 = vpack.c.b16 %v2215, %v2214
    %v2232 = vunpack.c.l.b16 %v1861
    %v2233 = vunpack.c.l.b16 %v1875
    %v2234 = vunpack.c.l.b16 %v1889
    %v2235 = vunpack.c.l.b16 %v1903
    %v2236 = vunpack.c.l.b16 %v1917
    %v2237 = vunpack.c.l.b16 %v1931
    %v2238 = vunpack.c.l.b16 %v1945
    %v2239 = vunpack.c.l.b16 %v1959
    %v2240 = vunpack.c.l.b16 %v1973
    %v2241 = vunpack.c.l.b16 %v1987
    %v2242 = vunpack.c.l.b16 %v2001
    %v2243 = vunpack.c.l.b16 %v2015
    %v2244 = vunpack.c.l.b16 %v2029
    %v2245 = vunpack.c.l.b16 %v2043
    %v2246 = vunpack.c.l.b16 %v2057
    %v2247 = vunpack.c.l.b16 %v2071
    %v2248 = vpack.c.b16 %v2233, %v2232
    %v2249 = vpack.c.b16 %v2235, %v2234
    %v2250 = vpack.c.b16 %v2237, %v2236
    %v2251 = vpack.c.b16 %v2239, %v2238
    %v2252 = vpack.c.b16 %v2241, %v2240
    %v2253 = vpack.c.b16 %v2243, %v2242
    %v2254 = vpack.c.b16 %v2245, %v2244
    %v2255 = vpack.c.b16 %v2247, %v2246
    %v2264 = vunpack.c.l.b16 %v2123
    %v2265 = vunpack.c.l.b16 %v2127
    %v2266 = vunpack.c.l.b16 %v2131
    %v2267 = vunpack.c.l.b16 %v2135
    %v2268 = vunpack.c.l.b16 %v2139
    %v2269 = vunpack.c.l.b16 %v2143
    %v2270 = vunpack.c.l.b16 %v2147
    %v2271 = vunpack.c.l.b16 %v2151
    %v2272 = vunpack.c.l.b16 %v2155
    %v2273 = vunpack.c.l.b16 %v2159
    %v2274 = vunpack.c.l.b16 %v2163
    %v2275 = vunpack.c.l.b16 %v2167
    %v2276 = vunpack.c.l.b16 %v2171
    %v2277 = vunpack.c.l.b16 %v2175
    %v2278 = vunpack.c.l.b16 %v2179
    %v2279 = vunpack.c.l.b16 %v2183
    %v2280 = vpack.c.b16 %v2265, %v2264
    %v2281 = vpack.c.b16 %v2267, %v2266
    %v2282 = vpack.c.b16 %v2269, %v2268
    %v2283 = vpack.c.b16 %v2271, %v2270
    %v2284 = vpack.c.b16 %v2273, %v2272
    %v2285 = vpack.c.b16 %v2275, %v2274
    %v2286 = vpack.c.b16 %v2277, %v2276
    %v2287 = vpack.c.b16 %v2279, %v2278
    %v2344 = vunpack.c.l.b16 %v124
    %v2345 = vunpack.c.l.b16 %v125
    %v2346 = vunpack.c.l.b16 %v126
    %v2347 = vunpack.c.l.b16 %v127
    %v2348 = vunpack.c.l.b16 %v128
    %v2349 = vunpack.c.l.b16 %v129
    %v2350 = vunpack.c.l.b16 %v130
    %v2351 = vunpack.c.l.b16 %v131
    %v2352 = vunpack.c.l.b16 %v132
    %v2353 = vunpack.c.l.b16 %v133
    %v2354 = vunpack.c.l.b16 %v134
    %v2355 = vunpack.c.l.b16 %v135
    %v2356 = vunpack.c.l.b16 %v136
    %v2357 = vunpack.c.l.b16 %v137
    %v2358 = vunpack.c.l.b16 %v138
    %v2359 = vunpack.c.l.b16 %v139
    %v2360 = vunpack.c.l.b16 %v140
    %v2361 = vunpack.c.l.b16 %v141
    %v2362 = vunpack.c.l.b16 %v142
    %v2363 = vunpack.c.l.b16 %v143
    %v2364 = vunpack.c.l.b16 %v144
    %v2365 = vunpack.c.l.b16 %v145
    %v2366 = vunpack.c.l.b16 %v146
    %v2367 = vunpack.c.l.b16 %v147
    %v2368 = vunpack.c.l.b16 %v148
    %v2369 = vunpack.c.l.b16 %v149
    %v2370 = vunpack.c.l.b16 %v150
    %v2371 = vunpack.c.l.b16 %v151
    %v2372 = vunpack.c.l.b16 %v152
    %v2373 = vunpack.c.l.b16 %v153
    %v2374 = vunpack.c.l.b16 %v154
    %v2375 = vunpack.c.l.b16 %v155
    %v2376 = vunpack.c.l.b16 %v156
    %v2377 = vunpack.c.l.b16 %v157
    %v2378 = vunpack.c.l.b16 %v158
    %v2379 = vunpack.c.l.b16 %v159
    %v2380 = vunpack.c.l.b16 %v160
    %v2381 = vunpack.c.l.b16 %v161
    %v2382 = vunpack.c.l.b16 %v162
    %v2383 = vunpack.c.l.b16 %v163
    %v2384 = vunpack.c.l.b16 %v164
    %v2385 = vunpack.c.l.b16 %v165
    %v2386 = vunpack.c.l.b16 %v166
    %v2387 = vunpack.c.l.b16 %v167
    %v2388 = vunpack.c.l.b16 %v168
    %v2389 = vunpack.c.l.b16 %v169
    %v2390 = vunpack.c.l.b16 %v170
    %v2391 = vunpack.c.l.b16 %v171
    %v2392 = vpack.c.b16 %v2345, %v2344
    %v2393 = vpack.c.b16 %v2347, %v2346
    %v2394 = vpack.c.b16 %v2349, %v2348
    %v2395 = vpack.c.b16 %v2351, %v2350
    %v2396 = vpack.c.b16 %v2353, %v2352
    %v2397 = vpack.c.b16 %v2355, %v2354
    %v2398 = vpack.c.b16 %v2357, %v2356
    %v2399 = vpack.c.b16 %v2359, %v2358
    %v2400 = vpack.c.b16 %v2361, %v2360
    %v2401 = vpack.c.b16 %v2363, %v2362
    %v2402 = vpack.c.b16 %v2365, %v2364
    %v2403 = vpack.c.b16 %v2367, %v2366
    %v2404 = vpack.c.b16 %v2369, %v2368
    %v2405 = vpack.c.b16 %v2371, %v2370
    %v2406 = vpack.c.b16 %v2373, %v2372
    %v2407 = vpack.c.b16 %v2375, %v2374
    %v2408 = vpack.c.b16 %v2377, %v2376
    %v2409 = vpack.c.b16 %v2379, %v2378
    %v2410 = vpack.c.b16 %v2381, %v2380
    %v2411 = vpack.c.b16 %v2383, %v2382
    %v2412 = vpack.c.b16 %v2385, %v2384
    %v2413 = vpack.c.b16 %v2387, %v2386
    %v2414 = vpack.c.b16 %v2389, %v2388
    %v2415 = vpack.c.b16 %v2391, %v2390
    %2440 = vmatprep.subr.bf16.mxu0 0
    %2441 = vmatpush1.bf16.msra.mxu0 %v2392
    %2442 = vmatprep.subr.bf16.mxu0 0
    %2443 = vmatpush1.bf16.msra.mxu0 %v2393
    %2444 = vmatprep.subr.bf16.mxu0 0
    %2445 = vmatpush1.bf16.msra.mxu0 %v2394
    %2446 = vmatprep.subr.bf16.mxu0 0
    %2447 = vmatpush1.bf16.msra.mxu0 %v2395
    %2448 = vmatprep.subr.bf16.mxu0 0
    %2449 = vmatpush1.bf16.msra.mxu0 %v2396
    %2450 = vmatprep.subr.bf16.mxu0 0
    %2451 = vmatpush1.bf16.msra.mxu0 %v2397
    %2452 = vmatprep.subr.bf16.mxu0 0
    %2453 = vmatpush1.bf16.msra.mxu0 %v2398
    %2454 = vmatprep.subr.bf16.mxu0 0
    %2455 = vmatpush1.bf16.msra.mxu0 %v2399
    %2456 = vmatprep.subr.bf16.mxu0 0
    %2457 = vmatpush1.bf16.msra.mxu0 %v2400
    %2458 = vmatprep.subr.bf16.mxu0 0
    %2459 = vmatpush1.bf16.msra.mxu0 %v2401
    %2460 = vmatprep.subr.bf16.mxu0 0
    %2461 = vmatpush1.bf16.msra.mxu0 %v2402
    %2462 = vmatprep.subr.bf16.mxu0 0
    %2463 = vmatpush1.bf16.msra.mxu0 %v2403
    %2464 = vmatprep.subr.bf16.mxu0 0
    %2465 = vmatpush1.bf16.msra.mxu0 %v2404
    %2466 = vmatprep.subr.bf16.mxu0 0
    %2467 = vmatpush1.bf16.msra.mxu0 %v2405
    %2468 = vmatprep.subr.bf16.mxu0 0
    %2469 = vmatpush1.bf16.msra.mxu0 %v2406
    %2470 = vmatprep.subr.bf16.mxu0 0
    %2471 = vmatpush1.bf16.msra.mxu0 %v2407
    %2472 = vmatprep.mubr.bf16.mxu0 %v2248
    %2473 = vmatmul.mubr.bf16.gmra.mrb[0].mxu0 %v2216
    %v2474 = vpop.f32.mrb[0].mxu0
    %v2475 = vadd.f32 0.0, %v2474
    %v2476 = vpop.f32.mrb[0].mxu0
    %v2477 = vpop.f32.mrb[0].mxu0
    %v2478 = vadd.f32 0.0, %v2477
    %v2479 = vpop.f32.mrb[0].mxu0
    %2480 = vmatprep.mubr.bf16.mxu0 %v2249
    %2481 = vmatmul.mubr.bf16.gmra.mrb[0].mxu0 %v2217
    %v2482 = vpop.f32.mrb[0].mxu0
    %v2483 = vadd.f32 0.0, %v2482
    %v2484 = vpop.f32.mrb[0].mxu0
    %v2485 = vpop.f32.mrb[0].mxu0
    %v2486 = vadd.f32 0.0, %v2485
    %v2487 = vpop.f32.mrb[0].mxu0
    %2488 = vmatprep.mubr.bf16.mxu0 %v2250
    %2489 = vmatmul.mubr.bf16.gmra.mrb[0].mxu0 %v2218
    %v2490 = vpop.f32.mrb[0].mxu0
    %v2491 = vadd.f32 0.0, %v2490
    %v2492 = vpop.f32.mrb[0].mxu0
    %v2493 = vpop.f32.mrb[0].mxu0
    %v2494 = vadd.f32 0.0, %v2493
    %v2495 = vpop.f32.mrb[0].mxu0
    %2496 = vmatprep.mubr.bf16.mxu0 %v2251
    %2497 = vmatmul.mubr.bf16.gmra.mrb[0].mxu0 %v2219
    %v2498 = vpop.f32.mrb[0].mxu0
    %v2499 = vadd.f32 0.0, %v2498
    %v2500 = vpop.f32.mrb[0].mxu0
    %v2501 = vpop.f32.mrb[0].mxu0
    %v2502 = vadd.f32 0.0, %v2501
    %v2503 = vpop.f32.mrb[0].mxu0
    %2504 = vmatprep.mubr.bf16.mxu0 %v2252
    %2505 = vmatmul.mubr.bf16.gmra.mrb[0].mxu0 %v2220
    %v2506 = vpop.f32.mrb[0].mxu0
    %v2507 = vadd.f32 0.0, %v2506
    %v2508 = vpop.f32.mrb[0].mxu0
    %v2509 = vpop.f32.mrb[0].mxu0
    %v2510 = vadd.f32 0.0, %v2509
    %v2511 = vpop.f32.mrb[0].mxu0
    %2512 = vmatprep.mubr.bf16.mxu0 %v2253
    %2513 = vmatmul.mubr.bf16.gmra.mrb[0].mxu0 %v2221
    %v2514 = vpop.f32.mrb[0].mxu0
    %v2515 = vadd.f32 0.0, %v2514
    %v2516 = vpop.f32.mrb[0].mxu0
    %v2517 = vpop.f32.mrb[0].mxu0
    %v2518 = vadd.f32 0.0, %v2517
    %v2519 = vpop.f32.mrb[0].mxu0
    %2520 = vmatprep.mubr.bf16.mxu0 %v2254
    %2521 = vmatmul.mubr.bf16.gmra.mrb[0].mxu0 %v2222
    %v2522 = vpop.f32.mrb[0].mxu0
    %v2523 = vadd.f32 0.0, %v2522
    %v2524 = vpop.f32.mrb[0].mxu0
    %v2525 = vpop.f32.mrb[0].mxu0
    %v2526 = vadd.f32 0.0, %v2525
    %v2527 = vpop.f32.mrb[0].mxu0
    %2528 = vmatprep.mubr.bf16.mxu0 %v2255
    %2529 = vmatmul.mubr.bf16.gmra.mrb[0].mxu0 %v2223
    %v2530 = vpop.f32.mrb[0].mxu0
    %v2531 = vadd.f32 0.0, %v2530
    %v2532 = vpop.f32.mrb[0].mxu0
    %v2533 = vpop.f32.mrb[0].mxu0
    %v2534 = vadd.f32 0.0, %v2533
    %v2535 = vpop.f32.mrb[0].mxu0
    %2536 = vdwg.mxu0
    %2537 = vmatprep.subr.bf16.mxu0 0
    %2538 = vmatpush1.bf16.msra.mxu0 %v2408
    %2539 = vmatprep.subr.bf16.mxu0 0
    %2540 = vmatpush1.bf16.msra.mxu0 %v2409
    %2541 = vmatprep.subr.bf16.mxu0 0
    %2542 = vmatpush1.bf16.msra.mxu0 %v2410
    %2543 = vmatprep.subr.bf16.mxu0 0
    %2544 = vmatpush1.bf16.msra.mxu0 %v2411
    %2545 = vmatprep.subr.bf16.mxu0 0
    %2546 = vmatpush1.bf16.msra.mxu0 %v2412
    %2547 = vmatprep.subr.bf16.mxu0 0
    %2548 = vmatpush1.bf16.msra.mxu0 %v2413
    %2549 = vmatprep.subr.bf16.mxu0 0
    %2550 = vmatpush1.bf16.msra.mxu0 %v2414
    %2551 = vmatprep.subr.bf16.mxu0 0
    %2552 = vmatpush1.bf16.msra.mxu0 %v2415
    %2553 = vmatprep.subr.bf16.mxu0 0
    %2554 = vmatpush1.bf16.msra.mxu0 0
    %2555 = vmatprep.subr.bf16.mxu0 0
    %2556 = vmatpush1.bf16.msra.mxu0 0
    %2557 = vmatprep.subr.bf16.mxu0 0
    %2558 = vmatpush1.bf16.msra.mxu0 0
    %2559 = vmatprep.subr.bf16.mxu0 0
    %2560 = vmatpush1.bf16.msra.mxu0 0
    %2561 = vmatprep.subr.bf16.mxu0 0
    %2562 = vmatpush1.bf16.msra.mxu0 0
    %2563 = vmatprep.subr.bf16.mxu0 0
    %2564 = vmatpush1.bf16.msra.mxu0 0
    %2565 = vmatprep.subr.bf16.mxu0 0
    %2566 = vmatpush1.bf16.msra.mxu0 0
    %2567 = vmatprep.subr.bf16.mxu0 0
    %2568 = vmatpush1.bf16.msra.mxu0 0
    %2569 = vmatprep.mubr.bf16.mxu0 0
    %2570 = vmatmul.mubr.bf16.gmra.mrb[0].mxu0 %v2280
    %v2571 = vpop.f32.mrb[0].mxu0
    %v2572 = vadd.f32 %v2475, %v2571
    %v2573 = vpop.f32.mrb[0].mxu0
    %v2574 = vpop.f32.mrb[0].mxu0
    %v2575 = vadd.f32 %v2478, %v2574
    %v2576 = vpop.f32.mrb[0].mxu0
    %2577 = vmatprep.mubr.bf16.mxu0 0
    %2578 = vmatmul.mubr.bf16.gmra.mrb[0].mxu0 %v2281
    %v2579 = vpop.f32.mrb[0].mxu0
    %v2580 = vadd.f32 %v2483, %v2579
    %v2581 = vpop.f32.mrb[0].mxu0
    %v2582 = vpop.f32.mrb[0].mxu0
    %v2583 = vadd.f32 %v2486, %v2582
    %v2584 = vpop.f32.mrb[0].mxu0
    %2585 = vmatprep.mubr.bf16.mxu0 0
    %2586 = vmatmul.mubr.bf16.gmra.mrb[0].mxu0 %v2282
    %v2587 = vpop.f32.mrb[0].mxu0
    %v2588 = vadd.f32 %v2491, %v2587
    %v2589 = vpop.f32.mrb[0].mxu0
    %v2590 = vpop.f32.mrb[0].mxu0
    %v2591 = vadd.f32 %v2494, %v2590
    %v2592 = vpop.f32.mrb[0].mxu0
    %2593 = vmatprep.mubr.bf16.mxu0 0
    %2594 = vmatmul.mubr.bf16.gmra.mrb[0].mxu0 %v2283
    %v2595 = vpop.f32.mrb[0].mxu0
    %v2596 = vadd.f32 %v2499, %v2595
    %v2597 = vpop.f32.mrb[0].mxu0
    %v2598 = vpop.f32.mrb[0].mxu0
    %v2599 = vadd.f32 %v2502, %v2598
    %v2600 = vpop.f32.mrb[0].mxu0
    %2601 = vmatprep.mubr.bf16.mxu0 0
    %2602 = vmatmul.mubr.bf16.gmra.mrb[0].mxu0 %v2284
    %v2603 = vpop.f32.mrb[0].mxu0
    %v2604 = vadd.f32 %v2507, %v2603
    %v2605 = vpop.f32.mrb[0].mxu0
    %v2606 = vpop.f32.mrb[0].mxu0
    %v2607 = vadd.f32 %v2510, %v2606
    %v2608 = vpop.f32.mrb[0].mxu0
    %2609 = vmatprep.mubr.bf16.mxu0 0
    %2610 = vmatmul.mubr.bf16.gmra.mrb[0].mxu0 %v2285
    %v2611 = vpop.f32.mrb[0].mxu0
    %v2612 = vadd.f32 %v2515, %v2611
    %v2613 = vpop.f32.mrb[0].mxu0
    %v2614 = vpop.f32.mrb[0].mxu0
    %v2615 = vadd.f32 %v2518, %v2614
    %v2616 = vpop.f32.mrb[0].mxu0
    %2617 = vmatprep.mubr.bf16.mxu0 0
    %2618 = vmatmul.mubr.bf16.gmra.mrb[0].mxu0 %v2286
    %v2619 = vpop.f32.mrb[0].mxu0
    %v2620 = vadd.f32 %v2523, %v2619
    %v2621 = vpop.f32.mrb[0].mxu0
    %v2622 = vpop.f32.mrb[0].mxu0
    %v2623 = vadd.f32 %v2526, %v2622
    %v2624 = vpop.f32.mrb[0].mxu0
    %2625 = vmatprep.mubr.bf16.mxu0 0
    %2626 = vmatmul.mubr.bf16.gmra.mrb[0].mxu0 %v2287
    %v2627 = vpop.f32.mrb[0].mxu0
    %v2628 = vadd.f32 %v2531, %v2627
    %v2629 = vpop.f32.mrb[0].mxu0
    %v2630 = vpop.f32.mrb[0].mxu0
    %v2631 = vadd.f32 %v2534, %v2630
    %v2632 = vpop.f32.mrb[0].mxu0
    %2633 = vdwg.mxu0
    %v2634 = vadd.f32 %v1753, %v2572
    %v2635 = vadd.f32 %v1756, %v2575
    %v2636 = vadd.f32 %v1761, %v2580
    %v2637 = vadd.f32 %v1764, %v2583
    %v2638 = vadd.f32 %v1769, %v2588
    %v2639 = vadd.f32 %v1772, %v2591
    %v2640 = vadd.f32 %v1777, %v2596
    %v2641 = vadd.f32 %v1780, %v2599
    %v2642 = vadd.f32 %v1785, %v2604
    %v2643 = vadd.f32 %v1788, %v2607
    %v2644 = vadd.f32 %v1793, %v2612
    %v2645 = vadd.f32 %v1796, %v2615
    %v2646 = vadd.f32 %v1801, %v2620
    %v2647 = vadd.f32 %v1804, %v2623
    %v2648 = vadd.f32 %v1809, %v2628
    %v2649 = vadd.f32 %v1812, %v2631
    %v2650 = vld [vmem:[%s2] sm:$0x1]
    %v2651 = vld [vmem:[%s3] sm:$0x1]
    %v2652 = vadd.f32 %v2634, %v2635
    %v2653 = vadd.f32 %v2652, %v2636
    %v2654 = vadd.f32 %v2653, %v2637
    %v2655 = vadd.f32 %v2654, %v2638
    %v2656 = vadd.f32 %v2655, %v2639
    %v2657 = vadd.f32 %v2656, %v2640
    %v2658 = vadd.f32 %v2657, %v2641
    %v2659 = vadd.f32 %v2658, %v2642
    %v2660 = vadd.f32 %v2659, %v2643
    %v2661 = vadd.f32 %v2660, %v2644
    %v2662 = vadd.f32 %v2661, %v2645
    %v2663 = vadd.f32 %v2662, %v2646
    %v2664 = vadd.f32 %v2663, %v2647
    %v2665 = vadd.f32 %v2664, %v2648
    %v2666 = vadd.f32 %v2665, %v2649
    %v2667 = vrot.slane %v2666, 4
    %v2668 = vadd.f32 %v2666, %v2667
    %v2669 = vrot.slane %v2668, 2
    %v2670 = vadd.f32 %v2668, %v2669
    %v2671 = vrot.slane %v2670, 1
    %v2672 = vadd.f32 %v2670, %v2671
    %v2673 = vmul.f32 %v2672, 0.0078125
    %v2674 = vmul.f32 %v2634, %v2634
    %v2675 = vmul.f32 %v2635, %v2635
    %v2676 = vmul.f32 %v2636, %v2636
    %v2677 = vmul.f32 %v2637, %v2637
    %v2678 = vmul.f32 %v2638, %v2638
    %v2679 = vmul.f32 %v2639, %v2639
    %v2680 = vmul.f32 %v2640, %v2640
    %v2681 = vmul.f32 %v2641, %v2641
    %v2682 = vmul.f32 %v2642, %v2642
    %v2683 = vmul.f32 %v2643, %v2643
    %v2684 = vmul.f32 %v2644, %v2644
    %v2685 = vmul.f32 %v2645, %v2645
    %v2686 = vmul.f32 %v2646, %v2646
    %v2687 = vmul.f32 %v2647, %v2647
    %v2688 = vmul.f32 %v2648, %v2648
    %v2689 = vmul.f32 %v2649, %v2649
    %v2690 = vadd.f32 %v2674, %v2675
    %v2691 = vadd.f32 %v2690, %v2676
    %v2692 = vadd.f32 %v2691, %v2677
    %v2693 = vadd.f32 %v2692, %v2678
    %v2694 = vadd.f32 %v2693, %v2679
    %v2695 = vadd.f32 %v2694, %v2680
    %v2696 = vadd.f32 %v2695, %v2681
    %v2697 = vadd.f32 %v2696, %v2682
    %v2698 = vadd.f32 %v2697, %v2683
    %v2699 = vadd.f32 %v2698, %v2684
    %v2700 = vadd.f32 %v2699, %v2685
    %v2701 = vadd.f32 %v2700, %v2686
    %v2702 = vadd.f32 %v2701, %v2687
    %v2703 = vadd.f32 %v2702, %v2688
    %v2704 = vadd.f32 %v2703, %v2689
    %v2705 = vrot.slane %v2704, 4
    %v2706 = vadd.f32 %v2704, %v2705
    %v2707 = vrot.slane %v2706, 2
    %v2708 = vadd.f32 %v2706, %v2707
    %v2709 = vrot.slane %v2708, 1
    %v2710 = vadd.f32 %v2708, %v2709
    %v2711 = vmul.f32 %v2710, 0.0078125
    %v2712 = vmul.f32 %v2673, %v2673
    %v2713 = vsub.f32 %v2711, %v2712
    %v2714 = vadd.f32 %v2713, 1e-05
    %v2715 = vrsqrt.pop %v2714
    %v2716 = vmul.f32 %v2650, %v2715
    %v2717 = vmul.f32 %v2673, %v2716
    %v2718 = vsub.f32 %v2651, %v2717
    %v2720 = vlaneseq
    %v2721 = vshrl.u32 %v2720, 7
    %v2722 = vsub.s32 0, %v2721
    %v2723 = vrot.slane %v2716, %v2722
    %v2725 = vmul.f32 %v2634, %v2723
    %v2726 = vmul.f32 %v2635, %v2723
    %v2727 = vmul.f32 %v2636, %v2723
    %v2728 = vmul.f32 %v2637, %v2723
    %v2729 = vmul.f32 %v2638, %v2723
    %v2730 = vmul.f32 %v2639, %v2723
    %v2731 = vmul.f32 %v2640, %v2723
    %v2732 = vmul.f32 %v2641, %v2723
    %v2733 = vmul.f32 %v2642, %v2723
    %v2734 = vmul.f32 %v2643, %v2723
    %v2735 = vmul.f32 %v2644, %v2723
    %v2736 = vmul.f32 %v2645, %v2723
    %v2737 = vmul.f32 %v2646, %v2723
    %v2738 = vmul.f32 %v2647, %v2723
    %v2739 = vmul.f32 %v2648, %v2723
    %v2740 = vmul.f32 %v2649, %v2723
    %v2742 = vlaneseq
    %v2743 = vshrl.u32 %v2742, 7
    %v2744 = vsub.s32 0, %v2743
    %v2745 = vrot.slane %v2718, %v2744
    %v2747 = vadd.f32 %v2725, %v2745
    %v2748 = vadd.f32 %v2726, %v2745
    %v2749 = vadd.f32 %v2727, %v2745
    %v2750 = vadd.f32 %v2728, %v2745
    %v2751 = vadd.f32 %v2729, %v2745
    %v2752 = vadd.f32 %v2730, %v2745
    %v2753 = vadd.f32 %v2731, %v2745
    %v2754 = vadd.f32 %v2732, %v2745
    %v2755 = vadd.f32 %v2733, %v2745
    %v2756 = vadd.f32 %v2734, %v2745
    %v2757 = vadd.f32 %v2735, %v2745
    %v2758 = vadd.f32 %v2736, %v2745
    %v2759 = vadd.f32 %v2737, %v2745
    %v2760 = vadd.f32 %v2738, %v2745
    %v2761 = vadd.f32 %v2739, %v2745
    %v2762 = vadd.f32 %v2740, %v2745
    %v2763 = vmax.f32 %v2747, 0.0
    %v2764 = vmax.f32 %v2748, 0.0
    %v2765 = vmax.f32 %v2749, 0.0
    %v2766 = vmax.f32 %v2750, 0.0
    %v2767 = vmax.f32 %v2751, 0.0
    %v2768 = vmax.f32 %v2752, 0.0
    %v2769 = vmax.f32 %v2753, 0.0
    %v2770 = vmax.f32 %v2754, 0.0
    %v2771 = vmax.f32 %v2755, 0.0
    %v2772 = vmax.f32 %v2756, 0.0
    %v2773 = vmax.f32 %v2757, 0.0
    %v2774 = vmax.f32 %v2758, 0.0
    %v2775 = vmax.f32 %v2759, 0.0
    %v2776 = vmax.f32 %v2760, 0.0
    %v2777 = vmax.f32 %v2761, 0.0
    %v2778 = vmax.f32 %v2762, 0.0
    %v2779 = vpack.c.bf16 %v2764, %v2763
    %v2780 = vpack.c.bf16 %v2766, %v2765
    %v2781 = vpack.c.bf16 %v2768, %v2767
    %v2782 = vpack.c.bf16 %v2770, %v2769
    %v2783 = vpack.c.bf16 %v2772, %v2771
    %v2784 = vpack.c.bf16 %v2774, %v2773
    %v2785 = vpack.c.bf16 %v2776, %v2775
    %v2786 = vpack.c.bf16 %v2778, %v2777
    %v2795 = vunpack.c.l.b16 %v2779
    %v2796 = vunpack.c.h.b16 %v2779
    %v2797 = vunpack.c.l.b16 %v2780
    %v2798 = vunpack.c.h.b16 %v2780
    %v2799 = vunpack.c.l.b16 %v2781
    %v2800 = vunpack.c.h.b16 %v2781
    %v2801 = vunpack.c.l.b16 %v2782
    %v2802 = vunpack.c.h.b16 %v2782
    %v2803 = vunpack.c.l.b16 %v2783
    %v2804 = vunpack.c.h.b16 %v2783
    %v2805 = vunpack.c.l.b16 %v2784
    %v2806 = vunpack.c.h.b16 %v2784
    %v2807 = vunpack.c.l.b16 %v2785
    %v2808 = vunpack.c.h.b16 %v2785
    %v2809 = vunpack.c.l.b16 %v2786
    %v2810 = vunpack.c.h.b16 %v2786
    %v2811 = vpack.c.b16 %v2795, %v2795
    %v2812 = vpack.c.b16 %v2796, %v2796
    %v2813 = vpack.c.b16 %v2797, %v2797
    %v2814 = vpack.c.b16 %v2798, %v2798
    %v2815 = vpack.c.b16 %v2799, %v2799
    %v2816 = vpack.c.b16 %v2800, %v2800
    %v2817 = vpack.c.b16 %v2801, %v2801
    %v2818 = vpack.c.b16 %v2802, %v2802
    %v2819 = vpack.c.b16 %v2803, %v2803
    %v2820 = vpack.c.b16 %v2804, %v2804
    %v2821 = vpack.c.b16 %v2805, %v2805
    %v2822 = vpack.c.b16 %v2806, %v2806
    %v2823 = vpack.c.b16 %v2807, %v2807
    %v2824 = vpack.c.b16 %v2808, %v2808
    %v2825 = vpack.c.b16 %v2809, %v2809
    %v2826 = vpack.c.b16 %v2810, %v2810
    %v2828 = vshrl.u32 %v2811, 16
    %v2830 = vrot.slane %v2828, 7
    %v2831 = vshll.u32 %v2811, 16
    %v2833 = vor.u32 %v2830, %v2831
    %v2835 = vshrl.u32 %v2812, 16
    %v2837 = vrot.slane %v2835, 7
    %v2838 = vshll.u32 %v2812, 16
    %v2840 = vor.u32 %v2837, %v2838
    %v2842 = vshrl.u32 %v2813, 16
    %v2844 = vrot.slane %v2842, 7
    %v2845 = vshll.u32 %v2813, 16
    %v2847 = vor.u32 %v2844, %v2845
    %v2849 = vshrl.u32 %v2814, 16
    %v2851 = vrot.slane %v2849, 7
    %v2852 = vshll.u32 %v2814, 16
    %v2854 = vor.u32 %v2851, %v2852
    %v2856 = vshrl.u32 %v2815, 16
    %v2858 = vrot.slane %v2856, 7
    %v2859 = vshll.u32 %v2815, 16
    %v2861 = vor.u32 %v2858, %v2859
    %v2863 = vshrl.u32 %v2816, 16
    %v2865 = vrot.slane %v2863, 7
    %v2866 = vshll.u32 %v2816, 16
    %v2868 = vor.u32 %v2865, %v2866
    %v2870 = vshrl.u32 %v2817, 16
    %v2872 = vrot.slane %v2870, 7
    %v2873 = vshll.u32 %v2817, 16
    %v2875 = vor.u32 %v2872, %v2873
    %v2877 = vshrl.u32 %v2818, 16
    %v2879 = vrot.slane %v2877, 7
    %v2880 = vshll.u32 %v2818, 16
    %v2882 = vor.u32 %v2879, %v2880
    %v2884 = vshrl.u32 %v2819, 16
    %v2886 = vrot.slane %v2884, 7
    %v2887 = vshll.u32 %v2819, 16
    %v2889 = vor.u32 %v2886, %v2887
    %v2891 = vshrl.u32 %v2820, 16
    %v2893 = vrot.slane %v2891, 7
    %v2894 = vshll.u32 %v2820, 16
    %v2896 = vor.u32 %v2893, %v2894
    %v2898 = vshrl.u32 %v2821, 16
    %v2900 = vrot.slane %v2898, 7
    %v2901 = vshll.u32 %v2821, 16
    %v2903 = vor.u32 %v2900, %v2901
    %v2905 = vshrl.u32 %v2822, 16
    %v2907 = vrot.slane %v2905, 7
    %v2908 = vshll.u32 %v2822, 16
    %v2910 = vor.u32 %v2907, %v2908
    %v2912 = vshrl.u32 %v2823, 16
    %v2914 = vrot.slane %v2912, 7
    %v2915 = vshll.u32 %v2823, 16
    %v2917 = vor.u32 %v2914, %v2915
    %v2919 = vshrl.u32 %v2824, 16
    %v2921 = vrot.slane %v2919, 7
    %v2922 = vshll.u32 %v2824, 16
    %v2924 = vor.u32 %v2921, %v2922
    %v2926 = vshrl.u32 %v2825, 16
    %v2928 = vrot.slane %v2926, 7
    %v2929 = vshll.u32 %v2825, 16
    %v2931 = vor.u32 %v2928, %v2929
    %v2933 = vshrl.u32 %v2826, 16
    %v2935 = vrot.slane %v2933, 7
    %v2936 = vshll.u32 %v2826, 16
    %v2938 = vor.u32 %v2935, %v2936
    %vm2955 = vcmask 1040384
    %vm2956 = vsmask.f32 256
    %vm2957 = vmand %vm2955, %vm2956
    %v2958 = vsel %vm2957, 0, %v2833
    %v2959 = vsel %vm2957, 0, %v2840
    %v2960 = vsel %vm2957, 0, %v2847
    %v2961 = vsel %vm2957, 0, %v2854
    %v2962 = vsel %vm2957, 0, %v2861
    %v2963 = vsel %vm2957, 0, %v2868
    %v2964 = vsel %vm2957, 0, %v2875
    %v2965 = vsel %vm2957, 0, %v2882
    %v2966 = vsel %vm2957, 0, %v2889
    %v2967 = vsel %vm2957, 0, %v2896
    %v2968 = vsel %vm2957, 0, %v2903
    %v2969 = vsel %vm2957, 0, %v2910
    %v2970 = vsel %vm2957, 0, %v2917
    %v2971 = vsel %vm2957, 0, %v2924
    %v2972 = vsel %vm2957, 0, %v2931
    %v2973 = vsel %vm2957, 0, %v2938
    %vm2974 = vcmask 1044480
    %vm2975 = vsmask.f32 4352
    %vm2976 = vmand %vm2974, %vm2975
    %v2977 = vsel %vm2976, %v2958, 0
    %v2978 = vsel %vm2976, %v2959, 0
    %v2979 = vsel %vm2976, %v2960, 0
    %v2980 = vsel %vm2976, %v2961, 0
    %v2981 = vsel %vm2976, %v2962, 0
    %v2982 = vsel %vm2976, %v2963, 0
    %v2983 = vsel %vm2976, %v2964, 0
    %v2984 = vsel %vm2976, %v2965, 0
    %v2985 = vsel %vm2976, %v2966, 0
    %v2986 = vsel %vm2976, %v2967, 0
    %v2987 = vsel %vm2976, %v2968, 0
    %v2988 = vsel %vm2976, %v2969, 0
    %v2989 = vsel %vm2976, %v2970, 0
    %v2990 = vsel %vm2976, %v2971, 0
    %v2991 = vsel %vm2976, %v2972, 0
    %v2992 = vsel %vm2976, %v2973, 0
    %v2993 = vld [vmem:[%s4] sm:$0xf]
    %v2994 = vld [vmem:[%s4 + $0x4] sm:$0xf]
    %v2995 = vld [vmem:[%s4 + $0x8] sm:$0xf]
    %v2996 = vld [vmem:[%s4 + $0xc] sm:$0xf]
    %v2997 = vld [vmem:[%s4 + $0x10] sm:$0xf]
    %v2998 = vld [vmem:[%s4 + $0x14] sm:$0xf]
    %v2999 = vld [vmem:[%s4 + $0x18] sm:$0xf]
    %v3000 = vld [vmem:[%s4 + $0x1c] sm:$0xf]
    %v3001 = vld [vmem:[%s4 + $0x20] sm:$0xf]
    %v3002 = vld [vmem:[%s4 + $0x24] sm:$0xf]
    %v3003 = vld [vmem:[%s4 + $0x28] sm:$0xf]
    %v3004 = vld [vmem:[%s4 + $0x2c] sm:$0xf]
    %v3005 = vld [vmem:[%s4 + $0x30] sm:$0xf]
    %v3006 = vld [vmem:[%s4 + $0x34] sm:$0xf]
    %v3007 = vld [vmem:[%s4 + $0x38] sm:$0xf]
    %v3008 = vld [vmem:[%s4 + $0x3c] sm:$0xf]
    %v3009 = vld [vmem:[%s4 + $0x40] sm:$0xf]
    %v3010 = vld [vmem:[%s4 + $0x44] sm:$0xf]
    %v3011 = vld [vmem:[%s4 + $0x48] sm:$0xf]
    %v3012 = vld [vmem:[%s4 + $0x4c] sm:$0xf]
    %v3013 = vld [vmem:[%s4 + $0x50] sm:$0xf]
    %v3014 = vld [vmem:[%s4 + $0x54] sm:$0xf]
    %v3015 = vld [vmem:[%s4 + $0x58] sm:$0xf]
    %v3016 = vld [vmem:[%s4 + $0x5c] sm:$0xf]
    %v3017 = vld [vmem:[%s4 + $0x60] sm:$0xf]
    %v3018 = vld [vmem:[%s4 + $0x64] sm:$0xf]
    %v3019 = vld [vmem:[%s4 + $0x68] sm:$0xf]
    %v3020 = vld [vmem:[%s4 + $0x6c] sm:$0xf]
    %v3021 = vld [vmem:[%s4 + $0x70] sm:$0xf]
    %v3022 = vld [vmem:[%s4 + $0x74] sm:$0xf]
    %v3023 = vld [vmem:[%s4 + $0x78] sm:$0xf]
    %v3024 = vld [vmem:[%s4 + $0x7c] sm:$0xf]
    %v3025 = vld [vmem:[%s4 + $0x80] sm:$0xf]
    %v3026 = vld [vmem:[%s4 + $0x84] sm:$0xf]
    %v3027 = vld [vmem:[%s4 + $0x88] sm:$0xf]
    %v3028 = vld [vmem:[%s4 + $0x8c] sm:$0xf]
    %v3029 = vld [vmem:[%s4 + $0x90] sm:$0xf]
    %v3030 = vld [vmem:[%s4 + $0x94] sm:$0xf]
    %v3031 = vld [vmem:[%s4 + $0x98] sm:$0xf]
    %v3032 = vld [vmem:[%s4 + $0x9c] sm:$0xf]
    %v3033 = vld [vmem:[%s4 + $0xa0] sm:$0xf]
    %v3034 = vld [vmem:[%s4 + $0xa4] sm:$0xf]
    %v3035 = vld [vmem:[%s4 + $0xa8] sm:$0xf]
    %v3036 = vld [vmem:[%s4 + $0xac] sm:$0xf]
    %v3037 = vld [vmem:[%s4 + $0xb0] sm:$0xf]
    %v3038 = vld [vmem:[%s4 + $0xb4] sm:$0xf]
    %v3039 = vld [vmem:[%s4 + $0xb8] sm:$0xf]
    %v3040 = vld [vmem:[%s4 + $0xbc] sm:$0xf]
    %v3041 = vld [vmem:[%s4 + $0xc0] sm:$0xf]
    %v3042 = vld [vmem:[%s4 + $0xc4] sm:$0xf]
    %v3043 = vld [vmem:[%s4 + $0xc8] sm:$0xf]
    %v3044 = vld [vmem:[%s4 + $0xcc] sm:$0xf]
    %v3045 = vld [vmem:[%s4 + $0xd0] sm:$0xf]
    %v3046 = vld [vmem:[%s4 + $0xd4] sm:$0xf]
    %v3047 = vld [vmem:[%s4 + $0xd8] sm:$0xf]
    %v3048 = vld [vmem:[%s4 + $0xdc] sm:$0xf]
    %v3049 = vld [vmem:[%s4 + $0xe0] sm:$0xf]
    %v3050 = vld [vmem:[%s4 + $0xe4] sm:$0xf]
    %v3051 = vld [vmem:[%s4 + $0xe8] sm:$0xf]
    %v3052 = vld [vmem:[%s4 + $0xec] sm:$0xf]
    %v3053 = vld [vmem:[%s4 + $0xf0] sm:$0xf]
    %v3054 = vld [vmem:[%s4 + $0xf4] sm:$0xf]
    %v3055 = vld [vmem:[%s4 + $0xf8] sm:$0xf]
    %v3056 = vld [vmem:[%s4 + $0xfc] sm:$0xf]
    %v3057 = vld [vmem:[%s4 + $0x100] sm:$0xf]
    %v3058 = vld [vmem:[%s4 + $0x104] sm:$0xf]
    %v3059 = vld [vmem:[%s4 + $0x108] sm:$0xf]
    %v3060 = vld [vmem:[%s4 + $0x10c] sm:$0xf]
    %v3061 = vld [vmem:[%s4 + $0x110] sm:$0xf]
    %v3062 = vld [vmem:[%s4 + $0x114] sm:$0xf]
    %v3063 = vld [vmem:[%s4 + $0x118] sm:$0xf]
    %v3064 = vld [vmem:[%s4 + $0x11c] sm:$0xf]
    %v3065 = vld [vmem:[%s4 + $0x120] sm:$0xf]
    %v3066 = vld [vmem:[%s4 + $0x124] sm:$0xf]
    %v3067 = vld [vmem:[%s4 + $0x128] sm:$0xf]
    %v3068 = vld [vmem:[%s4 + $0x12c] sm:$0xf]
    %v3069 = vld [vmem:[%s4 + $0x130] sm:$0xf]
    %v3070 = vld [vmem:[%s4 + $0x134] sm:$0xf]
    %v3071 = vld [vmem:[%s4 + $0x138] sm:$0xf]
    %v3072 = vld [vmem:[%s4 + $0x13c] sm:$0xf]
    %v3073 = vld [vmem:[%s4 + $0x140] sm:$0xf]
    %v3074 = vld [vmem:[%s4 + $0x144] sm:$0xf]
    %v3075 = vld [vmem:[%s4 + $0x148] sm:$0xf]
    %v3076 = vld [vmem:[%s4 + $0x14c] sm:$0xf]
    %v3077 = vld [vmem:[%s4 + $0x150] sm:$0xf]
    %v3078 = vld [vmem:[%s4 + $0x154] sm:$0xf]
    %v3079 = vld [vmem:[%s4 + $0x158] sm:$0xf]
    %v3080 = vld [vmem:[%s4 + $0x15c] sm:$0xf]
    %v3081 = vld [vmem:[%s4 + $0x160] sm:$0xf]
    %v3082 = vld [vmem:[%s4 + $0x164] sm:$0xf]
    %v3083 = vld [vmem:[%s4 + $0x168] sm:$0xf]
    %v3084 = vld [vmem:[%s4 + $0x16c] sm:$0xf]
    %v3085 = vld [vmem:[%s4 + $0x170] sm:$0xf]
    %v3086 = vld [vmem:[%s4 + $0x174] sm:$0xf]
    %v3087 = vld [vmem:[%s4 + $0x178] sm:$0xf]
    %v3088 = vld [vmem:[%s4 + $0x17c] sm:$0xf]
    %v3089 = vld [vmem:[%s4 + $0x180] sm:$0xf]
    %v3090 = vld [vmem:[%s4 + $0x184] sm:$0xf]
    %v3091 = vld [vmem:[%s4 + $0x188] sm:$0xf]
    %v3092 = vld [vmem:[%s4 + $0x18c] sm:$0xf]
    %v3093 = vld [vmem:[%s4 + $0x190] sm:$0xf]
    %v3094 = vld [vmem:[%s4 + $0x194] sm:$0xf]
    %v3095 = vld [vmem:[%s4 + $0x198] sm:$0xf]
    %v3096 = vld [vmem:[%s4 + $0x19c] sm:$0xf]
    %v3097 = vld [vmem:[%s4 + $0x1a0] sm:$0xf]
    %v3098 = vld [vmem:[%s4 + $0x1a4] sm:$0xf]
    %v3099 = vld [vmem:[%s4 + $0x1a8] sm:$0xf]
    %v3100 = vld [vmem:[%s4 + $0x1ac] sm:$0xf]
    %v3101 = vld [vmem:[%s4 + $0x1b0] sm:$0xf]
    %v3102 = vld [vmem:[%s4 + $0x1b4] sm:$0xf]
    %v3103 = vld [vmem:[%s4 + $0x1b8] sm:$0xf]
    %v3104 = vld [vmem:[%s4 + $0x1bc] sm:$0xf]
    %v3105 = vld [vmem:[%s4 + $0x1c0] sm:$0xf]
    %v3106 = vld [vmem:[%s4 + $0x1c4] sm:$0xf]
    %v3107 = vld [vmem:[%s4 + $0x1c8] sm:$0xf]
    %v3108 = vld [vmem:[%s4 + $0x1cc] sm:$0xf]
    %v3109 = vld [vmem:[%s4 + $0x1d0] sm:$0xf]
    %v3110 = vld [vmem:[%s4 + $0x1d4] sm:$0xf]
    %v3111 = vld [vmem:[%s4 + $0x1d8] sm:$0xf]
    %v3112 = vld [vmem:[%s4 + $0x1dc] sm:$0xf]
    %v3113 = vld [vmem:[%s4 + $0x1e0] sm:$0xf]
    %v3114 = vld [vmem:[%s4 + $0x1e4] sm:$0xf]
    %v3115 = vld [vmem:[%s4 + $0x1e8] sm:$0xf]
    %v3116 = vld [vmem:[%s4 + $0x1ec] sm:$0xf]
    %v3117 = vld [vmem:[%s4 + $0x1f0] sm:$0xf]
    %v3118 = vld [vmem:[%s4 + $0x1f4] sm:$0xf]
    %v3119 = vld [vmem:[%s4 + $0x1f8] sm:$0xf]
    %v3120 = vld [vmem:[%s4 + $0x1fc] sm:$0xf]
    %v3121 = vld [vmem:[%s4 + $0x200] sm:$0xf]
    %v3122 = vld [vmem:[%s4 + $0x204] sm:$0xf]
    %v3123 = vld [vmem:[%s4 + $0x208] sm:$0xf]
    %v3124 = vld [vmem:[%s4 + $0x20c] sm:$0xf]
    %v3125 = vld [vmem:[%s4 + $0x210] sm:$0xf]
    %v3126 = vld [vmem:[%s4 + $0x214] sm:$0xf]
    %v3127 = vld [vmem:[%s4 + $0x218] sm:$0xf]
    %v3128 = vld [vmem:[%s4 + $0x21c] sm:$0xf]
    %v3129 = vld [vmem:[%s4 + $0x220] sm:$0xf]
    %v3130 = vld [vmem:[%s4 + $0x224] sm:$0xf]
    %v3131 = vld [vmem:[%s4 + $0x228] sm:$0xf]
    %v3132 = vld [vmem:[%s4 + $0x22c] sm:$0xf]
    %v3133 = vld [vmem:[%s4 + $0x230] sm:$0xf]
    %v3134 = vld [vmem:[%s4 + $0x234] sm:$0xf]
    %v3135 = vld [vmem:[%s4 + $0x238] sm:$0xf]
    %v3136 = vld [vmem:[%s4 + $0x23c] sm:$0xf]
    %v3152 = vunpack.c.l.b16 0
    %v3153 = vunpack.c.h.b16 0
    %v3154 = vunpack.c.l.b16 %v2977
    %v3155 = vunpack.c.h.b16 %v2977
    %v3156 = vunpack.c.l.b16 %v2978
    %v3157 = vunpack.c.h.b16 %v2978
    %v3158 = vunpack.c.l.b16 %v2979
    %v3159 = vunpack.c.h.b16 %v2979
    %v3160 = vunpack.c.l.b16 %v2980
    %v3161 = vunpack.c.h.b16 %v2980
    %v3162 = vunpack.c.l.b16 %v2981
    %v3163 = vunpack.c.h.b16 %v2981
    %v3164 = vunpack.c.l.b16 %v2982
    %v3165 = vunpack.c.h.b16 %v2982
    %v3166 = vunpack.c.l.b16 %v2983
    %v3167 = vunpack.c.h.b16 %v2983
    %v3168 = vunpack.c.l.b16 %v2985
    %v3169 = vunpack.c.h.b16 %v2985
    %v3170 = vunpack.c.l.b16 %v2986
    %v3171 = vunpack.c.h.b16 %v2986
    %v3172 = vunpack.c.l.b16 %v2987
    %v3173 = vunpack.c.h.b16 %v2987
    %v3174 = vunpack.c.l.b16 %v2988
    %v3175 = vunpack.c.h.b16 %v2988
    %v3176 = vunpack.c.l.b16 %v2989
    %v3177 = vunpack.c.h.b16 %v2989
    %v3178 = vunpack.c.l.b16 %v2990
    %v3179 = vunpack.c.h.b16 %v2990
    %v3180 = vunpack.c.l.b16 %v2991
    %v3181 = vunpack.c.h.b16 %v2991
    %v3182 = vpack.c.b16 %v3152, %v3152
    %v3183 = vpack.c.b16 %v3153, %v3153
    %v3184 = vpack.c.b16 %v3154, %v3154
    %v3185 = vpack.c.b16 %v3155, %v3155
    %v3186 = vpack.c.b16 %v3156, %v3156
    %v3187 = vpack.c.b16 %v3157, %v3157
    %v3188 = vpack.c.b16 %v3158, %v3158
    %v3189 = vpack.c.b16 %v3159, %v3159
    %v3190 = vpack.c.b16 %v3160, %v3160
    %v3191 = vpack.c.b16 %v3161, %v3161
    %v3192 = vpack.c.b16 %v3162, %v3162
    %v3193 = vpack.c.b16 %v3163, %v3163
    %v3194 = vpack.c.b16 %v3164, %v3164
    %v3195 = vpack.c.b16 %v3165, %v3165
    %v3196 = vpack.c.b16 %v3166, %v3166
    %v3197 = vpack.c.b16 %v3167, %v3167
    %v3198 = vpack.c.b16 %v3168, %v3168
    %v3199 = vpack.c.b16 %v3169, %v3169
    %v3200 = vpack.c.b16 %v3170, %v3170
    %v3201 = vpack.c.b16 %v3171, %v3171
    %v3202 = vpack.c.b16 %v3172, %v3172
    %v3203 = vpack.c.b16 %v3173, %v3173
    %v3204 = vpack.c.b16 %v3174, %v3174
    %v3205 = vpack.c.b16 %v3175, %v3175
    %v3206 = vpack.c.b16 %v3176, %v3176
    %v3207 = vpack.c.b16 %v3177, %v3177
    %v3208 = vpack.c.b16 %v3178, %v3178
    %v3209 = vpack.c.b16 %v3179, %v3179
    %v3210 = vpack.c.b16 %v3180, %v3180
    %v3211 = vpack.c.b16 %v3181, %v3181
    %v3213 = vshrl.u32 %v3182, 16
    %v3215 = vrot.slane %v3213, 4
    %v3216 = vshll.u32 %v3182, 16
    %v3218 = vrot.slane %v3216, 5
    %v3219 = vor.u32 %v3215, %v3218
    %v3220 = vrot.slane %v3219, 4
    %v3222 = vshll.u32 %v3183, 16
    %v3224 = vrot.slane %v3222, 5
    %v3225 = vsel %vm206, %v3220, %v3224
    %v3227 = vshrl.u32 %v3184, 16
    %v3229 = vrot.slane %v3227, 4
    %v3230 = vshll.u32 %v3184, 16
    %v3232 = vrot.slane %v3230, 5
    %v3233 = vor.u32 %v3229, %v3232
    %v3234 = vrot.slane %v3233, 4
    %v3236 = vshll.u32 %v3185, 16
    %v3238 = vrot.slane %v3236, 5
    %v3239 = vsel %vm206, %v3234, %v3238
    %v3241 = vshrl.u32 %v3186, 16
    %v3243 = vrot.slane %v3241, 4
    %v3244 = vshll.u32 %v3186, 16
    %v3246 = vrot.slane %v3244, 5
    %v3247 = vor.u32 %v3243, %v3246
    %v3248 = vrot.slane %v3247, 4
    %v3250 = vshll.u32 %v3187, 16
    %v3252 = vrot.slane %v3250, 5
    %v3253 = vsel %vm206, %v3248, %v3252
    %v3255 = vshrl.u32 %v3188, 16
    %v3257 = vrot.slane %v3255, 4
    %v3258 = vshll.u32 %v3188, 16
    %v3260 = vrot.slane %v3258, 5
    %v3261 = vor.u32 %v3257, %v3260
    %v3262 = vrot.slane %v3261, 4
    %v3264 = vshll.u32 %v3189, 16
    %v3266 = vrot.slane %v3264, 5
    %v3267 = vsel %vm206, %v3262, %v3266
    %v3269 = vshrl.u32 %v3190, 16
    %v3271 = vrot.slane %v3269, 4
    %v3272 = vshll.u32 %v3190, 16
    %v3274 = vrot.slane %v3272, 5
    %v3275 = vor.u32 %v3271, %v3274
    %v3276 = vrot.slane %v3275, 4
    %v3278 = vshll.u32 %v3191, 16
    %v3280 = vrot.slane %v3278, 5
    %v3281 = vsel %vm206, %v3276, %v3280
    %v3283 = vshrl.u32 %v3192, 16
    %v3285 = vrot.slane %v3283, 4
    %v3286 = vshll.u32 %v3192, 16
    %v3288 = vrot.slane %v3286, 5
    %v3289 = vor.u32 %v3285, %v3288
    %v3290 = vrot.slane %v3289, 4
    %v3292 = vshll.u32 %v3193, 16
    %v3294 = vrot.slane %v3292, 5
    %v3295 = vsel %vm206, %v3290, %v3294
    %v3297 = vshrl.u32 %v3194, 16
    %v3299 = vrot.slane %v3297, 4
    %v3300 = vshll.u32 %v3194, 16
    %v3302 = vrot.slane %v3300, 5
    %v3303 = vor.u32 %v3299, %v3302
    %v3304 = vrot.slane %v3303, 4
    %v3306 = vshll.u32 %v3195, 16
    %v3308 = vrot.slane %v3306, 5
    %v3309 = vsel %vm206, %v3304, %v3308
    %v3311 = vshrl.u32 %v3196, 16
    %v3313 = vrot.slane %v3311, 4
    %v3314 = vshll.u32 %v3196, 16
    %v3316 = vrot.slane %v3314, 5
    %v3317 = vor.u32 %v3313, %v3316
    %v3318 = vrot.slane %v3317, 4
    %v3320 = vshll.u32 %v3197, 16
    %v3322 = vrot.slane %v3320, 5
    %v3323 = vsel %vm206, %v3318, %v3322
    %v3325 = vshrl.u32 %v3198, 16
    %v3327 = vrot.slane %v3325, 4
    %v3328 = vshll.u32 %v3198, 16
    %v3330 = vrot.slane %v3328, 5
    %v3331 = vor.u32 %v3327, %v3330
    %v3332 = vrot.slane %v3331, 4
    %v3334 = vshll.u32 %v3199, 16
    %v3336 = vrot.slane %v3334, 5
    %v3337 = vsel %vm206, %v3332, %v3336
    %v3339 = vshrl.u32 %v3200, 16
    %v3341 = vrot.slane %v3339, 4
    %v3342 = vshll.u32 %v3200, 16
    %v3344 = vrot.slane %v3342, 5
    %v3345 = vor.u32 %v3341, %v3344
    %v3346 = vrot.slane %v3345, 4
    %v3348 = vshll.u32 %v3201, 16
    %v3350 = vrot.slane %v3348, 5
    %v3351 = vsel %vm206, %v3346, %v3350
    %v3353 = vshrl.u32 %v3202, 16
    %v3355 = vrot.slane %v3353, 4
    %v3356 = vshll.u32 %v3202, 16
    %v3358 = vrot.slane %v3356, 5
    %v3359 = vor.u32 %v3355, %v3358
    %v3360 = vrot.slane %v3359, 4
    %v3362 = vshll.u32 %v3203, 16
    %v3364 = vrot.slane %v3362, 5
    %v3365 = vsel %vm206, %v3360, %v3364
    %v3367 = vshrl.u32 %v3204, 16
    %v3369 = vrot.slane %v3367, 4
    %v3370 = vshll.u32 %v3204, 16
    %v3372 = vrot.slane %v3370, 5
    %v3373 = vor.u32 %v3369, %v3372
    %v3374 = vrot.slane %v3373, 4
    %v3376 = vshll.u32 %v3205, 16
    %v3378 = vrot.slane %v3376, 5
    %v3379 = vsel %vm206, %v3374, %v3378
    %v3381 = vshrl.u32 %v3206, 16
    %v3383 = vrot.slane %v3381, 4
    %v3384 = vshll.u32 %v3206, 16
    %v3386 = vrot.slane %v3384, 5
    %v3387 = vor.u32 %v3383, %v3386
    %v3388 = vrot.slane %v3387, 4
    %v3390 = vshll.u32 %v3207, 16
    %v3392 = vrot.slane %v3390, 5
    %v3393 = vsel %vm206, %v3388, %v3392
    %v3395 = vshrl.u32 %v3208, 16
    %v3397 = vrot.slane %v3395, 4
    %v3398 = vshll.u32 %v3208, 16
    %v3400 = vrot.slane %v3398, 5
    %v3401 = vor.u32 %v3397, %v3400
    %v3402 = vrot.slane %v3401, 4
    %v3404 = vshll.u32 %v3209, 16
    %v3406 = vrot.slane %v3404, 5
    %v3407 = vsel %vm206, %v3402, %v3406
    %v3409 = vshrl.u32 %v3210, 16
    %v3411 = vrot.slane %v3409, 4
    %v3412 = vshll.u32 %v3210, 16
    %v3414 = vrot.slane %v3412, 5
    %v3415 = vor.u32 %v3411, %v3414
    %v3416 = vrot.slane %v3415, 4
    %v3418 = vshll.u32 %v3211, 16
    %v3420 = vrot.slane %v3418, 5
    %v3421 = vsel %vm206, %v3416, %v3420
    %v3422 = vrot.slane %v3182, 5
    %v3423 = vrot.slane %v3422, 4
    %v3424 = vrot.slane %v3183, 5
    %v3425 = vsel %vm481, %v3423, %v3424
    %v3426 = vrot.slane %v3184, 5
    %v3427 = vrot.slane %v3426, 4
    %v3428 = vrot.slane %v3185, 5
    %v3429 = vsel %vm481, %v3427, %v3428
    %v3430 = vrot.slane %v3186, 5
    %v3431 = vrot.slane %v3430, 4
    %v3432 = vrot.slane %v3187, 5
    %v3433 = vsel %vm481, %v3431, %v3432
    %v3434 = vrot.slane %v3188, 5
    %v3435 = vrot.slane %v3434, 4
    %v3436 = vrot.slane %v3189, 5
    %v3437 = vsel %vm481, %v3435, %v3436
    %v3438 = vrot.slane %v3190, 5
    %v3439 = vrot.slane %v3438, 4
    %v3440 = vrot.slane %v3191, 5
    %v3441 = vsel %vm481, %v3439, %v3440
    %v3442 = vrot.slane %v3192, 5
    %v3443 = vrot.slane %v3442, 4
    %v3444 = vrot.slane %v3193, 5
    %v3445 = vsel %vm481, %v3443, %v3444
    %v3446 = vrot.slane %v3194, 5
    %v3447 = vrot.slane %v3446, 4
    %v3448 = vrot.slane %v3195, 5
    %v3449 = vsel %vm481, %v3447, %v3448
    %v3450 = vrot.slane %v3196, 5
    %v3451 = vrot.slane %v3450, 4
    %v3452 = vrot.slane %v3197, 5
    %v3453 = vsel %vm481, %v3451, %v3452
    %v3454 = vrot.slane %v3198, 5
    %v3455 = vrot.slane %v3454, 4
    %v3456 = vrot.slane %v3199, 5
    %v3457 = vsel %vm481, %v3455, %v3456
    %v3458 = vrot.slane %v3200, 5
    %v3459 = vrot.slane %v3458, 4
    %v3460 = vrot.slane %v3201, 5
    %v3461 = vsel %vm481, %v3459, %v3460
    %v3462 = vrot.slane %v3202, 5
    %v3463 = vrot.slane %v3462, 4
    %v3464 = vrot.slane %v3203, 5
    %v3465 = vsel %vm481, %v3463, %v3464
    %v3466 = vrot.slane %v3204, 5
    %v3467 = vrot.slane %v3466, 4
    %v3468 = vrot.slane %v3205, 5
    %v3469 = vsel %vm481, %v3467, %v3468
    %v3470 = vrot.slane %v3206, 5
    %v3471 = vrot.slane %v3470, 4
    %v3472 = vrot.slane %v3207, 5
    %v3473 = vsel %vm481, %v3471, %v3472
    %v3474 = vrot.slane %v3208, 5
    %v3475 = vrot.slane %v3474, 4
    %v3476 = vrot.slane %v3209, 5
    %v3477 = vsel %vm481, %v3475, %v3476
    %v3478 = vrot.slane %v3210, 5
    %v3479 = vrot.slane %v3478, 4
    %v3480 = vrot.slane %v3211, 5
    %v3481 = vsel %vm481, %v3479, %v3480
    %v3482 = vpack.c.b16 %v3154, %v3152
    %v3483 = vpack.c.b16 %v3158, %v3156
    %v3484 = vpack.c.b16 %v3162, %v3160
    %v3485 = vpack.c.b16 %v3166, %v3164
    %v3486 = vpack.c.b16 %v3168, %v3152
    %v3487 = vpack.c.b16 %v3172, %v3170
    %v3488 = vpack.c.b16 %v3176, %v3174
    %v3489 = vpack.c.b16 %v3180, %v3178
    %v3498 = vunpack.c.l.b16 %v3225
    %v3499 = vunpack.c.l.b16 %v3239
    %v3500 = vunpack.c.l.b16 %v3253
    %v3501 = vunpack.c.l.b16 %v3267
    %v3502 = vunpack.c.l.b16 %v3281
    %v3503 = vunpack.c.l.b16 %v3295
    %v3504 = vunpack.c.l.b16 %v3309
    %v3505 = vunpack.c.l.b16 %v3323
    %v3506 = vunpack.c.l.b16 %v3337
    %v3507 = vunpack.c.l.b16 %v3351
    %v3508 = vunpack.c.l.b16 %v3365
    %v3509 = vunpack.c.l.b16 %v3379
    %v3510 = vunpack.c.l.b16 %v3393
    %v3511 = vunpack.c.l.b16 %v3407
    %v3512 = vunpack.c.l.b16 %v3421
    %v3513 = vpack.c.b16 %v3499, %v3498
    %v3514 = vpack.c.b16 %v3501, %v3500
    %v3515 = vpack.c.b16 %v3503, %v3502
    %v3516 = vpack.c.b16 %v3505, %v3504
    %v3517 = vpack.c.b16 %v3506, %v3498
    %v3518 = vpack.c.b16 %v3508, %v3507
    %v3519 = vpack.c.b16 %v3510, %v3509
    %v3520 = vpack.c.b16 %v3512, %v3511
    %v3529 = vunpack.c.l.b16 %v3425
    %v3530 = vunpack.c.l.b16 %v3429
    %v3531 = vunpack.c.l.b16 %v3433
    %v3532 = vunpack.c.l.b16 %v3437
    %v3533 = vunpack.c.l.b16 %v3441
    %v3534 = vunpack.c.l.b16 %v3445
    %v3535 = vunpack.c.l.b16 %v3449
    %v3536 = vunpack.c.l.b16 %v3453
    %v3537 = vunpack.c.l.b16 %v3457
    %v3538 = vunpack.c.l.b16 %v3461
    %v3539 = vunpack.c.l.b16 %v3465
    %v3540 = vunpack.c.l.b16 %v3469
    %v3541 = vunpack.c.l.b16 %v3473
    %v3542 = vunpack.c.l.b16 %v3477
    %v3543 = vunpack.c.l.b16 %v3481
    %v3544 = vpack.c.b16 %v3530, %v3529
    %v3545 = vpack.c.b16 %v3532, %v3531
    %v3546 = vpack.c.b16 %v3534, %v3533
    %v3547 = vpack.c.b16 %v3536, %v3535
    %v3548 = vpack.c.b16 %v3537, %v3529
    %v3549 = vpack.c.b16 %v3539, %v3538
    %v3550 = vpack.c.b16 %v3541, %v3540
    %v3551 = vpack.c.b16 %v3543, %v3542
    %v3562 = vunpack.c.l.b16 %v2984
    %v3563 = vunpack.c.h.b16 %v2984
    %v3564 = vunpack.c.l.b16 %v2992
    %v3565 = vunpack.c.h.b16 %v2992
    %v3566 = vpack.c.b16 %v3562, %v3562
    %v3567 = vpack.c.b16 %v3563, %v3563
    %v3568 = vpack.c.b16 %v3564, %v3564
    %v3569 = vpack.c.b16 %v3565, %v3565
    %v3571 = vshrl.u32 %v3566, 16
    %v3573 = vrot.slane %v3571, 4
    %v3574 = vshll.u32 %v3566, 16
    %v3576 = vrot.slane %v3574, 5
    %v3577 = vor.u32 %v3573, %v3576
    %v3578 = vrot.slane %v3577, 4
    %v3580 = vshll.u32 %v3567, 16
    %v3582 = vrot.slane %v3580, 5
    %v3583 = vsel %vm206, %v3578, %v3582
    %v3585 = vshrl.u32 %v3568, 16
    %v3587 = vrot.slane %v3585, 4
    %v3588 = vshll.u32 %v3568, 16
    %v3590 = vrot.slane %v3588, 5
    %v3591 = vor.u32 %v3587, %v3590
    %v3592 = vrot.slane %v3591, 4
    %v3594 = vshll.u32 %v3569, 16
    %v3596 = vrot.slane %v3594, 5
    %v3597 = vsel %vm206, %v3592, %v3596
    %v3598 = vrot.slane %v3566, 5
    %v3599 = vrot.slane %v3598, 4
    %v3600 = vrot.slane %v3567, 5
    %v3601 = vsel %vm481, %v3599, %v3600
    %v3602 = vrot.slane %v3568, 5
    %v3603 = vrot.slane %v3602, 4
    %v3604 = vrot.slane %v3569, 5
    %v3605 = vsel %vm481, %v3603, %v3604
    %v3606 = vpack.c.b16 %v3156, %v3154
    %v3607 = vpack.c.b16 %v3160, %v3158
    %v3608 = vpack.c.b16 %v3164, %v3162
    %v3609 = vpack.c.b16 %v3562, %v3166
    %v3610 = vpack.c.b16 %v3170, %v3168
    %v3611 = vpack.c.b16 %v3174, %v3172
    %v3612 = vpack.c.b16 %v3178, %v3176
    %v3613 = vpack.c.b16 %v3564, %v3180
    %v3622 = vunpack.c.l.b16 %v3583
    %v3623 = vunpack.c.l.b16 %v3597
    %v3624 = vpack.c.b16 %v3500, %v3499
    %v3625 = vpack.c.b16 %v3502, %v3501
    %v3626 = vpack.c.b16 %v3504, %v3503
    %v3627 = vpack.c.b16 %v3622, %v3505
    %v3628 = vpack.c.b16 %v3507, %v3506
    %v3629 = vpack.c.b16 %v3509, %v3508
    %v3630 = vpack.c.b16 %v3511, %v3510
    %v3631 = vpack.c.b16 %v3623, %v3512
    %v3640 = vunpack.c.l.b16 %v3601
    %v3641 = vunpack.c.l.b16 %v3605
    %v3642 = vpack.c.b16 %v3531, %v3530
    %v3643 = vpack.c.b16 %v3533, %v3532
    %v3644 = vpack.c.b16 %v3535, %v3534
    %v3645 = vpack.c.b16 %v3640, %v3536
    %v3646 = vpack.c.b16 %v3538, %v3537
    %v3647 = vpack.c.b16 %v3540, %v3539
    %v3648 = vpack.c.b16 %v3542, %v3541
    %v3649 = vpack.c.b16 %v3641, %v3543
    %v3706 = vunpack.c.l.b16 %v3041
    %v3707 = vunpack.c.l.b16 %v3042
    %v3708 = vunpack.c.l.b16 %v3043
    %v3709 = vunpack.c.l.b16 %v3044
    %v3710 = vunpack.c.l.b16 %v3045
    %v3711 = vunpack.c.l.b16 %v3046
    %v3712 = vunpack.c.l.b16 %v3047
    %v3713 = vunpack.c.l.b16 %v3048
    %v3714 = vunpack.c.l.b16 %v3049
    %v3715 = vunpack.c.l.b16 %v3050
    %v3716 = vunpack.c.l.b16 %v3051
    %v3717 = vunpack.c.l.b16 %v3052
    %v3718 = vunpack.c.l.b16 %v3053
    %v3719 = vunpack.c.l.b16 %v3054
    %v3720 = vunpack.c.l.b16 %v3055
    %v3721 = vunpack.c.l.b16 %v3056
    %v3722 = vunpack.c.l.b16 %v3057
    %v3723 = vunpack.c.l.b16 %v3058
    %v3724 = vunpack.c.l.b16 %v3059
    %v3725 = vunpack.c.l.b16 %v3060
    %v3726 = vunpack.c.l.b16 %v3061
    %v3727 = vunpack.c.l.b16 %v3062
    %v3728 = vunpack.c.l.b16 %v3063
    %v3729 = vunpack.c.l.b16 %v3064
    %v3730 = vunpack.c.l.b16 %v3065
    %v3731 = vunpack.c.l.b16 %v3066
    %v3732 = vunpack.c.l.b16 %v3067
    %v3733 = vunpack.c.l.b16 %v3068
    %v3734 = vunpack.c.l.b16 %v3069
    %v3735 = vunpack.c.l.b16 %v3070
    %v3736 = vunpack.c.l.b16 %v3071
    %v3737 = vunpack.c.l.b16 %v3072
    %v3738 = vunpack.c.l.b16 %v3073
    %v3739 = vunpack.c.l.b16 %v3074
    %v3740 = vunpack.c.l.b16 %v3075
    %v3741 = vunpack.c.l.b16 %v3076
    %v3742 = vunpack.c.l.b16 %v3077
    %v3743 = vunpack.c.l.b16 %v3078
    %v3744 = vunpack.c.l.b16 %v3079
    %v3745 = vunpack.c.l.b16 %v3080
    %v3746 = vunpack.c.l.b16 %v3081
    %v3747 = vunpack.c.l.b16 %v3082
    %v3748 = vunpack.c.l.b16 %v3083
    %v3749 = vunpack.c.l.b16 %v3084
    %v3750 = vunpack.c.l.b16 %v3085
    %v3751 = vunpack.c.l.b16 %v3086
    %v3752 = vunpack.c.l.b16 %v3087
    %v3753 = vunpack.c.l.b16 %v3088
    %v3754 = vpack.c.b16 %v3707, %v3706
    %v3755 = vpack.c.b16 %v3709, %v3708
    %v3756 = vpack.c.b16 %v3711, %v3710
    %v3757 = vpack.c.b16 %v3713, %v3712
    %v3758 = vpack.c.b16 %v3715, %v3714
    %v3759 = vpack.c.b16 %v3717, %v3716
    %v3760 = vpack.c.b16 %v3719, %v3718
    %v3761 = vpack.c.b16 %v3721, %v3720
    %v3762 = vpack.c.b16 %v3723, %v3722
    %v3763 = vpack.c.b16 %v3725, %v3724
    %v3764 = vpack.c.b16 %v3727, %v3726
    %v3765 = vpack.c.b16 %v3729, %v3728
    %v3766 = vpack.c.b16 %v3731, %v3730
    %v3767 = vpack.c.b16 %v3733, %v3732
    %v3768 = vpack.c.b16 %v3735, %v3734
    %v3769 = vpack.c.b16 %v3737, %v3736
    %v3770 = vpack.c.b16 %v3739, %v3738
    %v3771 = vpack.c.b16 %v3741, %v3740
    %v3772 = vpack.c.b16 %v3743, %v3742
    %v3773 = vpack.c.b16 %v3745, %v3744
    %v3774 = vpack.c.b16 %v3747, %v3746
    %v3775 = vpack.c.b16 %v3749, %v3748
    %v3776 = vpack.c.b16 %v3751, %v3750
    %v3777 = vpack.c.b16 %v3753, %v3752
    %3802 = vmatprep.subr.bf16.mxu0 0
    %3803 = vmatpush1.bf16.msra.mxu0 %v3754
    %3804 = vmatprep.subr.bf16.mxu0 0
    %3805 = vmatpush1.bf16.msra.mxu0 %v3755
    %3806 = vmatprep.subr.bf16.mxu0 0
    %3807 = vmatpush1.bf16.msra.mxu0 %v3756
    %3808 = vmatprep.subr.bf16.mxu0 0
    %3809 = vmatpush1.bf16.msra.mxu0 %v3757
    %3810 = vmatprep.subr.bf16.mxu0 0
    %3811 = vmatpush1.bf16.msra.mxu0 %v3758
    %3812 = vmatprep.subr.bf16.mxu0 0
    %3813 = vmatpush1.bf16.msra.mxu0 %v3759
    %3814 = vmatprep.subr.bf16.mxu0 0
    %3815 = vmatpush1.bf16.msra.mxu0 %v3760
    %3816 = vmatprep.subr.bf16.mxu0 0
    %3817 = vmatpush1.bf16.msra.mxu0 %v3761
    %3818 = vmatprep.subr.bf16.mxu0 0
    %3819 = vmatpush1.bf16.msra.mxu0 %v3762
    %3820 = vmatprep.subr.bf16.mxu0 0
    %3821 = vmatpush1.bf16.msra.mxu0 %v3763
    %3822 = vmatprep.subr.bf16.mxu0 0
    %3823 = vmatpush1.bf16.msra.mxu0 %v3764
    %3824 = vmatprep.subr.bf16.mxu0 0
    %3825 = vmatpush1.bf16.msra.mxu0 %v3765
    %3826 = vmatprep.subr.bf16.mxu0 0
    %3827 = vmatpush1.bf16.msra.mxu0 %v3766
    %3828 = vmatprep.subr.bf16.mxu0 0
    %3829 = vmatpush1.bf16.msra.mxu0 %v3767
    %3830 = vmatprep.subr.bf16.mxu0 0
    %3831 = vmatpush1.bf16.msra.mxu0 %v3768
    %3832 = vmatprep.subr.bf16.mxu0 0
    %3833 = vmatpush1.bf16.msra.mxu0 %v3769
    %3834 = vmatprep.mubr.bf16.mxu0 %v3624
    %3835 = vmatmul.mubr.bf16.gmra.mrb[0].mxu0 %v3606
    %v3836 = vpop.f32.mrb[0].mxu0
    %v3837 = vadd.f32 0.0, %v3836
    %v3838 = vpop.f32.mrb[0].mxu0
    %v3839 = vpop.f32.mrb[0].mxu0
    %v3840 = vadd.f32 0.0, %v3839
    %v3841 = vpop.f32.mrb[0].mxu0
    %3842 = vmatprep.mubr.bf16.mxu0 %v3625
    %3843 = vmatmul.mubr.bf16.gmra.mrb[0].mxu0 %v3607
    %v3844 = vpop.f32.mrb[0].mxu0
    %v3845 = vadd.f32 0.0, %v3844
    %v3846 = vpop.f32.mrb[0].mxu0
    %v3847 = vpop.f32.mrb[0].mxu0
    %v3848 = vadd.f32 0.0, %v3847
    %v3849 = vpop.f32.mrb[0].mxu0
    %3850 = vmatprep.mubr.bf16.mxu0 %v3626
    %3851 = vmatmul.mubr.bf16.gmra.mrb[0].mxu0 %v3608
    %v3852 = vpop.f32.mrb[0].mxu0
    %v3853 = vadd.f32 0.0, %v3852
    %v3854 = vpop.f32.mrb[0].mxu0
    %v3855 = vpop.f32.mrb[0].mxu0
    %v3856 = vadd.f32 0.0, %v3855
    %v3857 = vpop.f32.mrb[0].mxu0
    %3858 = vmatprep.mubr.bf16.mxu0 %v3627
    %3859 = vmatmul.mubr.bf16.gmra.mrb[0].mxu0 %v3609
    %v3860 = vpop.f32.mrb[0].mxu0
    %v3861 = vadd.f32 0.0, %v3860
    %v3862 = vpop.f32.mrb[0].mxu0
    %v3863 = vpop.f32.mrb[0].mxu0
    %v3864 = vadd.f32 0.0, %v3863
    %v3865 = vpop.f32.mrb[0].mxu0
    %3866 = vmatprep.mubr.bf16.mxu0 %v3628
    %3867 = vmatmul.mubr.bf16.gmra.mrb[0].mxu0 %v3610
    %v3868 = vpop.f32.mrb[0].mxu0
    %v3869 = vadd.f32 0.0, %v3868
    %v3870 = vpop.f32.mrb[0].mxu0
    %v3871 = vpop.f32.mrb[0].mxu0
    %v3872 = vadd.f32 0.0, %v3871
    %v3873 = vpop.f32.mrb[0].mxu0
    %3874 = vmatprep.mubr.bf16.mxu0 %v3629
    %3875 = vmatmul.mubr.bf16.gmra.mrb[0].mxu0 %v3611
    %v3876 = vpop.f32.mrb[0].mxu0
    %v3877 = vadd.f32 0.0, %v3876
    %v3878 = vpop.f32.mrb[0].mxu0
    %v3879 = vpop.f32.mrb[0].mxu0
    %v3880 = vadd.f32 0.0, %v3879
    %v3881 = vpop.f32.mrb[0].mxu0
    %3882 = vmatprep.mubr.bf16.mxu0 %v3630
    %3883 = vmatmul.mubr.bf16.gmra.mrb[0].mxu0 %v3612
    %v3884 = vpop.f32.mrb[0].mxu0
    %v3885 = vadd.f32 0.0, %v3884
    %v3886 = vpop.f32.mrb[0].mxu0
    %v3887 = vpop.f32.mrb[0].mxu0
    %v3888 = vadd.f32 0.0, %v3887
    %v3889 = vpop.f32.mrb[0].mxu0
    %3890 = vmatprep.mubr.bf16.mxu0 %v3631
    %3891 = vmatmul.mubr.bf16.gmra.mrb[0].mxu0 %v3613
    %v3892 = vpop.f32.mrb[0].mxu0
    %v3893 = vadd.f32 0.0, %v3892
    %v3894 = vpop.f32.mrb[0].mxu0
    %v3895 = vpop.f32.mrb[0].mxu0
    %v3896 = vadd.f32 0.0, %v3895
    %v3897 = vpop.f32.mrb[0].mxu0
    %3898 = vdwg.mxu0
    %3899 = vmatprep.subr.bf16.mxu0 0
    %3900 = vmatpush1.bf16.msra.mxu0 %v3770
    %3901 = vmatprep.subr.bf16.mxu0 0
    %3902 = vmatpush1.bf16.msra.mxu0 %v3771
    %3903 = vmatprep.subr.bf16.mxu0 0
    %3904 = vmatpush1.bf16.msra.mxu0 %v3772
    %3905 = vmatprep.subr.bf16.mxu0 0
    %3906 = vmatpush1.bf16.msra.mxu0 %v3773
    %3907 = vmatprep.subr.bf16.mxu0 0
    %3908 = vmatpush1.bf16.msra.mxu0 %v3774
    %3909 = vmatprep.subr.bf16.mxu0 0
    %3910 = vmatpush1.bf16.msra.mxu0 %v3775
    %3911 = vmatprep.subr.bf16.mxu0 0
    %3912 = vmatpush1.bf16.msra.mxu0 %v3776
    %3913 = vmatprep.subr.bf16.mxu0 0
    %3914 = vmatpush1.bf16.msra.mxu0 %v3777
    %3915 = vmatprep.subr.bf16.mxu0 0
    %3916 = vmatpush1.bf16.msra.mxu0 0
    %3917 = vmatprep.subr.bf16.mxu0 0
    %3918 = vmatpush1.bf16.msra.mxu0 0
    %3919 = vmatprep.subr.bf16.mxu0 0
    %3920 = vmatpush1.bf16.msra.mxu0 0
    %3921 = vmatprep.subr.bf16.mxu0 0
    %3922 = vmatpush1.bf16.msra.mxu0 0
    %3923 = vmatprep.subr.bf16.mxu0 0
    %3924 = vmatpush1.bf16.msra.mxu0 0
    %3925 = vmatprep.subr.bf16.mxu0 0
    %3926 = vmatpush1.bf16.msra.mxu0 0
    %3927 = vmatprep.subr.bf16.mxu0 0
    %3928 = vmatpush1.bf16.msra.mxu0 0
    %3929 = vmatprep.subr.bf16.mxu0 0
    %3930 = vmatpush1.bf16.msra.mxu0 0
    %3931 = vmatprep.mubr.bf16.mxu0 0
    %3932 = vmatmul.mubr.bf16.gmra.mrb[0].mxu0 %v3642
    %v3933 = vpop.f32.mrb[0].mxu0
    %v3934 = vadd.f32 %v3837, %v3933
    %v3935 = vpop.f32.mrb[0].mxu0
    %v3936 = vpop.f32.mrb[0].mxu0
    %v3937 = vadd.f32 %v3840, %v3936
    %v3938 = vpop.f32.mrb[0].mxu0
    %3939 = vmatprep.mubr.bf16.mxu0 0
    %3940 = vmatmul.mubr.bf16.gmra.mrb[0].mxu0 %v3643
    %v3941 = vpop.f32.mrb[0].mxu0
    %v3942 = vadd.f32 %v3845, %v3941
    %v3943 = vpop.f32.mrb[0].mxu0
    %v3944 = vpop.f32.mrb[0].mxu0
    %v3945 = vadd.f32 %v3848, %v3944
    %v3946 = vpop.f32.mrb[0].mxu0
    %3947 = vmatprep.mubr.bf16.mxu0 0
    %3948 = vmatmul.mubr.bf16.gmra.mrb[0].mxu0 %v3644
    %v3949 = vpop.f32.mrb[0].mxu0
    %v3950 = vadd.f32 %v3853, %v3949
    %v3951 = vpop.f32.mrb[0].mxu0
    %v3952 = vpop.f32.mrb[0].mxu0
    %v3953 = vadd.f32 %v3856, %v3952
    %v3954 = vpop.f32.mrb[0].mxu0
    %3955 = vmatprep.mubr.bf16.mxu0 0
    %3956 = vmatmul.mubr.bf16.gmra.mrb[0].mxu0 %v3645
    %v3957 = vpop.f32.mrb[0].mxu0
    %v3958 = vadd.f32 %v3861, %v3957
    %v3959 = vpop.f32.mrb[0].mxu0
    %v3960 = vpop.f32.mrb[0].mxu0
    %v3961 = vadd.f32 %v3864, %v3960
    %v3962 = vpop.f32.mrb[0].mxu0
    %3963 = vmatprep.mubr.bf16.mxu0 0
    %3964 = vmatmul.mubr.bf16.gmra.mrb[0].mxu0 %v3646
    %v3965 = vpop.f32.mrb[0].mxu0
    %v3966 = vadd.f32 %v3869, %v3965
    %v3967 = vpop.f32.mrb[0].mxu0
    %v3968 = vpop.f32.mrb[0].mxu0
    %v3969 = vadd.f32 %v3872, %v3968
    %v3970 = vpop.f32.mrb[0].mxu0
    %3971 = vmatprep.mubr.bf16.mxu0 0
    %3972 = vmatmul.mubr.bf16.gmra.mrb[0].mxu0 %v3647
    %v3973 = vpop.f32.mrb[0].mxu0
    %v3974 = vadd.f32 %v3877, %v3973
    %v3975 = vpop.f32.mrb[0].mxu0
    %v3976 = vpop.f32.mrb[0].mxu0
    %v3977 = vadd.f32 %v3880, %v3976
    %v3978 = vpop.f32.mrb[0].mxu0
    %3979 = vmatprep.mubr.bf16.mxu0 0
    %3980 = vmatmul.mubr.bf16.gmra.mrb[0].mxu0 %v3648
    %v3981 = vpop.f32.mrb[0].mxu0
    %v3982 = vadd.f32 %v3885, %v3981
    %v3983 = vpop.f32.mrb[0].mxu0
    %v3984 = vpop.f32.mrb[0].mxu0
    %v3985 = vadd.f32 %v3888, %v3984
    %v3986 = vpop.f32.mrb[0].mxu0
    %3987 = vmatprep.mubr.bf16.mxu0 0
    %3988 = vmatmul.mubr.bf16.gmra.mrb[0].mxu0 %v3649
    %v3989 = vpop.f32.mrb[0].mxu0
    %v3990 = vadd.f32 %v3893, %v3989
    %v3991 = vpop.f32.mrb[0].mxu0
    %v3992 = vpop.f32.mrb[0].mxu0
    %v3993 = vadd.f32 %v3896, %v3992
    %v3994 = vpop.f32.mrb[0].mxu0
    %3995 = vdwg.mxu0
    %v4044 = vunpack.c.l.b16 %v2993
    %v4045 = vunpack.c.l.b16 %v2994
    %v4046 = vunpack.c.l.b16 %v2995
    %v4047 = vunpack.c.l.b16 %v2996
    %v4048 = vunpack.c.l.b16 %v2997
    %v4049 = vunpack.c.l.b16 %v2998
    %v4050 = vunpack.c.l.b16 %v2999
    %v4051 = vunpack.c.l.b16 %v3000
    %v4052 = vunpack.c.l.b16 %v3001
    %v4053 = vunpack.c.l.b16 %v3002
    %v4054 = vunpack.c.l.b16 %v3003
    %v4055 = vunpack.c.l.b16 %v3004
    %v4056 = vunpack.c.l.b16 %v3005
    %v4057 = vunpack.c.l.b16 %v3006
    %v4058 = vunpack.c.l.b16 %v3007
    %v4059 = vunpack.c.l.b16 %v3008
    %v4060 = vunpack.c.l.b16 %v3009
    %v4061 = vunpack.c.l.b16 %v3010
    %v4062 = vunpack.c.l.b16 %v3011
    %v4063 = vunpack.c.l.b16 %v3012
    %v4064 = vunpack.c.l.b16 %v3013
    %v4065 = vunpack.c.l.b16 %v3014
    %v4066 = vunpack.c.l.b16 %v3015
    %v4067 = vunpack.c.l.b16 %v3016
    %v4068 = vunpack.c.l.b16 %v3017
    %v4069 = vunpack.c.l.b16 %v3018
    %v4070 = vunpack.c.l.b16 %v3019
    %v4071 = vunpack.c.l.b16 %v3020
    %v4072 = vunpack.c.l.b16 %v3021
    %v4073 = vunpack.c.l.b16 %v3022
    %v4074 = vunpack.c.l.b16 %v3023
    %v4075 = vunpack.c.l.b16 %v3024
    %v4076 = vunpack.c.l.b16 %v3025
    %v4077 = vunpack.c.l.b16 %v3026
    %v4078 = vunpack.c.l.b16 %v3027
    %v4079 = vunpack.c.l.b16 %v3028
    %v4080 = vunpack.c.l.b16 %v3029
    %v4081 = vunpack.c.l.b16 %v3030
    %v4082 = vunpack.c.l.b16 %v3031
    %v4083 = vunpack.c.l.b16 %v3032
    %v4084 = vunpack.c.l.b16 %v3033
    %v4085 = vunpack.c.l.b16 %v3034
    %v4086 = vunpack.c.l.b16 %v3035
    %v4087 = vunpack.c.l.b16 %v3036
    %v4088 = vunpack.c.l.b16 %v3037
    %v4089 = vunpack.c.l.b16 %v3038
    %v4090 = vunpack.c.l.b16 %v3039
    %v4091 = vunpack.c.l.b16 %v3040
    %v4092 = vpack.c.b16 %v4045, %v4044
    %v4093 = vpack.c.b16 %v4047, %v4046
    %v4094 = vpack.c.b16 %v4049, %v4048
    %v4095 = vpack.c.b16 %v4051, %v4050
    %v4096 = vpack.c.b16 %v4053, %v4052
    %v4097 = vpack.c.b16 %v4055, %v4054
    %v4098 = vpack.c.b16 %v4057, %v4056
    %v4099 = vpack.c.b16 %v4059, %v4058
    %v4100 = vpack.c.b16 %v4061, %v4060
    %v4101 = vpack.c.b16 %v4063, %v4062
    %v4102 = vpack.c.b16 %v4065, %v4064
    %v4103 = vpack.c.b16 %v4067, %v4066
    %v4104 = vpack.c.b16 %v4069, %v4068
    %v4105 = vpack.c.b16 %v4071, %v4070
    %v4106 = vpack.c.b16 %v4073, %v4072
    %v4107 = vpack.c.b16 %v4075, %v4074
    %v4108 = vpack.c.b16 %v4077, %v4076
    %v4109 = vpack.c.b16 %v4079, %v4078
    %v4110 = vpack.c.b16 %v4081, %v4080
    %v4111 = vpack.c.b16 %v4083, %v4082
    %v4112 = vpack.c.b16 %v4085, %v4084
    %v4113 = vpack.c.b16 %v4087, %v4086
    %v4114 = vpack.c.b16 %v4089, %v4088
    %v4115 = vpack.c.b16 %v4091, %v4090
    %4140 = vmatprep.subr.bf16.mxu0 0
    %4141 = vmatpush1.bf16.msra.mxu0 %v4092
    %4142 = vmatprep.subr.bf16.mxu0 0
    %4143 = vmatpush1.bf16.msra.mxu0 %v4093
    %4144 = vmatprep.subr.bf16.mxu0 0
    %4145 = vmatpush1.bf16.msra.mxu0 %v4094
    %4146 = vmatprep.subr.bf16.mxu0 0
    %4147 = vmatpush1.bf16.msra.mxu0 %v4095
    %4148 = vmatprep.subr.bf16.mxu0 0
    %4149 = vmatpush1.bf16.msra.mxu0 %v4096
    %4150 = vmatprep.subr.bf16.mxu0 0
    %4151 = vmatpush1.bf16.msra.mxu0 %v4097
    %4152 = vmatprep.subr.bf16.mxu0 0
    %4153 = vmatpush1.bf16.msra.mxu0 %v4098
    %4154 = vmatprep.subr.bf16.mxu0 0
    %4155 = vmatpush1.bf16.msra.mxu0 %v4099
    %4156 = vmatprep.subr.bf16.mxu0 0
    %4157 = vmatpush1.bf16.msra.mxu0 %v4100
    %4158 = vmatprep.subr.bf16.mxu0 0
    %4159 = vmatpush1.bf16.msra.mxu0 %v4101
    %4160 = vmatprep.subr.bf16.mxu0 0
    %4161 = vmatpush1.bf16.msra.mxu0 %v4102
    %4162 = vmatprep.subr.bf16.mxu0 0
    %4163 = vmatpush1.bf16.msra.mxu0 %v4103
    %4164 = vmatprep.subr.bf16.mxu0 0
    %4165 = vmatpush1.bf16.msra.mxu0 %v4104
    %4166 = vmatprep.subr.bf16.mxu0 0
    %4167 = vmatpush1.bf16.msra.mxu0 %v4105
    %4168 = vmatprep.subr.bf16.mxu0 0
    %4169 = vmatpush1.bf16.msra.mxu0 %v4106
    %4170 = vmatprep.subr.bf16.mxu0 0
    %4171 = vmatpush1.bf16.msra.mxu0 %v4107
    %4172 = vmatprep.mubr.bf16.mxu0 %v3513
    %4173 = vmatmul.mubr.bf16.gmra.mrb[0].mxu0 %v3482
    %v4174 = vpop.f32.mrb[0].mxu0
    %v4175 = vadd.f32 %v3934, %v4174
    %v4176 = vpop.f32.mrb[0].mxu0
    %v4177 = vpop.f32.mrb[0].mxu0
    %v4178 = vadd.f32 %v3937, %v4177
    %v4179 = vpop.f32.mrb[0].mxu0
    %4180 = vmatprep.mubr.bf16.mxu0 %v3514
    %4181 = vmatmul.mubr.bf16.gmra.mrb[0].mxu0 %v3483
    %v4182 = vpop.f32.mrb[0].mxu0
    %v4183 = vadd.f32 %v3942, %v4182
    %v4184 = vpop.f32.mrb[0].mxu0
    %v4185 = vpop.f32.mrb[0].mxu0
    %v4186 = vadd.f32 %v3945, %v4185
    %v4187 = vpop.f32.mrb[0].mxu0
    %4188 = vmatprep.mubr.bf16.mxu0 %v3515
    %4189 = vmatmul.mubr.bf16.gmra.mrb[0].mxu0 %v3484
    %v4190 = vpop.f32.mrb[0].mxu0
    %v4191 = vadd.f32 %v3950, %v4190
    %v4192 = vpop.f32.mrb[0].mxu0
    %v4193 = vpop.f32.mrb[0].mxu0
    %v4194 = vadd.f32 %v3953, %v4193
    %v4195 = vpop.f32.mrb[0].mxu0
    %4196 = vmatprep.mubr.bf16.mxu0 %v3516
    %4197 = vmatmul.mubr.bf16.gmra.mrb[0].mxu0 %v3485
    %v4198 = vpop.f32.mrb[0].mxu0
    %v4199 = vadd.f32 %v3958, %v4198
    %v4200 = vpop.f32.mrb[0].mxu0
    %v4201 = vpop.f32.mrb[0].mxu0
    %v4202 = vadd.f32 %v3961, %v4201
    %v4203 = vpop.f32.mrb[0].mxu0
    %4204 = vmatprep.mubr.bf16.mxu0 %v3517
    %4205 = vmatmul.mubr.bf16.gmra.mrb[0].mxu0 %v3486
    %v4206 = vpop.f32.mrb[0].mxu0
    %v4207 = vadd.f32 %v3966, %v4206
    %v4208 = vpop.f32.mrb[0].mxu0
    %v4209 = vpop.f32.mrb[0].mxu0
    %v4210 = vadd.f32 %v3969, %v4209
    %v4211 = vpop.f32.mrb[0].mxu0
    %4212 = vmatprep.mubr.bf16.mxu0 %v3518
    %4213 = vmatmul.mubr.bf16.gmra.mrb[0].mxu0 %v3487
    %v4214 = vpop.f32.mrb[0].mxu0
    %v4215 = vadd.f32 %v3974, %v4214
    %v4216 = vpop.f32.mrb[0].mxu0
    %v4217 = vpop.f32.mrb[0].mxu0
    %v4218 = vadd.f32 %v3977, %v4217
    %v4219 = vpop.f32.mrb[0].mxu0
    %4220 = vmatprep.mubr.bf16.mxu0 %v3519
    %4221 = vmatmul.mubr.bf16.gmra.mrb[0].mxu0 %v3488
    %v4222 = vpop.f32.mrb[0].mxu0
    %v4223 = vadd.f32 %v3982, %v4222
    %v4224 = vpop.f32.mrb[0].mxu0
    %v4225 = vpop.f32.mrb[0].mxu0
    %v4226 = vadd.f32 %v3985, %v4225
    %v4227 = vpop.f32.mrb[0].mxu0
    %4228 = vmatprep.mubr.bf16.mxu0 %v3520
    %4229 = vmatmul.mubr.bf16.gmra.mrb[0].mxu0 %v3489
    %v4230 = vpop.f32.mrb[0].mxu0
    %v4231 = vadd.f32 %v3990, %v4230
    %v4232 = vpop.f32.mrb[0].mxu0
    %v4233 = vpop.f32.mrb[0].mxu0
    %v4234 = vadd.f32 %v3993, %v4233
    %v4235 = vpop.f32.mrb[0].mxu0
    %4236 = vdwg.mxu0
    %4237 = vmatprep.subr.bf16.mxu0 0
    %4238 = vmatpush1.bf16.msra.mxu0 %v4108
    %4239 = vmatprep.subr.bf16.mxu0 0
    %4240 = vmatpush1.bf16.msra.mxu0 %v4109
    %4241 = vmatprep.subr.bf16.mxu0 0
    %4242 = vmatpush1.bf16.msra.mxu0 %v4110
    %4243 = vmatprep.subr.bf16.mxu0 0
    %4244 = vmatpush1.bf16.msra.mxu0 %v4111
    %4245 = vmatprep.subr.bf16.mxu0 0
    %4246 = vmatpush1.bf16.msra.mxu0 %v4112
    %4247 = vmatprep.subr.bf16.mxu0 0
    %4248 = vmatpush1.bf16.msra.mxu0 %v4113
    %4249 = vmatprep.subr.bf16.mxu0 0
    %4250 = vmatpush1.bf16.msra.mxu0 %v4114
    %4251 = vmatprep.subr.bf16.mxu0 0
    %4252 = vmatpush1.bf16.msra.mxu0 %v4115
    %4253 = vmatprep.subr.bf16.mxu0 0
    %4254 = vmatpush1.bf16.msra.mxu0 0
    %4255 = vmatprep.subr.bf16.mxu0 0
    %4256 = vmatpush1.bf16.msra.mxu0 0
    %4257 = vmatprep.subr.bf16.mxu0 0
    %4258 = vmatpush1.bf16.msra.mxu0 0
    %4259 = vmatprep.subr.bf16.mxu0 0
    %4260 = vmatpush1.bf16.msra.mxu0 0
    %4261 = vmatprep.subr.bf16.mxu0 0
    %4262 = vmatpush1.bf16.msra.mxu0 0
    %4263 = vmatprep.subr.bf16.mxu0 0
    %4264 = vmatpush1.bf16.msra.mxu0 0
    %4265 = vmatprep.subr.bf16.mxu0 0
    %4266 = vmatpush1.bf16.msra.mxu0 0
    %4267 = vmatprep.subr.bf16.mxu0 0
    %4268 = vmatpush1.bf16.msra.mxu0 0
    %4269 = vmatprep.mubr.bf16.mxu0 0
    %4270 = vmatmul.mubr.bf16.gmra.mrb[0].mxu0 %v3544
    %v4271 = vpop.f32.mrb[0].mxu0
    %v4272 = vadd.f32 %v4175, %v4271
    %v4273 = vpop.f32.mrb[0].mxu0
    %v4274 = vpop.f32.mrb[0].mxu0
    %v4275 = vadd.f32 %v4178, %v4274
    %v4276 = vpop.f32.mrb[0].mxu0
    %4277 = vmatprep.mubr.bf16.mxu0 0
    %4278 = vmatmul.mubr.bf16.gmra.mrb[0].mxu0 %v3545
    %v4279 = vpop.f32.mrb[0].mxu0
    %v4280 = vadd.f32 %v4183, %v4279
    %v4281 = vpop.f32.mrb[0].mxu0
    %v4282 = vpop.f32.mrb[0].mxu0
    %v4283 = vadd.f32 %v4186, %v4282
    %v4284 = vpop.f32.mrb[0].mxu0
    %4285 = vmatprep.mubr.bf16.mxu0 0
    %4286 = vmatmul.mubr.bf16.gmra.mrb[0].mxu0 %v3546
    %v4287 = vpop.f32.mrb[0].mxu0
    %v4288 = vadd.f32 %v4191, %v4287
    %v4289 = vpop.f32.mrb[0].mxu0
    %v4290 = vpop.f32.mrb[0].mxu0
    %v4291 = vadd.f32 %v4194, %v4290
    %v4292 = vpop.f32.mrb[0].mxu0
    %4293 = vmatprep.mubr.bf16.mxu0 0
    %4294 = vmatmul.mubr.bf16.gmra.mrb[0].mxu0 %v3547
    %v4295 = vpop.f32.mrb[0].mxu0
    %v4296 = vadd.f32 %v4199, %v4295
    %v4297 = vpop.f32.mrb[0].mxu0
    %v4298 = vpop.f32.mrb[0].mxu0
    %v4299 = vadd.f32 %v4202, %v4298
    %v4300 = vpop.f32.mrb[0].mxu0
    %4301 = vmatprep.mubr.bf16.mxu0 0
    %4302 = vmatmul.mubr.bf16.gmra.mrb[0].mxu0 %v3548
    %v4303 = vpop.f32.mrb[0].mxu0
    %v4304 = vadd.f32 %v4207, %v4303
    %v4305 = vpop.f32.mrb[0].mxu0
    %v4306 = vpop.f32.mrb[0].mxu0
    %v4307 = vadd.f32 %v4210, %v4306
    %v4308 = vpop.f32.mrb[0].mxu0
    %4309 = vmatprep.mubr.bf16.mxu0 0
    %4310 = vmatmul.mubr.bf16.gmra.mrb[0].mxu0 %v3549
    %v4311 = vpop.f32.mrb[0].mxu0
    %v4312 = vadd.f32 %v4215, %v4311
    %v4313 = vpop.f32.mrb[0].mxu0
    %v4314 = vpop.f32.mrb[0].mxu0
    %v4315 = vadd.f32 %v4218, %v4314
    %v4316 = vpop.f32.mrb[0].mxu0
    %4317 = vmatprep.mubr.bf16.mxu0 0
    %4318 = vmatmul.mubr.bf16.gmra.mrb[0].mxu0 %v3550
    %v4319 = vpop.f32.mrb[0].mxu0
    %v4320 = vadd.f32 %v4223, %v4319
    %v4321 = vpop.f32.mrb[0].mxu0
    %v4322 = vpop.f32.mrb[0].mxu0
    %v4323 = vadd.f32 %v4226, %v4322
    %v4324 = vpop.f32.mrb[0].mxu0
    %4325 = vmatprep.mubr.bf16.mxu0 0
    %4326 = vmatmul.mubr.bf16.gmra.mrb[0].mxu0 %v3551
    %v4327 = vpop.f32.mrb[0].mxu0
    %v4328 = vadd.f32 %v4231, %v4327
    %v4329 = vpop.f32.mrb[0].mxu0
    %v4330 = vpop.f32.mrb[0].mxu0
    %v4331 = vadd.f32 %v4234, %v4330
    %v4332 = vpop.f32.mrb[0].mxu0
    %4333 = vdwg.mxu0
    %v4334 = vpack.c.b16 %v3152, %v3562
    %v4335 = vpack.c.b16 %v3152, %v3564
    %v4338 = vpack.c.b16 %v3498, %v3622
    %v4339 = vpack.c.b16 %v3498, %v3623
    %v4342 = vpack.c.b16 %v3529, %v3640
    %v4343 = vpack.c.b16 %v3529, %v3641
    %v4394 = vunpack.c.l.b16 %v3089
    %v4395 = vunpack.c.l.b16 %v3090
    %v4396 = vunpack.c.l.b16 %v3091
    %v4397 = vunpack.c.l.b16 %v3092
    %v4398 = vunpack.c.l.b16 %v3093
    %v4399 = vunpack.c.l.b16 %v3094
    %v4400 = vunpack.c.l.b16 %v3095
    %v4401 = vunpack.c.l.b16 %v3096
    %v4402 = vunpack.c.l.b16 %v3097
    %v4403 = vunpack.c.l.b16 %v3098
    %v4404 = vunpack.c.l.b16 %v3099
    %v4405 = vunpack.c.l.b16 %v3100
    %v4406 = vunpack.c.l.b16 %v3101
    %v4407 = vunpack.c.l.b16 %v3102
    %v4408 = vunpack.c.l.b16 %v3103
    %v4409 = vunpack.c.l.b16 %v3104
    %v4410 = vunpack.c.l.b16 %v3105
    %v4411 = vunpack.c.l.b16 %v3106
    %v4412 = vunpack.c.l.b16 %v3107
    %v4413 = vunpack.c.l.b16 %v3108
    %v4414 = vunpack.c.l.b16 %v3109
    %v4415 = vunpack.c.l.b16 %v3110
    %v4416 = vunpack.c.l.b16 %v3111
    %v4417 = vunpack.c.l.b16 %v3112
    %v4418 = vunpack.c.l.b16 %v3113
    %v4419 = vunpack.c.l.b16 %v3114
    %v4420 = vunpack.c.l.b16 %v3115
    %v4421 = vunpack.c.l.b16 %v3116
    %v4422 = vunpack.c.l.b16 %v3117
    %v4423 = vunpack.c.l.b16 %v3118
    %v4424 = vunpack.c.l.b16 %v3119
    %v4425 = vunpack.c.l.b16 %v3120
    %v4426 = vunpack.c.l.b16 %v3121
    %v4427 = vunpack.c.l.b16 %v3122
    %v4428 = vunpack.c.l.b16 %v3123
    %v4429 = vunpack.c.l.b16 %v3124
    %v4430 = vunpack.c.l.b16 %v3125
    %v4431 = vunpack.c.l.b16 %v3126
    %v4432 = vunpack.c.l.b16 %v3127
    %v4433 = vunpack.c.l.b16 %v3128
    %v4434 = vunpack.c.l.b16 %v3129
    %v4435 = vunpack.c.l.b16 %v3130
    %v4436 = vunpack.c.l.b16 %v3131
    %v4437 = vunpack.c.l.b16 %v3132
    %v4438 = vunpack.c.l.b16 %v3133
    %v4439 = vunpack.c.l.b16 %v3134
    %v4440 = vunpack.c.l.b16 %v3135
    %v4441 = vunpack.c.l.b16 %v3136
    %v4442 = vpack.c.b16 %v4395, %v4394
    %v4443 = vpack.c.b16 %v4397, %v4396
    %v4444 = vpack.c.b16 %v4399, %v4398
    %v4445 = vpack.c.b16 %v4401, %v4400
    %v4446 = vpack.c.b16 %v4403, %v4402
    %v4447 = vpack.c.b16 %v4405, %v4404
    %v4448 = vpack.c.b16 %v4407, %v4406
    %v4449 = vpack.c.b16 %v4409, %v4408
    %v4450 = vpack.c.b16 %v4411, %v4410
    %v4451 = vpack.c.b16 %v4413, %v4412
    %v4452 = vpack.c.b16 %v4415, %v4414
    %v4453 = vpack.c.b16 %v4417, %v4416
    %v4454 = vpack.c.b16 %v4419, %v4418
    %v4455 = vpack.c.b16 %v4421, %v4420
    %v4456 = vpack.c.b16 %v4423, %v4422
    %v4457 = vpack.c.b16 %v4425, %v4424
    %v4458 = vpack.c.b16 %v4427, %v4426
    %v4459 = vpack.c.b16 %v4429, %v4428
    %v4460 = vpack.c.b16 %v4431, %v4430
    %v4461 = vpack.c.b16 %v4433, %v4432
    %v4462 = vpack.c.b16 %v4435, %v4434
    %v4463 = vpack.c.b16 %v4437, %v4436
    %v4464 = vpack.c.b16 %v4439, %v4438
    %v4465 = vpack.c.b16 %v4441, %v4440
    %4490 = vmatprep.subr.bf16.mxu0 0
    %4491 = vmatpush1.bf16.msra.mxu0 %v4442
    %4492 = vmatprep.subr.bf16.mxu0 0
    %4493 = vmatpush1.bf16.msra.mxu0 %v4443
    %4494 = vmatprep.subr.bf16.mxu0 0
    %4495 = vmatpush1.bf16.msra.mxu0 %v4444
    %4496 = vmatprep.subr.bf16.mxu0 0
    %4497 = vmatpush1.bf16.msra.mxu0 %v4445
    %4498 = vmatprep.subr.bf16.mxu0 0
    %4499 = vmatpush1.bf16.msra.mxu0 %v4446
    %4500 = vmatprep.subr.bf16.mxu0 0
    %4501 = vmatpush1.bf16.msra.mxu0 %v4447
    %4502 = vmatprep.subr.bf16.mxu0 0
    %4503 = vmatpush1.bf16.msra.mxu0 %v4448
    %4504 = vmatprep.subr.bf16.mxu0 0
    %4505 = vmatpush1.bf16.msra.mxu0 %v4449
    %4506 = vmatprep.subr.bf16.mxu0 0
    %4507 = vmatpush1.bf16.msra.mxu0 %v4450
    %4508 = vmatprep.subr.bf16.mxu0 0
    %4509 = vmatpush1.bf16.msra.mxu0 %v4451
    %4510 = vmatprep.subr.bf16.mxu0 0
    %4511 = vmatpush1.bf16.msra.mxu0 %v4452
    %4512 = vmatprep.subr.bf16.mxu0 0
    %4513 = vmatpush1.bf16.msra.mxu0 %v4453
    %4514 = vmatprep.subr.bf16.mxu0 0
    %4515 = vmatpush1.bf16.msra.mxu0 %v4454
    %4516 = vmatprep.subr.bf16.mxu0 0
    %4517 = vmatpush1.bf16.msra.mxu0 %v4455
    %4518 = vmatprep.subr.bf16.mxu0 0
    %4519 = vmatpush1.bf16.msra.mxu0 %v4456
    %4520 = vmatprep.subr.bf16.mxu0 0
    %4521 = vmatpush1.bf16.msra.mxu0 %v4457
    %4522 = vmatprep.mubr.bf16.mxu0 %v3514
    %4523 = vmatmul.mubr.bf16.gmra.mrb[0].mxu0 %v3483
    %v4524 = vpop.f32.mrb[0].mxu0
    %v4525 = vadd.f32 0.0, %v4524
    %v4526 = vpop.f32.mrb[0].mxu0
    %v4527 = vpop.f32.mrb[0].mxu0
    %v4528 = vadd.f32 0.0, %v4527
    %v4529 = vpop.f32.mrb[0].mxu0
    %4530 = vmatprep.mubr.bf16.mxu0 %v3515
    %4531 = vmatmul.mubr.bf16.gmra.mrb[0].mxu0 %v3484
    %v4532 = vpop.f32.mrb[0].mxu0
    %v4533 = vadd.f32 0.0, %v4532
    %v4534 = vpop.f32.mrb[0].mxu0
    %v4535 = vpop.f32.mrb[0].mxu0
    %v4536 = vadd.f32 0.0, %v4535
    %v4537 = vpop.f32.mrb[0].mxu0
    %4538 = vmatprep.mubr.bf16.mxu0 %v3516
    %4539 = vmatmul.mubr.bf16.gmra.mrb[0].mxu0 %v3485
    %v4540 = vpop.f32.mrb[0].mxu0
    %v4541 = vadd.f32 0.0, %v4540
    %v4542 = vpop.f32.mrb[0].mxu0
    %v4543 = vpop.f32.mrb[0].mxu0
    %v4544 = vadd.f32 0.0, %v4543
    %v4545 = vpop.f32.mrb[0].mxu0
    %4546 = vmatprep.mubr.bf16.mxu0 %v4338
    %4547 = vmatmul.mubr.bf16.gmra.mrb[0].mxu0 %v4334
    %v4548 = vpop.f32.mrb[0].mxu0
    %v4549 = vadd.f32 0.0, %v4548
    %v4550 = vpop.f32.mrb[0].mxu0
    %v4551 = vpop.f32.mrb[0].mxu0
    %v4552 = vadd.f32 0.0, %v4551
    %v4553 = vpop.f32.mrb[0].mxu0
    %4554 = vmatprep.mubr.bf16.mxu0 %v3518
    %4555 = vmatmul.mubr.bf16.gmra.mrb[0].mxu0 %v3487
    %v4556 = vpop.f32.mrb[0].mxu0
    %v4557 = vadd.f32 0.0, %v4556
    %v4558 = vpop.f32.mrb[0].mxu0
    %v4559 = vpop.f32.mrb[0].mxu0
    %v4560 = vadd.f32 0.0, %v4559
    %v4561 = vpop.f32.mrb[0].mxu0
    %4562 = vmatprep.mubr.bf16.mxu0 %v3519
    %4563 = vmatmul.mubr.bf16.gmra.mrb[0].mxu0 %v3488
    %v4564 = vpop.f32.mrb[0].mxu0
    %v4565 = vadd.f32 0.0, %v4564
    %v4566 = vpop.f32.mrb[0].mxu0
    %v4567 = vpop.f32.mrb[0].mxu0
    %v4568 = vadd.f32 0.0, %v4567
    %v4569 = vpop.f32.mrb[0].mxu0
    %4570 = vmatprep.mubr.bf16.mxu0 %v3520
    %4571 = vmatmul.mubr.bf16.gmra.mrb[0].mxu0 %v3489
    %v4572 = vpop.f32.mrb[0].mxu0
    %v4573 = vadd.f32 0.0, %v4572
    %v4574 = vpop.f32.mrb[0].mxu0
    %v4575 = vpop.f32.mrb[0].mxu0
    %v4576 = vadd.f32 0.0, %v4575
    %v4577 = vpop.f32.mrb[0].mxu0
    %4578 = vmatprep.mubr.bf16.mxu0 %v4339
    %4579 = vmatmul.mubr.bf16.gmra.mrb[0].mxu0 %v4335
    %v4580 = vpop.f32.mrb[0].mxu0
    %v4581 = vadd.f32 0.0, %v4580
    %v4582 = vpop.f32.mrb[0].mxu0
    %v4583 = vpop.f32.mrb[0].mxu0
    %v4584 = vadd.f32 0.0, %v4583
    %v4585 = vpop.f32.mrb[0].mxu0
    %4586 = vdwg.mxu0
    %4587 = vmatprep.subr.bf16.mxu0 0
    %4588 = vmatpush1.bf16.msra.mxu0 %v4458
    %4589 = vmatprep.subr.bf16.mxu0 0
    %4590 = vmatpush1.bf16.msra.mxu0 %v4459
    %4591 = vmatprep.subr.bf16.mxu0 0
    %4592 = vmatpush1.bf16.msra.mxu0 %v4460
    %4593 = vmatprep.subr.bf16.mxu0 0
    %4594 = vmatpush1.bf16.msra.mxu0 %v4461
    %4595 = vmatprep.subr.bf16.mxu0 0
    %4596 = vmatpush1.bf16.msra.mxu0 %v4462
    %4597 = vmatprep.subr.bf16.mxu0 0
    %4598 = vmatpush1.bf16.msra.mxu0 %v4463
    %4599 = vmatprep.subr.bf16.mxu0 0
    %4600 = vmatpush1.bf16.msra.mxu0 %v4464
    %4601 = vmatprep.subr.bf16.mxu0 0
    %4602 = vmatpush1.bf16.msra.mxu0 %v4465
    %4603 = vmatprep.subr.bf16.mxu0 0
    %4604 = vmatpush1.bf16.msra.mxu0 0
    %4605 = vmatprep.subr.bf16.mxu0 0
    %4606 = vmatpush1.bf16.msra.mxu0 0
    %4607 = vmatprep.subr.bf16.mxu0 0
    %4608 = vmatpush1.bf16.msra.mxu0 0
    %4609 = vmatprep.subr.bf16.mxu0 0
    %4610 = vmatpush1.bf16.msra.mxu0 0
    %4611 = vmatprep.subr.bf16.mxu0 0
    %4612 = vmatpush1.bf16.msra.mxu0 0
    %4613 = vmatprep.subr.bf16.mxu0 0
    %4614 = vmatpush1.bf16.msra.mxu0 0
    %4615 = vmatprep.subr.bf16.mxu0 0
    %4616 = vmatpush1.bf16.msra.mxu0 0
    %4617 = vmatprep.subr.bf16.mxu0 0
    %4618 = vmatpush1.bf16.msra.mxu0 0
    %4619 = vmatprep.mubr.bf16.mxu0 0
    %4620 = vmatmul.mubr.bf16.gmra.mrb[0].mxu0 %v3545
    %v4621 = vpop.f32.mrb[0].mxu0
    %v4622 = vadd.f32 %v4525, %v4621
    %v4623 = vpop.f32.mrb[0].mxu0
    %v4624 = vpop.f32.mrb[0].mxu0
    %v4625 = vadd.f32 %v4528, %v4624
    %v4626 = vpop.f32.mrb[0].mxu0
    %4627 = vmatprep.mubr.bf16.mxu0 0
    %4628 = vmatmul.mubr.bf16.gmra.mrb[0].mxu0 %v3546
    %v4629 = vpop.f32.mrb[0].mxu0
    %v4630 = vadd.f32 %v4533, %v4629
    %v4631 = vpop.f32.mrb[0].mxu0
    %v4632 = vpop.f32.mrb[0].mxu0
    %v4633 = vadd.f32 %v4536, %v4632
    %v4634 = vpop.f32.mrb[0].mxu0
    %4635 = vmatprep.mubr.bf16.mxu0 0
    %4636 = vmatmul.mubr.bf16.gmra.mrb[0].mxu0 %v3547
    %v4637 = vpop.f32.mrb[0].mxu0
    %v4638 = vadd.f32 %v4541, %v4637
    %v4639 = vpop.f32.mrb[0].mxu0
    %v4640 = vpop.f32.mrb[0].mxu0
    %v4641 = vadd.f32 %v4544, %v4640
    %v4642 = vpop.f32.mrb[0].mxu0
    %4643 = vmatprep.mubr.bf16.mxu0 0
    %4644 = vmatmul.mubr.bf16.gmra.mrb[0].mxu0 %v4342
    %v4645 = vpop.f32.mrb[0].mxu0
    %v4646 = vadd.f32 %v4549, %v4645
    %v4647 = vpop.f32.mrb[0].mxu0
    %v4648 = vpop.f32.mrb[0].mxu0
    %v4649 = vadd.f32 %v4552, %v4648
    %v4650 = vpop.f32.mrb[0].mxu0
    %4651 = vmatprep.mubr.bf16.mxu0 0
    %4652 = vmatmul.mubr.bf16.gmra.mrb[0].mxu0 %v3549
    %v4653 = vpop.f32.mrb[0].mxu0
    %v4654 = vadd.f32 %v4557, %v4653
    %v4655 = vpop.f32.mrb[0].mxu0
    %v4656 = vpop.f32.mrb[0].mxu0
    %v4657 = vadd.f32 %v4560, %v4656
    %v4658 = vpop.f32.mrb[0].mxu0
    %4659 = vmatprep.mubr.bf16.mxu0 0
    %4660 = vmatmul.mubr.bf16.gmra.mrb[0].mxu0 %v3550
    %v4661 = vpop.f32.mrb[0].mxu0
    %v4662 = vadd.f32 %v4565, %v4661
    %v4663 = vpop.f32.mrb[0].mxu0
    %v4664 = vpop.f32.mrb[0].mxu0
    %v4665 = vadd.f32 %v4568, %v4664
    %v4666 = vpop.f32.mrb[0].mxu0
    %4667 = vmatprep.mubr.bf16.mxu0 0
    %4668 = vmatmul.mubr.bf16.gmra.mrb[0].mxu0 %v3551
    %v4669 = vpop.f32.mrb[0].mxu0
    %v4670 = vadd.f32 %v4573, %v4669
    %v4671 = vpop.f32.mrb[0].mxu0
    %v4672 = vpop.f32.mrb[0].mxu0
    %v4673 = vadd.f32 %v4576, %v4672
    %v4674 = vpop.f32.mrb[0].mxu0
    %4675 = vmatprep.mubr.bf16.mxu0 0
    %4676 = vmatmul.mubr.bf16.gmra.mrb[0].mxu0 %v4343
    %v4677 = vpop.f32.mrb[0].mxu0
    %v4678 = vadd.f32 %v4581, %v4677
    %v4679 = vpop.f32.mrb[0].mxu0
    %v4680 = vpop.f32.mrb[0].mxu0
    %v4681 = vadd.f32 %v4584, %v4680
    %v4682 = vpop.f32.mrb[0].mxu0
    %4683 = vdwg.mxu0
    %v4684 = vadd.f32 %v4272, %v4622
    %v4685 = vadd.f32 %v4275, %v4625
    %v4686 = vadd.f32 %v4280, %v4630
    %v4687 = vadd.f32 %v4283, %v4633
    %v4688 = vadd.f32 %v4288, %v4638
    %v4689 = vadd.f32 %v4291, %v4641
    %v4690 = vadd.f32 %v4296, %v4646
    %v4691 = vadd.f32 %v4299, %v4649
    %v4692 = vadd.f32 %v4304, %v4654
    %v4693 = vadd.f32 %v4307, %v4657
    %v4694 = vadd.f32 %v4312, %v4662
    %v4695 = vadd.f32 %v4315, %v4665
    %v4696 = vadd.f32 %v4320, %v4670
    %v4697 = vadd.f32 %v4323, %v4673
    %v4698 = vadd.f32 %v4328, %v4678
    %v4699 = vadd.f32 %v4331, %v4681
    %v4700 = vld [vmem:[%s5] sm:$0x1]
    %v4701 = vld [vmem:[%s6] sm:$0x1]
    %v4702 = vadd.f32 %v4684, %v4685
    %v4703 = vadd.f32 %v4702, %v4686
    %v4704 = vadd.f32 %v4703, %v4687
    %v4705 = vadd.f32 %v4704, %v4688
    %v4706 = vadd.f32 %v4705, %v4689
    %v4707 = vadd.f32 %v4706, %v4690
    %v4708 = vadd.f32 %v4707, %v4691
    %v4709 = vadd.f32 %v4708, %v4692
    %v4710 = vadd.f32 %v4709, %v4693
    %v4711 = vadd.f32 %v4710, %v4694
    %v4712 = vadd.f32 %v4711, %v4695
    %v4713 = vadd.f32 %v4712, %v4696
    %v4714 = vadd.f32 %v4713, %v4697
    %v4715 = vadd.f32 %v4714, %v4698
    %v4716 = vadd.f32 %v4715, %v4699
    %v4717 = vrot.slane %v4716, 4
    %v4718 = vadd.f32 %v4716, %v4717
    %v4719 = vrot.slane %v4718, 2
    %v4720 = vadd.f32 %v4718, %v4719
    %v4721 = vrot.slane %v4720, 1
    %v4722 = vadd.f32 %v4720, %v4721
    %v4723 = vmul.f32 %v4722, 0.0078125
    %v4724 = vmul.f32 %v4684, %v4684
    %v4725 = vmul.f32 %v4685, %v4685
    %v4726 = vmul.f32 %v4686, %v4686
    %v4727 = vmul.f32 %v4687, %v4687
    %v4728 = vmul.f32 %v4688, %v4688
    %v4729 = vmul.f32 %v4689, %v4689
    %v4730 = vmul.f32 %v4690, %v4690
    %v4731 = vmul.f32 %v4691, %v4691
    %v4732 = vmul.f32 %v4692, %v4692
    %v4733 = vmul.f32 %v4693, %v4693
    %v4734 = vmul.f32 %v4694, %v4694
    %v4735 = vmul.f32 %v4695, %v4695
    %v4736 = vmul.f32 %v4696, %v4696
    %v4737 = vmul.f32 %v4697, %v4697
    %v4738 = vmul.f32 %v4698, %v4698
    %v4739 = vmul.f32 %v4699, %v4699
    %v4740 = vadd.f32 %v4724, %v4725
    %v4741 = vadd.f32 %v4740, %v4726
    %v4742 = vadd.f32 %v4741, %v4727
    %v4743 = vadd.f32 %v4742, %v4728
    %v4744 = vadd.f32 %v4743, %v4729
    %v4745 = vadd.f32 %v4744, %v4730
    %v4746 = vadd.f32 %v4745, %v4731
    %v4747 = vadd.f32 %v4746, %v4732
    %v4748 = vadd.f32 %v4747, %v4733
    %v4749 = vadd.f32 %v4748, %v4734
    %v4750 = vadd.f32 %v4749, %v4735
    %v4751 = vadd.f32 %v4750, %v4736
    %v4752 = vadd.f32 %v4751, %v4737
    %v4753 = vadd.f32 %v4752, %v4738
    %v4754 = vadd.f32 %v4753, %v4739
    %v4755 = vrot.slane %v4754, 4
    %v4756 = vadd.f32 %v4754, %v4755
    %v4757 = vrot.slane %v4756, 2
    %v4758 = vadd.f32 %v4756, %v4757
    %v4759 = vrot.slane %v4758, 1
    %v4760 = vadd.f32 %v4758, %v4759
    %v4761 = vmul.f32 %v4760, 0.0078125
    %v4762 = vmul.f32 %v4723, %v4723
    %v4763 = vsub.f32 %v4761, %v4762
    %v4764 = vadd.f32 %v4763, 1e-05
    %v4765 = vrsqrt.pop %v4764
    %v4766 = vmul.f32 %v4700, %v4765
    %v4767 = vmul.f32 %v4723, %v4766
    %v4768 = vsub.f32 %v4701, %v4767
    %v4770 = vlaneseq
    %v4771 = vshrl.u32 %v4770, 7
    %v4772 = vsub.s32 0, %v4771
    %v4773 = vrot.slane %v4766, %v4772
    %v4775 = vmul.f32 %v4684, %v4773
    %v4776 = vmul.f32 %v4685, %v4773
    %v4777 = vmul.f32 %v4686, %v4773
    %v4778 = vmul.f32 %v4687, %v4773
    %v4779 = vmul.f32 %v4688, %v4773
    %v4780 = vmul.f32 %v4689, %v4773
    %v4781 = vmul.f32 %v4690, %v4773
    %v4782 = vmul.f32 %v4691, %v4773
    %v4783 = vmul.f32 %v4692, %v4773
    %v4784 = vmul.f32 %v4693, %v4773
    %v4785 = vmul.f32 %v4694, %v4773
    %v4786 = vmul.f32 %v4695, %v4773
    %v4787 = vmul.f32 %v4696, %v4773
    %v4788 = vmul.f32 %v4697, %v4773
    %v4789 = vmul.f32 %v4698, %v4773
    %v4790 = vmul.f32 %v4699, %v4773
    %v4792 = vlaneseq
    %v4793 = vshrl.u32 %v4792, 7
    %v4794 = vsub.s32 0, %v4793
    %v4795 = vrot.slane %v4768, %v4794
    %v4797 = vadd.f32 %v4775, %v4795
    %v4798 = vadd.f32 %v4776, %v4795
    %v4799 = vadd.f32 %v4777, %v4795
    %v4800 = vadd.f32 %v4778, %v4795
    %v4801 = vadd.f32 %v4779, %v4795
    %v4802 = vadd.f32 %v4780, %v4795
    %v4803 = vadd.f32 %v4781, %v4795
    %v4804 = vadd.f32 %v4782, %v4795
    %v4805 = vadd.f32 %v4783, %v4795
    %v4806 = vadd.f32 %v4784, %v4795
    %v4807 = vadd.f32 %v4785, %v4795
    %v4808 = vadd.f32 %v4786, %v4795
    %v4809 = vadd.f32 %v4787, %v4795
    %v4810 = vadd.f32 %v4788, %v4795
    %v4811 = vadd.f32 %v4789, %v4795
    %v4812 = vadd.f32 %v4790, %v4795
    %v4813 = vmax.f32 %v4797, 0.0
    %v4814 = vmax.f32 %v4798, 0.0
    %v4815 = vmax.f32 %v4799, 0.0
    %v4816 = vmax.f32 %v4800, 0.0
    %v4817 = vmax.f32 %v4801, 0.0
    %v4818 = vmax.f32 %v4802, 0.0
    %v4819 = vmax.f32 %v4803, 0.0
    %v4820 = vmax.f32 %v4804, 0.0
    %v4821 = vmax.f32 %v4805, 0.0
    %v4822 = vmax.f32 %v4806, 0.0
    %v4823 = vmax.f32 %v4807, 0.0
    %v4824 = vmax.f32 %v4808, 0.0
    %v4825 = vmax.f32 %v4809, 0.0
    %v4826 = vmax.f32 %v4810, 0.0
    %v4827 = vmax.f32 %v4811, 0.0
    %v4828 = vmax.f32 %v4812, 0.0
    %4829 = vst [vmem:[#allocation2] sm:$0xff] %v4813
    %4830 = vst [vmem:[#allocation2 + $0x8] sm:$0xff] %v4814
    %4831 = vst [vmem:[#allocation2 + $0x10] sm:$0xff] %v4815
    %4832 = vst [vmem:[#allocation2 + $0x18] sm:$0xff] %v4816
    %4833 = vst [vmem:[#allocation2 + $0x20] sm:$0xff] %v4817
    %4834 = vst [vmem:[#allocation2 + $0x28] sm:$0xff] %v4818
    %4835 = vst [vmem:[#allocation2 + $0x30] sm:$0xff] %v4819
    %4836 = vst [vmem:[#allocation2 + $0x38] sm:$0xff] %v4820
    %4837 = vst [vmem:[#allocation2 + $0x40] sm:$0xff] %v4821
    %4838 = vst [vmem:[#allocation2 + $0x48] sm:$0xff] %v4822
    %4839 = vst [vmem:[#allocation2 + $0x50] sm:$0xff] %v4823
    %4840 = vst [vmem:[#allocation2 + $0x58] sm:$0xff] %v4824
    %4841 = vst [vmem:[#allocation2 + $0x60] sm:$0xff] %v4825
    %4842 = vst [vmem:[#allocation2 + $0x68] sm:$0xff] %v4826
    %4843 = vst [vmem:[#allocation2 + $0x70] sm:$0xff] %v4827
    %4844 = vst [vmem:[#allocation2 + $0x78] sm:$0xff] %v4828
    // Predicated region
    $region30: #{up_forward.7} parent=1 // pred_check
      _
    $region31: #{up_forward.7} parent=1 // pred_check_branch
      %4846 = sbr.rel (0) target = $region33
    $region32: #{up_forward.7} parent=1 // pred_region
      %s4848 = ssub.s32 2048, 2048
      %4849 = vsyncadd [#allocation3], %s4848
      %s4850 = sshll.u32 [#allocation2], 4
      %s4851 = int_to_ptr.vmem [resolvable:$true] %s4850
      %4856 = dma.vmem_to_hbm [thread:$0]  %s4851, 2048, %s7, [#allocation3], 128, 128, 8
    $region33: #{up_forward.7} parent=1 // pred_fallthru
      _
    // Predicated region
    $region34: #{up_forward.7} parent=1 // pred_check
      _
    $region35: #{up_forward.7} parent=1 // pred_check_branch
      %4858 = sbr.rel (0) target = $region37
    $region36: #{up_forward.7} parent=1 // pred_region
      %4859 = dma.done [#allocation3], 2048
    $region37: #{up_forward.7} parent=1 // pred_fallthru
      _
    %4860 = vsyncpa [#allocation3], 1

</llo_original>
